<compile_context>
chip_gen: v7x
topology: tpu7x:2x2x1
jax: 0.10.0
libtpu: 0.0.40
codegen_flags: <defaults>
</compile_context>

<pallas_src>
import functools

import jax
import jax.numpy as jnp
from jax.experimental import pallas as pl
from jax.experimental.pallas import tpu as pltpu


def _round_up(x, m):
    return ((x + m - 1) // m) * m


# ----------------------------------------------------------------------------
# Pallas kernels
# ----------------------------------------------------------------------------
def _matmul_bias_act_kernel(a_ref, w_ref, b_ref, o_ref, *, apply_relu):
    """One grid step: o = act(a @ w + b). K is fully resident (no reduction axis)."""
    out = jnp.dot(a_ref[...], w_ref[...], preferred_element_type=jnp.float32)
    out = out + b_ref[...]                      # (1, Np) broadcasts over (tm, Np)
    if apply_relu:
        out = jnp.maximum(out, 0.0)
    o_ref[...] = out.astype(o_ref.dtype)


def _fc_head_kernel(x_ref, w1_ref, b1_ref, w2_ref, b2_ref, o_ref):
    """Fused FC1 (+ReLU) and FC2 in a single VMEM-resident invocation."""
    h = jnp.dot(x_ref[...], w1_ref[...], preferred_element_type=jnp.float32)
    h = jnp.maximum(h + b1_ref[...], 0.0)
    q = jnp.dot(h, w2_ref[...], preferred_element_type=jnp.float32) + b2_ref[...]
    o_ref[...] = q.astype(o_ref.dtype)


# ----------------------------------------------------------------------------
# Pallas wrappers
# ----------------------------------------------------------------------------
def matmul_bias_act(a, w_pad, b_pad, *, tm=512, apply_relu=True):
    """act(a @ w_pad + b_pad) with a collapsed-K Pallas kernel.

    a: (M, K) f32 activations (K <= Kp), w_pad: (Kp, Np) pre-padded weights,
    b_pad: (1, Np). Returns (Mp, Np); caller slices real rows / lanes.
    """
    M, K = a.shape
    Kp, Np = w_pad.shape

    tm = min(tm, _round_up(M, 8))
    Mp = _round_up(M, tm)

    if (Mp, Kp) != (M, K):
        a_p = jnp.zeros((Mp, Kp), jnp.float32).at[:M, :K].set(a.astype(jnp.float32))
    else:
        a_p = a.astype(jnp.float32)

    grid = (Mp // tm,)

    out = pl.pallas_call(
        functools.partial(_matmul_bias_act_kernel, apply_relu=apply_relu),
        out_shape=jax.ShapeDtypeStruct((Mp, Np), jnp.float32),
        grid_spec=pltpu.PrefetchScalarGridSpec(
            num_scalar_prefetch=0,
            grid=grid,
            in_specs=[
                pl.BlockSpec((tm, Kp), lambda i: (i, 0)),
                pl.BlockSpec((Kp, Np), lambda i: (0, 0)),
                pl.BlockSpec((1, Np), lambda i: (0, 0)),
            ],
            out_specs=pl.BlockSpec((tm, Np), lambda i: (i, 0)),
        ),
        compiler_params=pltpu.CompilerParams(
            dimension_semantics=("parallel",),
        ),
    )(a_p, w_pad, b_pad)
    return out


def fc_head(x, w1, b1, w2, b2):
    """Fused FC1+ReLU+FC2.  x: (N, 3136) -> (Mp, 128); real values at [:N, :4]."""
    M, K = x.shape
    Kp = w1.shape[0]
    Np = w2.shape[1]
    Mp = _round_up(M, 8)

    x_p = jnp.zeros((Mp, Kp), jnp.float32).at[:M, :K].set(x.astype(jnp.float32))

    out = pl.pallas_call(
        _fc_head_kernel,
        out_shape=jax.ShapeDtypeStruct((Mp, Np), jnp.float32),
        compiler_params=pltpu.CompilerParams(
            vmem_limit_bytes=40 * 1024 * 1024,  # whole FC1 weight lives in VMEM
        ),
    )(x_p, w1, b1, w2, b2)
    return out


# ----------------------------------------------------------------------------
# im2col (NHWC) — kept as an XLA gather, fused under the same jit as the kernels.
# TODO(synk): fuse patch extraction into the Pallas kernel with manual DMA gather.
# ----------------------------------------------------------------------------
def _im2col_nhwc(x, kh, kw, stride):
    """x: (N, H, W, C) -> patches (N*OH*OW, kh*kw*C), plus OH, OW."""
    N, H, W, C = x.shape
    OH = (H - kh) // stride + 1
    OW = (W - kw) // stride + 1
    rows = jnp.arange(OH)[:, None] * stride + jnp.arange(kh)[None, :]  # (OH, kh)
    cols = jnp.arange(OW)[:, None] * stride + jnp.arange(kw)[None, :]  # (OW, kw)
    # -> (N, OH, kh, OW, kw, C)
    patches = x[:, rows[:, :, None, None], cols[None, None, :, :], :]
    # -> (N, OH, OW, kh, kw, C)
    patches = patches.transpose(0, 1, 3, 2, 4, 5)
    return patches.reshape(N * OH * OW, kh * kw * C), OH, OW


def _conv2d_relu(x_nhwc, w_pad, b_pad, c_out, kh, kw, stride, tm):
    N = x_nhwc.shape[0]
    patches, OH, OW = _im2col_nhwc(x_nhwc, kh, kw, stride)
    out = matmul_bias_act(patches, w_pad, b_pad, tm=tm, apply_relu=True)
    return out[: N * OH * OW, :c_out].reshape(N, OH, OW, c_out)


# ----------------------------------------------------------------------------
# Parameters: PyTorch-like init + one-time padding/permutation for the kernels.
# ----------------------------------------------------------------------------
def init_dqn_params(key):
    ks = jax.random.split(key, 10)

    def u(k, shape, fan_in):
        bound = 1.0 / jnp.sqrt(fan_in)
        return jax.random.uniform(k, shape, jnp.float32, -bound, bound)

    return {
        "conv1_w": u(ks[0], (32, 4, 8, 8), 4 * 8 * 8),
        "conv1_b": u(ks[1], (32,), 4 * 8 * 8),
        "conv2_w": u(ks[2], (64, 32, 4, 4), 32 * 4 * 4),
        "conv2_b": u(ks[3], (64,), 32 * 4 * 4),
        "conv3_w": u(ks[4], (64, 64, 3, 3), 64 * 3 * 3),
        "conv3_b": u(ks[5], (64,), 64 * 3 * 3),
        "fc1_w": u(ks[6], (7 * 7 * 64, 512), 7 * 7 * 64),
        "fc1_b": u(ks[7], (512,), 7 * 7 * 64),
        "fc2_w": u(ks[8], (512, 4), 512),
        "fc2_b": u(ks[9], (4,), 512),
    }


def prepare_params(params):
    """One-time padding / reordering of weights so the forward pass never pads them."""

    def prep_conv(w, b):
        O, C, kh, kw = w.shape
        K = kh * kw * C
        Kp = _round_up(K, 128)
        Np = _round_up(O, 128)
        # (O, C, kh, kw) -> rows ordered (kh, kw, C) to match NHWC im2col patches.
        w_mat = jnp.transpose(w, (2, 3, 1, 0)).reshape(K, O).astype(jnp.float32)
        w_p = jnp.zeros((Kp, Np), jnp.float32).at[:K, :O].set(w_mat)
        b_p = jnp.zeros((1, Np), jnp.float32).at[0, :O].set(b.astype(jnp.float32))
        return w_p, b_p

    c1w, c1b = prep_conv(params["conv1_w"], params["conv1_b"])
    c2w, c2b = prep_conv(params["conv2_w"], params["conv2_b"])
    c3w, c3b = prep_conv(params["conv3_w"], params["conv3_b"])

    # FC1 rows were laid out for NCHW flatten (c, h, w); permute to NHWC flatten
    # (h, w, c) so the conv3 output feeds it with no transpose, then pad K to 3200.
    w1 = params["fc1_w"].astype(jnp.float32)                     # (3136, 512)
    w1 = w1.reshape(64, 7, 7, 512).transpose(1, 2, 0, 3).reshape(3136, 512)
    K1p = _round_up(3136, 128)                                    # 3200
    fc1_w = jnp.zeros((K1p, 512), jnp.float32).at[:3136].set(w1)
    fc1_b = params["fc1_b"].astype(jnp.float32).reshape(1, 512)

    fc2_w = jnp.zeros((512, 128), jnp.float32).at[:, :4].set(
        params["fc2_w"].astype(jnp.float32))
    fc2_b = jnp.zeros((1, 128), jnp.float32).at[0, :4].set(
        params["fc2_b"].astype(jnp.float32))

    return {
        "c1_w": c1w, "c1_b": c1b,
        "c2_w": c2w, "c2_b": c2b,
        "c3_w": c3w, "c3_b": c3b,
        "fc1_w": fc1_w, "fc1_b": fc1_b,
        "fc2_w": fc2_w, "fc2_b": fc2_b,
    }


# ----------------------------------------------------------------------------
# Forward pass (whole thing under one jit so im2col/pads fuse with the kernels).
# ----------------------------------------------------------------------------
def dqn_forward(prepared, x):
    """x: (N, 4, 84, 84) NCHW float32 -> (N, 4) Q-values."""
    x = jnp.transpose(x.astype(jnp.float32), (0, 2, 3, 1))        # NCHW -> NHWC
    N = x.shape[0]

    x = _conv2d_relu(x, prepared["c1_w"], prepared["c1_b"], 32, 8, 8, 4, tm=400)
    x = _conv2d_relu(x, prepared["c2_w"], prepared["c2_b"], 64, 4, 4, 2, tm=512)
    x = _conv2d_relu(x, prepared["c3_w"], prepared["c3_b"], 64, 3, 3, 1, tm=512)

    x = x.reshape(N, -1)                                          # (N, 3136) NHWC order
    q = fc_head(x, prepared["fc1_w"], prepared["fc1_b"],
                prepared["fc2_w"], prepared["fc2_b"])
    return q[:N, :4]


# Pure-JAX reference (PyTorch semantics) for sanity checking the Pallas path.
def dqn_forward_ref(params, x):
    def conv(x, w, b, s):
        y = jax.lax.conv_general_dilated(
            x, w, window_strides=(s, s), padding="VALID",
            dimension_numbers=("NCHW", "OIHW", "NCHW"))
        return jax.nn.relu(y + b[None, :, None, None])

    x = conv(x, params["conv1_w"], params["conv1_b"], 4)
    x = conv(x, params["conv2_w"], params["conv2_b"], 2)
    x = conv(x, params["conv3_w"], params["conv3_b"], 1)
    x = x.reshape(-1, 7 * 7 * 64)
    x = jax.nn.relu(x @ params["fc1_w"] + params["fc1_b"])
    return x @ params["fc2_w"] + params["fc2_b"]


if __name__ == "__main__":
    key = jax.random.PRNGKey(0)
    k_param, k_x = jax.random.split(key)

    params = init_dqn_params(k_param)
    prepared = prepare_params(params)          # one-time padding/permutation
    # DQN's flatten to 7*7*64 implies 84x84 spatial input; keep batch small.
    x = jax.random.uniform(k_x, (2, 4, 84, 84), jnp.float32)

    fwd = jax.jit(dqn_forward)
    out = jax.block_until_ready(fwd(prepared, x))
    assert out.shape == (2, 4), out.shape

    ref = jax.block_until_ready(dqn_forward_ref(params, x))
    assert jnp.allclose(out, ref, rtol=1e-3, atol=1e-3), (
        "Pallas output mismatch vs reference")

    print("KERNEL_OK")
</pallas_src>

<mosaic_0001>
module attributes {stable_mosaic.version = 11 : i64} {
  func.func @_matmul_bias_act_kernel(%arg0: i32, %arg1: memref<400x256xf32, #tpu.memory_space<vmem>>, %arg2: memref<256x128xf32, #tpu.memory_space<vmem>>, %arg3: memref<1x128xf32, #tpu.memory_space<vmem>>, %arg4: memref<400x128xf32, #tpu.memory_space<vmem>>) attributes {dimension_semantics = [#tpu.dimension_semantics<parallel>], iteration_bounds = array<i64: 2>, scalar_prefetch = 0 : i64, scratch_operands = 0 : i64, tpu.core_type = #tpu.core_type<tc>, window_params = [{transform_indices = @transform_0, window_bounds = array<i64: 400, 256>}, {pipeline_mode = #tpu.pipeline_mode<synchronous>, transform_indices = @transform_1, window_bounds = array<i64: 256, 128>}, {pipeline_mode = #tpu.pipeline_mode<synchronous>, transform_indices = @transform_2, window_bounds = array<i64: 1, 128>}, {transform_indices = @transform_3, window_bounds = array<i64: 400, 128>}]} {
    %c0 = arith.constant 0 : index
    %c0_0 = arith.constant 0 : index
    %0 = vector.load %arg1[%c0, %c0_0] : memref<400x256xf32, #tpu.memory_space<vmem>>, vector<400x256xf32>
    %c0_1 = arith.constant 0 : index
    %c0_2 = arith.constant 0 : index
    %1 = vector.load %arg2[%c0_1, %c0_2] : memref<256x128xf32, #tpu.memory_space<vmem>>, vector<256x128xf32>
    %cst = arith.constant dense<0.000000e+00> : vector<400x128xf32>
    %2 = tpu.matmul %0, %1, %cst {dimension_numbers = #tpu.dot_dimension_numbers<[1], [0], [0], [1], [0, 0, 1, 1], [], []>} : vector<400x256xf32>, vector<256x128xf32>, vector<400x128xf32> -> vector<400x128xf32>
    %c0_3 = arith.constant 0 : index
    %c0_4 = arith.constant 0 : index
    %3 = vector.load %arg3[%c0_3, %c0_4] : memref<1x128xf32, #tpu.memory_space<vmem>>, vector<1x128xf32>
    %4 = vector.broadcast %3 : vector<1x128xf32> to vector<400x128xf32>
    %5 = arith.addf %2, %4 : vector<400x128xf32>
    %cst_5 = arith.constant 0.000000e+00 : f32
    %6 = vector.broadcast %cst_5 : f32 to vector<400x128xf32>
    %7 = arith.maximumf %5, %6 : vector<400x128xf32>
    %c0_6 = arith.constant 0 : index
    %c0_7 = arith.constant 0 : index
    %8 = vector.load %arg4[%c0_6, %c0_7] : memref<400x128xf32, #tpu.memory_space<vmem>>, vector<400x128xf32>
    tpu.vector_store %arg4[%c0_6, %c0_7], %7 {strides = array<i32>} : memref<400x128xf32, #tpu.memory_space<vmem>>, vector<400x128xf32>,
    return
  }
  func.func @transform_0(%arg0: i32) -> (i32, i32) {
    %c0_i32 = arith.constant 0 : i32
    %c0_i32_0 = arith.constant 0 : i32
    return %arg0, %c0_i32 : i32, i32
  }
  func.func @transform_1(%arg0: i32) -> (i32, i32) {
    %c0_i32 = arith.constant 0 : i32
    %c0_i32_0 = arith.constant 0 : i32
    %c0_i32_1 = arith.constant 0 : i32
    return %c0_i32, %c0_i32_0 : i32, i32
  }
  func.func @transform_2(%arg0: i32) -> (i32, i32) {
    %c0_i32 = arith.constant 0 : i32
    %c0_i32_0 = arith.constant 0 : i32
    %c0_i32_1 = arith.constant 0 : i32
    return %c0_i32, %c0_i32_0 : i32, i32
  }
  func.func @transform_3(%arg0: i32) -> (i32, i32) {
    %c0_i32 = arith.constant 0 : i32
    %c0_i32_0 = arith.constant 0 : i32
    return %arg0, %c0_i32 : i32, i32
  }
}

module attributes {stable_mosaic.version = 11 : i64} {
  func.func @_matmul_bias_act_kernel(%arg0: i32, %arg1: memref<168x512xf32, #tpu.memory_space<vmem>>, %arg2: memref<512x128xf32, #tpu.memory_space<vmem>>, %arg3: memref<1x128xf32, #tpu.memory_space<vmem>>, %arg4: memref<168x128xf32, #tpu.memory_space<vmem>>) attributes {dimension_semantics = [#tpu.dimension_semantics<parallel>], iteration_bounds = array<i64: 1>, scalar_prefetch = 0 : i64, scratch_operands = 0 : i64, tpu.core_type = #tpu.core_type<tc>, window_params = [{transform_indices = @transform_0, window_bounds = array<i64: 168, 512>}, {pipeline_mode = #tpu.pipeline_mode<synchronous>, transform_indices = @transform_1, window_bounds = array<i64: 512, 128>}, {pipeline_mode = #tpu.pipeline_mode<synchronous>, transform_indices = @transform_2, window_bounds = array<i64: 1, 128>}, {transform_indices = @transform_3, window_bounds = array<i64: 168, 128>}]} {
    %c0 = arith.constant 0 : index
    %c0_0 = arith.constant 0 : index
    %0 = vector.load %arg1[%c0, %c0_0] : memref<168x512xf32, #tpu.memory_space<vmem>>, vector<168x512xf32>
    %c0_1 = arith.constant 0 : index
    %c0_2 = arith.constant 0 : index
    %1 = vector.load %arg2[%c0_1, %c0_2] : memref<512x128xf32, #tpu.memory_space<vmem>>, vector<512x128xf32>
    %cst = arith.constant dense<0.000000e+00> : vector<168x128xf32>
    %2 = tpu.matmul %0, %1, %cst {dimension_numbers = #tpu.dot_dimension_numbers<[1], [0], [0], [1], [0, 0, 1, 1], [], []>} : vector<168x512xf32>, vector<512x128xf32>, vector<168x128xf32> -> vector<168x128xf32>
    %c0_3 = arith.constant 0 : index
    %c0_4 = arith.constant 0 : index
    %3 = vector.load %arg3[%c0_3, %c0_4] : memref<1x128xf32, #tpu.memory_space<vmem>>, vector<1x128xf32>
    %4 = vector.broadcast %3 : vector<1x128xf32> to vector<168x128xf32>
    %5 = arith.addf %2, %4 : vector<168x128xf32>
    %cst_5 = arith.constant 0.000000e+00 : f32
    %6 = vector.broadcast %cst_5 : f32 to vector<168x128xf32>
    %7 = arith.maximumf %5, %6 : vector<168x128xf32>
    %c0_6 = arith.constant 0 : index
    %c0_7 = arith.constant 0 : index
    %8 = vector.load %arg4[%c0_6, %c0_7] : memref<168x128xf32, #tpu.memory_space<vmem>>, vector<168x128xf32>
    tpu.vector_store %arg4[%c0_6, %c0_7], %7 {strides = array<i32>} : memref<168x128xf32, #tpu.memory_space<vmem>>, vector<168x128xf32>,
    return
  }
  func.func @transform_0(%arg0: i32) -> (i32, i32) {
    %c0_i32 = arith.constant 0 : i32
    %c0_i32_0 = arith.constant 0 : i32
    return %arg0, %c0_i32 : i32, i32
  }
  func.func @transform_1(%arg0: i32) -> (i32, i32) {
    %c0_i32 = arith.constant 0 : i32
    %c0_i32_0 = arith.constant 0 : i32
    %c0_i32_1 = arith.constant 0 : i32
    return %c0_i32, %c0_i32_0 : i32, i32
  }
  func.func @transform_2(%arg0: i32) -> (i32, i32) {
    %c0_i32 = arith.constant 0 : i32
    %c0_i32_0 = arith.constant 0 : i32
    %c0_i32_1 = arith.constant 0 : i32
    return %c0_i32, %c0_i32_0 : i32, i32
  }
  func.func @transform_3(%arg0: i32) -> (i32, i32) {
    %c0_i32 = arith.constant 0 : i32
    %c0_i32_0 = arith.constant 0 : i32
    return %arg0, %c0_i32 : i32, i32
  }
}

module attributes {stable_mosaic.version = 11 : i64} {
  func.func @_matmul_bias_act_kernel(%arg0: i32, %arg1: memref<104x640xf32, #tpu.memory_space<vmem>>, %arg2: memref<640x128xf32, #tpu.memory_space<vmem>>, %arg3: memref<1x128xf32, #tpu.memory_space<vmem>>, %arg4: memref<104x128xf32, #tpu.memory_space<vmem>>) attributes {dimension_semantics = [#tpu.dimension_semantics<parallel>], iteration_bounds = array<i64: 1>, scalar_prefetch = 0 : i64, scratch_operands = 0 : i64, tpu.core_type = #tpu.core_type<tc>, window_params = [{transform_indices = @transform_0, window_bounds = array<i64: 104, 640>}, {pipeline_mode = #tpu.pipeline_mode<synchronous>, transform_indices = @transform_1, window_bounds = array<i64: 640, 128>}, {pipeline_mode = #tpu.pipeline_mode<synchronous>, transform_indices = @transform_2, window_bounds = array<i64: 1, 128>}, {transform_indices = @transform_3, window_bounds = array<i64: 104, 128>}]} {
    %c0 = arith.constant 0 : index
    %c0_0 = arith.constant 0 : index
    %0 = vector.load %arg1[%c0, %c0_0] : memref<104x640xf32, #tpu.memory_space<vmem>>, vector<104x640xf32>
    %c0_1 = arith.constant 0 : index
    %c0_2 = arith.constant 0 : index
    %1 = vector.load %arg2[%c0_1, %c0_2] : memref<640x128xf32, #tpu.memory_space<vmem>>, vector<640x128xf32>
    %cst = arith.constant dense<0.000000e+00> : vector<104x128xf32>
    %2 = tpu.matmul %0, %1, %cst {dimension_numbers = #tpu.dot_dimension_numbers<[1], [0], [0], [1], [0, 0, 1, 1], [], []>} : vector<104x640xf32>, vector<640x128xf32>, vector<104x128xf32> -> vector<104x128xf32>
    %c0_3 = arith.constant 0 : index
    %c0_4 = arith.constant 0 : index
    %3 = vector.load %arg3[%c0_3, %c0_4] : memref<1x128xf32, #tpu.memory_space<vmem>>, vector<1x128xf32>
    %4 = vector.broadcast %3 : vector<1x128xf32> to vector<104x128xf32>
    %5 = arith.addf %2, %4 : vector<104x128xf32>
    %cst_5 = arith.constant 0.000000e+00 : f32
    %6 = vector.broadcast %cst_5 : f32 to vector<104x128xf32>
    %7 = arith.maximumf %5, %6 : vector<104x128xf32>
    %c0_6 = arith.constant 0 : index
    %c0_7 = arith.constant 0 : index
    %8 = vector.load %arg4[%c0_6, %c0_7] : memref<104x128xf32, #tpu.memory_space<vmem>>, vector<104x128xf32>
    tpu.vector_store %arg4[%c0_6, %c0_7], %7 {strides = array<i32>} : memref<104x128xf32, #tpu.memory_space<vmem>>, vector<104x128xf32>,
    return
  }
  func.func @transform_0(%arg0: i32) -> (i32, i32) {
    %c0_i32 = arith.constant 0 : i32
    %c0_i32_0 = arith.constant 0 : i32
    return %arg0, %c0_i32 : i32, i32
  }
  func.func @transform_1(%arg0: i32) -> (i32, i32) {
    %c0_i32 = arith.constant 0 : i32
    %c0_i32_0 = arith.constant 0 : i32
    %c0_i32_1 = arith.constant 0 : i32
    return %c0_i32, %c0_i32_0 : i32, i32
  }
  func.func @transform_2(%arg0: i32) -> (i32, i32) {
    %c0_i32 = arith.constant 0 : i32
    %c0_i32_0 = arith.constant 0 : i32
    %c0_i32_1 = arith.constant 0 : i32
    return %c0_i32, %c0_i32_0 : i32, i32
  }
  func.func @transform_3(%arg0: i32) -> (i32, i32) {
    %c0_i32 = arith.constant 0 : i32
    %c0_i32_0 = arith.constant 0 : i32
    return %arg0, %c0_i32 : i32, i32
  }
}

module attributes {stable_mosaic.version = 11 : i64} {
  func.func @_fc_head_kernel(%arg0: memref<8x3200xf32, #tpu.memory_space<vmem>>, %arg1: memref<3200x512xf32, #tpu.memory_space<vmem>>, %arg2: memref<1x512xf32, #tpu.memory_space<vmem>>, %arg3: memref<512x128xf32, #tpu.memory_space<vmem>>, %arg4: memref<1x128xf32, #tpu.memory_space<vmem>>, %arg5: memref<8x128xf32, #tpu.memory_space<vmem>>) attributes {dimension_semantics = [], scalar_prefetch = 0 : i64, scratch_operands = 0 : i64, tpu.core_type = #tpu.core_type<tc>} {
    %c0 = arith.constant 0 : index
    %c0_0 = arith.constant 0 : index
    %0 = vector.load %arg0[%c0, %c0_0] : memref<8x3200xf32, #tpu.memory_space<vmem>>, vector<8x3200xf32>
    %c0_1 = arith.constant 0 : index
    %c0_2 = arith.constant 0 : index
    %1 = vector.load %arg1[%c0_1, %c0_2] : memref<3200x512xf32, #tpu.memory_space<vmem>>, vector<3200x512xf32>
    %cst = arith.constant dense<0.000000e+00> : vector<8x512xf32>
    %2 = tpu.matmul %0, %1, %cst {dimension_numbers = #tpu.dot_dimension_numbers<[1], [0], [0], [1], [0, 0, 1, 1], [], []>} : vector<8x3200xf32>, vector<3200x512xf32>, vector<8x512xf32> -> vector<8x512xf32>
    %c0_3 = arith.constant 0 : index
    %c0_4 = arith.constant 0 : index
    %3 = vector.load %arg2[%c0_3, %c0_4] : memref<1x512xf32, #tpu.memory_space<vmem>>, vector<1x512xf32>
    %4 = vector.broadcast %3 : vector<1x512xf32> to vector<8x512xf32>
    %5 = arith.addf %2, %4 : vector<8x512xf32>
    %cst_5 = arith.constant 0.000000e+00 : f32
    %6 = vector.broadcast %cst_5 : f32 to vector<8x512xf32>
    %7 = arith.maximumf %5, %6 : vector<8x512xf32>
    %c0_6 = arith.constant 0 : index
    %c0_7 = arith.constant 0 : index
    %8 = vector.load %arg3[%c0_6, %c0_7] : memref<512x128xf32, #tpu.memory_space<vmem>>, vector<512x128xf32>
    %cst_8 = arith.constant dense<0.000000e+00> : vector<8x128xf32>
    %9 = tpu.matmul %7, %8, %cst_8 {dimension_numbers = #tpu.dot_dimension_numbers<[1], [0], [0], [1], [0, 0, 1, 1], [], []>} : vector<8x512xf32>, vector<512x128xf32>, vector<8x128xf32> -> vector<8x128xf32>
    %c0_9 = arith.constant 0 : index
    %c0_10 = arith.constant 0 : index
    %10 = vector.load %arg4[%c0_9, %c0_10] : memref<1x128xf32, #tpu.memory_space<vmem>>, vector<1x128xf32>
    %11 = vector.broadcast %10 : vector<1x128xf32> to vector<8x128xf32>
    %12 = arith.addf %9, %11 : vector<8x128xf32>
    %c0_11 = arith.constant 0 : index
    %c0_12 = arith.constant 0 : index
    %13 = vector.load %arg5[%c0_11, %c0_12] : memref<8x128xf32, #tpu.memory_space<vmem>>, vector<8x128xf32>
    tpu.vector_store %arg5[%c0_11, %c0_12], %12 {strides = array<i32>} : memref<8x128xf32, #tpu.memory_space<vmem>>, vector<8x128xf32>,
    return
  }
}

</mosaic_0001>

<llo_original>
// kernel: dqn_forward.4
$region0: #{dqn_forward.4}
  #allocation0 [shape = 'u32[]', space=smem, size = 0x4, offset = 0x4, fixed_abs, tag = 'smem constant byte address 0x4 - core index']
  #allocation1 [shape = 'u32[144,128]{1,0:T(1,128)}', space=vmem, size = 0x12000, scoped, tag = 'internal scratch']
  %s0 = inlined_call_operand.vmem [shape: f32[800,256], index: 0, kind: input, shape index: {}]
  %s1 = inlined_call_operand.hbm [shape: f32[256,128], index: 1, kind: input, shape index: {}]
  %s2 = inlined_call_operand.vmem [shape: f32[1,128], index: 2, kind: input, shape index: {}]
  %s3 = inlined_call_operand.vmem [shape: f32[800,128], index: 3, kind: output, shape index: {}]
  %s4 = sld [smem:[#allocation0]]
  $region49: #{dqn_forward.4} parent=0
    _
  %s6 = ssub.s32 1, %s4
  %s7 = scalar_select 0, %s6, %s4
  $region1: #{dqn_forward.4} parent=0
    #allocation2 [shape = 'u8[131072]{0}', space=vmem, size = 0x20000, scoped, tag = 'input window, operand 1, single buffered']
    #allocation3 [shape = 's32[2]{0}', space=sflag, size = 0x8, scoped, tag = 'scoped memory for dqn_forward.4']
    %8 = vsyncpa [#allocation3], 0
    loop: start=0, step=1, limit=4
    $region2: #{dqn_forward.4} parent=1 // loop_pre_header
      _
    $region3: #{dqn_forward.4} parent=1 // loop_header
      %s10 = sphi 0, %s14
      %p11 = scmp.ge.s32.totalorder %s10, 4
      %s20 = sphi 0, %s22
      %s23 = sphi 0, %s20
      %s24 = sphi 0, %s23
      %s40 = sphi 0, %s24
      %s44 = sphi 0, %s44
      %s46 = sphi 0, %s44
      %s47 = sphi 0, %s46
      %s61 = sphi 0, %s47
      %s65 = sphi 0, %s65
      %s67 = sphi 0, %s65
      %s68 = sphi 0, %s67
      %s82 = sphi 0, %s68
      %s88 = sphi 0, %s90
      %s91 = sphi 0, %s88
      %s92 = sphi 0, %s91
      %s108 = sphi 0, %s92
    $region4: #{dqn_forward.4} parent=1 // loop_header_branch
      %13 = sbr.rel (%p11) target = $region8
    $region5: #{dqn_forward.4} parent=1 // loop_body
      %s15 = ssub.s32 %s10, 1
      %s16 = ssub.s32 %s10, 2
      %s17 = sadd.s32 %s10, 1
      %s18 = ssub.s32 %s10, %s17
      %p19 = scmp.eq.s32.totalorder %s18, 0
      %s21 = sadd.s32 %s20, 1
      %s22 = scalar_select %p19, %s20, %s21
      %p25 = pneg %p19
      %p26 = scmp.eq.s32.totalorder %s10, 1
      %p27 = por %p25, %p26
      %p28 = scmp.ne.s32.totalorder %s20, %s23
      %p29 = scmp.eq.s32.totalorder %s10, 0
      %p30 = por %p28, %p29
      %p31 = scmp.ne.s32.totalorder %s20, %s23
      %p32 = scmp.eq.s32.totalorder %s15, 1
      %p33 = por %p31, %p32
      %p34 = scmp.ne.s32.totalorder %s23, %s24
      %p35 = scmp.eq.s32.totalorder %s15, 0
      %p36 = por %p34, %p35
      %p37 = scmp.ne.s32.totalorder %s23, %s24
      %p38 = scmp.eq.s32.totalorder %s16, 1
      %p39 = por %p37, %p38
      %p41 = scmp.ne.s32.totalorder %s24, %s40
      %p42 = scmp.eq.s32.totalorder %s16, 0
      %p43 = por %p41, %p42
      %s45 = sadd.s32 %s44, 1
      %p48 = scmp.eq.s32.totalorder %s10, 1
      %p49 = scmp.ne.s32.totalorder %s44, %s46
      %p50 = scmp.eq.s32.totalorder %s10, 0
      %p51 = por %p49, %p50
      %p52 = scmp.ne.s32.totalorder %s44, %s46
      %p53 = scmp.eq.s32.totalorder %s15, 1
      %p54 = por %p52, %p53
      %p55 = scmp.ne.s32.totalorder %s46, %s47
      %p56 = scmp.eq.s32.totalorder %s15, 0
      %p57 = por %p55, %p56
      %p58 = scmp.ne.s32.totalorder %s46, %s47
      %p59 = scmp.eq.s32.totalorder %s16, 1
      %p60 = por %p58, %p59
      %p62 = scmp.ne.s32.totalorder %s47, %s61
      %p63 = scmp.eq.s32.totalorder %s16, 0
      %p64 = por %p62, %p63
      %s66 = sadd.s32 %s65, 1
      %p69 = scmp.eq.s32.totalorder %s10, 1
      %p70 = scmp.ne.s32.totalorder %s65, %s67
      %p71 = scmp.eq.s32.totalorder %s10, 0
      %p72 = por %p70, %p71
      %p73 = scmp.ne.s32.totalorder %s65, %s67
      %p74 = scmp.eq.s32.totalorder %s15, 1
      %p75 = por %p73, %p74
      %p76 = scmp.ne.s32.totalorder %s67, %s68
      %p77 = scmp.eq.s32.totalorder %s15, 0
      %p78 = por %p76, %p77
      %p79 = scmp.ne.s32.totalorder %s67, %s68
      %p80 = scmp.eq.s32.totalorder %s16, 1
      %p81 = por %p79, %p80
      %p83 = scmp.ne.s32.totalorder %s68, %s82
      %p84 = scmp.eq.s32.totalorder %s16, 0
      %p85 = por %p83, %p84
      %s86 = ssub.s32 %s10, %s17
      %p87 = scmp.eq.s32.totalorder %s86, 0
      %s89 = sadd.s32 %s88, 1
      %s90 = scalar_select %p87, %s88, %s89
      %p93 = pneg %p87
      %p94 = scmp.eq.s32.totalorder %s10, 1
      %p95 = por %p93, %p94
      %p96 = scmp.ne.s32.totalorder %s88, %s91
      %p97 = scmp.eq.s32.totalorder %s10, 0
      %p98 = por %p96, %p97
      %p99 = scmp.ne.s32.totalorder %s88, %s91
      %p100 = scmp.eq.s32.totalorder %s15, 1
      %p101 = por %p99, %p100
      %p102 = scmp.ne.s32.totalorder %s91, %s92
      %p103 = scmp.eq.s32.totalorder %s15, 0
      %p104 = por %p102, %p103
      %p105 = scmp.ne.s32.totalorder %s91, %s92
      %p106 = scmp.eq.s32.totalorder %s16, 1
      %p107 = por %p105, %p106
      %p109 = scmp.ne.s32.totalorder %s92, %s108
      %p110 = scmp.eq.s32.totalorder %s16, 0
      %p111 = por %p109, %p110
      %p112 = scmp.le.s32.totalorder 1, %s10
      %p113 = scmp.lt.s32.totalorder %s10, 3
      %p114 = pnand %p112, %p113
      %p115 = pneg %p114
      // Predicated region
      $region9: #{dqn_forward.4} parent=5 // pred_check
        _
      $region10: #{dqn_forward.4} parent=5 // pred_check_branch
        %117 = sbr.rel (%p114) target = $region12
      $region11: #{dqn_forward.4} parent=5 // pred_region
        %s118 = ssub.s32 %s10, 1
        // Predicated region
        $region13: #{dqn_forward.4} parent=11 // pred_check
          %p119 = pneg %p57
        $region14: #{dqn_forward.4} parent=11 // pred_check_branch
          %121 = sbr.rel (%p119) target = $region16
        $region15: #{dqn_forward.4} parent=11 // pred_region
          %s123 = ssub.s32 4096, 4096
          %124 = vsyncadd [#allocation3], %s123
          %s125 = sshll.u32 [#allocation2], 4
          %s126 = int_to_ptr.vmem [resolvable:$true] %s125
          %131 = dma.hbm_to_vmem [thread:$0]  %s1, 4096, %s126, [#allocation3], 128, 128, 8
        $region16: #{dqn_forward.4} parent=11 // pred_fallthru
          _
        // Predicated region
        $region17: #{dqn_forward.4} parent=11 // pred_check
          %p132 = pneg %p78
        $region18: #{dqn_forward.4} parent=11 // pred_check_branch
          %134 = sbr.rel (%p132) target = $region20
        $region19: #{dqn_forward.4} parent=11 // pred_region
          _
        $region20: #{dqn_forward.4} parent=11 // pred_fallthru
          _
      $region12: #{dqn_forward.4} parent=5 // pred_fallthru
        _
      %p135 = scmp.lt.s32.totalorder %s10, 2
      // Predicated region
      $region21: #{dqn_forward.4} parent=5 // pred_check
        %p136 = pneg %p135
      $region22: #{dqn_forward.4} parent=5 // pred_check_branch
        %138 = sbr.rel (%p136) target = $region24
      $region23: #{dqn_forward.4} parent=5 // pred_region
        // Predicated region
        $region25: #{dqn_forward.4} parent=23 // pred_check
          %p139 = pneg %p30
        $region26: #{dqn_forward.4} parent=23 // pred_check_branch
          %141 = sbr.rel (%p139) target = $region28
        $region27: #{dqn_forward.4} parent=23 // pred_region
          %s142 = smul.u32 50, %s10
          %p143 = scmp.lt.s32.totalorder %s142, 99
          %s144 = scalar_select %p143, %s142, 99
          %s145 = smul.addr %s144, 2
          %s146 = smul.addr %s145, 8
          %s147 = scalar_lea.vmem %s0, %s146
          %s148 = smul.u32 50, %s10
        $region28: #{dqn_forward.4} parent=23 // pred_fallthru
          _
      $region24: #{dqn_forward.4} parent=5 // pred_fallthru
        _
      %p149 = scmp.le.s32.totalorder 1, %s10
      %p150 = scmp.lt.s32.totalorder %s10, 3
      %p151 = pnand %p149, %p150
      %p152 = pneg %p151
      // Predicated region
      $region29: #{dqn_forward.4} parent=5 // pred_check
        _
      $region30: #{dqn_forward.4} parent=5 // pred_check_branch
        %154 = sbr.rel (%p151) target = $region32
      $region31: #{dqn_forward.4} parent=5 // pred_region
        %s155 = ssub.s32 %s10, 1
        // Predicated region
        $region33: #{dqn_forward.4} parent=31 // pred_check
          %p156 = pneg %p57
        $region34: #{dqn_forward.4} parent=31 // pred_check_branch
          %158 = sbr.rel (%p156) target = $region36
        $region35: #{dqn_forward.4} parent=31 // pred_region
          %159 = dma.done [#allocation3], 4096
        $region36: #{dqn_forward.4} parent=31 // pred_fallthru
          _
        %s160 = smul.u32 50, %s15
        %p161 = scmp.lt.s32.totalorder %s160, 99
        %s162 = scalar_select %p161, %s160, 99
        %s163 = smul.addr %s162, 2
        %s164 = smul.addr %s163, 8
        %s165 = scalar_lea.vmem %s0, %s164
        %p166 = pneg %p36
        %p167 = pneg %p33
        %p168 = pneg %p57
        %p169 = pneg %p54
        %p170 = pneg %p78
        %p171 = pneg %p75
        %p172 = pneg %p104
        %p173 = pneg %p101
        %s174 = smul.u32 50, %s15
        %p175 = scmp.lt.s32.totalorder %s174, 99
        %s176 = scalar_select %p175, %s174, 99
        %s177 = smul.addr %s176, 8
        %s178 = scalar_lea.vmem %s3, %s177
        %s179 = smul.u32 50, %s15
        %p180 = scmp.lt.s32.totalorder %s179, 99
        %s181 = scalar_select %p180, %s179, 99
        %s182 = smul.addr %s181, 2
        %s183 = smul.addr %s182, 8
        %s184 = scalar_lea.vmem %s0, %s183
        %s185 = smul.u32 50, %s15
        %s186 = smul.u32 50, %s15
        %p187 = scmp.lt.s32.totalorder %s186, 99
        %s188 = scalar_select %p187, %s186, 99
        %s189 = smul.addr %s188, 8
        %s190 = scalar_lea.vmem %s3, %s189
        %s191 = smul.u32 50, %s15
        %v192 = vld [vmem:[%s184] sm:$0xff]
        %v193 = vld [vmem:[%s184 + $0x8] sm:$0xff]
        %v194 = vld [vmem:[%s184 + $0x10] sm:$0xff]
        %v195 = vld [vmem:[%s184 + $0x18] sm:$0xff]
        %v196 = vld [vmem:[%s184 + $0x20] sm:$0xff]
        %v197 = vld [vmem:[%s184 + $0x28] sm:$0xff]
        %v198 = vld [vmem:[%s184 + $0x30] sm:$0xff]
        %v199 = vld [vmem:[%s184 + $0x38] sm:$0xff]
        %v200 = vld [vmem:[%s184 + $0x40] sm:$0xff]
        %v201 = vld [vmem:[%s184 + $0x48] sm:$0xff]
        %v202 = vld [vmem:[%s184 + $0x50] sm:$0xff]
        %v203 = vld [vmem:[%s184 + $0x58] sm:$0xff]
        %v204 = vld [vmem:[%s184 + $0x60] sm:$0xff]
        %v205 = vld [vmem:[%s184 + $0x68] sm:$0xff]
        %v206 = vld [vmem:[%s184 + $0x70] sm:$0xff]
        %v207 = vld [vmem:[%s184 + $0x78] sm:$0xff]
        %v208 = vld [vmem:[%s184 + $0x80] sm:$0xff]
        %v209 = vld [vmem:[%s184 + $0x88] sm:$0xff]
        %v210 = vld [vmem:[%s184 + $0x90] sm:$0xff]
        %v211 = vld [vmem:[%s184 + $0x98] sm:$0xff]
        %v212 = vld [vmem:[%s184 + $0xa0] sm:$0xff]
        %v213 = vld [vmem:[%s184 + $0xa8] sm:$0xff]
        %v214 = vld [vmem:[%s184 + $0xb0] sm:$0xff]
        %v215 = vld [vmem:[%s184 + $0xb8] sm:$0xff]
        %v216 = vld [vmem:[%s184 + $0xc0] sm:$0xff]
        %v217 = vld [vmem:[%s184 + $0xc8] sm:$0xff]
        %v218 = vld [vmem:[%s184 + $0xd0] sm:$0xff]
        %v219 = vld [vmem:[%s184 + $0xd8] sm:$0xff]
        %v220 = vld [vmem:[%s184 + $0xe0] sm:$0xff]
        %v221 = vld [vmem:[%s184 + $0xe8] sm:$0xff]
        %v222 = vld [vmem:[%s184 + $0xf0] sm:$0xff]
        %v223 = vld [vmem:[%s184 + $0xf8] sm:$0xff]
        %v224 = vld [vmem:[%s184 + $0x100] sm:$0xff]
        %v225 = vld [vmem:[%s184 + $0x108] sm:$0xff]
        %v226 = vld [vmem:[%s184 + $0x110] sm:$0xff]
        %v227 = vld [vmem:[%s184 + $0x118] sm:$0xff]
        %v228 = vld [vmem:[%s184 + $0x120] sm:$0xff]
        %v229 = vld [vmem:[%s184 + $0x128] sm:$0xff]
        %v230 = vld [vmem:[%s184 + $0x130] sm:$0xff]
        %v231 = vld [vmem:[%s184 + $0x138] sm:$0xff]
        %v232 = vld [vmem:[%s184 + $0x140] sm:$0xff]
        %v233 = vld [vmem:[%s184 + $0x148] sm:$0xff]
        %v234 = vld [vmem:[%s184 + $0x150] sm:$0xff]
        %v235 = vld [vmem:[%s184 + $0x158] sm:$0xff]
        %v236 = vld [vmem:[%s184 + $0x160] sm:$0xff]
        %v237 = vld [vmem:[%s184 + $0x168] sm:$0xff]
        %v238 = vld [vmem:[%s184 + $0x170] sm:$0xff]
        %v239 = vld [vmem:[%s184 + $0x178] sm:$0xff]
        %v240 = vld [vmem:[%s184 + $0x180] sm:$0xff]
        %v241 = vld [vmem:[%s184 + $0x188] sm:$0xff]
        %v242 = vld [vmem:[%s184 + $0x190] sm:$0xff]
        %v243 = vld [vmem:[%s184 + $0x198] sm:$0xff]
        %v244 = vld [vmem:[%s184 + $0x1a0] sm:$0xff]
        %v245 = vld [vmem:[%s184 + $0x1a8] sm:$0xff]
        %v246 = vld [vmem:[%s184 + $0x1b0] sm:$0xff]
        %v247 = vld [vmem:[%s184 + $0x1b8] sm:$0xff]
        %v248 = vld [vmem:[%s184 + $0x1c0] sm:$0xff]
        %v249 = vld [vmem:[%s184 + $0x1c8] sm:$0xff]
        %v250 = vld [vmem:[%s184 + $0x1d0] sm:$0xff]
        %v251 = vld [vmem:[%s184 + $0x1d8] sm:$0xff]
        %v252 = vld [vmem:[%s184 + $0x1e0] sm:$0xff]
        %v253 = vld [vmem:[%s184 + $0x1e8] sm:$0xff]
        %v254 = vld [vmem:[%s184 + $0x1f0] sm:$0xff]
        %v255 = vld [vmem:[%s184 + $0x1f8] sm:$0xff]
        %v256 = vld [vmem:[%s184 + $0x200] sm:$0xff]
        %v257 = vld [vmem:[%s184 + $0x208] sm:$0xff]
        %v258 = vld [vmem:[%s184 + $0x210] sm:$0xff]
        %v259 = vld [vmem:[%s184 + $0x218] sm:$0xff]
        %v260 = vld [vmem:[%s184 + $0x220] sm:$0xff]
        %v261 = vld [vmem:[%s184 + $0x228] sm:$0xff]
        %v262 = vld [vmem:[%s184 + $0x230] sm:$0xff]
        %v263 = vld [vmem:[%s184 + $0x238] sm:$0xff]
        %v264 = vld [vmem:[%s184 + $0x240] sm:$0xff]
        %v265 = vld [vmem:[%s184 + $0x248] sm:$0xff]
        %v266 = vld [vmem:[%s184 + $0x250] sm:$0xff]
        %v267 = vld [vmem:[%s184 + $0x258] sm:$0xff]
        %v268 = vld [vmem:[%s184 + $0x260] sm:$0xff]
        %v269 = vld [vmem:[%s184 + $0x268] sm:$0xff]
        %v270 = vld [vmem:[%s184 + $0x270] sm:$0xff]
        %v271 = vld [vmem:[%s184 + $0x278] sm:$0xff]
        %v272 = vld [vmem:[%s184 + $0x280] sm:$0xff]
        %v273 = vld [vmem:[%s184 + $0x288] sm:$0xff]
        %v274 = vld [vmem:[%s184 + $0x290] sm:$0xff]
        %v275 = vld [vmem:[%s184 + $0x298] sm:$0xff]
        %v276 = vld [vmem:[%s184 + $0x2a0] sm:$0xff]
        %v277 = vld [vmem:[%s184 + $0x2a8] sm:$0xff]
        %v278 = vld [vmem:[%s184 + $0x2b0] sm:$0xff]
        %v279 = vld [vmem:[%s184 + $0x2b8] sm:$0xff]
        %v280 = vld [vmem:[%s184 + $0x2c0] sm:$0xff]
        %v281 = vld [vmem:[%s184 + $0x2c8] sm:$0xff]
        %v282 = vld [vmem:[%s184 + $0x2d0] sm:$0xff]
        %v283 = vld [vmem:[%s184 + $0x2d8] sm:$0xff]
        %v284 = vld [vmem:[%s184 + $0x2e0] sm:$0xff]
        %v285 = vld [vmem:[%s184 + $0x2e8] sm:$0xff]
        %v286 = vld [vmem:[%s184 + $0x2f0] sm:$0xff]
        %v287 = vld [vmem:[%s184 + $0x2f8] sm:$0xff]
        %v288 = vld [vmem:[%s184 + $0x300] sm:$0xff]
        %v289 = vld [vmem:[%s184 + $0x308] sm:$0xff]
        %v290 = vld [vmem:[%s184 + $0x310] sm:$0xff]
        %v291 = vld [vmem:[%s184 + $0x318] sm:$0xff]
        %v292 = vld [vmem:[#allocation2] sm:$0xff]
        %v293 = vld [vmem:[#allocation2 + $0x8] sm:$0xff]
        %v294 = vld [vmem:[#allocation2 + $0x10] sm:$0xff]
        %v295 = vld [vmem:[#allocation2 + $0x18] sm:$0xff]
        %v296 = vld [vmem:[#allocation2 + $0x20] sm:$0xff]
        %v297 = vld [vmem:[#allocation2 + $0x28] sm:$0xff]
        %v298 = vld [vmem:[#allocation2 + $0x30] sm:$0xff]
        %v299 = vld [vmem:[#allocation2 + $0x38] sm:$0xff]
        %v300 = vld [vmem:[#allocation2 + $0x40] sm:$0xff]
        %v301 = vld [vmem:[#allocation2 + $0x48] sm:$0xff]
        %v302 = vld [vmem:[#allocation2 + $0x50] sm:$0xff]
        %v303 = vld [vmem:[#allocation2 + $0x58] sm:$0xff]
        %v304 = vld [vmem:[#allocation2 + $0x60] sm:$0xff]
        %v305 = vld [vmem:[#allocation2 + $0x68] sm:$0xff]
        %v306 = vld [vmem:[#allocation2 + $0x70] sm:$0xff]
        %v307 = vld [vmem:[#allocation2 + $0x78] sm:$0xff]
        %v308 = vld [vmem:[#allocation2 + $0x80] sm:$0xff]
        %v309 = vld [vmem:[#allocation2 + $0x88] sm:$0xff]
        %v310 = vld [vmem:[#allocation2 + $0x90] sm:$0xff]
        %v311 = vld [vmem:[#allocation2 + $0x98] sm:$0xff]
        %v312 = vld [vmem:[#allocation2 + $0xa0] sm:$0xff]
        %v313 = vld [vmem:[#allocation2 + $0xa8] sm:$0xff]
        %v314 = vld [vmem:[#allocation2 + $0xb0] sm:$0xff]
        %v315 = vld [vmem:[#allocation2 + $0xb8] sm:$0xff]
        %v316 = vld [vmem:[#allocation2 + $0xc0] sm:$0xff]
        %v317 = vld [vmem:[#allocation2 + $0xc8] sm:$0xff]
        %v318 = vld [vmem:[#allocation2 + $0xd0] sm:$0xff]
        %v319 = vld [vmem:[#allocation2 + $0xd8] sm:$0xff]
        %v320 = vld [vmem:[#allocation2 + $0xe0] sm:$0xff]
        %v321 = vld [vmem:[#allocation2 + $0xe8] sm:$0xff]
        %v322 = vld [vmem:[#allocation2 + $0xf0] sm:$0xff]
        %v323 = vld [vmem:[#allocation2 + $0xf8] sm:$0xff]
        %v324 = vld [vmem:[%s2] sm:$0x1]
        %v326 = vlaneseq
        %v327 = vshrl.u32 %v326, 7
        %v328 = vsub.s32 0, %v327
        %v329 = vrot.slane %v324, %v328
        %331 = vmatprep.subr.mxu0 0.0
        %332 = vmatpush1.msra.mxu0 %v292
        %333 = vmatprep.subr.mxu0 0.0
        %334 = vmatpush1.msra.mxu0 %v293
        %335 = vmatprep.subr.mxu0 0.0
        %336 = vmatpush1.msra.mxu0 %v294
        %337 = vmatprep.subr.mxu0 0.0
        %338 = vmatpush1.msra.mxu0 %v295
        %339 = vmatprep.subr.mxu0 0.0
        %340 = vmatpush1.msra.mxu0 %v296
        %341 = vmatprep.subr.mxu0 0.0
        %342 = vmatpush1.msra.mxu0 %v297
        %343 = vmatprep.subr.mxu0 0.0
        %344 = vmatpush1.msra.mxu0 %v298
        %345 = vmatprep.subr.mxu0 0.0
        %346 = vmatpush1.msra.mxu0 %v299
        %347 = vmatprep.subr.mxu0 0.0
        %348 = vmatpush1.msra.mxu0 %v300
        %349 = vmatprep.subr.mxu0 0.0
        %350 = vmatpush1.msra.mxu0 %v301
        %351 = vmatprep.subr.mxu0 0.0
        %352 = vmatpush1.msra.mxu0 %v302
        %353 = vmatprep.subr.mxu0 0.0
        %354 = vmatpush1.msra.mxu0 %v303
        %355 = vmatprep.subr.mxu0 0.0
        %356 = vmatpush1.msra.mxu0 %v304
        %357 = vmatprep.subr.mxu0 0.0
        %358 = vmatpush1.msra.mxu0 %v305
        %359 = vmatprep.subr.mxu0 0.0
        %360 = vmatpush1.msra.mxu0 %v306
        %361 = vmatprep.subr.mxu0 0.0
        %362 = vmatpush1.msra.mxu0 %v307
        %363 = vmatprep.subr.mxu0 0.0
        %364 = vmatpush1.msra.mxu0 %v308
        %365 = vmatprep.subr.mxu0 0.0
        %366 = vmatpush1.msra.mxu0 %v309
        %367 = vmatprep.subr.mxu0 0.0
        %368 = vmatpush1.msra.mxu0 %v310
        %369 = vmatprep.subr.mxu0 0.0
        %370 = vmatpush1.msra.mxu0 %v311
        %371 = vmatprep.subr.mxu0 0.0
        %372 = vmatpush1.msra.mxu0 %v312
        %373 = vmatprep.subr.mxu0 0.0
        %374 = vmatpush1.msra.mxu0 %v313
        %375 = vmatprep.subr.mxu0 0.0
        %376 = vmatpush1.msra.mxu0 %v314
        %377 = vmatprep.subr.mxu0 0.0
        %378 = vmatpush1.msra.mxu0 %v315
        %379 = vmatprep.subr.mxu0 0.0
        %380 = vmatpush1.msra.mxu0 %v316
        %381 = vmatprep.subr.mxu0 0.0
        %382 = vmatpush1.msra.mxu0 %v317
        %383 = vmatprep.subr.mxu0 0.0
        %384 = vmatpush1.msra.mxu0 %v318
        %385 = vmatprep.subr.mxu0 0.0
        %386 = vmatpush1.msra.mxu0 %v319
        %387 = vmatprep.subr.mxu0 0.0
        %388 = vmatpush1.msra.mxu0 %v320
        %389 = vmatprep.subr.mxu0 0.0
        %390 = vmatpush1.msra.mxu0 %v321
        %391 = vmatprep.subr.mxu0 0.0
        %392 = vmatpush1.msra.mxu0 %v322
        %393 = vmatprep.subr.mxu0 0.0
        %394 = vmatpush1.msra.mxu0 %v323
        %395 = vmatprep.mubr.f32.mxu0 %v193
        %396 = vmatmul.mubr.f32.gmra.mrb[0].mxu0 %v192
        %v397 = vpop.f32.mrb[0].mxu0
        %v398 = vadd.f32 %v329, %v397
        %v399 = vpop.f32.mrb[0].mxu0
        %400 = vmatprep.mubr.f32.mxu0 %v195
        %401 = vmatmul.mubr.f32.gmra.mrb[0].mxu0 %v194
        %v402 = vpop.f32.mrb[0].mxu0
        %v403 = vadd.f32 %v329, %v402
        %v404 = vpop.f32.mrb[0].mxu0
        %405 = vmatprep.mubr.f32.mxu0 %v197
        %406 = vmatmul.mubr.f32.gmra.mrb[0].mxu0 %v196
        %v407 = vpop.f32.mrb[0].mxu0
        %v408 = vadd.f32 %v329, %v407
        %v409 = vpop.f32.mrb[0].mxu0
        %410 = vmatprep.mubr.f32.mxu0 %v199
        %411 = vmatmul.mubr.f32.gmra.mrb[0].mxu0 %v198
        %v412 = vpop.f32.mrb[0].mxu0
        %v413 = vadd.f32 %v329, %v412
        %v414 = vpop.f32.mrb[0].mxu0
        %415 = vmatprep.mubr.f32.mxu0 %v201
        %416 = vmatmul.mubr.f32.gmra.mrb[0].mxu0 %v200
        %v417 = vpop.f32.mrb[0].mxu0
        %v418 = vadd.f32 %v329, %v417
        %v419 = vpop.f32.mrb[0].mxu0
        %420 = vmatprep.mubr.f32.mxu0 %v203
        %421 = vmatmul.mubr.f32.gmra.mrb[0].mxu0 %v202
        %v422 = vpop.f32.mrb[0].mxu0
        %v423 = vadd.f32 %v329, %v422
        %v424 = vpop.f32.mrb[0].mxu0
        %425 = vmatprep.mubr.f32.mxu0 %v205
        %426 = vmatmul.mubr.f32.gmra.mrb[0].mxu0 %v204
        %v427 = vpop.f32.mrb[0].mxu0
        %v428 = vadd.f32 %v329, %v427
        %v429 = vpop.f32.mrb[0].mxu0
        %430 = vmatprep.mubr.f32.mxu0 %v207
        %431 = vmatmul.mubr.f32.gmra.mrb[0].mxu0 %v206
        %v432 = vpop.f32.mrb[0].mxu0
        %v433 = vadd.f32 %v329, %v432
        %v434 = vpop.f32.mrb[0].mxu0
        %435 = vmatprep.mubr.f32.mxu0 %v209
        %436 = vmatmul.mubr.f32.gmra.mrb[0].mxu0 %v208
        %v437 = vpop.f32.mrb[0].mxu0
        %v438 = vadd.f32 %v329, %v437
        %v439 = vpop.f32.mrb[0].mxu0
        %440 = vmatprep.mubr.f32.mxu0 %v211
        %441 = vmatmul.mubr.f32.gmra.mrb[0].mxu0 %v210
        %v442 = vpop.f32.mrb[0].mxu0
        %v443 = vadd.f32 %v329, %v442
        %v444 = vpop.f32.mrb[0].mxu0
        %445 = vmatprep.mubr.f32.mxu0 %v213
        %446 = vmatmul.mubr.f32.gmra.mrb[0].mxu0 %v212
        %v447 = vpop.f32.mrb[0].mxu0
        %v448 = vadd.f32 %v329, %v447
        %v449 = vpop.f32.mrb[0].mxu0
        %450 = vmatprep.mubr.f32.mxu0 %v215
        %451 = vmatmul.mubr.f32.gmra.mrb[0].mxu0 %v214
        %v452 = vpop.f32.mrb[0].mxu0
        %v453 = vadd.f32 %v329, %v452
        %v454 = vpop.f32.mrb[0].mxu0
        %455 = vmatprep.mubr.f32.mxu0 %v217
        %456 = vmatmul.mubr.f32.gmra.mrb[0].mxu0 %v216
        %v457 = vpop.f32.mrb[0].mxu0
        %v458 = vadd.f32 %v329, %v457
        %v459 = vpop.f32.mrb[0].mxu0
        %460 = vmatprep.mubr.f32.mxu0 %v219
        %461 = vmatmul.mubr.f32.gmra.mrb[0].mxu0 %v218
        %v462 = vpop.f32.mrb[0].mxu0
        %v463 = vadd.f32 %v329, %v462
        %v464 = vpop.f32.mrb[0].mxu0
        %465 = vmatprep.mubr.f32.mxu0 %v221
        %466 = vmatmul.mubr.f32.gmra.mrb[0].mxu0 %v220
        %v467 = vpop.f32.mrb[0].mxu0
        %v468 = vadd.f32 %v329, %v467
        %v469 = vpop.f32.mrb[0].mxu0
        %470 = vmatprep.mubr.f32.mxu0 %v223
        %471 = vmatmul.mubr.f32.gmra.mrb[0].mxu0 %v222
        %v472 = vpop.f32.mrb[0].mxu0
        %v473 = vadd.f32 %v329, %v472
        %v474 = vpop.f32.mrb[0].mxu0
        %475 = vmatprep.mubr.f32.mxu0 %v225
        %476 = vmatmul.mubr.f32.gmra.mrb[0].mxu0 %v224
        %v477 = vpop.f32.mrb[0].mxu0
        %v478 = vadd.f32 %v329, %v477
        %v479 = vpop.f32.mrb[0].mxu0
        %480 = vmatprep.mubr.f32.mxu0 %v227
        %481 = vmatmul.mubr.f32.gmra.mrb[0].mxu0 %v226
        %v482 = vpop.f32.mrb[0].mxu0
        %v483 = vadd.f32 %v329, %v482
        %v484 = vpop.f32.mrb[0].mxu0
        %485 = vmatprep.mubr.f32.mxu0 %v229
        %486 = vmatmul.mubr.f32.gmra.mrb[0].mxu0 %v228
        %v487 = vpop.f32.mrb[0].mxu0
        %v488 = vadd.f32 %v329, %v487
        %v489 = vpop.f32.mrb[0].mxu0
        %490 = vmatprep.mubr.f32.mxu0 %v231
        %491 = vmatmul.mubr.f32.gmra.mrb[0].mxu0 %v230
        %v492 = vpop.f32.mrb[0].mxu0
        %v493 = vadd.f32 %v329, %v492
        %v494 = vpop.f32.mrb[0].mxu0
        %495 = vmatprep.mubr.f32.mxu0 %v233
        %496 = vmatmul.mubr.f32.gmra.mrb[0].mxu0 %v232
        %v497 = vpop.f32.mrb[0].mxu0
        %v498 = vadd.f32 %v329, %v497
        %v499 = vpop.f32.mrb[0].mxu0
        %500 = vmatprep.mubr.f32.mxu0 %v235
        %501 = vmatmul.mubr.f32.gmra.mrb[0].mxu0 %v234
        %v502 = vpop.f32.mrb[0].mxu0
        %v503 = vadd.f32 %v329, %v502
        %v504 = vpop.f32.mrb[0].mxu0
        %505 = vmatprep.mubr.f32.mxu0 %v237
        %506 = vmatmul.mubr.f32.gmra.mrb[0].mxu0 %v236
        %v507 = vpop.f32.mrb[0].mxu0
        %v508 = vadd.f32 %v329, %v507
        %v509 = vpop.f32.mrb[0].mxu0
        %510 = vmatprep.mubr.f32.mxu0 %v239
        %511 = vmatmul.mubr.f32.gmra.mrb[0].mxu0 %v238
        %v512 = vpop.f32.mrb[0].mxu0
        %v513 = vadd.f32 %v329, %v512
        %v514 = vpop.f32.mrb[0].mxu0
        %515 = vmatprep.mubr.f32.mxu0 %v241
        %516 = vmatmul.mubr.f32.gmra.mrb[0].mxu0 %v240
        %v517 = vpop.f32.mrb[0].mxu0
        %v518 = vadd.f32 %v329, %v517
        %v519 = vpop.f32.mrb[0].mxu0
        %520 = vmatprep.mubr.f32.mxu0 %v243
        %521 = vmatmul.mubr.f32.gmra.mrb[0].mxu0 %v242
        %v522 = vpop.f32.mrb[0].mxu0
        %v523 = vadd.f32 %v329, %v522
        %v524 = vpop.f32.mrb[0].mxu0
        %525 = vmatprep.mubr.f32.mxu0 %v245
        %526 = vmatmul.mubr.f32.gmra.mrb[0].mxu0 %v244
        %v527 = vpop.f32.mrb[0].mxu0
        %v528 = vadd.f32 %v329, %v527
        %v529 = vpop.f32.mrb[0].mxu0
        %530 = vmatprep.mubr.f32.mxu0 %v247
        %531 = vmatmul.mubr.f32.gmra.mrb[0].mxu0 %v246
        %v532 = vpop.f32.mrb[0].mxu0
        %v533 = vadd.f32 %v329, %v532
        %v534 = vpop.f32.mrb[0].mxu0
        %535 = vmatprep.mubr.f32.mxu0 %v249
        %536 = vmatmul.mubr.f32.gmra.mrb[0].mxu0 %v248
        %v537 = vpop.f32.mrb[0].mxu0
        %v538 = vadd.f32 %v329, %v537
        %v539 = vpop.f32.mrb[0].mxu0
        %540 = vmatprep.mubr.f32.mxu0 %v251
        %541 = vmatmul.mubr.f32.gmra.mrb[0].mxu0 %v250
        %v542 = vpop.f32.mrb[0].mxu0
        %v543 = vadd.f32 %v329, %v542
        %v544 = vpop.f32.mrb[0].mxu0
        %545 = vmatprep.mubr.f32.mxu0 %v253
        %546 = vmatmul.mubr.f32.gmra.mrb[0].mxu0 %v252
        %v547 = vpop.f32.mrb[0].mxu0
        %v548 = vadd.f32 %v329, %v547
        %v549 = vpop.f32.mrb[0].mxu0
        %550 = vmatprep.mubr.f32.mxu0 %v255
        %551 = vmatmul.mubr.f32.gmra.mrb[0].mxu0 %v254
        %v552 = vpop.f32.mrb[0].mxu0
        %v553 = vadd.f32 %v329, %v552
        %v554 = vpop.f32.mrb[0].mxu0
        %555 = vmatprep.mubr.f32.mxu0 %v257
        %556 = vmatmul.mubr.f32.gmra.mrb[0].mxu0 %v256
        %v557 = vpop.f32.mrb[0].mxu0
        %v558 = vadd.f32 %v329, %v557
        %v559 = vpop.f32.mrb[0].mxu0
        %560 = vmatprep.mubr.f32.mxu0 %v259
        %561 = vmatmul.mubr.f32.gmra.mrb[0].mxu0 %v258
        %v562 = vpop.f32.mrb[0].mxu0
        %v563 = vadd.f32 %v329, %v562
        %v564 = vpop.f32.mrb[0].mxu0
        %565 = vmatprep.mubr.f32.mxu0 %v261
        %566 = vmatmul.mubr.f32.gmra.mrb[0].mxu0 %v260
        %v567 = vpop.f32.mrb[0].mxu0
        %v568 = vadd.f32 %v329, %v567
        %v569 = vpop.f32.mrb[0].mxu0
        %570 = vmatprep.mubr.f32.mxu0 %v263
        %571 = vmatmul.mubr.f32.gmra.mrb[0].mxu0 %v262
        %v572 = vpop.f32.mrb[0].mxu0
        %v573 = vadd.f32 %v329, %v572
        %v574 = vpop.f32.mrb[0].mxu0
        %575 = vmatprep.mubr.f32.mxu0 %v265
        %576 = vmatmul.mubr.f32.gmra.mrb[0].mxu0 %v264
        %v577 = vpop.f32.mrb[0].mxu0
        %v578 = vadd.f32 %v329, %v577
        %v579 = vpop.f32.mrb[0].mxu0
        %580 = vmatprep.mubr.f32.mxu0 %v267
        %581 = vmatmul.mubr.f32.gmra.mrb[0].mxu0 %v266
        %v582 = vpop.f32.mrb[0].mxu0
        %v583 = vadd.f32 %v329, %v582
        %v584 = vpop.f32.mrb[0].mxu0
        %585 = vmatprep.mubr.f32.mxu0 %v269
        %586 = vmatmul.mubr.f32.gmra.mrb[0].mxu0 %v268
        %v587 = vpop.f32.mrb[0].mxu0
        %v588 = vadd.f32 %v329, %v587
        %v589 = vpop.f32.mrb[0].mxu0
        %590 = vmatprep.mubr.f32.mxu0 %v271
        %591 = vmatmul.mubr.f32.gmra.mrb[0].mxu0 %v270
        %v592 = vpop.f32.mrb[0].mxu0
        %v593 = vadd.f32 %v329, %v592
        %v594 = vpop.f32.mrb[0].mxu0
        %595 = vmatprep.mubr.f32.mxu0 %v273
        %596 = vmatmul.mubr.f32.gmra.mrb[0].mxu0 %v272
        %v597 = vpop.f32.mrb[0].mxu0
        %v598 = vadd.f32 %v329, %v597
        %v599 = vpop.f32.mrb[0].mxu0
        %600 = vmatprep.mubr.f32.mxu0 %v275
        %601 = vmatmul.mubr.f32.gmra.mrb[0].mxu0 %v274
        %v602 = vpop.f32.mrb[0].mxu0
        %v603 = vadd.f32 %v329, %v602
        %v604 = vpop.f32.mrb[0].mxu0
        %605 = vmatprep.mubr.f32.mxu0 %v277
        %606 = vmatmul.mubr.f32.gmra.mrb[0].mxu0 %v276
        %v607 = vpop.f32.mrb[0].mxu0
        %v608 = vadd.f32 %v329, %v607
        %v609 = vpop.f32.mrb[0].mxu0
        %610 = vmatprep.mubr.f32.mxu0 %v279
        %611 = vmatmul.mubr.f32.gmra.mrb[0].mxu0 %v278
        %v612 = vpop.f32.mrb[0].mxu0
        %v613 = vadd.f32 %v329, %v612
        %v614 = vpop.f32.mrb[0].mxu0
        %615 = vmatprep.mubr.f32.mxu0 %v281
        %616 = vmatmul.mubr.f32.gmra.mrb[0].mxu0 %v280
        %v617 = vpop.f32.mrb[0].mxu0
        %v618 = vadd.f32 %v329, %v617
        %v619 = vpop.f32.mrb[0].mxu0
        %620 = vmatprep.mubr.f32.mxu0 %v283
        %621 = vmatmul.mubr.f32.gmra.mrb[0].mxu0 %v282
        %v622 = vpop.f32.mrb[0].mxu0
        %v623 = vadd.f32 %v329, %v622
        %v624 = vpop.f32.mrb[0].mxu0
        %625 = vmatprep.mubr.f32.mxu0 %v285
        %626 = vmatmul.mubr.f32.gmra.mrb[0].mxu0 %v284
        %v627 = vpop.f32.mrb[0].mxu0
        %v628 = vadd.f32 %v329, %v627
        %v629 = vpop.f32.mrb[0].mxu0
        %630 = vmatprep.mubr.f32.mxu0 %v287
        %631 = vmatmul.mubr.f32.gmra.mrb[0].mxu0 %v286
        %v632 = vpop.f32.mrb[0].mxu0
        %v633 = vadd.f32 %v329, %v632
        %v634 = vpop.f32.mrb[0].mxu0
        %635 = vmatprep.mubr.f32.mxu0 %v289
        %636 = vmatmul.mubr.f32.gmra.mrb[0].mxu0 %v288
        %v637 = vpop.f32.mrb[0].mxu0
        %v638 = vadd.f32 %v329, %v637
        %v639 = vpop.f32.mrb[0].mxu0
        %640 = vmatprep.mubr.f32.mxu0 %v291
        %641 = vmatmul.mubr.f32.gmra.mrb[0].mxu0 %v290
        %v642 = vpop.f32.mrb[0].mxu0
        %v643 = vadd.f32 %v329, %v642
        %v644 = vpop.f32.mrb[0].mxu0
        %645 = vdwg.mxu0
        %v646 = vmax.f32 %v398, 0.0
        %v647 = vmax.f32 %v403, 0.0
        %v648 = vmax.f32 %v408, 0.0
        %v649 = vmax.f32 %v413, 0.0
        %v650 = vmax.f32 %v418, 0.0
        %v651 = vmax.f32 %v423, 0.0
        %v652 = vmax.f32 %v428, 0.0
        %v653 = vmax.f32 %v433, 0.0
        %v654 = vmax.f32 %v438, 0.0
        %v655 = vmax.f32 %v443, 0.0
        %v656 = vmax.f32 %v448, 0.0
        %v657 = vmax.f32 %v453, 0.0
        %v658 = vmax.f32 %v458, 0.0
        %v659 = vmax.f32 %v463, 0.0
        %v660 = vmax.f32 %v468, 0.0
        %v661 = vmax.f32 %v473, 0.0
        %v662 = vmax.f32 %v478, 0.0
        %v663 = vmax.f32 %v483, 0.0
        %v664 = vmax.f32 %v488, 0.0
        %v665 = vmax.f32 %v493, 0.0
        %v666 = vmax.f32 %v498, 0.0
        %v667 = vmax.f32 %v503, 0.0
        %v668 = vmax.f32 %v508, 0.0
        %v669 = vmax.f32 %v513, 0.0
        %v670 = vmax.f32 %v518, 0.0
        %v671 = vmax.f32 %v523, 0.0
        %v672 = vmax.f32 %v528, 0.0
        %v673 = vmax.f32 %v533, 0.0
        %v674 = vmax.f32 %v538, 0.0
        %v675 = vmax.f32 %v543, 0.0
        %v676 = vmax.f32 %v548, 0.0
        %v677 = vmax.f32 %v553, 0.0
        %v678 = vmax.f32 %v558, 0.0
        %v679 = vmax.f32 %v563, 0.0
        %v680 = vmax.f32 %v568, 0.0
        %v681 = vmax.f32 %v573, 0.0
        %v682 = vmax.f32 %v578, 0.0
        %v683 = vmax.f32 %v583, 0.0
        %v684 = vmax.f32 %v588, 0.0
        %v685 = vmax.f32 %v593, 0.0
        %v686 = vmax.f32 %v598, 0.0
        %v687 = vmax.f32 %v603, 0.0
        %v688 = vmax.f32 %v608, 0.0
        %v689 = vmax.f32 %v613, 0.0
        %v690 = vmax.f32 %v618, 0.0
        %v691 = vmax.f32 %v623, 0.0
        %v692 = vmax.f32 %v628, 0.0
        %v693 = vmax.f32 %v633, 0.0
        %v694 = vmax.f32 %v638, 0.0
        %v695 = vmax.f32 %v643, 0.0
        %696 = vst [vmem:[%s190] sm:$0xff] %v646
        %697 = vst [vmem:[%s190 + $0x8] sm:$0xff] %v647
        %698 = vst [vmem:[%s190 + $0x10] sm:$0xff] %v648
        %699 = vst [vmem:[%s190 + $0x18] sm:$0xff] %v649
        %700 = vst [vmem:[%s190 + $0x20] sm:$0xff] %v650
        %701 = vst [vmem:[%s190 + $0x28] sm:$0xff] %v651
        %702 = vst [vmem:[%s190 + $0x30] sm:$0xff] %v652
        %703 = vst [vmem:[%s190 + $0x38] sm:$0xff] %v653
        %704 = vst [vmem:[%s190 + $0x40] sm:$0xff] %v654
        %705 = vst [vmem:[%s190 + $0x48] sm:$0xff] %v655
        %706 = vst [vmem:[%s190 + $0x50] sm:$0xff] %v656
        %707 = vst [vmem:[%s190 + $0x58] sm:$0xff] %v657
        %708 = vst [vmem:[%s190 + $0x60] sm:$0xff] %v658
        %709 = vst [vmem:[%s190 + $0x68] sm:$0xff] %v659
        %710 = vst [vmem:[%s190 + $0x70] sm:$0xff] %v660
        %711 = vst [vmem:[%s190 + $0x78] sm:$0xff] %v661
        %712 = vst [vmem:[%s190 + $0x80] sm:$0xff] %v662
        %713 = vst [vmem:[%s190 + $0x88] sm:$0xff] %v663
        %714 = vst [vmem:[%s190 + $0x90] sm:$0xff] %v664
        %715 = vst [vmem:[%s190 + $0x98] sm:$0xff] %v665
        %716 = vst [vmem:[%s190 + $0xa0] sm:$0xff] %v666
        %717 = vst [vmem:[%s190 + $0xa8] sm:$0xff] %v667
        %718 = vst [vmem:[%s190 + $0xb0] sm:$0xff] %v668
        %719 = vst [vmem:[%s190 + $0xb8] sm:$0xff] %v669
        %720 = vst [vmem:[%s190 + $0xc0] sm:$0xff] %v670
        %721 = vst [vmem:[%s190 + $0xc8] sm:$0xff] %v671
        %722 = vst [vmem:[%s190 + $0xd0] sm:$0xff] %v672
        %723 = vst [vmem:[%s190 + $0xd8] sm:$0xff] %v673
        %724 = vst [vmem:[%s190 + $0xe0] sm:$0xff] %v674
        %725 = vst [vmem:[%s190 + $0xe8] sm:$0xff] %v675
        %726 = vst [vmem:[%s190 + $0xf0] sm:$0xff] %v676
        %727 = vst [vmem:[%s190 + $0xf8] sm:$0xff] %v677
        %728 = vst [vmem:[%s190 + $0x100] sm:$0xff] %v678
        %729 = vst [vmem:[%s190 + $0x108] sm:$0xff] %v679
        %730 = vst [vmem:[%s190 + $0x110] sm:$0xff] %v680
        %731 = vst [vmem:[%s190 + $0x118] sm:$0xff] %v681
        %732 = vst [vmem:[%s190 + $0x120] sm:$0xff] %v682
        %733 = vst [vmem:[%s190 + $0x128] sm:$0xff] %v683
        %734 = vst [vmem:[%s190 + $0x130] sm:$0xff] %v684
        %735 = vst [vmem:[%s190 + $0x138] sm:$0xff] %v685
        %736 = vst [vmem:[%s190 + $0x140] sm:$0xff] %v686
        %737 = vst [vmem:[%s190 + $0x148] sm:$0xff] %v687
        %738 = vst [vmem:[%s190 + $0x150] sm:$0xff] %v688
        %739 = vst [vmem:[%s190 + $0x158] sm:$0xff] %v689
        %740 = vst [vmem:[%s190 + $0x160] sm:$0xff] %v690
        %741 = vst [vmem:[%s190 + $0x168] sm:$0xff] %v691
        %742 = vst [vmem:[%s190 + $0x170] sm:$0xff] %v692
        %743 = vst [vmem:[%s190 + $0x178] sm:$0xff] %v693
        %744 = vst [vmem:[%s190 + $0x180] sm:$0xff] %v694
        %745 = vst [vmem:[%s190 + $0x188] sm:$0xff] %v695
        %s746 = smul.u32 50, %s15
        %p747 = scmp.lt.s32.totalorder %s746, 99
        %s748 = scalar_select %p747, %s746, 99
        %s749 = smul.addr %s748, 8
        %s750 = scalar_lea.vmem %s3, %s749
        // Predicated region
        $region37: #{dqn_forward.4} parent=31 // pred_check
          %p751 = pneg %p101
        $region38: #{dqn_forward.4} parent=31 // pred_check_branch
          %753 = sbr.rel (%p751) target = $region40
        $region39: #{dqn_forward.4} parent=31 // pred_region
          %s754 = smul.u32 50, %s15
        $region40: #{dqn_forward.4} parent=31 // pred_fallthru
          _
      $region32: #{dqn_forward.4} parent=5 // pred_fallthru
        _
      %p755 = scmp.le.s32.totalorder 2, %s10
      // Predicated region
      $region41: #{dqn_forward.4} parent=5 // pred_check
        %p756 = pneg %p755
      $region42: #{dqn_forward.4} parent=5 // pred_check_branch
        %758 = sbr.rel (%p756) target = $region44
      $region43: #{dqn_forward.4} parent=5 // pred_region
        %s759 = ssub.s32 %s10, 2
        // Predicated region
        $region45: #{dqn_forward.4} parent=43 // pred_check
          %p760 = pneg %p107
        $region46: #{dqn_forward.4} parent=43 // pred_check_branch
          %762 = sbr.rel (%p760) target = $region48
        $region47: #{dqn_forward.4} parent=43 // pred_region
          %s763 = smul.u32 50, %s16
          %p764 = scmp.lt.s32.totalorder %s763, 99
          %s765 = scalar_select %p764, %s763, 99
          %s766 = smul.addr %s765, 8
          %s767 = scalar_lea.vmem %s3, %s766
        $region48: #{dqn_forward.4} parent=43 // pred_fallthru
          _
      $region44: #{dqn_forward.4} parent=5 // pred_fallthru
        _
    $region6: #{dqn_forward.4} parent=1 // loop_footer
      %s14 = sadd.s32 1, %s10
    $region7: #{dqn_forward.4} parent=1 // loop_footer_branch
      %9 = sbr.rel target = $region3
    $region8: #{dqn_forward.4} parent=1 // loop_exit
      _
    %768 = vsyncpa [#allocation3], 1
    %s769 = scalar_lea.sflag [#allocation3], 1
    %770 = vsyncpa %s769, 1

// kernel: dqn_forward.5
$region0: #{dqn_forward.5}
  #allocation0 [shape = 'u32[]', space=smem, size = 0x4, offset = 0x4, fixed_abs, tag = 'smem constant byte address 0x4 - core index']
  #allocation1 [shape = 'u32[144,128]{1,0:T(1,128)}', space=vmem, size = 0x12000, scoped, tag = 'internal scratch']
  %s0 = inlined_call_operand.vmem [shape: f32[168,512], index: 0, kind: input, shape index: {}]
  %s1 = inlined_call_operand.vmem [shape: f32[512,128], index: 1, kind: input, shape index: {}]
  %s2 = inlined_call_operand.vmem [shape: f32[1,128], index: 2, kind: input, shape index: {}]
  %s3 = inlined_call_operand.vmem [shape: f32[168,128], index: 3, kind: output, shape index: {}]
  %s4 = sld [smem:[#allocation0]]
  $region22: #{dqn_forward.5} parent=0
    _
  %s6 = ssub.s32 1, %s4
  %s7 = scalar_select 0, %s6, %s4
  // Predicated region
  $region2: #{dqn_forward.5} parent=0 // pred_check
    _
  $region3: #{dqn_forward.5} parent=0 // pred_check_branch
    %9 = sbr.rel (0) target = $region5
  $region4: #{dqn_forward.5} parent=0 // pred_region
    _
  $region5: #{dqn_forward.5} parent=0 // pred_fallthru
    _
  // Predicated region
  $region6: #{dqn_forward.5} parent=0 // pred_check
    _
  $region7: #{dqn_forward.5} parent=0 // pred_check_branch
    %11 = sbr.rel (0) target = $region9
  $region8: #{dqn_forward.5} parent=0 // pred_region
    _
  $region9: #{dqn_forward.5} parent=0 // pred_fallthru
    _
  // Predicated region
  $region10: #{dqn_forward.5} parent=0 // pred_check
    _
  $region11: #{dqn_forward.5} parent=0 // pred_check_branch
    %13 = sbr.rel (0) target = $region13
  $region12: #{dqn_forward.5} parent=0 // pred_region
    _
  $region13: #{dqn_forward.5} parent=0 // pred_fallthru
    _
  %v14 = vld [vmem:[%s0] sm:$0xff]
  %v15 = vld [vmem:[%s0 + $0x8] sm:$0xff]
  %v16 = vld [vmem:[%s0 + $0x10] sm:$0xff]
  %v17 = vld [vmem:[%s0 + $0x18] sm:$0xff]
  %v18 = vld [vmem:[%s0 + $0x20] sm:$0xff]
  %v19 = vld [vmem:[%s0 + $0x28] sm:$0xff]
  %v20 = vld [vmem:[%s0 + $0x30] sm:$0xff]
  %v21 = vld [vmem:[%s0 + $0x38] sm:$0xff]
  %v22 = vld [vmem:[%s0 + $0x40] sm:$0xff]
  %v23 = vld [vmem:[%s0 + $0x48] sm:$0xff]
  %v24 = vld [vmem:[%s0 + $0x50] sm:$0xff]
  %v25 = vld [vmem:[%s0 + $0x58] sm:$0xff]
  %v26 = vld [vmem:[%s0 + $0x60] sm:$0xff]
  %v27 = vld [vmem:[%s0 + $0x68] sm:$0xff]
  %v28 = vld [vmem:[%s0 + $0x70] sm:$0xff]
  %v29 = vld [vmem:[%s0 + $0x78] sm:$0xff]
  %v30 = vld [vmem:[%s0 + $0x80] sm:$0xff]
  %v31 = vld [vmem:[%s0 + $0x88] sm:$0xff]
  %v32 = vld [vmem:[%s0 + $0x90] sm:$0xff]
  %v33 = vld [vmem:[%s0 + $0x98] sm:$0xff]
  %v34 = vld [vmem:[%s0 + $0xa0] sm:$0xff]
  %v35 = vld [vmem:[%s0 + $0xa8] sm:$0xff]
  %v36 = vld [vmem:[%s0 + $0xb0] sm:$0xff]
  %v37 = vld [vmem:[%s0 + $0xb8] sm:$0xff]
  %v38 = vld [vmem:[%s0 + $0xc0] sm:$0xff]
  %v39 = vld [vmem:[%s0 + $0xc8] sm:$0xff]
  %v40 = vld [vmem:[%s0 + $0xd0] sm:$0xff]
  %v41 = vld [vmem:[%s0 + $0xd8] sm:$0xff]
  %v42 = vld [vmem:[%s0 + $0xe0] sm:$0xff]
  %v43 = vld [vmem:[%s0 + $0xe8] sm:$0xff]
  %v44 = vld [vmem:[%s0 + $0xf0] sm:$0xff]
  %v45 = vld [vmem:[%s0 + $0xf8] sm:$0xff]
  %v46 = vld [vmem:[%s0 + $0x100] sm:$0xff]
  %v47 = vld [vmem:[%s0 + $0x108] sm:$0xff]
  %v48 = vld [vmem:[%s0 + $0x110] sm:$0xff]
  %v49 = vld [vmem:[%s0 + $0x118] sm:$0xff]
  %v50 = vld [vmem:[%s0 + $0x120] sm:$0xff]
  %v51 = vld [vmem:[%s0 + $0x128] sm:$0xff]
  %v52 = vld [vmem:[%s0 + $0x130] sm:$0xff]
  %v53 = vld [vmem:[%s0 + $0x138] sm:$0xff]
  %v54 = vld [vmem:[%s0 + $0x140] sm:$0xff]
  %v55 = vld [vmem:[%s0 + $0x148] sm:$0xff]
  %v56 = vld [vmem:[%s0 + $0x150] sm:$0xff]
  %v57 = vld [vmem:[%s0 + $0x158] sm:$0xff]
  %v58 = vld [vmem:[%s0 + $0x160] sm:$0xff]
  %v59 = vld [vmem:[%s0 + $0x168] sm:$0xff]
  %v60 = vld [vmem:[%s0 + $0x170] sm:$0xff]
  %v61 = vld [vmem:[%s0 + $0x178] sm:$0xff]
  %v62 = vld [vmem:[%s0 + $0x180] sm:$0xff]
  %v63 = vld [vmem:[%s0 + $0x188] sm:$0xff]
  %v64 = vld [vmem:[%s0 + $0x190] sm:$0xff]
  %v65 = vld [vmem:[%s0 + $0x198] sm:$0xff]
  %v66 = vld [vmem:[%s0 + $0x1a0] sm:$0xff]
  %v67 = vld [vmem:[%s0 + $0x1a8] sm:$0xff]
  %v68 = vld [vmem:[%s0 + $0x1b0] sm:$0xff]
  %v69 = vld [vmem:[%s0 + $0x1b8] sm:$0xff]
  %v70 = vld [vmem:[%s0 + $0x1c0] sm:$0xff]
  %v71 = vld [vmem:[%s0 + $0x1c8] sm:$0xff]
  %v72 = vld [vmem:[%s0 + $0x1d0] sm:$0xff]
  %v73 = vld [vmem:[%s0 + $0x1d8] sm:$0xff]
  %v74 = vld [vmem:[%s0 + $0x1e0] sm:$0xff]
  %v75 = vld [vmem:[%s0 + $0x1e8] sm:$0xff]
  %v76 = vld [vmem:[%s0 + $0x1f0] sm:$0xff]
  %v77 = vld [vmem:[%s0 + $0x1f8] sm:$0xff]
  %v78 = vld [vmem:[%s0 + $0x200] sm:$0xff]
  %v79 = vld [vmem:[%s0 + $0x208] sm:$0xff]
  %v80 = vld [vmem:[%s0 + $0x210] sm:$0xff]
  %v81 = vld [vmem:[%s0 + $0x218] sm:$0xff]
  %v82 = vld [vmem:[%s0 + $0x220] sm:$0xff]
  %v83 = vld [vmem:[%s0 + $0x228] sm:$0xff]
  %v84 = vld [vmem:[%s0 + $0x230] sm:$0xff]
  %v85 = vld [vmem:[%s0 + $0x238] sm:$0xff]
  %v86 = vld [vmem:[%s0 + $0x240] sm:$0xff]
  %v87 = vld [vmem:[%s0 + $0x248] sm:$0xff]
  %v88 = vld [vmem:[%s0 + $0x250] sm:$0xff]
  %v89 = vld [vmem:[%s0 + $0x258] sm:$0xff]
  %v90 = vld [vmem:[%s0 + $0x260] sm:$0xff]
  %v91 = vld [vmem:[%s0 + $0x268] sm:$0xff]
  %v92 = vld [vmem:[%s0 + $0x270] sm:$0xff]
  %v93 = vld [vmem:[%s0 + $0x278] sm:$0xff]
  %v94 = vld [vmem:[%s0 + $0x280] sm:$0xff]
  %v95 = vld [vmem:[%s0 + $0x288] sm:$0xff]
  %v96 = vld [vmem:[%s0 + $0x290] sm:$0xff]
  %v97 = vld [vmem:[%s0 + $0x298] sm:$0xff]
  %v98 = vld [vmem:[%s1] sm:$0xff]
  %v99 = vld [vmem:[%s1 + $0x8] sm:$0xff]
  %v100 = vld [vmem:[%s1 + $0x10] sm:$0xff]
  %v101 = vld [vmem:[%s1 + $0x18] sm:$0xff]
  %v102 = vld [vmem:[%s1 + $0x20] sm:$0xff]
  %v103 = vld [vmem:[%s1 + $0x28] sm:$0xff]
  %v104 = vld [vmem:[%s1 + $0x30] sm:$0xff]
  %v105 = vld [vmem:[%s1 + $0x38] sm:$0xff]
  %v106 = vld [vmem:[%s1 + $0x40] sm:$0xff]
  %v107 = vld [vmem:[%s1 + $0x48] sm:$0xff]
  %v108 = vld [vmem:[%s1 + $0x50] sm:$0xff]
  %v109 = vld [vmem:[%s1 + $0x58] sm:$0xff]
  %v110 = vld [vmem:[%s1 + $0x60] sm:$0xff]
  %v111 = vld [vmem:[%s1 + $0x68] sm:$0xff]
  %v112 = vld [vmem:[%s1 + $0x70] sm:$0xff]
  %v113 = vld [vmem:[%s1 + $0x78] sm:$0xff]
  %v114 = vld [vmem:[%s1 + $0x80] sm:$0xff]
  %v115 = vld [vmem:[%s1 + $0x88] sm:$0xff]
  %v116 = vld [vmem:[%s1 + $0x90] sm:$0xff]
  %v117 = vld [vmem:[%s1 + $0x98] sm:$0xff]
  %v118 = vld [vmem:[%s1 + $0xa0] sm:$0xff]
  %v119 = vld [vmem:[%s1 + $0xa8] sm:$0xff]
  %v120 = vld [vmem:[%s1 + $0xb0] sm:$0xff]
  %v121 = vld [vmem:[%s1 + $0xb8] sm:$0xff]
  %v122 = vld [vmem:[%s1 + $0xc0] sm:$0xff]
  %v123 = vld [vmem:[%s1 + $0xc8] sm:$0xff]
  %v124 = vld [vmem:[%s1 + $0xd0] sm:$0xff]
  %v125 = vld [vmem:[%s1 + $0xd8] sm:$0xff]
  %v126 = vld [vmem:[%s1 + $0xe0] sm:$0xff]
  %v127 = vld [vmem:[%s1 + $0xe8] sm:$0xff]
  %v128 = vld [vmem:[%s1 + $0xf0] sm:$0xff]
  %v129 = vld [vmem:[%s1 + $0xf8] sm:$0xff]
  %v130 = vld [vmem:[%s1 + $0x100] sm:$0xff]
  %v131 = vld [vmem:[%s1 + $0x108] sm:$0xff]
  %v132 = vld [vmem:[%s1 + $0x110] sm:$0xff]
  %v133 = vld [vmem:[%s1 + $0x118] sm:$0xff]
  %v134 = vld [vmem:[%s1 + $0x120] sm:$0xff]
  %v135 = vld [vmem:[%s1 + $0x128] sm:$0xff]
  %v136 = vld [vmem:[%s1 + $0x130] sm:$0xff]
  %v137 = vld [vmem:[%s1 + $0x138] sm:$0xff]
  %v138 = vld [vmem:[%s1 + $0x140] sm:$0xff]
  %v139 = vld [vmem:[%s1 + $0x148] sm:$0xff]
  %v140 = vld [vmem:[%s1 + $0x150] sm:$0xff]
  %v141 = vld [vmem:[%s1 + $0x158] sm:$0xff]
  %v142 = vld [vmem:[%s1 + $0x160] sm:$0xff]
  %v143 = vld [vmem:[%s1 + $0x168] sm:$0xff]
  %v144 = vld [vmem:[%s1 + $0x170] sm:$0xff]
  %v145 = vld [vmem:[%s1 + $0x178] sm:$0xff]
  %v146 = vld [vmem:[%s1 + $0x180] sm:$0xff]
  %v147 = vld [vmem:[%s1 + $0x188] sm:$0xff]
  %v148 = vld [vmem:[%s1 + $0x190] sm:$0xff]
  %v149 = vld [vmem:[%s1 + $0x198] sm:$0xff]
  %v150 = vld [vmem:[%s1 + $0x1a0] sm:$0xff]
  %v151 = vld [vmem:[%s1 + $0x1a8] sm:$0xff]
  %v152 = vld [vmem:[%s1 + $0x1b0] sm:$0xff]
  %v153 = vld [vmem:[%s1 + $0x1b8] sm:$0xff]
  %v154 = vld [vmem:[%s1 + $0x1c0] sm:$0xff]
  %v155 = vld [vmem:[%s1 + $0x1c8] sm:$0xff]
  %v156 = vld [vmem:[%s1 + $0x1d0] sm:$0xff]
  %v157 = vld [vmem:[%s1 + $0x1d8] sm:$0xff]
  %v158 = vld [vmem:[%s1 + $0x1e0] sm:$0xff]
  %v159 = vld [vmem:[%s1 + $0x1e8] sm:$0xff]
  %v160 = vld [vmem:[%s1 + $0x1f0] sm:$0xff]
  %v161 = vld [vmem:[%s1 + $0x1f8] sm:$0xff]
  %v162 = vld [vmem:[%s2] sm:$0x1]
  %v164 = vlaneseq
  %v165 = vshrl.u32 %v164, 7
  %v166 = vsub.s32 0, %v165
  %v167 = vrot.slane %v162, %v166
  %169 = vmatprep.subr.mxu0 0.0
  %170 = vmatpush1.msra.mxu0 %v98
  %171 = vmatprep.subr.mxu0 0.0
  %172 = vmatpush1.msra.mxu0 %v99
  %173 = vmatprep.subr.mxu0 0.0
  %174 = vmatpush1.msra.mxu0 %v100
  %175 = vmatprep.subr.mxu0 0.0
  %176 = vmatpush1.msra.mxu0 %v101
  %177 = vmatprep.subr.mxu0 0.0
  %178 = vmatpush1.msra.mxu0 %v102
  %179 = vmatprep.subr.mxu0 0.0
  %180 = vmatpush1.msra.mxu0 %v103
  %181 = vmatprep.subr.mxu0 0.0
  %182 = vmatpush1.msra.mxu0 %v104
  %183 = vmatprep.subr.mxu0 0.0
  %184 = vmatpush1.msra.mxu0 %v105
  %185 = vmatprep.subr.mxu0 0.0
  %186 = vmatpush1.msra.mxu0 %v106
  %187 = vmatprep.subr.mxu0 0.0
  %188 = vmatpush1.msra.mxu0 %v107
  %189 = vmatprep.subr.mxu0 0.0
  %190 = vmatpush1.msra.mxu0 %v108
  %191 = vmatprep.subr.mxu0 0.0
  %192 = vmatpush1.msra.mxu0 %v109
  %193 = vmatprep.subr.mxu0 0.0
  %194 = vmatpush1.msra.mxu0 %v110
  %195 = vmatprep.subr.mxu0 0.0
  %196 = vmatpush1.msra.mxu0 %v111
  %197 = vmatprep.subr.mxu0 0.0
  %198 = vmatpush1.msra.mxu0 %v112
  %199 = vmatprep.subr.mxu0 0.0
  %200 = vmatpush1.msra.mxu0 %v113
  %201 = vmatprep.subr.mxu0 0.0
  %202 = vmatpush1.msra.mxu0 %v114
  %203 = vmatprep.subr.mxu0 0.0
  %204 = vmatpush1.msra.mxu0 %v115
  %205 = vmatprep.subr.mxu0 0.0
  %206 = vmatpush1.msra.mxu0 %v116
  %207 = vmatprep.subr.mxu0 0.0
  %208 = vmatpush1.msra.mxu0 %v117
  %209 = vmatprep.subr.mxu0 0.0
  %210 = vmatpush1.msra.mxu0 %v118
  %211 = vmatprep.subr.mxu0 0.0
  %212 = vmatpush1.msra.mxu0 %v119
  %213 = vmatprep.subr.mxu0 0.0
  %214 = vmatpush1.msra.mxu0 %v120
  %215 = vmatprep.subr.mxu0 0.0
  %216 = vmatpush1.msra.mxu0 %v121
  %217 = vmatprep.subr.mxu0 0.0
  %218 = vmatpush1.msra.mxu0 %v122
  %219 = vmatprep.subr.mxu0 0.0
  %220 = vmatpush1.msra.mxu0 %v123
  %221 = vmatprep.subr.mxu0 0.0
  %222 = vmatpush1.msra.mxu0 %v124
  %223 = vmatprep.subr.mxu0 0.0
  %224 = vmatpush1.msra.mxu0 %v125
  %225 = vmatprep.subr.mxu0 0.0
  %226 = vmatpush1.msra.mxu0 %v126
  %227 = vmatprep.subr.mxu0 0.0
  %228 = vmatpush1.msra.mxu0 %v127
  %229 = vmatprep.subr.mxu0 0.0
  %230 = vmatpush1.msra.mxu0 %v128
  %231 = vmatprep.subr.mxu0 0.0
  %232 = vmatpush1.msra.mxu0 %v129
  %233 = vmatprep.mubr.f32.mxu0 %v15
  %234 = vmatmul.mubr.f32.gmra.mrb[0].mxu0 %v14
  %v235 = vpop.f32.mrb[0].mxu0
  %v236 = vadd.f32 %v167, %v235
  %v237 = vpop.f32.mrb[0].mxu0
  %238 = vmatprep.mubr.f32.mxu0 %v19
  %239 = vmatmul.mubr.f32.gmra.mrb[0].mxu0 %v18
  %v240 = vpop.f32.mrb[0].mxu0
  %v241 = vadd.f32 %v167, %v240
  %v242 = vpop.f32.mrb[0].mxu0
  %243 = vmatprep.mubr.f32.mxu0 %v23
  %244 = vmatmul.mubr.f32.gmra.mrb[0].mxu0 %v22
  %v245 = vpop.f32.mrb[0].mxu0
  %v246 = vadd.f32 %v167, %v245
  %v247 = vpop.f32.mrb[0].mxu0
  %248 = vmatprep.mubr.f32.mxu0 %v27
  %249 = vmatmul.mubr.f32.gmra.mrb[0].mxu0 %v26
  %v250 = vpop.f32.mrb[0].mxu0
  %v251 = vadd.f32 %v167, %v250
  %v252 = vpop.f32.mrb[0].mxu0
  %253 = vmatprep.mubr.f32.mxu0 %v31
  %254 = vmatmul.mubr.f32.gmra.mrb[0].mxu0 %v30
  %v255 = vpop.f32.mrb[0].mxu0
  %v256 = vadd.f32 %v167, %v255
  %v257 = vpop.f32.mrb[0].mxu0
  %258 = vmatprep.mubr.f32.mxu0 %v35
  %259 = vmatmul.mubr.f32.gmra.mrb[0].mxu0 %v34
  %v260 = vpop.f32.mrb[0].mxu0
  %v261 = vadd.f32 %v167, %v260
  %v262 = vpop.f32.mrb[0].mxu0
  %263 = vmatprep.mubr.f32.mxu0 %v39
  %264 = vmatmul.mubr.f32.gmra.mrb[0].mxu0 %v38
  %v265 = vpop.f32.mrb[0].mxu0
  %v266 = vadd.f32 %v167, %v265
  %v267 = vpop.f32.mrb[0].mxu0
  %268 = vmatprep.mubr.f32.mxu0 %v43
  %269 = vmatmul.mubr.f32.gmra.mrb[0].mxu0 %v42
  %v270 = vpop.f32.mrb[0].mxu0
  %v271 = vadd.f32 %v167, %v270
  %v272 = vpop.f32.mrb[0].mxu0
  %273 = vmatprep.mubr.f32.mxu0 %v47
  %274 = vmatmul.mubr.f32.gmra.mrb[0].mxu0 %v46
  %v275 = vpop.f32.mrb[0].mxu0
  %v276 = vadd.f32 %v167, %v275
  %v277 = vpop.f32.mrb[0].mxu0
  %278 = vmatprep.mubr.f32.mxu0 %v51
  %279 = vmatmul.mubr.f32.gmra.mrb[0].mxu0 %v50
  %v280 = vpop.f32.mrb[0].mxu0
  %v281 = vadd.f32 %v167, %v280
  %v282 = vpop.f32.mrb[0].mxu0
  %283 = vmatprep.mubr.f32.mxu0 %v55
  %284 = vmatmul.mubr.f32.gmra.mrb[0].mxu0 %v54
  %v285 = vpop.f32.mrb[0].mxu0
  %v286 = vadd.f32 %v167, %v285
  %v287 = vpop.f32.mrb[0].mxu0
  %288 = vmatprep.mubr.f32.mxu0 %v59
  %289 = vmatmul.mubr.f32.gmra.mrb[0].mxu0 %v58
  %v290 = vpop.f32.mrb[0].mxu0
  %v291 = vadd.f32 %v167, %v290
  %v292 = vpop.f32.mrb[0].mxu0
  %293 = vmatprep.mubr.f32.mxu0 %v63
  %294 = vmatmul.mubr.f32.gmra.mrb[0].mxu0 %v62
  %v295 = vpop.f32.mrb[0].mxu0
  %v296 = vadd.f32 %v167, %v295
  %v297 = vpop.f32.mrb[0].mxu0
  %298 = vmatprep.mubr.f32.mxu0 %v67
  %299 = vmatmul.mubr.f32.gmra.mrb[0].mxu0 %v66
  %v300 = vpop.f32.mrb[0].mxu0
  %v301 = vadd.f32 %v167, %v300
  %v302 = vpop.f32.mrb[0].mxu0
  %303 = vmatprep.mubr.f32.mxu0 %v71
  %304 = vmatmul.mubr.f32.gmra.mrb[0].mxu0 %v70
  %v305 = vpop.f32.mrb[0].mxu0
  %v306 = vadd.f32 %v167, %v305
  %v307 = vpop.f32.mrb[0].mxu0
  %308 = vmatprep.mubr.f32.mxu0 %v75
  %309 = vmatmul.mubr.f32.gmra.mrb[0].mxu0 %v74
  %v310 = vpop.f32.mrb[0].mxu0
  %v311 = vadd.f32 %v167, %v310
  %v312 = vpop.f32.mrb[0].mxu0
  %313 = vmatprep.mubr.f32.mxu0 %v79
  %314 = vmatmul.mubr.f32.gmra.mrb[0].mxu0 %v78
  %v315 = vpop.f32.mrb[0].mxu0
  %v316 = vadd.f32 %v167, %v315
  %v317 = vpop.f32.mrb[0].mxu0
  %318 = vmatprep.mubr.f32.mxu0 %v83
  %319 = vmatmul.mubr.f32.gmra.mrb[0].mxu0 %v82
  %v320 = vpop.f32.mrb[0].mxu0
  %v321 = vadd.f32 %v167, %v320
  %v322 = vpop.f32.mrb[0].mxu0
  %323 = vmatprep.mubr.f32.mxu0 %v87
  %324 = vmatmul.mubr.f32.gmra.mrb[0].mxu0 %v86
  %v325 = vpop.f32.mrb[0].mxu0
  %v326 = vadd.f32 %v167, %v325
  %v327 = vpop.f32.mrb[0].mxu0
  %328 = vmatprep.mubr.f32.mxu0 %v91
  %329 = vmatmul.mubr.f32.gmra.mrb[0].mxu0 %v90
  %v330 = vpop.f32.mrb[0].mxu0
  %v331 = vadd.f32 %v167, %v330
  %v332 = vpop.f32.mrb[0].mxu0
  %333 = vmatprep.mubr.f32.mxu0 %v95
  %334 = vmatmul.mubr.f32.gmra.mrb[0].mxu0 %v94
  %v335 = vpop.f32.mrb[0].mxu0
  %v336 = vadd.f32 %v167, %v335
  %v337 = vpop.f32.mrb[0].mxu0
  %338 = vdwg.mxu0
  %339 = vmatprep.subr.mxu0 0.0
  %340 = vmatpush1.msra.mxu0 %v130
  %341 = vmatprep.subr.mxu0 0.0
  %342 = vmatpush1.msra.mxu0 %v131
  %343 = vmatprep.subr.mxu0 0.0
  %344 = vmatpush1.msra.mxu0 %v132
  %345 = vmatprep.subr.mxu0 0.0
  %346 = vmatpush1.msra.mxu0 %v133
  %347 = vmatprep.subr.mxu0 0.0
  %348 = vmatpush1.msra.mxu0 %v134
  %349 = vmatprep.subr.mxu0 0.0
  %350 = vmatpush1.msra.mxu0 %v135
  %351 = vmatprep.subr.mxu0 0.0
  %352 = vmatpush1.msra.mxu0 %v136
  %353 = vmatprep.subr.mxu0 0.0
  %354 = vmatpush1.msra.mxu0 %v137
  %355 = vmatprep.subr.mxu0 0.0
  %356 = vmatpush1.msra.mxu0 %v138
  %357 = vmatprep.subr.mxu0 0.0
  %358 = vmatpush1.msra.mxu0 %v139
  %359 = vmatprep.subr.mxu0 0.0
  %360 = vmatpush1.msra.mxu0 %v140
  %361 = vmatprep.subr.mxu0 0.0
  %362 = vmatpush1.msra.mxu0 %v141
  %363 = vmatprep.subr.mxu0 0.0
  %364 = vmatpush1.msra.mxu0 %v142
  %365 = vmatprep.subr.mxu0 0.0
  %366 = vmatpush1.msra.mxu0 %v143
  %367 = vmatprep.subr.mxu0 0.0
  %368 = vmatpush1.msra.mxu0 %v144
  %369 = vmatprep.subr.mxu0 0.0
  %370 = vmatpush1.msra.mxu0 %v145
  %371 = vmatprep.subr.mxu0 0.0
  %372 = vmatpush1.msra.mxu0 %v146
  %373 = vmatprep.subr.mxu0 0.0
  %374 = vmatpush1.msra.mxu0 %v147
  %375 = vmatprep.subr.mxu0 0.0
  %376 = vmatpush1.msra.mxu0 %v148
  %377 = vmatprep.subr.mxu0 0.0
  %378 = vmatpush1.msra.mxu0 %v149
  %379 = vmatprep.subr.mxu0 0.0
  %380 = vmatpush1.msra.mxu0 %v150
  %381 = vmatprep.subr.mxu0 0.0
  %382 = vmatpush1.msra.mxu0 %v151
  %383 = vmatprep.subr.mxu0 0.0
  %384 = vmatpush1.msra.mxu0 %v152
  %385 = vmatprep.subr.mxu0 0.0
  %386 = vmatpush1.msra.mxu0 %v153
  %387 = vmatprep.subr.mxu0 0.0
  %388 = vmatpush1.msra.mxu0 %v154
  %389 = vmatprep.subr.mxu0 0.0
  %390 = vmatpush1.msra.mxu0 %v155
  %391 = vmatprep.subr.mxu0 0.0
  %392 = vmatpush1.msra.mxu0 %v156
  %393 = vmatprep.subr.mxu0 0.0
  %394 = vmatpush1.msra.mxu0 %v157
  %395 = vmatprep.subr.mxu0 0.0
  %396 = vmatpush1.msra.mxu0 %v158
  %397 = vmatprep.subr.mxu0 0.0
  %398 = vmatpush1.msra.mxu0 %v159
  %399 = vmatprep.subr.mxu0 0.0
  %400 = vmatpush1.msra.mxu0 %v160
  %401 = vmatprep.subr.mxu0 0.0
  %402 = vmatpush1.msra.mxu0 %v161
  %403 = vmatprep.mubr.f32.mxu0 %v17
  %404 = vmatmul.mubr.f32.gmra.mrb[0].mxu0 %v16
  %v405 = vpop.f32.mrb[0].mxu0
  %v406 = vadd.f32 %v236, %v405
  %v407 = vpop.f32.mrb[0].mxu0
  %408 = vmatprep.mubr.f32.mxu0 %v21
  %409 = vmatmul.mubr.f32.gmra.mrb[0].mxu0 %v20
  %v410 = vpop.f32.mrb[0].mxu0
  %v411 = vadd.f32 %v241, %v410
  %v412 = vpop.f32.mrb[0].mxu0
  %413 = vmatprep.mubr.f32.mxu0 %v25
  %414 = vmatmul.mubr.f32.gmra.mrb[0].mxu0 %v24
  %v415 = vpop.f32.mrb[0].mxu0
  %v416 = vadd.f32 %v246, %v415
  %v417 = vpop.f32.mrb[0].mxu0
  %418 = vmatprep.mubr.f32.mxu0 %v29
  %419 = vmatmul.mubr.f32.gmra.mrb[0].mxu0 %v28
  %v420 = vpop.f32.mrb[0].mxu0
  %v421 = vadd.f32 %v251, %v420
  %v422 = vpop.f32.mrb[0].mxu0
  %423 = vmatprep.mubr.f32.mxu0 %v33
  %424 = vmatmul.mubr.f32.gmra.mrb[0].mxu0 %v32
  %v425 = vpop.f32.mrb[0].mxu0
  %v426 = vadd.f32 %v256, %v425
  %v427 = vpop.f32.mrb[0].mxu0
  %428 = vmatprep.mubr.f32.mxu0 %v37
  %429 = vmatmul.mubr.f32.gmra.mrb[0].mxu0 %v36
  %v430 = vpop.f32.mrb[0].mxu0
  %v431 = vadd.f32 %v261, %v430
  %v432 = vpop.f32.mrb[0].mxu0
  %433 = vmatprep.mubr.f32.mxu0 %v41
  %434 = vmatmul.mubr.f32.gmra.mrb[0].mxu0 %v40
  %v435 = vpop.f32.mrb[0].mxu0
  %v436 = vadd.f32 %v266, %v435
  %v437 = vpop.f32.mrb[0].mxu0
  %438 = vmatprep.mubr.f32.mxu0 %v45
  %439 = vmatmul.mubr.f32.gmra.mrb[0].mxu0 %v44
  %v440 = vpop.f32.mrb[0].mxu0
  %v441 = vadd.f32 %v271, %v440
  %v442 = vpop.f32.mrb[0].mxu0
  %443 = vmatprep.mubr.f32.mxu0 %v49
  %444 = vmatmul.mubr.f32.gmra.mrb[0].mxu0 %v48
  %v445 = vpop.f32.mrb[0].mxu0
  %v446 = vadd.f32 %v276, %v445
  %v447 = vpop.f32.mrb[0].mxu0
  %448 = vmatprep.mubr.f32.mxu0 %v53
  %449 = vmatmul.mubr.f32.gmra.mrb[0].mxu0 %v52
  %v450 = vpop.f32.mrb[0].mxu0
  %v451 = vadd.f32 %v281, %v450
  %v452 = vpop.f32.mrb[0].mxu0
  %453 = vmatprep.mubr.f32.mxu0 %v57
  %454 = vmatmul.mubr.f32.gmra.mrb[0].mxu0 %v56
  %v455 = vpop.f32.mrb[0].mxu0
  %v456 = vadd.f32 %v286, %v455
  %v457 = vpop.f32.mrb[0].mxu0
  %458 = vmatprep.mubr.f32.mxu0 %v61
  %459 = vmatmul.mubr.f32.gmra.mrb[0].mxu0 %v60
  %v460 = vpop.f32.mrb[0].mxu0
  %v461 = vadd.f32 %v291, %v460
  %v462 = vpop.f32.mrb[0].mxu0
  %463 = vmatprep.mubr.f32.mxu0 %v65
  %464 = vmatmul.mubr.f32.gmra.mrb[0].mxu0 %v64
  %v465 = vpop.f32.mrb[0].mxu0
  %v466 = vadd.f32 %v296, %v465
  %v467 = vpop.f32.mrb[0].mxu0
  %468 = vmatprep.mubr.f32.mxu0 %v69
  %469 = vmatmul.mubr.f32.gmra.mrb[0].mxu0 %v68
  %v470 = vpop.f32.mrb[0].mxu0
  %v471 = vadd.f32 %v301, %v470
  %v472 = vpop.f32.mrb[0].mxu0
  %473 = vmatprep.mubr.f32.mxu0 %v73
  %474 = vmatmul.mubr.f32.gmra.mrb[0].mxu0 %v72
  %v475 = vpop.f32.mrb[0].mxu0
  %v476 = vadd.f32 %v306, %v475
  %v477 = vpop.f32.mrb[0].mxu0
  %478 = vmatprep.mubr.f32.mxu0 %v77
  %479 = vmatmul.mubr.f32.gmra.mrb[0].mxu0 %v76
  %v480 = vpop.f32.mrb[0].mxu0
  %v481 = vadd.f32 %v311, %v480
  %v482 = vpop.f32.mrb[0].mxu0
  %483 = vmatprep.mubr.f32.mxu0 %v81
  %484 = vmatmul.mubr.f32.gmra.mrb[0].mxu0 %v80
  %v485 = vpop.f32.mrb[0].mxu0
  %v486 = vadd.f32 %v316, %v485
  %v487 = vpop.f32.mrb[0].mxu0
  %488 = vmatprep.mubr.f32.mxu0 %v85
  %489 = vmatmul.mubr.f32.gmra.mrb[0].mxu0 %v84
  %v490 = vpop.f32.mrb[0].mxu0
  %v491 = vadd.f32 %v321, %v490
  %v492 = vpop.f32.mrb[0].mxu0
  %493 = vmatprep.mubr.f32.mxu0 %v89
  %494 = vmatmul.mubr.f32.gmra.mrb[0].mxu0 %v88
  %v495 = vpop.f32.mrb[0].mxu0
  %v496 = vadd.f32 %v326, %v495
  %v497 = vpop.f32.mrb[0].mxu0
  %498 = vmatprep.mubr.f32.mxu0 %v93
  %499 = vmatmul.mubr.f32.gmra.mrb[0].mxu0 %v92
  %v500 = vpop.f32.mrb[0].mxu0
  %v501 = vadd.f32 %v331, %v500
  %v502 = vpop.f32.mrb[0].mxu0
  %503 = vmatprep.mubr.f32.mxu0 %v97
  %504 = vmatmul.mubr.f32.gmra.mrb[0].mxu0 %v96
  %v505 = vpop.f32.mrb[0].mxu0
  %v506 = vadd.f32 %v336, %v505
  %v507 = vpop.f32.mrb[0].mxu0
  %508 = vdwg.mxu0
  %v509 = vmax.f32 %v406, 0.0
  %v510 = vmax.f32 %v411, 0.0
  %v511 = vmax.f32 %v416, 0.0
  %v512 = vmax.f32 %v421, 0.0
  %v513 = vmax.f32 %v426, 0.0
  %v514 = vmax.f32 %v431, 0.0
  %v515 = vmax.f32 %v436, 0.0
  %v516 = vmax.f32 %v441, 0.0
  %v517 = vmax.f32 %v446, 0.0
  %v518 = vmax.f32 %v451, 0.0
  %v519 = vmax.f32 %v456, 0.0
  %v520 = vmax.f32 %v461, 0.0
  %v521 = vmax.f32 %v466, 0.0
  %v522 = vmax.f32 %v471, 0.0
  %v523 = vmax.f32 %v476, 0.0
  %v524 = vmax.f32 %v481, 0.0
  %v525 = vmax.f32 %v486, 0.0
  %v526 = vmax.f32 %v491, 0.0
  %v527 = vmax.f32 %v496, 0.0
  %v528 = vmax.f32 %v501, 0.0
  %v529 = vmax.f32 %v506, 0.0
  %530 = vst [vmem:[%s3] sm:$0xff] %v509
  %531 = vst [vmem:[%s3 + $0x8] sm:$0xff] %v510
  %532 = vst [vmem:[%s3 + $0x10] sm:$0xff] %v511
  %533 = vst [vmem:[%s3 + $0x18] sm:$0xff] %v512
  %534 = vst [vmem:[%s3 + $0x20] sm:$0xff] %v513
  %535 = vst [vmem:[%s3 + $0x28] sm:$0xff] %v514
  %536 = vst [vmem:[%s3 + $0x30] sm:$0xff] %v515
  %537 = vst [vmem:[%s3 + $0x38] sm:$0xff] %v516
  %538 = vst [vmem:[%s3 + $0x40] sm:$0xff] %v517
  %539 = vst [vmem:[%s3 + $0x48] sm:$0xff] %v518
  %540 = vst [vmem:[%s3 + $0x50] sm:$0xff] %v519
  %541 = vst [vmem:[%s3 + $0x58] sm:$0xff] %v520
  %542 = vst [vmem:[%s3 + $0x60] sm:$0xff] %v521
  %543 = vst [vmem:[%s3 + $0x68] sm:$0xff] %v522
  %544 = vst [vmem:[%s3 + $0x70] sm:$0xff] %v523
  %545 = vst [vmem:[%s3 + $0x78] sm:$0xff] %v524
  %546 = vst [vmem:[%s3 + $0x80] sm:$0xff] %v525
  %547 = vst [vmem:[%s3 + $0x88] sm:$0xff] %v526
  %548 = vst [vmem:[%s3 + $0x90] sm:$0xff] %v527
  %549 = vst [vmem:[%s3 + $0x98] sm:$0xff] %v528
  %550 = vst [vmem:[%s3 + $0xa0] sm:$0xff] %v529
  // Predicated region
  $region14: #{dqn_forward.5} parent=0 // pred_check
    _
  $region15: #{dqn_forward.5} parent=0 // pred_check_branch
    %552 = sbr.rel (0) target = $region17
  $region16: #{dqn_forward.5} parent=0 // pred_region
    _
  $region17: #{dqn_forward.5} parent=0 // pred_fallthru
    _
  // Predicated region
  $region18: #{dqn_forward.5} parent=0 // pred_check
    _
  $region19: #{dqn_forward.5} parent=0 // pred_check_branch
    %554 = sbr.rel (0) target = $region21
  $region20: #{dqn_forward.5} parent=0 // pred_region
    _
  $region21: #{dqn_forward.5} parent=0 // pred_fallthru
    _

// kernel: dqn_forward.6
$region0: #{dqn_forward.6}
  #allocation0 [shape = 'u32[]', space=smem, size = 0x4, offset = 0x4, fixed_abs, tag = 'smem constant byte address 0x4 - core index']
  #allocation1 [shape = 'u32[144,128]{1,0:T(1,128)}', space=vmem, size = 0x12000, scoped, tag = 'internal scratch']
  %s0 = inlined_call_operand.vmem [shape: f32[104,640], index: 0, kind: input, shape index: {}]
  %s1 = inlined_call_operand.vmem [shape: f32[640,128], index: 1, kind: input, shape index: {}]
  %s2 = inlined_call_operand.vmem [shape: f32[1,128], index: 2, kind: input, shape index: {}]
  %s3 = inlined_call_operand.vmem [shape: f32[104,128], index: 3, kind: output, shape index: {}]
  %s4 = sld [smem:[#allocation0]]
  $region22: #{dqn_forward.6} parent=0
    _
  %s6 = ssub.s32 1, %s4
  %s7 = scalar_select 0, %s6, %s4
  // Predicated region
  $region2: #{dqn_forward.6} parent=0 // pred_check
    _
  $region3: #{dqn_forward.6} parent=0 // pred_check_branch
    %9 = sbr.rel (0) target = $region5
  $region4: #{dqn_forward.6} parent=0 // pred_region
    _
  $region5: #{dqn_forward.6} parent=0 // pred_fallthru
    _
  // Predicated region
  $region6: #{dqn_forward.6} parent=0 // pred_check
    _
  $region7: #{dqn_forward.6} parent=0 // pred_check_branch
    %11 = sbr.rel (0) target = $region9
  $region8: #{dqn_forward.6} parent=0 // pred_region
    _
  $region9: #{dqn_forward.6} parent=0 // pred_fallthru
    _
  // Predicated region
  $region10: #{dqn_forward.6} parent=0 // pred_check
    _
  $region11: #{dqn_forward.6} parent=0 // pred_check_branch
    %13 = sbr.rel (0) target = $region13
  $region12: #{dqn_forward.6} parent=0 // pred_region
    _
  $region13: #{dqn_forward.6} parent=0 // pred_fallthru
    _
  %v14 = vld [vmem:[%s0] sm:$0xff]
  %v15 = vld [vmem:[%s0 + $0x8] sm:$0xff]
  %v16 = vld [vmem:[%s0 + $0x10] sm:$0xff]
  %v17 = vld [vmem:[%s0 + $0x18] sm:$0xff]
  %v18 = vld [vmem:[%s0 + $0x20] sm:$0xff]
  %v19 = vld [vmem:[%s0 + $0x28] sm:$0xff]
  %v20 = vld [vmem:[%s0 + $0x30] sm:$0xff]
  %v21 = vld [vmem:[%s0 + $0x38] sm:$0xff]
  %v22 = vld [vmem:[%s0 + $0x40] sm:$0xff]
  %v23 = vld [vmem:[%s0 + $0x48] sm:$0xff]
  %v24 = vld [vmem:[%s0 + $0x50] sm:$0xff]
  %v25 = vld [vmem:[%s0 + $0x58] sm:$0xff]
  %v26 = vld [vmem:[%s0 + $0x60] sm:$0xff]
  %v27 = vld [vmem:[%s0 + $0x68] sm:$0xff]
  %v28 = vld [vmem:[%s0 + $0x70] sm:$0xff]
  %v29 = vld [vmem:[%s0 + $0x78] sm:$0xff]
  %v30 = vld [vmem:[%s0 + $0x80] sm:$0xff]
  %v31 = vld [vmem:[%s0 + $0x88] sm:$0xff]
  %v32 = vld [vmem:[%s0 + $0x90] sm:$0xff]
  %v33 = vld [vmem:[%s0 + $0x98] sm:$0xff]
  %v34 = vld [vmem:[%s0 + $0xa0] sm:$0xff]
  %v35 = vld [vmem:[%s0 + $0xa8] sm:$0xff]
  %v36 = vld [vmem:[%s0 + $0xb0] sm:$0xff]
  %v37 = vld [vmem:[%s0 + $0xb8] sm:$0xff]
  %v38 = vld [vmem:[%s0 + $0xc0] sm:$0xff]
  %v39 = vld [vmem:[%s0 + $0xc8] sm:$0xff]
  %v40 = vld [vmem:[%s0 + $0xd0] sm:$0xff]
  %v41 = vld [vmem:[%s0 + $0xd8] sm:$0xff]
  %v42 = vld [vmem:[%s0 + $0xe0] sm:$0xff]
  %v43 = vld [vmem:[%s0 + $0xe8] sm:$0xff]
  %v44 = vld [vmem:[%s0 + $0xf0] sm:$0xff]
  %v45 = vld [vmem:[%s0 + $0xf8] sm:$0xff]
  %v46 = vld [vmem:[%s0 + $0x100] sm:$0xff]
  %v47 = vld [vmem:[%s0 + $0x108] sm:$0xff]
  %v48 = vld [vmem:[%s0 + $0x110] sm:$0xff]
  %v49 = vld [vmem:[%s0 + $0x118] sm:$0xff]
  %v50 = vld [vmem:[%s0 + $0x120] sm:$0xff]
  %v51 = vld [vmem:[%s0 + $0x128] sm:$0xff]
  %v52 = vld [vmem:[%s0 + $0x130] sm:$0xff]
  %v53 = vld [vmem:[%s0 + $0x138] sm:$0xff]
  %v54 = vld [vmem:[%s0 + $0x140] sm:$0xff]
  %v55 = vld [vmem:[%s0 + $0x148] sm:$0xff]
  %v56 = vld [vmem:[%s0 + $0x150] sm:$0xff]
  %v57 = vld [vmem:[%s0 + $0x158] sm:$0xff]
  %v58 = vld [vmem:[%s0 + $0x160] sm:$0xff]
  %v59 = vld [vmem:[%s0 + $0x168] sm:$0xff]
  %v60 = vld [vmem:[%s0 + $0x170] sm:$0xff]
  %v61 = vld [vmem:[%s0 + $0x178] sm:$0xff]
  %v62 = vld [vmem:[%s0 + $0x180] sm:$0xff]
  %v63 = vld [vmem:[%s0 + $0x188] sm:$0xff]
  %v64 = vld [vmem:[%s0 + $0x190] sm:$0xff]
  %v65 = vld [vmem:[%s0 + $0x198] sm:$0xff]
  %v66 = vld [vmem:[%s0 + $0x1a0] sm:$0xff]
  %v67 = vld [vmem:[%s0 + $0x1a8] sm:$0xff]
  %v68 = vld [vmem:[%s0 + $0x1b0] sm:$0xff]
  %v69 = vld [vmem:[%s0 + $0x1b8] sm:$0xff]
  %v70 = vld [vmem:[%s0 + $0x1c0] sm:$0xff]
  %v71 = vld [vmem:[%s0 + $0x1c8] sm:$0xff]
  %v72 = vld [vmem:[%s0 + $0x1d0] sm:$0xff]
  %v73 = vld [vmem:[%s0 + $0x1d8] sm:$0xff]
  %v74 = vld [vmem:[%s0 + $0x1e0] sm:$0xff]
  %v75 = vld [vmem:[%s0 + $0x1e8] sm:$0xff]
  %v76 = vld [vmem:[%s0 + $0x1f0] sm:$0xff]
  %v77 = vld [vmem:[%s0 + $0x1f8] sm:$0xff]
  %v78 = vld [vmem:[%s0 + $0x200] sm:$0xff]
  %v79 = vld [vmem:[%s1] sm:$0xff]
  %v80 = vld [vmem:[%s1 + $0x8] sm:$0xff]
  %v81 = vld [vmem:[%s1 + $0x10] sm:$0xff]
  %v82 = vld [vmem:[%s1 + $0x18] sm:$0xff]
  %v83 = vld [vmem:[%s1 + $0x20] sm:$0xff]
  %v84 = vld [vmem:[%s1 + $0x28] sm:$0xff]
  %v85 = vld [vmem:[%s1 + $0x30] sm:$0xff]
  %v86 = vld [vmem:[%s1 + $0x38] sm:$0xff]
  %v87 = vld [vmem:[%s1 + $0x40] sm:$0xff]
  %v88 = vld [vmem:[%s1 + $0x48] sm:$0xff]
  %v89 = vld [vmem:[%s1 + $0x50] sm:$0xff]
  %v90 = vld [vmem:[%s1 + $0x58] sm:$0xff]
  %v91 = vld [vmem:[%s1 + $0x60] sm:$0xff]
  %v92 = vld [vmem:[%s1 + $0x68] sm:$0xff]
  %v93 = vld [vmem:[%s1 + $0x70] sm:$0xff]
  %v94 = vld [vmem:[%s1 + $0x78] sm:$0xff]
  %v95 = vld [vmem:[%s1 + $0x80] sm:$0xff]
  %v96 = vld [vmem:[%s1 + $0x88] sm:$0xff]
  %v97 = vld [vmem:[%s1 + $0x90] sm:$0xff]
  %v98 = vld [vmem:[%s1 + $0x98] sm:$0xff]
  %v99 = vld [vmem:[%s1 + $0xa0] sm:$0xff]
  %v100 = vld [vmem:[%s1 + $0xa8] sm:$0xff]
  %v101 = vld [vmem:[%s1 + $0xb0] sm:$0xff]
  %v102 = vld [vmem:[%s1 + $0xb8] sm:$0xff]
  %v103 = vld [vmem:[%s1 + $0xc0] sm:$0xff]
  %v104 = vld [vmem:[%s1 + $0xc8] sm:$0xff]
  %v105 = vld [vmem:[%s1 + $0xd0] sm:$0xff]
  %v106 = vld [vmem:[%s1 + $0xd8] sm:$0xff]
  %v107 = vld [vmem:[%s1 + $0xe0] sm:$0xff]
  %v108 = vld [vmem:[%s1 + $0xe8] sm:$0xff]
  %v109 = vld [vmem:[%s1 + $0xf0] sm:$0xff]
  %v110 = vld [vmem:[%s1 + $0xf8] sm:$0xff]
  %v111 = vld [vmem:[%s1 + $0x100] sm:$0xff]
  %v112 = vld [vmem:[%s1 + $0x108] sm:$0xff]
  %v113 = vld [vmem:[%s1 + $0x110] sm:$0xff]
  %v114 = vld [vmem:[%s1 + $0x118] sm:$0xff]
  %v115 = vld [vmem:[%s1 + $0x120] sm:$0xff]
  %v116 = vld [vmem:[%s1 + $0x128] sm:$0xff]
  %v117 = vld [vmem:[%s1 + $0x130] sm:$0xff]
  %v118 = vld [vmem:[%s1 + $0x138] sm:$0xff]
  %v119 = vld [vmem:[%s1 + $0x140] sm:$0xff]
  %v120 = vld [vmem:[%s1 + $0x148] sm:$0xff]
  %v121 = vld [vmem:[%s1 + $0x150] sm:$0xff]
  %v122 = vld [vmem:[%s1 + $0x158] sm:$0xff]
  %v123 = vld [vmem:[%s1 + $0x160] sm:$0xff]
  %v124 = vld [vmem:[%s1 + $0x168] sm:$0xff]
  %v125 = vld [vmem:[%s1 + $0x170] sm:$0xff]
  %v126 = vld [vmem:[%s1 + $0x178] sm:$0xff]
  %v127 = vld [vmem:[%s1 + $0x180] sm:$0xff]
  %v128 = vld [vmem:[%s1 + $0x188] sm:$0xff]
  %v129 = vld [vmem:[%s1 + $0x190] sm:$0xff]
  %v130 = vld [vmem:[%s1 + $0x198] sm:$0xff]
  %v131 = vld [vmem:[%s1 + $0x1a0] sm:$0xff]
  %v132 = vld [vmem:[%s1 + $0x1a8] sm:$0xff]
  %v133 = vld [vmem:[%s1 + $0x1b0] sm:$0xff]
  %v134 = vld [vmem:[%s1 + $0x1b8] sm:$0xff]
  %v135 = vld [vmem:[%s1 + $0x1c0] sm:$0xff]
  %v136 = vld [vmem:[%s1 + $0x1c8] sm:$0xff]
  %v137 = vld [vmem:[%s1 + $0x1d0] sm:$0xff]
  %v138 = vld [vmem:[%s1 + $0x1d8] sm:$0xff]
  %v139 = vld [vmem:[%s1 + $0x1e0] sm:$0xff]
  %v140 = vld [vmem:[%s1 + $0x1e8] sm:$0xff]
  %v141 = vld [vmem:[%s1 + $0x1f0] sm:$0xff]
  %v142 = vld [vmem:[%s1 + $0x1f8] sm:$0xff]
  %v143 = vld [vmem:[%s1 + $0x200] sm:$0xff]
  %v144 = vld [vmem:[%s1 + $0x208] sm:$0xff]
  %v145 = vld [vmem:[%s1 + $0x210] sm:$0xff]
  %v146 = vld [vmem:[%s1 + $0x218] sm:$0xff]
  %v147 = vld [vmem:[%s1 + $0x220] sm:$0xff]
  %v148 = vld [vmem:[%s1 + $0x228] sm:$0xff]
  %v149 = vld [vmem:[%s1 + $0x230] sm:$0xff]
  %v150 = vld [vmem:[%s1 + $0x238] sm:$0xff]
  %v151 = vld [vmem:[%s1 + $0x240] sm:$0xff]
  %v152 = vld [vmem:[%s1 + $0x248] sm:$0xff]
  %v153 = vld [vmem:[%s1 + $0x250] sm:$0xff]
  %v154 = vld [vmem:[%s1 + $0x258] sm:$0xff]
  %v155 = vld [vmem:[%s1 + $0x260] sm:$0xff]
  %v156 = vld [vmem:[%s1 + $0x268] sm:$0xff]
  %v157 = vld [vmem:[%s1 + $0x270] sm:$0xff]
  %v158 = vld [vmem:[%s1 + $0x278] sm:$0xff]
  %v159 = vld [vmem:[%s2] sm:$0x1]
  %v161 = vlaneseq
  %v162 = vshrl.u32 %v161, 7
  %v163 = vsub.s32 0, %v162
  %v164 = vrot.slane %v159, %v163
  %166 = vmatprep.subr.mxu0 0.0
  %167 = vmatpush1.msra.mxu0 %v79
  %168 = vmatprep.subr.mxu0 0.0
  %169 = vmatpush1.msra.mxu0 %v80
  %170 = vmatprep.subr.mxu0 0.0
  %171 = vmatpush1.msra.mxu0 %v81
  %172 = vmatprep.subr.mxu0 0.0
  %173 = vmatpush1.msra.mxu0 %v82
  %174 = vmatprep.subr.mxu0 0.0
  %175 = vmatpush1.msra.mxu0 %v83
  %176 = vmatprep.subr.mxu0 0.0
  %177 = vmatpush1.msra.mxu0 %v84
  %178 = vmatprep.subr.mxu0 0.0
  %179 = vmatpush1.msra.mxu0 %v85
  %180 = vmatprep.subr.mxu0 0.0
  %181 = vmatpush1.msra.mxu0 %v86
  %182 = vmatprep.subr.mxu0 0.0
  %183 = vmatpush1.msra.mxu0 %v87
  %184 = vmatprep.subr.mxu0 0.0
  %185 = vmatpush1.msra.mxu0 %v88
  %186 = vmatprep.subr.mxu0 0.0
  %187 = vmatpush1.msra.mxu0 %v89
  %188 = vmatprep.subr.mxu0 0.0
  %189 = vmatpush1.msra.mxu0 %v90
  %190 = vmatprep.subr.mxu0 0.0
  %191 = vmatpush1.msra.mxu0 %v91
  %192 = vmatprep.subr.mxu0 0.0
  %193 = vmatpush1.msra.mxu0 %v92
  %194 = vmatprep.subr.mxu0 0.0
  %195 = vmatpush1.msra.mxu0 %v93
  %196 = vmatprep.subr.mxu0 0.0
  %197 = vmatpush1.msra.mxu0 %v94
  %198 = vmatprep.subr.mxu0 0.0
  %199 = vmatpush1.msra.mxu0 %v95
  %200 = vmatprep.subr.mxu0 0.0
  %201 = vmatpush1.msra.mxu0 %v96
  %202 = vmatprep.subr.mxu0 0.0
  %203 = vmatpush1.msra.mxu0 %v97
  %204 = vmatprep.subr.mxu0 0.0
  %205 = vmatpush1.msra.mxu0 %v98
  %206 = vmatprep.subr.mxu0 0.0
  %207 = vmatpush1.msra.mxu0 %v99
  %208 = vmatprep.subr.mxu0 0.0
  %209 = vmatpush1.msra.mxu0 %v100
  %210 = vmatprep.subr.mxu0 0.0
  %211 = vmatpush1.msra.mxu0 %v101
  %212 = vmatprep.subr.mxu0 0.0
  %213 = vmatpush1.msra.mxu0 %v102
  %214 = vmatprep.subr.mxu0 0.0
  %215 = vmatpush1.msra.mxu0 %v103
  %216 = vmatprep.subr.mxu0 0.0
  %217 = vmatpush1.msra.mxu0 %v104
  %218 = vmatprep.subr.mxu0 0.0
  %219 = vmatpush1.msra.mxu0 %v105
  %220 = vmatprep.subr.mxu0 0.0
  %221 = vmatpush1.msra.mxu0 %v106
  %222 = vmatprep.subr.mxu0 0.0
  %223 = vmatpush1.msra.mxu0 %v107
  %224 = vmatprep.subr.mxu0 0.0
  %225 = vmatpush1.msra.mxu0 %v108
  %226 = vmatprep.subr.mxu0 0.0
  %227 = vmatpush1.msra.mxu0 %v109
  %228 = vmatprep.subr.mxu0 0.0
  %229 = vmatpush1.msra.mxu0 %v110
  %230 = vmatprep.mubr.f32.mxu0 %v15
  %231 = vmatmul.mubr.f32.gmra.mrb[0].mxu0 %v14
  %v232 = vpop.f32.mrb[0].mxu0
  %v233 = vadd.f32 %v164, %v232
  %v234 = vpop.f32.mrb[0].mxu0
  %235 = vmatprep.mubr.f32.mxu0 %v20
  %236 = vmatmul.mubr.f32.gmra.mrb[0].mxu0 %v19
  %v237 = vpop.f32.mrb[0].mxu0
  %v238 = vadd.f32 %v164, %v237
  %v239 = vpop.f32.mrb[0].mxu0
  %240 = vmatprep.mubr.f32.mxu0 %v25
  %241 = vmatmul.mubr.f32.gmra.mrb[0].mxu0 %v24
  %v242 = vpop.f32.mrb[0].mxu0
  %v243 = vadd.f32 %v164, %v242
  %v244 = vpop.f32.mrb[0].mxu0
  %245 = vmatprep.mubr.f32.mxu0 %v30
  %246 = vmatmul.mubr.f32.gmra.mrb[0].mxu0 %v29
  %v247 = vpop.f32.mrb[0].mxu0
  %v248 = vadd.f32 %v164, %v247
  %v249 = vpop.f32.mrb[0].mxu0
  %250 = vmatprep.mubr.f32.mxu0 %v35
  %251 = vmatmul.mubr.f32.gmra.mrb[0].mxu0 %v34
  %v252 = vpop.f32.mrb[0].mxu0
  %v253 = vadd.f32 %v164, %v252
  %v254 = vpop.f32.mrb[0].mxu0
  %255 = vmatprep.mubr.f32.mxu0 %v40
  %256 = vmatmul.mubr.f32.gmra.mrb[0].mxu0 %v39
  %v257 = vpop.f32.mrb[0].mxu0
  %v258 = vadd.f32 %v164, %v257
  %v259 = vpop.f32.mrb[0].mxu0
  %260 = vmatprep.mubr.f32.mxu0 %v45
  %261 = vmatmul.mubr.f32.gmra.mrb[0].mxu0 %v44
  %v262 = vpop.f32.mrb[0].mxu0
  %v263 = vadd.f32 %v164, %v262
  %v264 = vpop.f32.mrb[0].mxu0
  %265 = vmatprep.mubr.f32.mxu0 %v50
  %266 = vmatmul.mubr.f32.gmra.mrb[0].mxu0 %v49
  %v267 = vpop.f32.mrb[0].mxu0
  %v268 = vadd.f32 %v164, %v267
  %v269 = vpop.f32.mrb[0].mxu0
  %270 = vmatprep.mubr.f32.mxu0 %v55
  %271 = vmatmul.mubr.f32.gmra.mrb[0].mxu0 %v54
  %v272 = vpop.f32.mrb[0].mxu0
  %v273 = vadd.f32 %v164, %v272
  %v274 = vpop.f32.mrb[0].mxu0
  %275 = vmatprep.mubr.f32.mxu0 %v60
  %276 = vmatmul.mubr.f32.gmra.mrb[0].mxu0 %v59
  %v277 = vpop.f32.mrb[0].mxu0
  %v278 = vadd.f32 %v164, %v277
  %v279 = vpop.f32.mrb[0].mxu0
  %280 = vmatprep.mubr.f32.mxu0 %v65
  %281 = vmatmul.mubr.f32.gmra.mrb[0].mxu0 %v64
  %v282 = vpop.f32.mrb[0].mxu0
  %v283 = vadd.f32 %v164, %v282
  %v284 = vpop.f32.mrb[0].mxu0
  %285 = vmatprep.mubr.f32.mxu0 %v70
  %286 = vmatmul.mubr.f32.gmra.mrb[0].mxu0 %v69
  %v287 = vpop.f32.mrb[0].mxu0
  %v288 = vadd.f32 %v164, %v287
  %v289 = vpop.f32.mrb[0].mxu0
  %290 = vmatprep.mubr.f32.mxu0 %v75
  %291 = vmatmul.mubr.f32.gmra.mrb[0].mxu0 %v74
  %v292 = vpop.f32.mrb[0].mxu0
  %v293 = vadd.f32 %v164, %v292
  %v294 = vpop.f32.mrb[0].mxu0
  %295 = vdwg.mxu0
  %296 = vmatprep.subr.mxu0 0.0
  %297 = vmatpush1.msra.mxu0 %v111
  %298 = vmatprep.subr.mxu0 0.0
  %299 = vmatpush1.msra.mxu0 %v112
  %300 = vmatprep.subr.mxu0 0.0
  %301 = vmatpush1.msra.mxu0 %v113
  %302 = vmatprep.subr.mxu0 0.0
  %303 = vmatpush1.msra.mxu0 %v114
  %304 = vmatprep.subr.mxu0 0.0
  %305 = vmatpush1.msra.mxu0 %v115
  %306 = vmatprep.subr.mxu0 0.0
  %307 = vmatpush1.msra.mxu0 %v116
  %308 = vmatprep.subr.mxu0 0.0
  %309 = vmatpush1.msra.mxu0 %v117
  %310 = vmatprep.subr.mxu0 0.0
  %311 = vmatpush1.msra.mxu0 %v118
  %312 = vmatprep.subr.mxu0 0.0
  %313 = vmatpush1.msra.mxu0 %v119
  %314 = vmatprep.subr.mxu0 0.0
  %315 = vmatpush1.msra.mxu0 %v120
  %316 = vmatprep.subr.mxu0 0.0
  %317 = vmatpush1.msra.mxu0 %v121
  %318 = vmatprep.subr.mxu0 0.0
  %319 = vmatpush1.msra.mxu0 %v122
  %320 = vmatprep.subr.mxu0 0.0
  %321 = vmatpush1.msra.mxu0 %v123
  %322 = vmatprep.subr.mxu0 0.0
  %323 = vmatpush1.msra.mxu0 %v124
  %324 = vmatprep.subr.mxu0 0.0
  %325 = vmatpush1.msra.mxu0 %v125
  %326 = vmatprep.subr.mxu0 0.0
  %327 = vmatpush1.msra.mxu0 %v126
  %328 = vmatprep.subr.mxu0 0.0
  %329 = vmatpush1.msra.mxu0 %v127
  %330 = vmatprep.subr.mxu0 0.0
  %331 = vmatpush1.msra.mxu0 %v128
  %332 = vmatprep.subr.mxu0 0.0
  %333 = vmatpush1.msra.mxu0 %v129
  %334 = vmatprep.subr.mxu0 0.0
  %335 = vmatpush1.msra.mxu0 %v130
  %336 = vmatprep.subr.mxu0 0.0
  %337 = vmatpush1.msra.mxu0 %v131
  %338 = vmatprep.subr.mxu0 0.0
  %339 = vmatpush1.msra.mxu0 %v132
  %340 = vmatprep.subr.mxu0 0.0
  %341 = vmatpush1.msra.mxu0 %v133
  %342 = vmatprep.subr.mxu0 0.0
  %343 = vmatpush1.msra.mxu0 %v134
  %344 = vmatprep.subr.mxu0 0.0
  %345 = vmatpush1.msra.mxu0 %v135
  %346 = vmatprep.subr.mxu0 0.0
  %347 = vmatpush1.msra.mxu0 %v136
  %348 = vmatprep.subr.mxu0 0.0
  %349 = vmatpush1.msra.mxu0 %v137
  %350 = vmatprep.subr.mxu0 0.0
  %351 = vmatpush1.msra.mxu0 %v138
  %352 = vmatprep.subr.mxu0 0.0
  %353 = vmatpush1.msra.mxu0 %v139
  %354 = vmatprep.subr.mxu0 0.0
  %355 = vmatpush1.msra.mxu0 %v140
  %356 = vmatprep.subr.mxu0 0.0
  %357 = vmatpush1.msra.mxu0 %v141
  %358 = vmatprep.subr.mxu0 0.0
  %359 = vmatpush1.msra.mxu0 %v142
  %360 = vmatprep.mubr.f32.mxu0 %v17
  %361 = vmatmul.mubr.f32.gmra.mrb[0].mxu0 %v16
  %v362 = vpop.f32.mrb[0].mxu0
  %v363 = vadd.f32 %v233, %v362
  %v364 = vpop.f32.mrb[0].mxu0
  %365 = vmatprep.mubr.f32.mxu0 %v22
  %366 = vmatmul.mubr.f32.gmra.mrb[0].mxu0 %v21
  %v367 = vpop.f32.mrb[0].mxu0
  %v368 = vadd.f32 %v238, %v367
  %v369 = vpop.f32.mrb[0].mxu0
  %370 = vmatprep.mubr.f32.mxu0 %v27
  %371 = vmatmul.mubr.f32.gmra.mrb[0].mxu0 %v26
  %v372 = vpop.f32.mrb[0].mxu0
  %v373 = vadd.f32 %v243, %v372
  %v374 = vpop.f32.mrb[0].mxu0
  %375 = vmatprep.mubr.f32.mxu0 %v32
  %376 = vmatmul.mubr.f32.gmra.mrb[0].mxu0 %v31
  %v377 = vpop.f32.mrb[0].mxu0
  %v378 = vadd.f32 %v248, %v377
  %v379 = vpop.f32.mrb[0].mxu0
  %380 = vmatprep.mubr.f32.mxu0 %v37
  %381 = vmatmul.mubr.f32.gmra.mrb[0].mxu0 %v36
  %v382 = vpop.f32.mrb[0].mxu0
  %v383 = vadd.f32 %v253, %v382
  %v384 = vpop.f32.mrb[0].mxu0
  %385 = vmatprep.mubr.f32.mxu0 %v42
  %386 = vmatmul.mubr.f32.gmra.mrb[0].mxu0 %v41
  %v387 = vpop.f32.mrb[0].mxu0
  %v388 = vadd.f32 %v258, %v387
  %v389 = vpop.f32.mrb[0].mxu0
  %390 = vmatprep.mubr.f32.mxu0 %v47
  %391 = vmatmul.mubr.f32.gmra.mrb[0].mxu0 %v46
  %v392 = vpop.f32.mrb[0].mxu0
  %v393 = vadd.f32 %v263, %v392
  %v394 = vpop.f32.mrb[0].mxu0
  %395 = vmatprep.mubr.f32.mxu0 %v52
  %396 = vmatmul.mubr.f32.gmra.mrb[0].mxu0 %v51
  %v397 = vpop.f32.mrb[0].mxu0
  %v398 = vadd.f32 %v268, %v397
  %v399 = vpop.f32.mrb[0].mxu0
  %400 = vmatprep.mubr.f32.mxu0 %v57
  %401 = vmatmul.mubr.f32.gmra.mrb[0].mxu0 %v56
  %v402 = vpop.f32.mrb[0].mxu0
  %v403 = vadd.f32 %v273, %v402
  %v404 = vpop.f32.mrb[0].mxu0
  %405 = vmatprep.mubr.f32.mxu0 %v62
  %406 = vmatmul.mubr.f32.gmra.mrb[0].mxu0 %v61
  %v407 = vpop.f32.mrb[0].mxu0
  %v408 = vadd.f32 %v278, %v407
  %v409 = vpop.f32.mrb[0].mxu0
  %410 = vmatprep.mubr.f32.mxu0 %v67
  %411 = vmatmul.mubr.f32.gmra.mrb[0].mxu0 %v66
  %v412 = vpop.f32.mrb[0].mxu0
  %v413 = vadd.f32 %v283, %v412
  %v414 = vpop.f32.mrb[0].mxu0
  %415 = vmatprep.mubr.f32.mxu0 %v72
  %416 = vmatmul.mubr.f32.gmra.mrb[0].mxu0 %v71
  %v417 = vpop.f32.mrb[0].mxu0
  %v418 = vadd.f32 %v288, %v417
  %v419 = vpop.f32.mrb[0].mxu0
  %420 = vmatprep.mubr.f32.mxu0 %v77
  %421 = vmatmul.mubr.f32.gmra.mrb[0].mxu0 %v76
  %v422 = vpop.f32.mrb[0].mxu0
  %v423 = vadd.f32 %v293, %v422
  %v424 = vpop.f32.mrb[0].mxu0
  %425 = vdwg.mxu0
  %426 = vmatprep.subr.mxu0 0.0
  %427 = vmatpush1.msra.mxu0 %v143
  %428 = vmatprep.subr.mxu0 0.0
  %429 = vmatpush1.msra.mxu0 %v144
  %430 = vmatprep.subr.mxu0 0.0
  %431 = vmatpush1.msra.mxu0 %v145
  %432 = vmatprep.subr.mxu0 0.0
  %433 = vmatpush1.msra.mxu0 %v146
  %434 = vmatprep.subr.mxu0 0.0
  %435 = vmatpush1.msra.mxu0 %v147
  %436 = vmatprep.subr.mxu0 0.0
  %437 = vmatpush1.msra.mxu0 %v148
  %438 = vmatprep.subr.mxu0 0.0
  %439 = vmatpush1.msra.mxu0 %v149
  %440 = vmatprep.subr.mxu0 0.0
  %441 = vmatpush1.msra.mxu0 %v150
  %442 = vmatprep.subr.mxu0 0.0
  %443 = vmatpush1.msra.mxu0 %v151
  %444 = vmatprep.subr.mxu0 0.0
  %445 = vmatpush1.msra.mxu0 %v152
  %446 = vmatprep.subr.mxu0 0.0
  %447 = vmatpush1.msra.mxu0 %v153
  %448 = vmatprep.subr.mxu0 0.0
  %449 = vmatpush1.msra.mxu0 %v154
  %450 = vmatprep.subr.mxu0 0.0
  %451 = vmatpush1.msra.mxu0 %v155
  %452 = vmatprep.subr.mxu0 0.0
  %453 = vmatpush1.msra.mxu0 %v156
  %454 = vmatprep.subr.mxu0 0.0
  %455 = vmatpush1.msra.mxu0 %v157
  %456 = vmatprep.subr.mxu0 0.0
  %457 = vmatpush1.msra.mxu0 %v158
  %458 = vmatprep.subr.mxu0 0.0
  %459 = vmatpush1.msra.mxu0 0.0
  %460 = vmatprep.subr.mxu0 0.0
  %461 = vmatpush1.msra.mxu0 0.0
  %462 = vmatprep.subr.mxu0 0.0
  %463 = vmatpush1.msra.mxu0 0.0
  %464 = vmatprep.subr.mxu0 0.0
  %465 = vmatpush1.msra.mxu0 0.0
  %466 = vmatprep.subr.mxu0 0.0
  %467 = vmatpush1.msra.mxu0 0.0
  %468 = vmatprep.subr.mxu0 0.0
  %469 = vmatpush1.msra.mxu0 0.0
  %470 = vmatprep.subr.mxu0 0.0
  %471 = vmatpush1.msra.mxu0 0.0
  %472 = vmatprep.subr.mxu0 0.0
  %473 = vmatpush1.msra.mxu0 0.0
  %474 = vmatprep.subr.mxu0 0.0
  %475 = vmatpush1.msra.mxu0 0.0
  %476 = vmatprep.subr.mxu0 0.0
  %477 = vmatpush1.msra.mxu0 0.0
  %478 = vmatprep.subr.mxu0 0.0
  %479 = vmatpush1.msra.mxu0 0.0
  %480 = vmatprep.subr.mxu0 0.0
  %481 = vmatpush1.msra.mxu0 0.0
  %482 = vmatprep.subr.mxu0 0.0
  %483 = vmatpush1.msra.mxu0 0.0
  %484 = vmatprep.subr.mxu0 0.0
  %485 = vmatpush1.msra.mxu0 0.0
  %486 = vmatprep.subr.mxu0 0.0
  %487 = vmatpush1.msra.mxu0 0.0
  %488 = vmatprep.subr.mxu0 0.0
  %489 = vmatpush1.msra.mxu0 0.0
  %490 = vmatprep.mubr.f32.mxu0 0.0
  %491 = vmatmul.mubr.f32.gmra.mrb[0].mxu0 %v18
  %v492 = vpop.f32.mrb[0].mxu0
  %v493 = vadd.f32 %v363, %v492
  %v494 = vpop.f32.mrb[0].mxu0
  %495 = vmatprep.mubr.f32.mxu0 0.0
  %496 = vmatmul.mubr.f32.gmra.mrb[0].mxu0 %v23
  %v497 = vpop.f32.mrb[0].mxu0
  %v498 = vadd.f32 %v368, %v497
  %v499 = vpop.f32.mrb[0].mxu0
  %500 = vmatprep.mubr.f32.mxu0 0.0
  %501 = vmatmul.mubr.f32.gmra.mrb[0].mxu0 %v28
  %v502 = vpop.f32.mrb[0].mxu0
  %v503 = vadd.f32 %v373, %v502
  %v504 = vpop.f32.mrb[0].mxu0
  %505 = vmatprep.mubr.f32.mxu0 0.0
  %506 = vmatmul.mubr.f32.gmra.mrb[0].mxu0 %v33
  %v507 = vpop.f32.mrb[0].mxu0
  %v508 = vadd.f32 %v378, %v507
  %v509 = vpop.f32.mrb[0].mxu0
  %510 = vmatprep.mubr.f32.mxu0 0.0
  %511 = vmatmul.mubr.f32.gmra.mrb[0].mxu0 %v38
  %v512 = vpop.f32.mrb[0].mxu0
  %v513 = vadd.f32 %v383, %v512
  %v514 = vpop.f32.mrb[0].mxu0
  %515 = vmatprep.mubr.f32.mxu0 0.0
  %516 = vmatmul.mubr.f32.gmra.mrb[0].mxu0 %v43
  %v517 = vpop.f32.mrb[0].mxu0
  %v518 = vadd.f32 %v388, %v517
  %v519 = vpop.f32.mrb[0].mxu0
  %520 = vmatprep.mubr.f32.mxu0 0.0
  %521 = vmatmul.mubr.f32.gmra.mrb[0].mxu0 %v48
  %v522 = vpop.f32.mrb[0].mxu0
  %v523 = vadd.f32 %v393, %v522
  %v524 = vpop.f32.mrb[0].mxu0
  %525 = vmatprep.mubr.f32.mxu0 0.0
  %526 = vmatmul.mubr.f32.gmra.mrb[0].mxu0 %v53
  %v527 = vpop.f32.mrb[0].mxu0
  %v528 = vadd.f32 %v398, %v527
  %v529 = vpop.f32.mrb[0].mxu0
  %530 = vmatprep.mubr.f32.mxu0 0.0
  %531 = vmatmul.mubr.f32.gmra.mrb[0].mxu0 %v58
  %v532 = vpop.f32.mrb[0].mxu0
  %v533 = vadd.f32 %v403, %v532
  %v534 = vpop.f32.mrb[0].mxu0
  %535 = vmatprep.mubr.f32.mxu0 0.0
  %536 = vmatmul.mubr.f32.gmra.mrb[0].mxu0 %v63
  %v537 = vpop.f32.mrb[0].mxu0
  %v538 = vadd.f32 %v408, %v537
  %v539 = vpop.f32.mrb[0].mxu0
  %540 = vmatprep.mubr.f32.mxu0 0.0
  %541 = vmatmul.mubr.f32.gmra.mrb[0].mxu0 %v68
  %v542 = vpop.f32.mrb[0].mxu0
  %v543 = vadd.f32 %v413, %v542
  %v544 = vpop.f32.mrb[0].mxu0
  %545 = vmatprep.mubr.f32.mxu0 0.0
  %546 = vmatmul.mubr.f32.gmra.mrb[0].mxu0 %v73
  %v547 = vpop.f32.mrb[0].mxu0
  %v548 = vadd.f32 %v418, %v547
  %v549 = vpop.f32.mrb[0].mxu0
  %550 = vmatprep.mubr.f32.mxu0 0.0
  %551 = vmatmul.mubr.f32.gmra.mrb[0].mxu0 %v78
  %v552 = vpop.f32.mrb[0].mxu0
  %v553 = vadd.f32 %v423, %v552
  %v554 = vpop.f32.mrb[0].mxu0
  %555 = vdwg.mxu0
  %v556 = vmax.f32 %v493, 0.0
  %v557 = vmax.f32 %v498, 0.0
  %v558 = vmax.f32 %v503, 0.0
  %v559 = vmax.f32 %v508, 0.0
  %v560 = vmax.f32 %v513, 0.0
  %v561 = vmax.f32 %v518, 0.0
  %v562 = vmax.f32 %v523, 0.0
  %v563 = vmax.f32 %v528, 0.0
  %v564 = vmax.f32 %v533, 0.0
  %v565 = vmax.f32 %v538, 0.0
  %v566 = vmax.f32 %v543, 0.0
  %v567 = vmax.f32 %v548, 0.0
  %v568 = vmax.f32 %v553, 0.0
  %569 = vst [vmem:[%s3] sm:$0xff] %v556
  %570 = vst [vmem:[%s3 + $0x8] sm:$0xff] %v557
  %571 = vst [vmem:[%s3 + $0x10] sm:$0xff] %v558
  %572 = vst [vmem:[%s3 + $0x18] sm:$0xff] %v559
  %573 = vst [vmem:[%s3 + $0x20] sm:$0xff] %v560
  %574 = vst [vmem:[%s3 + $0x28] sm:$0xff] %v561
  %575 = vst [vmem:[%s3 + $0x30] sm:$0xff] %v562
  %576 = vst [vmem:[%s3 + $0x38] sm:$0xff] %v563
  %577 = vst [vmem:[%s3 + $0x40] sm:$0xff] %v564
  %578 = vst [vmem:[%s3 + $0x48] sm:$0xff] %v565
  %579 = vst [vmem:[%s3 + $0x50] sm:$0xff] %v566
  %580 = vst [vmem:[%s3 + $0x58] sm:$0xff] %v567
  %581 = vst [vmem:[%s3 + $0x60] sm:$0xff] %v568
  // Predicated region
  $region14: #{dqn_forward.6} parent=0 // pred_check
    _
  $region15: #{dqn_forward.6} parent=0 // pred_check_branch
    %583 = sbr.rel (0) target = $region17
  $region16: #{dqn_forward.6} parent=0 // pred_region
    _
  $region17: #{dqn_forward.6} parent=0 // pred_fallthru
    _
  // Predicated region
  $region18: #{dqn_forward.6} parent=0 // pred_check
    _
  $region19: #{dqn_forward.6} parent=0 // pred_check_branch
    %585 = sbr.rel (0) target = $region21
  $region20: #{dqn_forward.6} parent=0 // pred_region
    _
  $region21: #{dqn_forward.6} parent=0 // pred_fallthru
    _

// kernel: dqn_forward.7
$region0: #{dqn_forward.7}
  #allocation0 [shape = 'u32[]', space=smem, size = 0x4, offset = 0x4, fixed_abs, tag = 'smem constant byte address 0x4 - core index']
  #allocation1 [shape = 'u32[144,128]{1,0:T(1,128)}', space=vmem, size = 0x12000, scoped, tag = 'internal scratch']
  %s0 = inlined_call_operand.vmem [shape: f32[8,3200], index: 0, kind: input, shape index: {}]
  %s1 = inlined_call_operand.vmem [shape: f32[3200,512], index: 1, kind: input, shape index: {}]
  %s2 = inlined_call_operand.vmem [shape: f32[1,512], index: 2, kind: input, shape index: {}]
  %s3 = inlined_call_operand.vmem [shape: f32[512,128], index: 3, kind: input, shape index: {}]
  %s4 = inlined_call_operand.vmem [shape: f32[1,128], index: 4, kind: input, shape index: {}]
  %s5 = inlined_call_operand.vmem [shape: f32[8,128], index: 5, kind: output, shape index: {}]
  %s6 = sld [smem:[#allocation0]]
  $region30: #{dqn_forward.7} parent=0
    _
  %s8 = ssub.s32 1, %s6
  %s9 = scalar_select 0, %s8, %s6
  // Predicated region
  $region2: #{dqn_forward.7} parent=0 // pred_check
    _
  $region3: #{dqn_forward.7} parent=0 // pred_check_branch
    %11 = sbr.rel (0) target = $region5
  $region4: #{dqn_forward.7} parent=0 // pred_region
    _
  $region5: #{dqn_forward.7} parent=0 // pred_fallthru
    _
  // Predicated region
  $region6: #{dqn_forward.7} parent=0 // pred_check
    _
  $region7: #{dqn_forward.7} parent=0 // pred_check_branch
    %13 = sbr.rel (0) target = $region9
  $region8: #{dqn_forward.7} parent=0 // pred_region
    _
  $region9: #{dqn_forward.7} parent=0 // pred_fallthru
    _
  // Predicated region
  $region10: #{dqn_forward.7} parent=0 // pred_check
    _
  $region11: #{dqn_forward.7} parent=0 // pred_check_branch
    %15 = sbr.rel (0) target = $region13
  $region12: #{dqn_forward.7} parent=0 // pred_region
    _
  $region13: #{dqn_forward.7} parent=0 // pred_fallthru
    _
  // Predicated region
  $region14: #{dqn_forward.7} parent=0 // pred_check
    _
  $region15: #{dqn_forward.7} parent=0 // pred_check_branch
    %17 = sbr.rel (0) target = $region17
  $region16: #{dqn_forward.7} parent=0 // pred_region
    _
  $region17: #{dqn_forward.7} parent=0 // pred_fallthru
    _
  // Predicated region
  $region18: #{dqn_forward.7} parent=0 // pred_check
    _
  $region19: #{dqn_forward.7} parent=0 // pred_check_branch
    %19 = sbr.rel (0) target = $region21
  $region20: #{dqn_forward.7} parent=0 // pred_region
    _
  $region21: #{dqn_forward.7} parent=0 // pred_fallthru
    _
  %v20 = vld [vmem:[%s0] sm:$0xff]
  %v21 = vld [vmem:[%s0 + $0x8] sm:$0xff]
  %v22 = vld [vmem:[%s0 + $0x10] sm:$0xff]
  %v23 = vld [vmem:[%s0 + $0x18] sm:$0xff]
  %v24 = vld [vmem:[%s0 + $0x20] sm:$0xff]
  %v25 = vld [vmem:[%s0 + $0x28] sm:$0xff]
  %v26 = vld [vmem:[%s0 + $0x30] sm:$0xff]
  %v27 = vld [vmem:[%s0 + $0x38] sm:$0xff]
  %v28 = vld [vmem:[%s0 + $0x40] sm:$0xff]
  %v29 = vld [vmem:[%s0 + $0x48] sm:$0xff]
  %v30 = vld [vmem:[%s0 + $0x50] sm:$0xff]
  %v31 = vld [vmem:[%s0 + $0x58] sm:$0xff]
  %v32 = vld [vmem:[%s0 + $0x60] sm:$0xff]
  %v33 = vld [vmem:[%s0 + $0x68] sm:$0xff]
  %v34 = vld [vmem:[%s0 + $0x70] sm:$0xff]
  %v35 = vld [vmem:[%s0 + $0x78] sm:$0xff]
  %v36 = vld [vmem:[%s0 + $0x80] sm:$0xff]
  %v37 = vld [vmem:[%s0 + $0x88] sm:$0xff]
  %v38 = vld [vmem:[%s0 + $0x90] sm:$0xff]
  %v39 = vld [vmem:[%s0 + $0x98] sm:$0xff]
  %v40 = vld [vmem:[%s0 + $0xa0] sm:$0xff]
  %v41 = vld [vmem:[%s0 + $0xa8] sm:$0xff]
  %v42 = vld [vmem:[%s0 + $0xb0] sm:$0xff]
  %v43 = vld [vmem:[%s0 + $0xb8] sm:$0xff]
  %v44 = vld [vmem:[%s0 + $0xc0] sm:$0xff]
  %v45 = vld [vmem:[%s1] sm:$0xff]
  %v46 = vld [vmem:[%s1 + $0x8] sm:$0xff]
  %v47 = vld [vmem:[%s1 + $0x10] sm:$0xff]
  %v48 = vld [vmem:[%s1 + $0x18] sm:$0xff]
  %v49 = vld [vmem:[%s1 + $0x20] sm:$0xff]
  %v50 = vld [vmem:[%s1 + $0x28] sm:$0xff]
  %v51 = vld [vmem:[%s1 + $0x30] sm:$0xff]
  %v52 = vld [vmem:[%s1 + $0x38] sm:$0xff]
  %v53 = vld [vmem:[%s1 + $0x40] sm:$0xff]
  %v54 = vld [vmem:[%s1 + $0x48] sm:$0xff]
  %v55 = vld [vmem:[%s1 + $0x50] sm:$0xff]
  %v56 = vld [vmem:[%s1 + $0x58] sm:$0xff]
  %v57 = vld [vmem:[%s1 + $0x60] sm:$0xff]
  %v58 = vld [vmem:[%s1 + $0x68] sm:$0xff]
  %v59 = vld [vmem:[%s1 + $0x70] sm:$0xff]
  %v60 = vld [vmem:[%s1 + $0x78] sm:$0xff]
  %v61 = vld [vmem:[%s1 + $0x80] sm:$0xff]
  %v62 = vld [vmem:[%s1 + $0x88] sm:$0xff]
  %v63 = vld [vmem:[%s1 + $0x90] sm:$0xff]
  %v64 = vld [vmem:[%s1 + $0x98] sm:$0xff]
  %v65 = vld [vmem:[%s1 + $0xa0] sm:$0xff]
  %v66 = vld [vmem:[%s1 + $0xa8] sm:$0xff]
  %v67 = vld [vmem:[%s1 + $0xb0] sm:$0xff]
  %v68 = vld [vmem:[%s1 + $0xb8] sm:$0xff]
  %v69 = vld [vmem:[%s1 + $0xc0] sm:$0xff]
  %v70 = vld [vmem:[%s1 + $0xc8] sm:$0xff]
  %v71 = vld [vmem:[%s1 + $0xd0] sm:$0xff]
  %v72 = vld [vmem:[%s1 + $0xd8] sm:$0xff]
  %v73 = vld [vmem:[%s1 + $0xe0] sm:$0xff]
  %v74 = vld [vmem:[%s1 + $0xe8] sm:$0xff]
  %v75 = vld [vmem:[%s1 + $0xf0] sm:$0xff]
  %v76 = vld [vmem:[%s1 + $0xf8] sm:$0xff]
  %v77 = vld [vmem:[%s1 + $0x100] sm:$0xff]
  %v78 = vld [vmem:[%s1 + $0x108] sm:$0xff]
  %v79 = vld [vmem:[%s1 + $0x110] sm:$0xff]
  %v80 = vld [vmem:[%s1 + $0x118] sm:$0xff]
  %v81 = vld [vmem:[%s1 + $0x120] sm:$0xff]
  %v82 = vld [vmem:[%s1 + $0x128] sm:$0xff]
  %v83 = vld [vmem:[%s1 + $0x130] sm:$0xff]
  %v84 = vld [vmem:[%s1 + $0x138] sm:$0xff]
  %v85 = vld [vmem:[%s1 + $0x140] sm:$0xff]
  %v86 = vld [vmem:[%s1 + $0x148] sm:$0xff]
  %v87 = vld [vmem:[%s1 + $0x150] sm:$0xff]
  %v88 = vld [vmem:[%s1 + $0x158] sm:$0xff]
  %v89 = vld [vmem:[%s1 + $0x160] sm:$0xff]
  %v90 = vld [vmem:[%s1 + $0x168] sm:$0xff]
  %v91 = vld [vmem:[%s1 + $0x170] sm:$0xff]
  %v92 = vld [vmem:[%s1 + $0x178] sm:$0xff]
  %v93 = vld [vmem:[%s1 + $0x180] sm:$0xff]
  %v94 = vld [vmem:[%s1 + $0x188] sm:$0xff]
  %v95 = vld [vmem:[%s1 + $0x190] sm:$0xff]
  %v96 = vld [vmem:[%s1 + $0x198] sm:$0xff]
  %v97 = vld [vmem:[%s1 + $0x1a0] sm:$0xff]
  %v98 = vld [vmem:[%s1 + $0x1a8] sm:$0xff]
  %v99 = vld [vmem:[%s1 + $0x1b0] sm:$0xff]
  %v100 = vld [vmem:[%s1 + $0x1b8] sm:$0xff]
  %v101 = vld [vmem:[%s1 + $0x1c0] sm:$0xff]
  %v102 = vld [vmem:[%s1 + $0x1c8] sm:$0xff]
  %v103 = vld [vmem:[%s1 + $0x1d0] sm:$0xff]
  %v104 = vld [vmem:[%s1 + $0x1d8] sm:$0xff]
  %v105 = vld [vmem:[%s1 + $0x1e0] sm:$0xff]
  %v106 = vld [vmem:[%s1 + $0x1e8] sm:$0xff]
  %v107 = vld [vmem:[%s1 + $0x1f0] sm:$0xff]
  %v108 = vld [vmem:[%s1 + $0x1f8] sm:$0xff]
  %v109 = vld [vmem:[%s1 + $0x200] sm:$0xff]
  %v110 = vld [vmem:[%s1 + $0x208] sm:$0xff]
  %v111 = vld [vmem:[%s1 + $0x210] sm:$0xff]
  %v112 = vld [vmem:[%s1 + $0x218] sm:$0xff]
  %v113 = vld [vmem:[%s1 + $0x220] sm:$0xff]
  %v114 = vld [vmem:[%s1 + $0x228] sm:$0xff]
  %v115 = vld [vmem:[%s1 + $0x230] sm:$0xff]
  %v116 = vld [vmem:[%s1 + $0x238] sm:$0xff]
  %v117 = vld [vmem:[%s1 + $0x240] sm:$0xff]
  %v118 = vld [vmem:[%s1 + $0x248] sm:$0xff]
  %v119 = vld [vmem:[%s1 + $0x250] sm:$0xff]
  %v120 = vld [vmem:[%s1 + $0x258] sm:$0xff]
  %v121 = vld [vmem:[%s1 + $0x260] sm:$0xff]
  %v122 = vld [vmem:[%s1 + $0x268] sm:$0xff]
  %v123 = vld [vmem:[%s1 + $0x270] sm:$0xff]
  %v124 = vld [vmem:[%s1 + $0x278] sm:$0xff]
  %v125 = vld [vmem:[%s1 + $0x280] sm:$0xff]
  %v126 = vld [vmem:[%s1 + $0x288] sm:$0xff]
  %v127 = vld [vmem:[%s1 + $0x290] sm:$0xff]
  %v128 = vld [vmem:[%s1 + $0x298] sm:$0xff]
  %v129 = vld [vmem:[%s1 + $0x2a0] sm:$0xff]
  %v130 = vld [vmem:[%s1 + $0x2a8] sm:$0xff]
  %v131 = vld [vmem:[%s1 + $0x2b0] sm:$0xff]
  %v132 = vld [vmem:[%s1 + $0x2b8] sm:$0xff]
  %v133 = vld [vmem:[%s1 + $0x2c0] sm:$0xff]
  %v134 = vld [vmem:[%s1 + $0x2c8] sm:$0xff]
  %v135 = vld [vmem:[%s1 + $0x2d0] sm:$0xff]
  %v136 = vld [vmem:[%s1 + $0x2d8] sm:$0xff]
  %v137 = vld [vmem:[%s1 + $0x2e0] sm:$0xff]
  %v138 = vld [vmem:[%s1 + $0x2e8] sm:$0xff]
  %v139 = vld [vmem:[%s1 + $0x2f0] sm:$0xff]
  %v140 = vld [vmem:[%s1 + $0x2f8] sm:$0xff]
  %v141 = vld [vmem:[%s1 + $0x300] sm:$0xff]
  %v142 = vld [vmem:[%s1 + $0x308] sm:$0xff]
  %v143 = vld [vmem:[%s1 + $0x310] sm:$0xff]
  %v144 = vld [vmem:[%s1 + $0x318] sm:$0xff]
  %v145 = vld [vmem:[%s1 + $0x320] sm:$0xff]
  %v146 = vld [vmem:[%s1 + $0x328] sm:$0xff]
  %v147 = vld [vmem:[%s1 + $0x330] sm:$0xff]
  %v148 = vld [vmem:[%s1 + $0x338] sm:$0xff]
  %v149 = vld [vmem:[%s1 + $0x340] sm:$0xff]
  %v150 = vld [vmem:[%s1 + $0x348] sm:$0xff]
  %v151 = vld [vmem:[%s1 + $0x350] sm:$0xff]
  %v152 = vld [vmem:[%s1 + $0x358] sm:$0xff]
  %v153 = vld [vmem:[%s1 + $0x360] sm:$0xff]
  %v154 = vld [vmem:[%s1 + $0x368] sm:$0xff]
  %v155 = vld [vmem:[%s1 + $0x370] sm:$0xff]
  %v156 = vld [vmem:[%s1 + $0x378] sm:$0xff]
  %v157 = vld [vmem:[%s1 + $0x380] sm:$0xff]
  %v158 = vld [vmem:[%s1 + $0x388] sm:$0xff]
  %v159 = vld [vmem:[%s1 + $0x390] sm:$0xff]
  %v160 = vld [vmem:[%s1 + $0x398] sm:$0xff]
  %v161 = vld [vmem:[%s1 + $0x3a0] sm:$0xff]
  %v162 = vld [vmem:[%s1 + $0x3a8] sm:$0xff]
  %v163 = vld [vmem:[%s1 + $0x3b0] sm:$0xff]
  %v164 = vld [vmem:[%s1 + $0x3b8] sm:$0xff]
  %v165 = vld [vmem:[%s1 + $0x3c0] sm:$0xff]
  %v166 = vld [vmem:[%s1 + $0x3c8] sm:$0xff]
  %v167 = vld [vmem:[%s1 + $0x3d0] sm:$0xff]
  %v168 = vld [vmem:[%s1 + $0x3d8] sm:$0xff]
  %v169 = vld [vmem:[%s1 + $0x3e0] sm:$0xff]
  %v170 = vld [vmem:[%s1 + $0x3e8] sm:$0xff]
  %v171 = vld [vmem:[%s1 + $0x3f0] sm:$0xff]
  %v172 = vld [vmem:[%s1 + $0x3f8] sm:$0xff]
  %v173 = vld [vmem:[%s1 + $0x400] sm:$0xff]
  %v174 = vld [vmem:[%s1 + $0x408] sm:$0xff]
  %v175 = vld [vmem:[%s1 + $0x410] sm:$0xff]
  %v176 = vld [vmem:[%s1 + $0x418] sm:$0xff]
  %v177 = vld [vmem:[%s1 + $0x420] sm:$0xff]
  %v178 = vld [vmem:[%s1 + $0x428] sm:$0xff]
  %v179 = vld [vmem:[%s1 + $0x430] sm:$0xff]
  %v180 = vld [vmem:[%s1 + $0x438] sm:$0xff]
  %v181 = vld [vmem:[%s1 + $0x440] sm:$0xff]
  %v182 = vld [vmem:[%s1 + $0x448] sm:$0xff]
  %v183 = vld [vmem:[%s1 + $0x450] sm:$0xff]
  %v184 = vld [vmem:[%s1 + $0x458] sm:$0xff]
  %v185 = vld [vmem:[%s1 + $0x460] sm:$0xff]
  %v186 = vld [vmem:[%s1 + $0x468] sm:$0xff]
  %v187 = vld [vmem:[%s1 + $0x470] sm:$0xff]
  %v188 = vld [vmem:[%s1 + $0x478] sm:$0xff]
  %v189 = vld [vmem:[%s1 + $0x480] sm:$0xff]
  %v190 = vld [vmem:[%s1 + $0x488] sm:$0xff]
  %v191 = vld [vmem:[%s1 + $0x490] sm:$0xff]
  %v192 = vld [vmem:[%s1 + $0x498] sm:$0xff]
  %v193 = vld [vmem:[%s1 + $0x4a0] sm:$0xff]
  %v194 = vld [vmem:[%s1 + $0x4a8] sm:$0xff]
  %v195 = vld [vmem:[%s1 + $0x4b0] sm:$0xff]
  %v196 = vld [vmem:[%s1 + $0x4b8] sm:$0xff]
  %v197 = vld [vmem:[%s1 + $0x4c0] sm:$0xff]
  %v198 = vld [vmem:[%s1 + $0x4c8] sm:$0xff]
  %v199 = vld [vmem:[%s1 + $0x4d0] sm:$0xff]
  %v200 = vld [vmem:[%s1 + $0x4d8] sm:$0xff]
  %v201 = vld [vmem:[%s1 + $0x4e0] sm:$0xff]
  %v202 = vld [vmem:[%s1 + $0x4e8] sm:$0xff]
  %v203 = vld [vmem:[%s1 + $0x4f0] sm:$0xff]
  %v204 = vld [vmem:[%s1 + $0x4f8] sm:$0xff]
  %v205 = vld [vmem:[%s1 + $0x500] sm:$0xff]
  %v206 = vld [vmem:[%s1 + $0x508] sm:$0xff]
  %v207 = vld [vmem:[%s1 + $0x510] sm:$0xff]
  %v208 = vld [vmem:[%s1 + $0x518] sm:$0xff]
  %v209 = vld [vmem:[%s1 + $0x520] sm:$0xff]
  %v210 = vld [vmem:[%s1 + $0x528] sm:$0xff]
  %v211 = vld [vmem:[%s1 + $0x530] sm:$0xff]
  %v212 = vld [vmem:[%s1 + $0x538] sm:$0xff]
  %v213 = vld [vmem:[%s1 + $0x540] sm:$0xff]
  %v214 = vld [vmem:[%s1 + $0x548] sm:$0xff]
  %v215 = vld [vmem:[%s1 + $0x550] sm:$0xff]
  %v216 = vld [vmem:[%s1 + $0x558] sm:$0xff]
  %v217 = vld [vmem:[%s1 + $0x560] sm:$0xff]
  %v218 = vld [vmem:[%s1 + $0x568] sm:$0xff]
  %v219 = vld [vmem:[%s1 + $0x570] sm:$0xff]
  %v220 = vld [vmem:[%s1 + $0x578] sm:$0xff]
  %v221 = vld [vmem:[%s1 + $0x580] sm:$0xff]
  %v222 = vld [vmem:[%s1 + $0x588] sm:$0xff]
  %v223 = vld [vmem:[%s1 + $0x590] sm:$0xff]
  %v224 = vld [vmem:[%s1 + $0x598] sm:$0xff]
  %v225 = vld [vmem:[%s1 + $0x5a0] sm:$0xff]
  %v226 = vld [vmem:[%s1 + $0x5a8] sm:$0xff]
  %v227 = vld [vmem:[%s1 + $0x5b0] sm:$0xff]
  %v228 = vld [vmem:[%s1 + $0x5b8] sm:$0xff]
  %v229 = vld [vmem:[%s1 + $0x5c0] sm:$0xff]
  %v230 = vld [vmem:[%s1 + $0x5c8] sm:$0xff]
  %v231 = vld [vmem:[%s1 + $0x5d0] sm:$0xff]
  %v232 = vld [vmem:[%s1 + $0x5d8] sm:$0xff]
  %v233 = vld [vmem:[%s1 + $0x5e0] sm:$0xff]
  %v234 = vld [vmem:[%s1 + $0x5e8] sm:$0xff]
  %v235 = vld [vmem:[%s1 + $0x5f0] sm:$0xff]
  %v236 = vld [vmem:[%s1 + $0x5f8] sm:$0xff]
  %v237 = vld [vmem:[%s1 + $0x600] sm:$0xff]
  %v238 = vld [vmem:[%s1 + $0x608] sm:$0xff]
  %v239 = vld [vmem:[%s1 + $0x610] sm:$0xff]
  %v240 = vld [vmem:[%s1 + $0x618] sm:$0xff]
  %v241 = vld [vmem:[%s1 + $0x620] sm:$0xff]
  %v242 = vld [vmem:[%s1 + $0x628] sm:$0xff]
  %v243 = vld [vmem:[%s1 + $0x630] sm:$0xff]
  %v244 = vld [vmem:[%s1 + $0x638] sm:$0xff]
  %v245 = vld [vmem:[%s1 + $0x640] sm:$0xff]
  %v246 = vld [vmem:[%s1 + $0x648] sm:$0xff]
  %v247 = vld [vmem:[%s1 + $0x650] sm:$0xff]
  %v248 = vld [vmem:[%s1 + $0x658] sm:$0xff]
  %v249 = vld [vmem:[%s1 + $0x660] sm:$0xff]
  %v250 = vld [vmem:[%s1 + $0x668] sm:$0xff]
  %v251 = vld [vmem:[%s1 + $0x670] sm:$0xff]
  %v252 = vld [vmem:[%s1 + $0x678] sm:$0xff]
  %v253 = vld [vmem:[%s1 + $0x680] sm:$0xff]
  %v254 = vld [vmem:[%s1 + $0x688] sm:$0xff]
  %v255 = vld [vmem:[%s1 + $0x690] sm:$0xff]
  %v256 = vld [vmem:[%s1 + $0x698] sm:$0xff]
  %v257 = vld [vmem:[%s1 + $0x6a0] sm:$0xff]
  %v258 = vld [vmem:[%s1 + $0x6a8] sm:$0xff]
  %v259 = vld [vmem:[%s1 + $0x6b0] sm:$0xff]
  %v260 = vld [vmem:[%s1 + $0x6b8] sm:$0xff]
  %v261 = vld [vmem:[%s1 + $0x6c0] sm:$0xff]
  %v262 = vld [vmem:[%s1 + $0x6c8] sm:$0xff]
  %v263 = vld [vmem:[%s1 + $0x6d0] sm:$0xff]
  %v264 = vld [vmem:[%s1 + $0x6d8] sm:$0xff]
  %v265 = vld [vmem:[%s1 + $0x6e0] sm:$0xff]
  %v266 = vld [vmem:[%s1 + $0x6e8] sm:$0xff]
  %v267 = vld [vmem:[%s1 + $0x6f0] sm:$0xff]
  %v268 = vld [vmem:[%s1 + $0x6f8] sm:$0xff]
  %v269 = vld [vmem:[%s1 + $0x700] sm:$0xff]
  %v270 = vld [vmem:[%s1 + $0x708] sm:$0xff]
  %v271 = vld [vmem:[%s1 + $0x710] sm:$0xff]
  %v272 = vld [vmem:[%s1 + $0x718] sm:$0xff]
  %v273 = vld [vmem:[%s1 + $0x720] sm:$0xff]
  %v274 = vld [vmem:[%s1 + $0x728] sm:$0xff]
  %v275 = vld [vmem:[%s1 + $0x730] sm:$0xff]
  %v276 = vld [vmem:[%s1 + $0x738] sm:$0xff]
  %v277 = vld [vmem:[%s1 + $0x740] sm:$0xff]
  %v278 = vld [vmem:[%s1 + $0x748] sm:$0xff]
  %v279 = vld [vmem:[%s1 + $0x750] sm:$0xff]
  %v280 = vld [vmem:[%s1 + $0x758] sm:$0xff]
  %v281 = vld [vmem:[%s1 + $0x760] sm:$0xff]
  %v282 = vld [vmem:[%s1 + $0x768] sm:$0xff]
  %v283 = vld [vmem:[%s1 + $0x770] sm:$0xff]
  %v284 = vld [vmem:[%s1 + $0x778] sm:$0xff]
  %v285 = vld [vmem:[%s1 + $0x780] sm:$0xff]
  %v286 = vld [vmem:[%s1 + $0x788] sm:$0xff]
  %v287 = vld [vmem:[%s1 + $0x790] sm:$0xff]
  %v288 = vld [vmem:[%s1 + $0x798] sm:$0xff]
  %v289 = vld [vmem:[%s1 + $0x7a0] sm:$0xff]
  %v290 = vld [vmem:[%s1 + $0x7a8] sm:$0xff]
  %v291 = vld [vmem:[%s1 + $0x7b0] sm:$0xff]
  %v292 = vld [vmem:[%s1 + $0x7b8] sm:$0xff]
  %v293 = vld [vmem:[%s1 + $0x7c0] sm:$0xff]
  %v294 = vld [vmem:[%s1 + $0x7c8] sm:$0xff]
  %v295 = vld [vmem:[%s1 + $0x7d0] sm:$0xff]
  %v296 = vld [vmem:[%s1 + $0x7d8] sm:$0xff]
  %v297 = vld [vmem:[%s1 + $0x7e0] sm:$0xff]
  %v298 = vld [vmem:[%s1 + $0x7e8] sm:$0xff]
  %v299 = vld [vmem:[%s1 + $0x7f0] sm:$0xff]
  %v300 = vld [vmem:[%s1 + $0x7f8] sm:$0xff]
  %v301 = vld [vmem:[%s1 + $0x800] sm:$0xff]
  %v302 = vld [vmem:[%s1 + $0x808] sm:$0xff]
  %v303 = vld [vmem:[%s1 + $0x810] sm:$0xff]
  %v304 = vld [vmem:[%s1 + $0x818] sm:$0xff]
  %v305 = vld [vmem:[%s1 + $0x820] sm:$0xff]
  %v306 = vld [vmem:[%s1 + $0x828] sm:$0xff]
  %v307 = vld [vmem:[%s1 + $0x830] sm:$0xff]
  %v308 = vld [vmem:[%s1 + $0x838] sm:$0xff]
  %v309 = vld [vmem:[%s1 + $0x840] sm:$0xff]
  %v310 = vld [vmem:[%s1 + $0x848] sm:$0xff]
  %v311 = vld [vmem:[%s1 + $0x850] sm:$0xff]
  %v312 = vld [vmem:[%s1 + $0x858] sm:$0xff]
  %v313 = vld [vmem:[%s1 + $0x860] sm:$0xff]
  %v314 = vld [vmem:[%s1 + $0x868] sm:$0xff]
  %v315 = vld [vmem:[%s1 + $0x870] sm:$0xff]
  %v316 = vld [vmem:[%s1 + $0x878] sm:$0xff]
  %v317 = vld [vmem:[%s1 + $0x880] sm:$0xff]
  %v318 = vld [vmem:[%s1 + $0x888] sm:$0xff]
  %v319 = vld [vmem:[%s1 + $0x890] sm:$0xff]
  %v320 = vld [vmem:[%s1 + $0x898] sm:$0xff]
  %v321 = vld [vmem:[%s1 + $0x8a0] sm:$0xff]
  %v322 = vld [vmem:[%s1 + $0x8a8] sm:$0xff]
  %v323 = vld [vmem:[%s1 + $0x8b0] sm:$0xff]
  %v324 = vld [vmem:[%s1 + $0x8b8] sm:$0xff]
  %v325 = vld [vmem:[%s1 + $0x8c0] sm:$0xff]
  %v326 = vld [vmem:[%s1 + $0x8c8] sm:$0xff]
  %v327 = vld [vmem:[%s1 + $0x8d0] sm:$0xff]
  %v328 = vld [vmem:[%s1 + $0x8d8] sm:$0xff]
  %v329 = vld [vmem:[%s1 + $0x8e0] sm:$0xff]
  %v330 = vld [vmem:[%s1 + $0x8e8] sm:$0xff]
  %v331 = vld [vmem:[%s1 + $0x8f0] sm:$0xff]
  %v332 = vld [vmem:[%s1 + $0x8f8] sm:$0xff]
  %v333 = vld [vmem:[%s1 + $0x900] sm:$0xff]
  %v334 = vld [vmem:[%s1 + $0x908] sm:$0xff]
  %v335 = vld [vmem:[%s1 + $0x910] sm:$0xff]
  %v336 = vld [vmem:[%s1 + $0x918] sm:$0xff]
  %v337 = vld [vmem:[%s1 + $0x920] sm:$0xff]
  %v338 = vld [vmem:[%s1 + $0x928] sm:$0xff]
  %v339 = vld [vmem:[%s1 + $0x930] sm:$0xff]
  %v340 = vld [vmem:[%s1 + $0x938] sm:$0xff]
  %v341 = vld [vmem:[%s1 + $0x940] sm:$0xff]
  %v342 = vld [vmem:[%s1 + $0x948] sm:$0xff]
  %v343 = vld [vmem:[%s1 + $0x950] sm:$0xff]
  %v344 = vld [vmem:[%s1 + $0x958] sm:$0xff]
  %v345 = vld [vmem:[%s1 + $0x960] sm:$0xff]
  %v346 = vld [vmem:[%s1 + $0x968] sm:$0xff]
  %v347 = vld [vmem:[%s1 + $0x970] sm:$0xff]
  %v348 = vld [vmem:[%s1 + $0x978] sm:$0xff]
  %v349 = vld [vmem:[%s1 + $0x980] sm:$0xff]
  %v350 = vld [vmem:[%s1 + $0x988] sm:$0xff]
  %v351 = vld [vmem:[%s1 + $0x990] sm:$0xff]
  %v352 = vld [vmem:[%s1 + $0x998] sm:$0xff]
  %v353 = vld [vmem:[%s1 + $0x9a0] sm:$0xff]
  %v354 = vld [vmem:[%s1 + $0x9a8] sm:$0xff]
  %v355 = vld [vmem:[%s1 + $0x9b0] sm:$0xff]
  %v356 = vld [vmem:[%s1 + $0x9b8] sm:$0xff]
  %v357 = vld [vmem:[%s1 + $0x9c0] sm:$0xff]
  %v358 = vld [vmem:[%s1 + $0x9c8] sm:$0xff]
  %v359 = vld [vmem:[%s1 + $0x9d0] sm:$0xff]
  %v360 = vld [vmem:[%s1 + $0x9d8] sm:$0xff]
  %v361 = vld [vmem:[%s1 + $0x9e0] sm:$0xff]
  %v362 = vld [vmem:[%s1 + $0x9e8] sm:$0xff]
  %v363 = vld [vmem:[%s1 + $0x9f0] sm:$0xff]
  %v364 = vld [vmem:[%s1 + $0x9f8] sm:$0xff]
  %v365 = vld [vmem:[%s1 + $0xa00] sm:$0xff]
  %v366 = vld [vmem:[%s1 + $0xa08] sm:$0xff]
  %v367 = vld [vmem:[%s1 + $0xa10] sm:$0xff]
  %v368 = vld [vmem:[%s1 + $0xa18] sm:$0xff]
  %v369 = vld [vmem:[%s1 + $0xa20] sm:$0xff]
  %v370 = vld [vmem:[%s1 + $0xa28] sm:$0xff]
  %v371 = vld [vmem:[%s1 + $0xa30] sm:$0xff]
  %v372 = vld [vmem:[%s1 + $0xa38] sm:$0xff]
  %v373 = vld [vmem:[%s1 + $0xa40] sm:$0xff]
  %v374 = vld [vmem:[%s1 + $0xa48] sm:$0xff]
  %v375 = vld [vmem:[%s1 + $0xa50] sm:$0xff]
  %v376 = vld [vmem:[%s1 + $0xa58] sm:$0xff]
  %v377 = vld [vmem:[%s1 + $0xa60] sm:$0xff]
  %v378 = vld [vmem:[%s1 + $0xa68] sm:$0xff]
  %v379 = vld [vmem:[%s1 + $0xa70] sm:$0xff]
  %v380 = vld [vmem:[%s1 + $0xa78] sm:$0xff]
  %v381 = vld [vmem:[%s1 + $0xa80] sm:$0xff]
  %v382 = vld [vmem:[%s1 + $0xa88] sm:$0xff]
  %v383 = vld [vmem:[%s1 + $0xa90] sm:$0xff]
  %v384 = vld [vmem:[%s1 + $0xa98] sm:$0xff]
  %v385 = vld [vmem:[%s1 + $0xaa0] sm:$0xff]
  %v386 = vld [vmem:[%s1 + $0xaa8] sm:$0xff]
  %v387 = vld [vmem:[%s1 + $0xab0] sm:$0xff]
  %v388 = vld [vmem:[%s1 + $0xab8] sm:$0xff]
  %v389 = vld [vmem:[%s1 + $0xac0] sm:$0xff]
  %v390 = vld [vmem:[%s1 + $0xac8] sm:$0xff]
  %v391 = vld [vmem:[%s1 + $0xad0] sm:$0xff]
  %v392 = vld [vmem:[%s1 + $0xad8] sm:$0xff]
  %v393 = vld [vmem:[%s1 + $0xae0] sm:$0xff]
  %v394 = vld [vmem:[%s1 + $0xae8] sm:$0xff]
  %v395 = vld [vmem:[%s1 + $0xaf0] sm:$0xff]
  %v396 = vld [vmem:[%s1 + $0xaf8] sm:$0xff]
  %v397 = vld [vmem:[%s1 + $0xb00] sm:$0xff]
  %v398 = vld [vmem:[%s1 + $0xb08] sm:$0xff]
  %v399 = vld [vmem:[%s1 + $0xb10] sm:$0xff]
  %v400 = vld [vmem:[%s1 + $0xb18] sm:$0xff]
  %v401 = vld [vmem:[%s1 + $0xb20] sm:$0xff]
  %v402 = vld [vmem:[%s1 + $0xb28] sm:$0xff]
  %v403 = vld [vmem:[%s1 + $0xb30] sm:$0xff]
  %v404 = vld [vmem:[%s1 + $0xb38] sm:$0xff]
  %v405 = vld [vmem:[%s1 + $0xb40] sm:$0xff]
  %v406 = vld [vmem:[%s1 + $0xb48] sm:$0xff]
  %v407 = vld [vmem:[%s1 + $0xb50] sm:$0xff]
  %v408 = vld [vmem:[%s1 + $0xb58] sm:$0xff]
  %v409 = vld [vmem:[%s1 + $0xb60] sm:$0xff]
  %v410 = vld [vmem:[%s1 + $0xb68] sm:$0xff]
  %v411 = vld [vmem:[%s1 + $0xb70] sm:$0xff]
  %v412 = vld [vmem:[%s1 + $0xb78] sm:$0xff]
  %v413 = vld [vmem:[%s1 + $0xb80] sm:$0xff]
  %v414 = vld [vmem:[%s1 + $0xb88] sm:$0xff]
  %v415 = vld [vmem:[%s1 + $0xb90] sm:$0xff]
  %v416 = vld [vmem:[%s1 + $0xb98] sm:$0xff]
  %v417 = vld [vmem:[%s1 + $0xba0] sm:$0xff]
  %v418 = vld [vmem:[%s1 + $0xba8] sm:$0xff]
  %v419 = vld [vmem:[%s1 + $0xbb0] sm:$0xff]
  %v420 = vld [vmem:[%s1 + $0xbb8] sm:$0xff]
  %v421 = vld [vmem:[%s1 + $0xbc0] sm:$0xff]
  %v422 = vld [vmem:[%s1 + $0xbc8] sm:$0xff]
  %v423 = vld [vmem:[%s1 + $0xbd0] sm:$0xff]
  %v424 = vld [vmem:[%s1 + $0xbd8] sm:$0xff]
  %v425 = vld [vmem:[%s1 + $0xbe0] sm:$0xff]
  %v426 = vld [vmem:[%s1 + $0xbe8] sm:$0xff]
  %v427 = vld [vmem:[%s1 + $0xbf0] sm:$0xff]
  %v428 = vld [vmem:[%s1 + $0xbf8] sm:$0xff]
  %v429 = vld [vmem:[%s1 + $0xc00] sm:$0xff]
  %v430 = vld [vmem:[%s1 + $0xc08] sm:$0xff]
  %v431 = vld [vmem:[%s1 + $0xc10] sm:$0xff]
  %v432 = vld [vmem:[%s1 + $0xc18] sm:$0xff]
  %v433 = vld [vmem:[%s1 + $0xc20] sm:$0xff]
  %v434 = vld [vmem:[%s1 + $0xc28] sm:$0xff]
  %v435 = vld [vmem:[%s1 + $0xc30] sm:$0xff]
  %v436 = vld [vmem:[%s1 + $0xc38] sm:$0xff]
  %v437 = vld [vmem:[%s1 + $0xc40] sm:$0xff]
  %v438 = vld [vmem:[%s1 + $0xc48] sm:$0xff]
  %v439 = vld [vmem:[%s1 + $0xc50] sm:$0xff]
  %v440 = vld [vmem:[%s1 + $0xc58] sm:$0xff]
  %v441 = vld [vmem:[%s1 + $0xc60] sm:$0xff]
  %v442 = vld [vmem:[%s1 + $0xc68] sm:$0xff]
  %v443 = vld [vmem:[%s1 + $0xc70] sm:$0xff]
  %v444 = vld [vmem:[%s1 + $0xc78] sm:$0xff]
  %v445 = vld [vmem:[%s1 + $0xc80] sm:$0xff]
  %v446 = vld [vmem:[%s1 + $0xc88] sm:$0xff]
  %v447 = vld [vmem:[%s1 + $0xc90] sm:$0xff]
  %v448 = vld [vmem:[%s1 + $0xc98] sm:$0xff]
  %v449 = vld [vmem:[%s1 + $0xca0] sm:$0xff]
  %v450 = vld [vmem:[%s1 + $0xca8] sm:$0xff]
  %v451 = vld [vmem:[%s1 + $0xcb0] sm:$0xff]
  %v452 = vld [vmem:[%s1 + $0xcb8] sm:$0xff]
  %v453 = vld [vmem:[%s1 + $0xcc0] sm:$0xff]
  %v454 = vld [vmem:[%s1 + $0xcc8] sm:$0xff]
  %v455 = vld [vmem:[%s1 + $0xcd0] sm:$0xff]
  %v456 = vld [vmem:[%s1 + $0xcd8] sm:$0xff]
  %v457 = vld [vmem:[%s1 + $0xce0] sm:$0xff]
  %v458 = vld [vmem:[%s1 + $0xce8] sm:$0xff]
  %v459 = vld [vmem:[%s1 + $0xcf0] sm:$0xff]
  %v460 = vld [vmem:[%s1 + $0xcf8] sm:$0xff]
  %v461 = vld [vmem:[%s1 + $0xd00] sm:$0xff]
  %v462 = vld [vmem:[%s1 + $0xd08] sm:$0xff]
  %v463 = vld [vmem:[%s1 + $0xd10] sm:$0xff]
  %v464 = vld [vmem:[%s1 + $0xd18] sm:$0xff]
  %v465 = vld [vmem:[%s1 + $0xd20] sm:$0xff]
  %v466 = vld [vmem:[%s1 + $0xd28] sm:$0xff]
  %v467 = vld [vmem:[%s1 + $0xd30] sm:$0xff]
  %v468 = vld [vmem:[%s1 + $0xd38] sm:$0xff]
  %v469 = vld [vmem:[%s1 + $0xd40] sm:$0xff]
  %v470 = vld [vmem:[%s1 + $0xd48] sm:$0xff]
  %v471 = vld [vmem:[%s1 + $0xd50] sm:$0xff]
  %v472 = vld [vmem:[%s1 + $0xd58] sm:$0xff]
  %v473 = vld [vmem:[%s1 + $0xd60] sm:$0xff]
  %v474 = vld [vmem:[%s1 + $0xd68] sm:$0xff]
  %v475 = vld [vmem:[%s1 + $0xd70] sm:$0xff]
  %v476 = vld [vmem:[%s1 + $0xd78] sm:$0xff]
  %v477 = vld [vmem:[%s1 + $0xd80] sm:$0xff]
  %v478 = vld [vmem:[%s1 + $0xd88] sm:$0xff]
  %v479 = vld [vmem:[%s1 + $0xd90] sm:$0xff]
  %v480 = vld [vmem:[%s1 + $0xd98] sm:$0xff]
  %v481 = vld [vmem:[%s1 + $0xda0] sm:$0xff]
  %v482 = vld [vmem:[%s1 + $0xda8] sm:$0xff]
  %v483 = vld [vmem:[%s1 + $0xdb0] sm:$0xff]
  %v484 = vld [vmem:[%s1 + $0xdb8] sm:$0xff]
  %v485 = vld [vmem:[%s1 + $0xdc0] sm:$0xff]
  %v486 = vld [vmem:[%s1 + $0xdc8] sm:$0xff]
  %v487 = vld [vmem:[%s1 + $0xdd0] sm:$0xff]
  %v488 = vld [vmem:[%s1 + $0xdd8] sm:$0xff]
  %v489 = vld [vmem:[%s1 + $0xde0] sm:$0xff]
  %v490 = vld [vmem:[%s1 + $0xde8] sm:$0xff]
  %v491 = vld [vmem:[%s1 + $0xdf0] sm:$0xff]
  %v492 = vld [vmem:[%s1 + $0xdf8] sm:$0xff]
  %v493 = vld [vmem:[%s1 + $0xe00] sm:$0xff]
  %v494 = vld [vmem:[%s1 + $0xe08] sm:$0xff]
  %v495 = vld [vmem:[%s1 + $0xe10] sm:$0xff]
  %v496 = vld [vmem:[%s1 + $0xe18] sm:$0xff]
  %v497 = vld [vmem:[%s1 + $0xe20] sm:$0xff]
  %v498 = vld [vmem:[%s1 + $0xe28] sm:$0xff]
  %v499 = vld [vmem:[%s1 + $0xe30] sm:$0xff]
  %v500 = vld [vmem:[%s1 + $0xe38] sm:$0xff]
  %v501 = vld [vmem:[%s1 + $0xe40] sm:$0xff]
  %v502 = vld [vmem:[%s1 + $0xe48] sm:$0xff]
  %v503 = vld [vmem:[%s1 + $0xe50] sm:$0xff]
  %v504 = vld [vmem:[%s1 + $0xe58] sm:$0xff]
  %v505 = vld [vmem:[%s1 + $0xe60] sm:$0xff]
  %v506 = vld [vmem:[%s1 + $0xe68] sm:$0xff]
  %v507 = vld [vmem:[%s1 + $0xe70] sm:$0xff]
  %v508 = vld [vmem:[%s1 + $0xe78] sm:$0xff]
  %v509 = vld [vmem:[%s1 + $0xe80] sm:$0xff]
  %v510 = vld [vmem:[%s1 + $0xe88] sm:$0xff]
  %v511 = vld [vmem:[%s1 + $0xe90] sm:$0xff]
  %v512 = vld [vmem:[%s1 + $0xe98] sm:$0xff]
  %v513 = vld [vmem:[%s1 + $0xea0] sm:$0xff]
  %v514 = vld [vmem:[%s1 + $0xea8] sm:$0xff]
  %v515 = vld [vmem:[%s1 + $0xeb0] sm:$0xff]
  %v516 = vld [vmem:[%s1 + $0xeb8] sm:$0xff]
  %v517 = vld [vmem:[%s1 + $0xec0] sm:$0xff]
  %v518 = vld [vmem:[%s1 + $0xec8] sm:$0xff]
  %v519 = vld [vmem:[%s1 + $0xed0] sm:$0xff]
  %v520 = vld [vmem:[%s1 + $0xed8] sm:$0xff]
  %v521 = vld [vmem:[%s1 + $0xee0] sm:$0xff]
  %v522 = vld [vmem:[%s1 + $0xee8] sm:$0xff]
  %v523 = vld [vmem:[%s1 + $0xef0] sm:$0xff]
  %v524 = vld [vmem:[%s1 + $0xef8] sm:$0xff]
  %v525 = vld [vmem:[%s1 + $0xf00] sm:$0xff]
  %v526 = vld [vmem:[%s1 + $0xf08] sm:$0xff]
  %v527 = vld [vmem:[%s1 + $0xf10] sm:$0xff]
  %v528 = vld [vmem:[%s1 + $0xf18] sm:$0xff]
  %v529 = vld [vmem:[%s1 + $0xf20] sm:$0xff]
  %v530 = vld [vmem:[%s1 + $0xf28] sm:$0xff]
  %v531 = vld [vmem:[%s1 + $0xf30] sm:$0xff]
  %v532 = vld [vmem:[%s1 + $0xf38] sm:$0xff]
  %v533 = vld [vmem:[%s1 + $0xf40] sm:$0xff]
  %v534 = vld [vmem:[%s1 + $0xf48] sm:$0xff]
  %v535 = vld [vmem:[%s1 + $0xf50] sm:$0xff]
  %v536 = vld [vmem:[%s1 + $0xf58] sm:$0xff]
  %v537 = vld [vmem:[%s1 + $0xf60] sm:$0xff]
  %v538 = vld [vmem:[%s1 + $0xf68] sm:$0xff]
  %v539 = vld [vmem:[%s1 + $0xf70] sm:$0xff]
  %v540 = vld [vmem:[%s1 + $0xf78] sm:$0xff]
  %v541 = vld [vmem:[%s1 + $0xf80] sm:$0xff]
  %v542 = vld [vmem:[%s1 + $0xf88] sm:$0xff]
  %v543 = vld [vmem:[%s1 + $0xf90] sm:$0xff]
  %v544 = vld [vmem:[%s1 + $0xf98] sm:$0xff]
  %v545 = vld [vmem:[%s1 + $0xfa0] sm:$0xff]
  %v546 = vld [vmem:[%s1 + $0xfa8] sm:$0xff]
  %v547 = vld [vmem:[%s1 + $0xfb0] sm:$0xff]
  %v548 = vld [vmem:[%s1 + $0xfb8] sm:$0xff]
  %v549 = vld [vmem:[%s1 + $0xfc0] sm:$0xff]
  %v550 = vld [vmem:[%s1 + $0xfc8] sm:$0xff]
  %v551 = vld [vmem:[%s1 + $0xfd0] sm:$0xff]
  %v552 = vld [vmem:[%s1 + $0xfd8] sm:$0xff]
  %v553 = vld [vmem:[%s1 + $0xfe0] sm:$0xff]
  %v554 = vld [vmem:[%s1 + $0xfe8] sm:$0xff]
  %v555 = vld [vmem:[%s1 + $0xff0] sm:$0xff]
  %v556 = vld [vmem:[%s1 + $0xff8] sm:$0xff]
  %v557 = vld [vmem:[%s1 + $0x1000] sm:$0xff]
  %v558 = vld [vmem:[%s1 + $0x1008] sm:$0xff]
  %v559 = vld [vmem:[%s1 + $0x1010] sm:$0xff]
  %v560 = vld [vmem:[%s1 + $0x1018] sm:$0xff]
  %v561 = vld [vmem:[%s1 + $0x1020] sm:$0xff]
  %v562 = vld [vmem:[%s1 + $0x1028] sm:$0xff]
  %v563 = vld [vmem:[%s1 + $0x1030] sm:$0xff]
  %v564 = vld [vmem:[%s1 + $0x1038] sm:$0xff]
  %v565 = vld [vmem:[%s1 + $0x1040] sm:$0xff]
  %v566 = vld [vmem:[%s1 + $0x1048] sm:$0xff]
  %v567 = vld [vmem:[%s1 + $0x1050] sm:$0xff]
  %v568 = vld [vmem:[%s1 + $0x1058] sm:$0xff]
  %v569 = vld [vmem:[%s1 + $0x1060] sm:$0xff]
  %v570 = vld [vmem:[%s1 + $0x1068] sm:$0xff]
  %v571 = vld [vmem:[%s1 + $0x1070] sm:$0xff]
  %v572 = vld [vmem:[%s1 + $0x1078] sm:$0xff]
  %v573 = vld [vmem:[%s1 + $0x1080] sm:$0xff]
  %v574 = vld [vmem:[%s1 + $0x1088] sm:$0xff]
  %v575 = vld [vmem:[%s1 + $0x1090] sm:$0xff]
  %v576 = vld [vmem:[%s1 + $0x1098] sm:$0xff]
  %v577 = vld [vmem:[%s1 + $0x10a0] sm:$0xff]
  %v578 = vld [vmem:[%s1 + $0x10a8] sm:$0xff]
  %v579 = vld [vmem:[%s1 + $0x10b0] sm:$0xff]
  %v580 = vld [vmem:[%s1 + $0x10b8] sm:$0xff]
  %v581 = vld [vmem:[%s1 + $0x10c0] sm:$0xff]
  %v582 = vld [vmem:[%s1 + $0x10c8] sm:$0xff]
  %v583 = vld [vmem:[%s1 + $0x10d0] sm:$0xff]
  %v584 = vld [vmem:[%s1 + $0x10d8] sm:$0xff]
  %v585 = vld [vmem:[%s1 + $0x10e0] sm:$0xff]
  %v586 = vld [vmem:[%s1 + $0x10e8] sm:$0xff]
  %v587 = vld [vmem:[%s1 + $0x10f0] sm:$0xff]
  %v588 = vld [vmem:[%s1 + $0x10f8] sm:$0xff]
  %v589 = vld [vmem:[%s1 + $0x1100] sm:$0xff]
  %v590 = vld [vmem:[%s1 + $0x1108] sm:$0xff]
  %v591 = vld [vmem:[%s1 + $0x1110] sm:$0xff]
  %v592 = vld [vmem:[%s1 + $0x1118] sm:$0xff]
  %v593 = vld [vmem:[%s1 + $0x1120] sm:$0xff]
  %v594 = vld [vmem:[%s1 + $0x1128] sm:$0xff]
  %v595 = vld [vmem:[%s1 + $0x1130] sm:$0xff]
  %v596 = vld [vmem:[%s1 + $0x1138] sm:$0xff]
  %v597 = vld [vmem:[%s1 + $0x1140] sm:$0xff]
  %v598 = vld [vmem:[%s1 + $0x1148] sm:$0xff]
  %v599 = vld [vmem:[%s1 + $0x1150] sm:$0xff]
  %v600 = vld [vmem:[%s1 + $0x1158] sm:$0xff]
  %v601 = vld [vmem:[%s1 + $0x1160] sm:$0xff]
  %v602 = vld [vmem:[%s1 + $0x1168] sm:$0xff]
  %v603 = vld [vmem:[%s1 + $0x1170] sm:$0xff]
  %v604 = vld [vmem:[%s1 + $0x1178] sm:$0xff]
  %v605 = vld [vmem:[%s1 + $0x1180] sm:$0xff]
  %v606 = vld [vmem:[%s1 + $0x1188] sm:$0xff]
  %v607 = vld [vmem:[%s1 + $0x1190] sm:$0xff]
  %v608 = vld [vmem:[%s1 + $0x1198] sm:$0xff]
  %v609 = vld [vmem:[%s1 + $0x11a0] sm:$0xff]
  %v610 = vld [vmem:[%s1 + $0x11a8] sm:$0xff]
  %v611 = vld [vmem:[%s1 + $0x11b0] sm:$0xff]
  %v612 = vld [vmem:[%s1 + $0x11b8] sm:$0xff]
  %v613 = vld [vmem:[%s1 + $0x11c0] sm:$0xff]
  %v614 = vld [vmem:[%s1 + $0x11c8] sm:$0xff]
  %v615 = vld [vmem:[%s1 + $0x11d0] sm:$0xff]
  %v616 = vld [vmem:[%s1 + $0x11d8] sm:$0xff]
  %v617 = vld [vmem:[%s1 + $0x11e0] sm:$0xff]
  %v618 = vld [vmem:[%s1 + $0x11e8] sm:$0xff]
  %v619 = vld [vmem:[%s1 + $0x11f0] sm:$0xff]
  %v620 = vld [vmem:[%s1 + $0x11f8] sm:$0xff]
  %v621 = vld [vmem:[%s1 + $0x1200] sm:$0xff]
  %v622 = vld [vmem:[%s1 + $0x1208] sm:$0xff]
  %v623 = vld [vmem:[%s1 + $0x1210] sm:$0xff]
  %v624 = vld [vmem:[%s1 + $0x1218] sm:$0xff]
  %v625 = vld [vmem:[%s1 + $0x1220] sm:$0xff]
  %v626 = vld [vmem:[%s1 + $0x1228] sm:$0xff]
  %v627 = vld [vmem:[%s1 + $0x1230] sm:$0xff]
  %v628 = vld [vmem:[%s1 + $0x1238] sm:$0xff]
  %v629 = vld [vmem:[%s1 + $0x1240] sm:$0xff]
  %v630 = vld [vmem:[%s1 + $0x1248] sm:$0xff]
  %v631 = vld [vmem:[%s1 + $0x1250] sm:$0xff]
  %v632 = vld [vmem:[%s1 + $0x1258] sm:$0xff]
  %v633 = vld [vmem:[%s1 + $0x1260] sm:$0xff]
  %v634 = vld [vmem:[%s1 + $0x1268] sm:$0xff]
  %v635 = vld [vmem:[%s1 + $0x1270] sm:$0xff]
  %v636 = vld [vmem:[%s1 + $0x1278] sm:$0xff]
  %v637 = vld [vmem:[%s1 + $0x1280] sm:$0xff]
  %v638 = vld [vmem:[%s1 + $0x1288] sm:$0xff]
  %v639 = vld [vmem:[%s1 + $0x1290] sm:$0xff]
  %v640 = vld [vmem:[%s1 + $0x1298] sm:$0xff]
  %v641 = vld [vmem:[%s1 + $0x12a0] sm:$0xff]
  %v642 = vld [vmem:[%s1 + $0x12a8] sm:$0xff]
  %v643 = vld [vmem:[%s1 + $0x12b0] sm:$0xff]
  %v644 = vld [vmem:[%s1 + $0x12b8] sm:$0xff]
  %v645 = vld [vmem:[%s1 + $0x12c0] sm:$0xff]
  %v646 = vld [vmem:[%s1 + $0x12c8] sm:$0xff]
  %v647 = vld [vmem:[%s1 + $0x12d0] sm:$0xff]
  %v648 = vld [vmem:[%s1 + $0x12d8] sm:$0xff]
  %v649 = vld [vmem:[%s1 + $0x12e0] sm:$0xff]
  %v650 = vld [vmem:[%s1 + $0x12e8] sm:$0xff]
  %v651 = vld [vmem:[%s1 + $0x12f0] sm:$0xff]
  %v652 = vld [vmem:[%s1 + $0x12f8] sm:$0xff]
  %v653 = vld [vmem:[%s1 + $0x1300] sm:$0xff]
  %v654 = vld [vmem:[%s1 + $0x1308] sm:$0xff]
  %v655 = vld [vmem:[%s1 + $0x1310] sm:$0xff]
  %v656 = vld [vmem:[%s1 + $0x1318] sm:$0xff]
  %v657 = vld [vmem:[%s1 + $0x1320] sm:$0xff]
  %v658 = vld [vmem:[%s1 + $0x1328] sm:$0xff]
  %v659 = vld [vmem:[%s1 + $0x1330] sm:$0xff]
  %v660 = vld [vmem:[%s1 + $0x1338] sm:$0xff]
  %v661 = vld [vmem:[%s1 + $0x1340] sm:$0xff]
  %v662 = vld [vmem:[%s1 + $0x1348] sm:$0xff]
  %v663 = vld [vmem:[%s1 + $0x1350] sm:$0xff]
  %v664 = vld [vmem:[%s1 + $0x1358] sm:$0xff]
  %v665 = vld [vmem:[%s1 + $0x1360] sm:$0xff]
  %v666 = vld [vmem:[%s1 + $0x1368] sm:$0xff]
  %v667 = vld [vmem:[%s1 + $0x1370] sm:$0xff]
  %v668 = vld [vmem:[%s1 + $0x1378] sm:$0xff]
  %v669 = vld [vmem:[%s1 + $0x1380] sm:$0xff]
  %v670 = vld [vmem:[%s1 + $0x1388] sm:$0xff]
  %v671 = vld [vmem:[%s1 + $0x1390] sm:$0xff]
  %v672 = vld [vmem:[%s1 + $0x1398] sm:$0xff]
  %v673 = vld [vmem:[%s1 + $0x13a0] sm:$0xff]
  %v674 = vld [vmem:[%s1 + $0x13a8] sm:$0xff]
  %v675 = vld [vmem:[%s1 + $0x13b0] sm:$0xff]
  %v676 = vld [vmem:[%s1 + $0x13b8] sm:$0xff]
  %v677 = vld [vmem:[%s1 + $0x13c0] sm:$0xff]
  %v678 = vld [vmem:[%s1 + $0x13c8] sm:$0xff]
  %v679 = vld [vmem:[%s1 + $0x13d0] sm:$0xff]
  %v680 = vld [vmem:[%s1 + $0x13d8] sm:$0xff]
  %v681 = vld [vmem:[%s1 + $0x13e0] sm:$0xff]
  %v682 = vld [vmem:[%s1 + $0x13e8] sm:$0xff]
  %v683 = vld [vmem:[%s1 + $0x13f0] sm:$0xff]
  %v684 = vld [vmem:[%s1 + $0x13f8] sm:$0xff]
  %v685 = vld [vmem:[%s1 + $0x1400] sm:$0xff]
  %v686 = vld [vmem:[%s1 + $0x1408] sm:$0xff]
  %v687 = vld [vmem:[%s1 + $0x1410] sm:$0xff]
  %v688 = vld [vmem:[%s1 + $0x1418] sm:$0xff]
  %v689 = vld [vmem:[%s1 + $0x1420] sm:$0xff]
  %v690 = vld [vmem:[%s1 + $0x1428] sm:$0xff]
  %v691 = vld [vmem:[%s1 + $0x1430] sm:$0xff]
  %v692 = vld [vmem:[%s1 + $0x1438] sm:$0xff]
  %v693 = vld [vmem:[%s1 + $0x1440] sm:$0xff]
  %v694 = vld [vmem:[%s1 + $0x1448] sm:$0xff]
  %v695 = vld [vmem:[%s1 + $0x1450] sm:$0xff]
  %v696 = vld [vmem:[%s1 + $0x1458] sm:$0xff]
  %v697 = vld [vmem:[%s1 + $0x1460] sm:$0xff]
  %v698 = vld [vmem:[%s1 + $0x1468] sm:$0xff]
  %v699 = vld [vmem:[%s1 + $0x1470] sm:$0xff]
  %v700 = vld [vmem:[%s1 + $0x1478] sm:$0xff]
  %v701 = vld [vmem:[%s1 + $0x1480] sm:$0xff]
  %v702 = vld [vmem:[%s1 + $0x1488] sm:$0xff]
  %v703 = vld [vmem:[%s1 + $0x1490] sm:$0xff]
  %v704 = vld [vmem:[%s1 + $0x1498] sm:$0xff]
  %v705 = vld [vmem:[%s1 + $0x14a0] sm:$0xff]
  %v706 = vld [vmem:[%s1 + $0x14a8] sm:$0xff]
  %v707 = vld [vmem:[%s1 + $0x14b0] sm:$0xff]
  %v708 = vld [vmem:[%s1 + $0x14b8] sm:$0xff]
  %v709 = vld [vmem:[%s1 + $0x14c0] sm:$0xff]
  %v710 = vld [vmem:[%s1 + $0x14c8] sm:$0xff]
  %v711 = vld [vmem:[%s1 + $0x14d0] sm:$0xff]
  %v712 = vld [vmem:[%s1 + $0x14d8] sm:$0xff]
  %v713 = vld [vmem:[%s1 + $0x14e0] sm:$0xff]
  %v714 = vld [vmem:[%s1 + $0x14e8] sm:$0xff]
  %v715 = vld [vmem:[%s1 + $0x14f0] sm:$0xff]
  %v716 = vld [vmem:[%s1 + $0x14f8] sm:$0xff]
  %v717 = vld [vmem:[%s1 + $0x1500] sm:$0xff]
  %v718 = vld [vmem:[%s1 + $0x1508] sm:$0xff]
  %v719 = vld [vmem:[%s1 + $0x1510] sm:$0xff]
  %v720 = vld [vmem:[%s1 + $0x1518] sm:$0xff]
  %v721 = vld [vmem:[%s1 + $0x1520] sm:$0xff]
  %v722 = vld [vmem:[%s1 + $0x1528] sm:$0xff]
  %v723 = vld [vmem:[%s1 + $0x1530] sm:$0xff]
  %v724 = vld [vmem:[%s1 + $0x1538] sm:$0xff]
  %v725 = vld [vmem:[%s1 + $0x1540] sm:$0xff]
  %v726 = vld [vmem:[%s1 + $0x1548] sm:$0xff]
  %v727 = vld [vmem:[%s1 + $0x1550] sm:$0xff]
  %v728 = vld [vmem:[%s1 + $0x1558] sm:$0xff]
  %v729 = vld [vmem:[%s1 + $0x1560] sm:$0xff]
  %v730 = vld [vmem:[%s1 + $0x1568] sm:$0xff]
  %v731 = vld [vmem:[%s1 + $0x1570] sm:$0xff]
  %v732 = vld [vmem:[%s1 + $0x1578] sm:$0xff]
  %v733 = vld [vmem:[%s1 + $0x1580] sm:$0xff]
  %v734 = vld [vmem:[%s1 + $0x1588] sm:$0xff]
  %v735 = vld [vmem:[%s1 + $0x1590] sm:$0xff]
  %v736 = vld [vmem:[%s1 + $0x1598] sm:$0xff]
  %v737 = vld [vmem:[%s1 + $0x15a0] sm:$0xff]
  %v738 = vld [vmem:[%s1 + $0x15a8] sm:$0xff]
  %v739 = vld [vmem:[%s1 + $0x15b0] sm:$0xff]
  %v740 = vld [vmem:[%s1 + $0x15b8] sm:$0xff]
  %v741 = vld [vmem:[%s1 + $0x15c0] sm:$0xff]
  %v742 = vld [vmem:[%s1 + $0x15c8] sm:$0xff]
  %v743 = vld [vmem:[%s1 + $0x15d0] sm:$0xff]
  %v744 = vld [vmem:[%s1 + $0x15d8] sm:$0xff]
  %v745 = vld [vmem:[%s1 + $0x15e0] sm:$0xff]
  %v746 = vld [vmem:[%s1 + $0x15e8] sm:$0xff]
  %v747 = vld [vmem:[%s1 + $0x15f0] sm:$0xff]
  %v748 = vld [vmem:[%s1 + $0x15f8] sm:$0xff]
  %v749 = vld [vmem:[%s1 + $0x1600] sm:$0xff]
  %v750 = vld [vmem:[%s1 + $0x1608] sm:$0xff]
  %v751 = vld [vmem:[%s1 + $0x1610] sm:$0xff]
  %v752 = vld [vmem:[%s1 + $0x1618] sm:$0xff]
  %v753 = vld [vmem:[%s1 + $0x1620] sm:$0xff]
  %v754 = vld [vmem:[%s1 + $0x1628] sm:$0xff]
  %v755 = vld [vmem:[%s1 + $0x1630] sm:$0xff]
  %v756 = vld [vmem:[%s1 + $0x1638] sm:$0xff]
  %v757 = vld [vmem:[%s1 + $0x1640] sm:$0xff]
  %v758 = vld [vmem:[%s1 + $0x1648] sm:$0xff]
  %v759 = vld [vmem:[%s1 + $0x1650] sm:$0xff]
  %v760 = vld [vmem:[%s1 + $0x1658] sm:$0xff]
  %v761 = vld [vmem:[%s1 + $0x1660] sm:$0xff]
  %v762 = vld [vmem:[%s1 + $0x1668] sm:$0xff]
  %v763 = vld [vmem:[%s1 + $0x1670] sm:$0xff]
  %v764 = vld [vmem:[%s1 + $0x1678] sm:$0xff]
  %v765 = vld [vmem:[%s1 + $0x1680] sm:$0xff]
  %v766 = vld [vmem:[%s1 + $0x1688] sm:$0xff]
  %v767 = vld [vmem:[%s1 + $0x1690] sm:$0xff]
  %v768 = vld [vmem:[%s1 + $0x1698] sm:$0xff]
  %v769 = vld [vmem:[%s1 + $0x16a0] sm:$0xff]
  %v770 = vld [vmem:[%s1 + $0x16a8] sm:$0xff]
  %v771 = vld [vmem:[%s1 + $0x16b0] sm:$0xff]
  %v772 = vld [vmem:[%s1 + $0x16b8] sm:$0xff]
  %v773 = vld [vmem:[%s1 + $0x16c0] sm:$0xff]
  %v774 = vld [vmem:[%s1 + $0x16c8] sm:$0xff]
  %v775 = vld [vmem:[%s1 + $0x16d0] sm:$0xff]
  %v776 = vld [vmem:[%s1 + $0x16d8] sm:$0xff]
  %v777 = vld [vmem:[%s1 + $0x16e0] sm:$0xff]
  %v778 = vld [vmem:[%s1 + $0x16e8] sm:$0xff]
  %v779 = vld [vmem:[%s1 + $0x16f0] sm:$0xff]
  %v780 = vld [vmem:[%s1 + $0x16f8] sm:$0xff]
  %v781 = vld [vmem:[%s1 + $0x1700] sm:$0xff]
  %v782 = vld [vmem:[%s1 + $0x1708] sm:$0xff]
  %v783 = vld [vmem:[%s1 + $0x1710] sm:$0xff]
  %v784 = vld [vmem:[%s1 + $0x1718] sm:$0xff]
  %v785 = vld [vmem:[%s1 + $0x1720] sm:$0xff]
  %v786 = vld [vmem:[%s1 + $0x1728] sm:$0xff]
  %v787 = vld [vmem:[%s1 + $0x1730] sm:$0xff]
  %v788 = vld [vmem:[%s1 + $0x1738] sm:$0xff]
  %v789 = vld [vmem:[%s1 + $0x1740] sm:$0xff]
  %v790 = vld [vmem:[%s1 + $0x1748] sm:$0xff]
  %v791 = vld [vmem:[%s1 + $0x1750] sm:$0xff]
  %v792 = vld [vmem:[%s1 + $0x1758] sm:$0xff]
  %v793 = vld [vmem:[%s1 + $0x1760] sm:$0xff]
  %v794 = vld [vmem:[%s1 + $0x1768] sm:$0xff]
  %v795 = vld [vmem:[%s1 + $0x1770] sm:$0xff]
  %v796 = vld [vmem:[%s1 + $0x1778] sm:$0xff]
  %v797 = vld [vmem:[%s1 + $0x1780] sm:$0xff]
  %v798 = vld [vmem:[%s1 + $0x1788] sm:$0xff]
  %v799 = vld [vmem:[%s1 + $0x1790] sm:$0xff]
  %v800 = vld [vmem:[%s1 + $0x1798] sm:$0xff]
  %v801 = vld [vmem:[%s1 + $0x17a0] sm:$0xff]
  %v802 = vld [vmem:[%s1 + $0x17a8] sm:$0xff]
  %v803 = vld [vmem:[%s1 + $0x17b0] sm:$0xff]
  %v804 = vld [vmem:[%s1 + $0x17b8] sm:$0xff]
  %v805 = vld [vmem:[%s1 + $0x17c0] sm:$0xff]
  %v806 = vld [vmem:[%s1 + $0x17c8] sm:$0xff]
  %v807 = vld [vmem:[%s1 + $0x17d0] sm:$0xff]
  %v808 = vld [vmem:[%s1 + $0x17d8] sm:$0xff]
  %v809 = vld [vmem:[%s1 + $0x17e0] sm:$0xff]
  %v810 = vld [vmem:[%s1 + $0x17e8] sm:$0xff]
  %v811 = vld [vmem:[%s1 + $0x17f0] sm:$0xff]
  %v812 = vld [vmem:[%s1 + $0x17f8] sm:$0xff]
  %v813 = vld [vmem:[%s1 + $0x1800] sm:$0xff]
  %v814 = vld [vmem:[%s1 + $0x1808] sm:$0xff]
  %v815 = vld [vmem:[%s1 + $0x1810] sm:$0xff]
  %v816 = vld [vmem:[%s1 + $0x1818] sm:$0xff]
  %v817 = vld [vmem:[%s1 + $0x1820] sm:$0xff]
  %v818 = vld [vmem:[%s1 + $0x1828] sm:$0xff]
  %v819 = vld [vmem:[%s1 + $0x1830] sm:$0xff]
  %v820 = vld [vmem:[%s1 + $0x1838] sm:$0xff]
  %v821 = vld [vmem:[%s1 + $0x1840] sm:$0xff]
  %v822 = vld [vmem:[%s1 + $0x1848] sm:$0xff]
  %v823 = vld [vmem:[%s1 + $0x1850] sm:$0xff]
  %v824 = vld [vmem:[%s1 + $0x1858] sm:$0xff]
  %v825 = vld [vmem:[%s1 + $0x1860] sm:$0xff]
  %v826 = vld [vmem:[%s1 + $0x1868] sm:$0xff]
  %v827 = vld [vmem:[%s1 + $0x1870] sm:$0xff]
  %v828 = vld [vmem:[%s1 + $0x1878] sm:$0xff]
  %v829 = vld [vmem:[%s1 + $0x1880] sm:$0xff]
  %v830 = vld [vmem:[%s1 + $0x1888] sm:$0xff]
  %v831 = vld [vmem:[%s1 + $0x1890] sm:$0xff]
  %v832 = vld [vmem:[%s1 + $0x1898] sm:$0xff]
  %v833 = vld [vmem:[%s1 + $0x18a0] sm:$0xff]
  %v834 = vld [vmem:[%s1 + $0x18a8] sm:$0xff]
  %v835 = vld [vmem:[%s1 + $0x18b0] sm:$0xff]
  %v836 = vld [vmem:[%s1 + $0x18b8] sm:$0xff]
  %v837 = vld [vmem:[%s1 + $0x18c0] sm:$0xff]
  %v838 = vld [vmem:[%s1 + $0x18c8] sm:$0xff]
  %v839 = vld [vmem:[%s1 + $0x18d0] sm:$0xff]
  %v840 = vld [vmem:[%s1 + $0x18d8] sm:$0xff]
  %v841 = vld [vmem:[%s1 + $0x18e0] sm:$0xff]
  %v842 = vld [vmem:[%s1 + $0x18e8] sm:$0xff]
  %v843 = vld [vmem:[%s1 + $0x18f0] sm:$0xff]
  %v844 = vld [vmem:[%s1 + $0x18f8] sm:$0xff]
  %v845 = vld [vmem:[%s1 + $0x1900] sm:$0xff]
  %v846 = vld [vmem:[%s1 + $0x1908] sm:$0xff]
  %v847 = vld [vmem:[%s1 + $0x1910] sm:$0xff]
  %v848 = vld [vmem:[%s1 + $0x1918] sm:$0xff]
  %v849 = vld [vmem:[%s1 + $0x1920] sm:$0xff]
  %v850 = vld [vmem:[%s1 + $0x1928] sm:$0xff]
  %v851 = vld [vmem:[%s1 + $0x1930] sm:$0xff]
  %v852 = vld [vmem:[%s1 + $0x1938] sm:$0xff]
  %v853 = vld [vmem:[%s1 + $0x1940] sm:$0xff]
  %v854 = vld [vmem:[%s1 + $0x1948] sm:$0xff]
  %v855 = vld [vmem:[%s1 + $0x1950] sm:$0xff]
  %v856 = vld [vmem:[%s1 + $0x1958] sm:$0xff]
  %v857 = vld [vmem:[%s1 + $0x1960] sm:$0xff]
  %v858 = vld [vmem:[%s1 + $0x1968] sm:$0xff]
  %v859 = vld [vmem:[%s1 + $0x1970] sm:$0xff]
  %v860 = vld [vmem:[%s1 + $0x1978] sm:$0xff]
  %v861 = vld [vmem:[%s1 + $0x1980] sm:$0xff]
  %v862 = vld [vmem:[%s1 + $0x1988] sm:$0xff]
  %v863 = vld [vmem:[%s1 + $0x1990] sm:$0xff]
  %v864 = vld [vmem:[%s1 + $0x1998] sm:$0xff]
  %v865 = vld [vmem:[%s1 + $0x19a0] sm:$0xff]
  %v866 = vld [vmem:[%s1 + $0x19a8] sm:$0xff]
  %v867 = vld [vmem:[%s1 + $0x19b0] sm:$0xff]
  %v868 = vld [vmem:[%s1 + $0x19b8] sm:$0xff]
  %v869 = vld [vmem:[%s1 + $0x19c0] sm:$0xff]
  %v870 = vld [vmem:[%s1 + $0x19c8] sm:$0xff]
  %v871 = vld [vmem:[%s1 + $0x19d0] sm:$0xff]
  %v872 = vld [vmem:[%s1 + $0x19d8] sm:$0xff]
  %v873 = vld [vmem:[%s1 + $0x19e0] sm:$0xff]
  %v874 = vld [vmem:[%s1 + $0x19e8] sm:$0xff]
  %v875 = vld [vmem:[%s1 + $0x19f0] sm:$0xff]
  %v876 = vld [vmem:[%s1 + $0x19f8] sm:$0xff]
  %v877 = vld [vmem:[%s1 + $0x1a00] sm:$0xff]
  %v878 = vld [vmem:[%s1 + $0x1a08] sm:$0xff]
  %v879 = vld [vmem:[%s1 + $0x1a10] sm:$0xff]
  %v880 = vld [vmem:[%s1 + $0x1a18] sm:$0xff]
  %v881 = vld [vmem:[%s1 + $0x1a20] sm:$0xff]
  %v882 = vld [vmem:[%s1 + $0x1a28] sm:$0xff]
  %v883 = vld [vmem:[%s1 + $0x1a30] sm:$0xff]
  %v884 = vld [vmem:[%s1 + $0x1a38] sm:$0xff]
  %v885 = vld [vmem:[%s1 + $0x1a40] sm:$0xff]
  %v886 = vld [vmem:[%s1 + $0x1a48] sm:$0xff]
  %v887 = vld [vmem:[%s1 + $0x1a50] sm:$0xff]
  %v888 = vld [vmem:[%s1 + $0x1a58] sm:$0xff]
  %v889 = vld [vmem:[%s1 + $0x1a60] sm:$0xff]
  %v890 = vld [vmem:[%s1 + $0x1a68] sm:$0xff]
  %v891 = vld [vmem:[%s1 + $0x1a70] sm:$0xff]
  %v892 = vld [vmem:[%s1 + $0x1a78] sm:$0xff]
  %v893 = vld [vmem:[%s1 + $0x1a80] sm:$0xff]
  %v894 = vld [vmem:[%s1 + $0x1a88] sm:$0xff]
  %v895 = vld [vmem:[%s1 + $0x1a90] sm:$0xff]
  %v896 = vld [vmem:[%s1 + $0x1a98] sm:$0xff]
  %v897 = vld [vmem:[%s1 + $0x1aa0] sm:$0xff]
  %v898 = vld [vmem:[%s1 + $0x1aa8] sm:$0xff]
  %v899 = vld [vmem:[%s1 + $0x1ab0] sm:$0xff]
  %v900 = vld [vmem:[%s1 + $0x1ab8] sm:$0xff]
  %v901 = vld [vmem:[%s1 + $0x1ac0] sm:$0xff]
  %v902 = vld [vmem:[%s1 + $0x1ac8] sm:$0xff]
  %v903 = vld [vmem:[%s1 + $0x1ad0] sm:$0xff]
  %v904 = vld [vmem:[%s1 + $0x1ad8] sm:$0xff]
  %v905 = vld [vmem:[%s1 + $0x1ae0] sm:$0xff]
  %v906 = vld [vmem:[%s1 + $0x1ae8] sm:$0xff]
  %v907 = vld [vmem:[%s1 + $0x1af0] sm:$0xff]
  %v908 = vld [vmem:[%s1 + $0x1af8] sm:$0xff]
  %v909 = vld [vmem:[%s1 + $0x1b00] sm:$0xff]
  %v910 = vld [vmem:[%s1 + $0x1b08] sm:$0xff]
  %v911 = vld [vmem:[%s1 + $0x1b10] sm:$0xff]
  %v912 = vld [vmem:[%s1 + $0x1b18] sm:$0xff]
  %v913 = vld [vmem:[%s1 + $0x1b20] sm:$0xff]
  %v914 = vld [vmem:[%s1 + $0x1b28] sm:$0xff]
  %v915 = vld [vmem:[%s1 + $0x1b30] sm:$0xff]
  %v916 = vld [vmem:[%s1 + $0x1b38] sm:$0xff]
  %v917 = vld [vmem:[%s1 + $0x1b40] sm:$0xff]
  %v918 = vld [vmem:[%s1 + $0x1b48] sm:$0xff]
  %v919 = vld [vmem:[%s1 + $0x1b50] sm:$0xff]
  %v920 = vld [vmem:[%s1 + $0x1b58] sm:$0xff]
  %v921 = vld [vmem:[%s1 + $0x1b60] sm:$0xff]
  %v922 = vld [vmem:[%s1 + $0x1b68] sm:$0xff]
  %v923 = vld [vmem:[%s1 + $0x1b70] sm:$0xff]
  %v924 = vld [vmem:[%s1 + $0x1b78] sm:$0xff]
  %v925 = vld [vmem:[%s1 + $0x1b80] sm:$0xff]
  %v926 = vld [vmem:[%s1 + $0x1b88] sm:$0xff]
  %v927 = vld [vmem:[%s1 + $0x1b90] sm:$0xff]
  %v928 = vld [vmem:[%s1 + $0x1b98] sm:$0xff]
  %v929 = vld [vmem:[%s1 + $0x1ba0] sm:$0xff]
  %v930 = vld [vmem:[%s1 + $0x1ba8] sm:$0xff]
  %v931 = vld [vmem:[%s1 + $0x1bb0] sm:$0xff]
  %v932 = vld [vmem:[%s1 + $0x1bb8] sm:$0xff]
  %v933 = vld [vmem:[%s1 + $0x1bc0] sm:$0xff]
  %v934 = vld [vmem:[%s1 + $0x1bc8] sm:$0xff]
  %v935 = vld [vmem:[%s1 + $0x1bd0] sm:$0xff]
  %v936 = vld [vmem:[%s1 + $0x1bd8] sm:$0xff]
  %v937 = vld [vmem:[%s1 + $0x1be0] sm:$0xff]
  %v938 = vld [vmem:[%s1 + $0x1be8] sm:$0xff]
  %v939 = vld [vmem:[%s1 + $0x1bf0] sm:$0xff]
  %v940 = vld [vmem:[%s1 + $0x1bf8] sm:$0xff]
  %v941 = vld [vmem:[%s1 + $0x1c00] sm:$0xff]
  %v942 = vld [vmem:[%s1 + $0x1c08] sm:$0xff]
  %v943 = vld [vmem:[%s1 + $0x1c10] sm:$0xff]
  %v944 = vld [vmem:[%s1 + $0x1c18] sm:$0xff]
  %v945 = vld [vmem:[%s1 + $0x1c20] sm:$0xff]
  %v946 = vld [vmem:[%s1 + $0x1c28] sm:$0xff]
  %v947 = vld [vmem:[%s1 + $0x1c30] sm:$0xff]
  %v948 = vld [vmem:[%s1 + $0x1c38] sm:$0xff]
  %v949 = vld [vmem:[%s1 + $0x1c40] sm:$0xff]
  %v950 = vld [vmem:[%s1 + $0x1c48] sm:$0xff]
  %v951 = vld [vmem:[%s1 + $0x1c50] sm:$0xff]
  %v952 = vld [vmem:[%s1 + $0x1c58] sm:$0xff]
  %v953 = vld [vmem:[%s1 + $0x1c60] sm:$0xff]
  %v954 = vld [vmem:[%s1 + $0x1c68] sm:$0xff]
  %v955 = vld [vmem:[%s1 + $0x1c70] sm:$0xff]
  %v956 = vld [vmem:[%s1 + $0x1c78] sm:$0xff]
  %v957 = vld [vmem:[%s1 + $0x1c80] sm:$0xff]
  %v958 = vld [vmem:[%s1 + $0x1c88] sm:$0xff]
  %v959 = vld [vmem:[%s1 + $0x1c90] sm:$0xff]
  %v960 = vld [vmem:[%s1 + $0x1c98] sm:$0xff]
  %v961 = vld [vmem:[%s1 + $0x1ca0] sm:$0xff]
  %v962 = vld [vmem:[%s1 + $0x1ca8] sm:$0xff]
  %v963 = vld [vmem:[%s1 + $0x1cb0] sm:$0xff]
  %v964 = vld [vmem:[%s1 + $0x1cb8] sm:$0xff]
  %v965 = vld [vmem:[%s1 + $0x1cc0] sm:$0xff]
  %v966 = vld [vmem:[%s1 + $0x1cc8] sm:$0xff]
  %v967 = vld [vmem:[%s1 + $0x1cd0] sm:$0xff]
  %v968 = vld [vmem:[%s1 + $0x1cd8] sm:$0xff]
  %v969 = vld [vmem:[%s1 + $0x1ce0] sm:$0xff]
  %v970 = vld [vmem:[%s1 + $0x1ce8] sm:$0xff]
  %v971 = vld [vmem:[%s1 + $0x1cf0] sm:$0xff]
  %v972 = vld [vmem:[%s1 + $0x1cf8] sm:$0xff]
  %v973 = vld [vmem:[%s1 + $0x1d00] sm:$0xff]
  %v974 = vld [vmem:[%s1 + $0x1d08] sm:$0xff]
  %v975 = vld [vmem:[%s1 + $0x1d10] sm:$0xff]
  %v976 = vld [vmem:[%s1 + $0x1d18] sm:$0xff]
  %v977 = vld [vmem:[%s1 + $0x1d20] sm:$0xff]
  %v978 = vld [vmem:[%s1 + $0x1d28] sm:$0xff]
  %v979 = vld [vmem:[%s1 + $0x1d30] sm:$0xff]
  %v980 = vld [vmem:[%s1 + $0x1d38] sm:$0xff]
  %v981 = vld [vmem:[%s1 + $0x1d40] sm:$0xff]
  %v982 = vld [vmem:[%s1 + $0x1d48] sm:$0xff]
  %v983 = vld [vmem:[%s1 + $0x1d50] sm:$0xff]
  %v984 = vld [vmem:[%s1 + $0x1d58] sm:$0xff]
  %v985 = vld [vmem:[%s1 + $0x1d60] sm:$0xff]
  %v986 = vld [vmem:[%s1 + $0x1d68] sm:$0xff]
  %v987 = vld [vmem:[%s1 + $0x1d70] sm:$0xff]
  %v988 = vld [vmem:[%s1 + $0x1d78] sm:$0xff]
  %v989 = vld [vmem:[%s1 + $0x1d80] sm:$0xff]
  %v990 = vld [vmem:[%s1 + $0x1d88] sm:$0xff]
  %v991 = vld [vmem:[%s1 + $0x1d90] sm:$0xff]
  %v992 = vld [vmem:[%s1 + $0x1d98] sm:$0xff]
  %v993 = vld [vmem:[%s1 + $0x1da0] sm:$0xff]
  %v994 = vld [vmem:[%s1 + $0x1da8] sm:$0xff]
  %v995 = vld [vmem:[%s1 + $0x1db0] sm:$0xff]
  %v996 = vld [vmem:[%s1 + $0x1db8] sm:$0xff]
  %v997 = vld [vmem:[%s1 + $0x1dc0] sm:$0xff]
  %v998 = vld [vmem:[%s1 + $0x1dc8] sm:$0xff]
  %v999 = vld [vmem:[%s1 + $0x1dd0] sm:$0xff]
  %v1000 = vld [vmem:[%s1 + $0x1dd8] sm:$0xff]
  %v1001 = vld [vmem:[%s1 + $0x1de0] sm:$0xff]
  %v1002 = vld [vmem:[%s1 + $0x1de8] sm:$0xff]
  %v1003 = vld [vmem:[%s1 + $0x1df0] sm:$0xff]
  %v1004 = vld [vmem:[%s1 + $0x1df8] sm:$0xff]
  %v1005 = vld [vmem:[%s1 + $0x1e00] sm:$0xff]
  %v1006 = vld [vmem:[%s1 + $0x1e08] sm:$0xff]
  %v1007 = vld [vmem:[%s1 + $0x1e10] sm:$0xff]
  %v1008 = vld [vmem:[%s1 + $0x1e18] sm:$0xff]
  %v1009 = vld [vmem:[%s1 + $0x1e20] sm:$0xff]
  %v1010 = vld [vmem:[%s1 + $0x1e28] sm:$0xff]
  %v1011 = vld [vmem:[%s1 + $0x1e30] sm:$0xff]
  %v1012 = vld [vmem:[%s1 + $0x1e38] sm:$0xff]
  %v1013 = vld [vmem:[%s1 + $0x1e40] sm:$0xff]
  %v1014 = vld [vmem:[%s1 + $0x1e48] sm:$0xff]
  %v1015 = vld [vmem:[%s1 + $0x1e50] sm:$0xff]
  %v1016 = vld [vmem:[%s1 + $0x1e58] sm:$0xff]
  %v1017 = vld [vmem:[%s1 + $0x1e60] sm:$0xff]
  %v1018 = vld [vmem:[%s1 + $0x1e68] sm:$0xff]
  %v1019 = vld [vmem:[%s1 + $0x1e70] sm:$0xff]
  %v1020 = vld [vmem:[%s1 + $0x1e78] sm:$0xff]
  %v1021 = vld [vmem:[%s1 + $0x1e80] sm:$0xff]
  %v1022 = vld [vmem:[%s1 + $0x1e88] sm:$0xff]
  %v1023 = vld [vmem:[%s1 + $0x1e90] sm:$0xff]
  %v1024 = vld [vmem:[%s1 + $0x1e98] sm:$0xff]
  %v1025 = vld [vmem:[%s1 + $0x1ea0] sm:$0xff]
  %v1026 = vld [vmem:[%s1 + $0x1ea8] sm:$0xff]
  %v1027 = vld [vmem:[%s1 + $0x1eb0] sm:$0xff]
  %v1028 = vld [vmem:[%s1 + $0x1eb8] sm:$0xff]
  %v1029 = vld [vmem:[%s1 + $0x1ec0] sm:$0xff]
  %v1030 = vld [vmem:[%s1 + $0x1ec8] sm:$0xff]
  %v1031 = vld [vmem:[%s1 + $0x1ed0] sm:$0xff]
  %v1032 = vld [vmem:[%s1 + $0x1ed8] sm:$0xff]
  %v1033 = vld [vmem:[%s1 + $0x1ee0] sm:$0xff]
  %v1034 = vld [vmem:[%s1 + $0x1ee8] sm:$0xff]
  %v1035 = vld [vmem:[%s1 + $0x1ef0] sm:$0xff]
  %v1036 = vld [vmem:[%s1 + $0x1ef8] sm:$0xff]
  %v1037 = vld [vmem:[%s1 + $0x1f00] sm:$0xff]
  %v1038 = vld [vmem:[%s1 + $0x1f08] sm:$0xff]
  %v1039 = vld [vmem:[%s1 + $0x1f10] sm:$0xff]
  %v1040 = vld [vmem:[%s1 + $0x1f18] sm:$0xff]
  %v1041 = vld [vmem:[%s1 + $0x1f20] sm:$0xff]
  %v1042 = vld [vmem:[%s1 + $0x1f28] sm:$0xff]
  %v1043 = vld [vmem:[%s1 + $0x1f30] sm:$0xff]
  %v1044 = vld [vmem:[%s1 + $0x1f38] sm:$0xff]
  %v1045 = vld [vmem:[%s1 + $0x1f40] sm:$0xff]
  %v1046 = vld [vmem:[%s1 + $0x1f48] sm:$0xff]
  %v1047 = vld [vmem:[%s1 + $0x1f50] sm:$0xff]
  %v1048 = vld [vmem:[%s1 + $0x1f58] sm:$0xff]
  %v1049 = vld [vmem:[%s1 + $0x1f60] sm:$0xff]
  %v1050 = vld [vmem:[%s1 + $0x1f68] sm:$0xff]
  %v1051 = vld [vmem:[%s1 + $0x1f70] sm:$0xff]
  %v1052 = vld [vmem:[%s1 + $0x1f78] sm:$0xff]
  %v1053 = vld [vmem:[%s1 + $0x1f80] sm:$0xff]
  %v1054 = vld [vmem:[%s1 + $0x1f88] sm:$0xff]
  %v1055 = vld [vmem:[%s1 + $0x1f90] sm:$0xff]
  %v1056 = vld [vmem:[%s1 + $0x1f98] sm:$0xff]
  %v1057 = vld [vmem:[%s1 + $0x1fa0] sm:$0xff]
  %v1058 = vld [vmem:[%s1 + $0x1fa8] sm:$0xff]
  %v1059 = vld [vmem:[%s1 + $0x1fb0] sm:$0xff]
  %v1060 = vld [vmem:[%s1 + $0x1fb8] sm:$0xff]
  %v1061 = vld [vmem:[%s1 + $0x1fc0] sm:$0xff]
  %v1062 = vld [vmem:[%s1 + $0x1fc8] sm:$0xff]
  %v1063 = vld [vmem:[%s1 + $0x1fd0] sm:$0xff]
  %v1064 = vld [vmem:[%s1 + $0x1fd8] sm:$0xff]
  %v1065 = vld [vmem:[%s1 + $0x1fe0] sm:$0xff]
  %v1066 = vld [vmem:[%s1 + $0x1fe8] sm:$0xff]
  %v1067 = vld [vmem:[%s1 + $0x1ff0] sm:$0xff]
  %v1068 = vld [vmem:[%s1 + $0x1ff8] sm:$0xff]
  %v1069 = vld [vmem:[%s1 + $0x2000] sm:$0xff]
  %v1070 = vld [vmem:[%s1 + $0x2008] sm:$0xff]
  %v1071 = vld [vmem:[%s1 + $0x2010] sm:$0xff]
  %v1072 = vld [vmem:[%s1 + $0x2018] sm:$0xff]
  %v1073 = vld [vmem:[%s1 + $0x2020] sm:$0xff]
  %v1074 = vld [vmem:[%s1 + $0x2028] sm:$0xff]
  %v1075 = vld [vmem:[%s1 + $0x2030] sm:$0xff]
  %v1076 = vld [vmem:[%s1 + $0x2038] sm:$0xff]
  %v1077 = vld [vmem:[%s1 + $0x2040] sm:$0xff]
  %v1078 = vld [vmem:[%s1 + $0x2048] sm:$0xff]
  %v1079 = vld [vmem:[%s1 + $0x2050] sm:$0xff]
  %v1080 = vld [vmem:[%s1 + $0x2058] sm:$0xff]
  %v1081 = vld [vmem:[%s1 + $0x2060] sm:$0xff]
  %v1082 = vld [vmem:[%s1 + $0x2068] sm:$0xff]
  %v1083 = vld [vmem:[%s1 + $0x2070] sm:$0xff]
  %v1084 = vld [vmem:[%s1 + $0x2078] sm:$0xff]
  %v1085 = vld [vmem:[%s1 + $0x2080] sm:$0xff]
  %v1086 = vld [vmem:[%s1 + $0x2088] sm:$0xff]
  %v1087 = vld [vmem:[%s1 + $0x2090] sm:$0xff]
  %v1088 = vld [vmem:[%s1 + $0x2098] sm:$0xff]
  %v1089 = vld [vmem:[%s1 + $0x20a0] sm:$0xff]
  %v1090 = vld [vmem:[%s1 + $0x20a8] sm:$0xff]
  %v1091 = vld [vmem:[%s1 + $0x20b0] sm:$0xff]
  %v1092 = vld [vmem:[%s1 + $0x20b8] sm:$0xff]
  %v1093 = vld [vmem:[%s1 + $0x20c0] sm:$0xff]
  %v1094 = vld [vmem:[%s1 + $0x20c8] sm:$0xff]
  %v1095 = vld [vmem:[%s1 + $0x20d0] sm:$0xff]
  %v1096 = vld [vmem:[%s1 + $0x20d8] sm:$0xff]
  %v1097 = vld [vmem:[%s1 + $0x20e0] sm:$0xff]
  %v1098 = vld [vmem:[%s1 + $0x20e8] sm:$0xff]
  %v1099 = vld [vmem:[%s1 + $0x20f0] sm:$0xff]
  %v1100 = vld [vmem:[%s1 + $0x20f8] sm:$0xff]
  %v1101 = vld [vmem:[%s1 + $0x2100] sm:$0xff]
  %v1102 = vld [vmem:[%s1 + $0x2108] sm:$0xff]
  %v1103 = vld [vmem:[%s1 + $0x2110] sm:$0xff]
  %v1104 = vld [vmem:[%s1 + $0x2118] sm:$0xff]
  %v1105 = vld [vmem:[%s1 + $0x2120] sm:$0xff]
  %v1106 = vld [vmem:[%s1 + $0x2128] sm:$0xff]
  %v1107 = vld [vmem:[%s1 + $0x2130] sm:$0xff]
  %v1108 = vld [vmem:[%s1 + $0x2138] sm:$0xff]
  %v1109 = vld [vmem:[%s1 + $0x2140] sm:$0xff]
  %v1110 = vld [vmem:[%s1 + $0x2148] sm:$0xff]
  %v1111 = vld [vmem:[%s1 + $0x2150] sm:$0xff]
  %v1112 = vld [vmem:[%s1 + $0x2158] sm:$0xff]
  %v1113 = vld [vmem:[%s1 + $0x2160] sm:$0xff]
  %v1114 = vld [vmem:[%s1 + $0x2168] sm:$0xff]
  %v1115 = vld [vmem:[%s1 + $0x2170] sm:$0xff]
  %v1116 = vld [vmem:[%s1 + $0x2178] sm:$0xff]
  %v1117 = vld [vmem:[%s1 + $0x2180] sm:$0xff]
  %v1118 = vld [vmem:[%s1 + $0x2188] sm:$0xff]
  %v1119 = vld [vmem:[%s1 + $0x2190] sm:$0xff]
  %v1120 = vld [vmem:[%s1 + $0x2198] sm:$0xff]
  %v1121 = vld [vmem:[%s1 + $0x21a0] sm:$0xff]
  %v1122 = vld [vmem:[%s1 + $0x21a8] sm:$0xff]
  %v1123 = vld [vmem:[%s1 + $0x21b0] sm:$0xff]
  %v1124 = vld [vmem:[%s1 + $0x21b8] sm:$0xff]
  %v1125 = vld [vmem:[%s1 + $0x21c0] sm:$0xff]
  %v1126 = vld [vmem:[%s1 + $0x21c8] sm:$0xff]
  %v1127 = vld [vmem:[%s1 + $0x21d0] sm:$0xff]
  %v1128 = vld [vmem:[%s1 + $0x21d8] sm:$0xff]
  %v1129 = vld [vmem:[%s1 + $0x21e0] sm:$0xff]
  %v1130 = vld [vmem:[%s1 + $0x21e8] sm:$0xff]
  %v1131 = vld [vmem:[%s1 + $0x21f0] sm:$0xff]
  %v1132 = vld [vmem:[%s1 + $0x21f8] sm:$0xff]
  %v1133 = vld [vmem:[%s1 + $0x2200] sm:$0xff]
  %v1134 = vld [vmem:[%s1 + $0x2208] sm:$0xff]
  %v1135 = vld [vmem:[%s1 + $0x2210] sm:$0xff]
  %v1136 = vld [vmem:[%s1 + $0x2218] sm:$0xff]
  %v1137 = vld [vmem:[%s1 + $0x2220] sm:$0xff]
  %v1138 = vld [vmem:[%s1 + $0x2228] sm:$0xff]
  %v1139 = vld [vmem:[%s1 + $0x2230] sm:$0xff]
  %v1140 = vld [vmem:[%s1 + $0x2238] sm:$0xff]
  %v1141 = vld [vmem:[%s1 + $0x2240] sm:$0xff]
  %v1142 = vld [vmem:[%s1 + $0x2248] sm:$0xff]
  %v1143 = vld [vmem:[%s1 + $0x2250] sm:$0xff]
  %v1144 = vld [vmem:[%s1 + $0x2258] sm:$0xff]
  %v1145 = vld [vmem:[%s1 + $0x2260] sm:$0xff]
  %v1146 = vld [vmem:[%s1 + $0x2268] sm:$0xff]
  %v1147 = vld [vmem:[%s1 + $0x2270] sm:$0xff]
  %v1148 = vld [vmem:[%s1 + $0x2278] sm:$0xff]
  %v1149 = vld [vmem:[%s1 + $0x2280] sm:$0xff]
  %v1150 = vld [vmem:[%s1 + $0x2288] sm:$0xff]
  %v1151 = vld [vmem:[%s1 + $0x2290] sm:$0xff]
  %v1152 = vld [vmem:[%s1 + $0x2298] sm:$0xff]
  %v1153 = vld [vmem:[%s1 + $0x22a0] sm:$0xff]
  %v1154 = vld [vmem:[%s1 + $0x22a8] sm:$0xff]
  %v1155 = vld [vmem:[%s1 + $0x22b0] sm:$0xff]
  %v1156 = vld [vmem:[%s1 + $0x22b8] sm:$0xff]
  %v1157 = vld [vmem:[%s1 + $0x22c0] sm:$0xff]
  %v1158 = vld [vmem:[%s1 + $0x22c8] sm:$0xff]
  %v1159 = vld [vmem:[%s1 + $0x22d0] sm:$0xff]
  %v1160 = vld [vmem:[%s1 + $0x22d8] sm:$0xff]
  %v1161 = vld [vmem:[%s1 + $0x22e0] sm:$0xff]
  %v1162 = vld [vmem:[%s1 + $0x22e8] sm:$0xff]
  %v1163 = vld [vmem:[%s1 + $0x22f0] sm:$0xff]
  %v1164 = vld [vmem:[%s1 + $0x22f8] sm:$0xff]
  %v1165 = vld [vmem:[%s1 + $0x2300] sm:$0xff]
  %v1166 = vld [vmem:[%s1 + $0x2308] sm:$0xff]
  %v1167 = vld [vmem:[%s1 + $0x2310] sm:$0xff]
  %v1168 = vld [vmem:[%s1 + $0x2318] sm:$0xff]
  %v1169 = vld [vmem:[%s1 + $0x2320] sm:$0xff]
  %v1170 = vld [vmem:[%s1 + $0x2328] sm:$0xff]
  %v1171 = vld [vmem:[%s1 + $0x2330] sm:$0xff]
  %v1172 = vld [vmem:[%s1 + $0x2338] sm:$0xff]
  %v1173 = vld [vmem:[%s1 + $0x2340] sm:$0xff]
  %v1174 = vld [vmem:[%s1 + $0x2348] sm:$0xff]
  %v1175 = vld [vmem:[%s1 + $0x2350] sm:$0xff]
  %v1176 = vld [vmem:[%s1 + $0x2358] sm:$0xff]
  %v1177 = vld [vmem:[%s1 + $0x2360] sm:$0xff]
  %v1178 = vld [vmem:[%s1 + $0x2368] sm:$0xff]
  %v1179 = vld [vmem:[%s1 + $0x2370] sm:$0xff]
  %v1180 = vld [vmem:[%s1 + $0x2378] sm:$0xff]
  %v1181 = vld [vmem:[%s1 + $0x2380] sm:$0xff]
  %v1182 = vld [vmem:[%s1 + $0x2388] sm:$0xff]
  %v1183 = vld [vmem:[%s1 + $0x2390] sm:$0xff]
  %v1184 = vld [vmem:[%s1 + $0x2398] sm:$0xff]
  %v1185 = vld [vmem:[%s1 + $0x23a0] sm:$0xff]
  %v1186 = vld [vmem:[%s1 + $0x23a8] sm:$0xff]
  %v1187 = vld [vmem:[%s1 + $0x23b0] sm:$0xff]
  %v1188 = vld [vmem:[%s1 + $0x23b8] sm:$0xff]
  %v1189 = vld [vmem:[%s1 + $0x23c0] sm:$0xff]
  %v1190 = vld [vmem:[%s1 + $0x23c8] sm:$0xff]
  %v1191 = vld [vmem:[%s1 + $0x23d0] sm:$0xff]
  %v1192 = vld [vmem:[%s1 + $0x23d8] sm:$0xff]
  %v1193 = vld [vmem:[%s1 + $0x23e0] sm:$0xff]
  %v1194 = vld [vmem:[%s1 + $0x23e8] sm:$0xff]
  %v1195 = vld [vmem:[%s1 + $0x23f0] sm:$0xff]
  %v1196 = vld [vmem:[%s1 + $0x23f8] sm:$0xff]
  %v1197 = vld [vmem:[%s1 + $0x2400] sm:$0xff]
  %v1198 = vld [vmem:[%s1 + $0x2408] sm:$0xff]
  %v1199 = vld [vmem:[%s1 + $0x2410] sm:$0xff]
  %v1200 = vld [vmem:[%s1 + $0x2418] sm:$0xff]
  %v1201 = vld [vmem:[%s1 + $0x2420] sm:$0xff]
  %v1202 = vld [vmem:[%s1 + $0x2428] sm:$0xff]
  %v1203 = vld [vmem:[%s1 + $0x2430] sm:$0xff]
  %v1204 = vld [vmem:[%s1 + $0x2438] sm:$0xff]
  %v1205 = vld [vmem:[%s1 + $0x2440] sm:$0xff]
  %v1206 = vld [vmem:[%s1 + $0x2448] sm:$0xff]
  %v1207 = vld [vmem:[%s1 + $0x2450] sm:$0xff]
  %v1208 = vld [vmem:[%s1 + $0x2458] sm:$0xff]
  %v1209 = vld [vmem:[%s1 + $0x2460] sm:$0xff]
  %v1210 = vld [vmem:[%s1 + $0x2468] sm:$0xff]
  %v1211 = vld [vmem:[%s1 + $0x2470] sm:$0xff]
  %v1212 = vld [vmem:[%s1 + $0x2478] sm:$0xff]
  %v1213 = vld [vmem:[%s1 + $0x2480] sm:$0xff]
  %v1214 = vld [vmem:[%s1 + $0x2488] sm:$0xff]
  %v1215 = vld [vmem:[%s1 + $0x2490] sm:$0xff]
  %v1216 = vld [vmem:[%s1 + $0x2498] sm:$0xff]
  %v1217 = vld [vmem:[%s1 + $0x24a0] sm:$0xff]
  %v1218 = vld [vmem:[%s1 + $0x24a8] sm:$0xff]
  %v1219 = vld [vmem:[%s1 + $0x24b0] sm:$0xff]
  %v1220 = vld [vmem:[%s1 + $0x24b8] sm:$0xff]
  %v1221 = vld [vmem:[%s1 + $0x24c0] sm:$0xff]
  %v1222 = vld [vmem:[%s1 + $0x24c8] sm:$0xff]
  %v1223 = vld [vmem:[%s1 + $0x24d0] sm:$0xff]
  %v1224 = vld [vmem:[%s1 + $0x24d8] sm:$0xff]
  %v1225 = vld [vmem:[%s1 + $0x24e0] sm:$0xff]
  %v1226 = vld [vmem:[%s1 + $0x24e8] sm:$0xff]
  %v1227 = vld [vmem:[%s1 + $0x24f0] sm:$0xff]
  %v1228 = vld [vmem:[%s1 + $0x24f8] sm:$0xff]
  %v1229 = vld [vmem:[%s1 + $0x2500] sm:$0xff]
  %v1230 = vld [vmem:[%s1 + $0x2508] sm:$0xff]
  %v1231 = vld [vmem:[%s1 + $0x2510] sm:$0xff]
  %v1232 = vld [vmem:[%s1 + $0x2518] sm:$0xff]
  %v1233 = vld [vmem:[%s1 + $0x2520] sm:$0xff]
  %v1234 = vld [vmem:[%s1 + $0x2528] sm:$0xff]
  %v1235 = vld [vmem:[%s1 + $0x2530] sm:$0xff]
  %v1236 = vld [vmem:[%s1 + $0x2538] sm:$0xff]
  %v1237 = vld [vmem:[%s1 + $0x2540] sm:$0xff]
  %v1238 = vld [vmem:[%s1 + $0x2548] sm:$0xff]
  %v1239 = vld [vmem:[%s1 + $0x2550] sm:$0xff]
  %v1240 = vld [vmem:[%s1 + $0x2558] sm:$0xff]
  %v1241 = vld [vmem:[%s1 + $0x2560] sm:$0xff]
  %v1242 = vld [vmem:[%s1 + $0x2568] sm:$0xff]
  %v1243 = vld [vmem:[%s1 + $0x2570] sm:$0xff]
  %v1244 = vld [vmem:[%s1 + $0x2578] sm:$0xff]
  %v1245 = vld [vmem:[%s1 + $0x2580] sm:$0xff]
  %v1246 = vld [vmem:[%s1 + $0x2588] sm:$0xff]
  %v1247 = vld [vmem:[%s1 + $0x2590] sm:$0xff]
  %v1248 = vld [vmem:[%s1 + $0x2598] sm:$0xff]
  %v1249 = vld [vmem:[%s1 + $0x25a0] sm:$0xff]
  %v1250 = vld [vmem:[%s1 + $0x25a8] sm:$0xff]
  %v1251 = vld [vmem:[%s1 + $0x25b0] sm:$0xff]
  %v1252 = vld [vmem:[%s1 + $0x25b8] sm:$0xff]
  %v1253 = vld [vmem:[%s1 + $0x25c0] sm:$0xff]
  %v1254 = vld [vmem:[%s1 + $0x25c8] sm:$0xff]
  %v1255 = vld [vmem:[%s1 + $0x25d0] sm:$0xff]
  %v1256 = vld [vmem:[%s1 + $0x25d8] sm:$0xff]
  %v1257 = vld [vmem:[%s1 + $0x25e0] sm:$0xff]
  %v1258 = vld [vmem:[%s1 + $0x25e8] sm:$0xff]
  %v1259 = vld [vmem:[%s1 + $0x25f0] sm:$0xff]
  %v1260 = vld [vmem:[%s1 + $0x25f8] sm:$0xff]
  %v1261 = vld [vmem:[%s1 + $0x2600] sm:$0xff]
  %v1262 = vld [vmem:[%s1 + $0x2608] sm:$0xff]
  %v1263 = vld [vmem:[%s1 + $0x2610] sm:$0xff]
  %v1264 = vld [vmem:[%s1 + $0x2618] sm:$0xff]
  %v1265 = vld [vmem:[%s1 + $0x2620] sm:$0xff]
  %v1266 = vld [vmem:[%s1 + $0x2628] sm:$0xff]
  %v1267 = vld [vmem:[%s1 + $0x2630] sm:$0xff]
  %v1268 = vld [vmem:[%s1 + $0x2638] sm:$0xff]
  %v1269 = vld [vmem:[%s1 + $0x2640] sm:$0xff]
  %v1270 = vld [vmem:[%s1 + $0x2648] sm:$0xff]
  %v1271 = vld [vmem:[%s1 + $0x2650] sm:$0xff]
  %v1272 = vld [vmem:[%s1 + $0x2658] sm:$0xff]
  %v1273 = vld [vmem:[%s1 + $0x2660] sm:$0xff]
  %v1274 = vld [vmem:[%s1 + $0x2668] sm:$0xff]
  %v1275 = vld [vmem:[%s1 + $0x2670] sm:$0xff]
  %v1276 = vld [vmem:[%s1 + $0x2678] sm:$0xff]
  %v1277 = vld [vmem:[%s1 + $0x2680] sm:$0xff]
  %v1278 = vld [vmem:[%s1 + $0x2688] sm:$0xff]
  %v1279 = vld [vmem:[%s1 + $0x2690] sm:$0xff]
  %v1280 = vld [vmem:[%s1 + $0x2698] sm:$0xff]
  %v1281 = vld [vmem:[%s1 + $0x26a0] sm:$0xff]
  %v1282 = vld [vmem:[%s1 + $0x26a8] sm:$0xff]
  %v1283 = vld [vmem:[%s1 + $0x26b0] sm:$0xff]
  %v1284 = vld [vmem:[%s1 + $0x26b8] sm:$0xff]
  %v1285 = vld [vmem:[%s1 + $0x26c0] sm:$0xff]
  %v1286 = vld [vmem:[%s1 + $0x26c8] sm:$0xff]
  %v1287 = vld [vmem:[%s1 + $0x26d0] sm:$0xff]
  %v1288 = vld [vmem:[%s1 + $0x26d8] sm:$0xff]
  %v1289 = vld [vmem:[%s1 + $0x26e0] sm:$0xff]
  %v1290 = vld [vmem:[%s1 + $0x26e8] sm:$0xff]
  %v1291 = vld [vmem:[%s1 + $0x26f0] sm:$0xff]
  %v1292 = vld [vmem:[%s1 + $0x26f8] sm:$0xff]
  %v1293 = vld [vmem:[%s1 + $0x2700] sm:$0xff]
  %v1294 = vld [vmem:[%s1 + $0x2708] sm:$0xff]
  %v1295 = vld [vmem:[%s1 + $0x2710] sm:$0xff]
  %v1296 = vld [vmem:[%s1 + $0x2718] sm:$0xff]
  %v1297 = vld [vmem:[%s1 + $0x2720] sm:$0xff]
  %v1298 = vld [vmem:[%s1 + $0x2728] sm:$0xff]
  %v1299 = vld [vmem:[%s1 + $0x2730] sm:$0xff]
  %v1300 = vld [vmem:[%s1 + $0x2738] sm:$0xff]
  %v1301 = vld [vmem:[%s1 + $0x2740] sm:$0xff]
  %v1302 = vld [vmem:[%s1 + $0x2748] sm:$0xff]
  %v1303 = vld [vmem:[%s1 + $0x2750] sm:$0xff]
  %v1304 = vld [vmem:[%s1 + $0x2758] sm:$0xff]
  %v1305 = vld [vmem:[%s1 + $0x2760] sm:$0xff]
  %v1306 = vld [vmem:[%s1 + $0x2768] sm:$0xff]
  %v1307 = vld [vmem:[%s1 + $0x2770] sm:$0xff]
  %v1308 = vld [vmem:[%s1 + $0x2778] sm:$0xff]
  %v1309 = vld [vmem:[%s1 + $0x2780] sm:$0xff]
  %v1310 = vld [vmem:[%s1 + $0x2788] sm:$0xff]
  %v1311 = vld [vmem:[%s1 + $0x2790] sm:$0xff]
  %v1312 = vld [vmem:[%s1 + $0x2798] sm:$0xff]
  %v1313 = vld [vmem:[%s1 + $0x27a0] sm:$0xff]
  %v1314 = vld [vmem:[%s1 + $0x27a8] sm:$0xff]
  %v1315 = vld [vmem:[%s1 + $0x27b0] sm:$0xff]
  %v1316 = vld [vmem:[%s1 + $0x27b8] sm:$0xff]
  %v1317 = vld [vmem:[%s1 + $0x27c0] sm:$0xff]
  %v1318 = vld [vmem:[%s1 + $0x27c8] sm:$0xff]
  %v1319 = vld [vmem:[%s1 + $0x27d0] sm:$0xff]
  %v1320 = vld [vmem:[%s1 + $0x27d8] sm:$0xff]
  %v1321 = vld [vmem:[%s1 + $0x27e0] sm:$0xff]
  %v1322 = vld [vmem:[%s1 + $0x27e8] sm:$0xff]
  %v1323 = vld [vmem:[%s1 + $0x27f0] sm:$0xff]
  %v1324 = vld [vmem:[%s1 + $0x27f8] sm:$0xff]
  %v1325 = vld [vmem:[%s1 + $0x2800] sm:$0xff]
  %v1326 = vld [vmem:[%s1 + $0x2808] sm:$0xff]
  %v1327 = vld [vmem:[%s1 + $0x2810] sm:$0xff]
  %v1328 = vld [vmem:[%s1 + $0x2818] sm:$0xff]
  %v1329 = vld [vmem:[%s1 + $0x2820] sm:$0xff]
  %v1330 = vld [vmem:[%s1 + $0x2828] sm:$0xff]
  %v1331 = vld [vmem:[%s1 + $0x2830] sm:$0xff]
  %v1332 = vld [vmem:[%s1 + $0x2838] sm:$0xff]
  %v1333 = vld [vmem:[%s1 + $0x2840] sm:$0xff]
  %v1334 = vld [vmem:[%s1 + $0x2848] sm:$0xff]
  %v1335 = vld [vmem:[%s1 + $0x2850] sm:$0xff]
  %v1336 = vld [vmem:[%s1 + $0x2858] sm:$0xff]
  %v1337 = vld [vmem:[%s1 + $0x2860] sm:$0xff]
  %v1338 = vld [vmem:[%s1 + $0x2868] sm:$0xff]
  %v1339 = vld [vmem:[%s1 + $0x2870] sm:$0xff]
  %v1340 = vld [vmem:[%s1 + $0x2878] sm:$0xff]
  %v1341 = vld [vmem:[%s1 + $0x2880] sm:$0xff]
  %v1342 = vld [vmem:[%s1 + $0x2888] sm:$0xff]
  %v1343 = vld [vmem:[%s1 + $0x2890] sm:$0xff]
  %v1344 = vld [vmem:[%s1 + $0x2898] sm:$0xff]
  %v1345 = vld [vmem:[%s1 + $0x28a0] sm:$0xff]
  %v1346 = vld [vmem:[%s1 + $0x28a8] sm:$0xff]
  %v1347 = vld [vmem:[%s1 + $0x28b0] sm:$0xff]
  %v1348 = vld [vmem:[%s1 + $0x28b8] sm:$0xff]
  %v1349 = vld [vmem:[%s1 + $0x28c0] sm:$0xff]
  %v1350 = vld [vmem:[%s1 + $0x28c8] sm:$0xff]
  %v1351 = vld [vmem:[%s1 + $0x28d0] sm:$0xff]
  %v1352 = vld [vmem:[%s1 + $0x28d8] sm:$0xff]
  %v1353 = vld [vmem:[%s1 + $0x28e0] sm:$0xff]
  %v1354 = vld [vmem:[%s1 + $0x28e8] sm:$0xff]
  %v1355 = vld [vmem:[%s1 + $0x28f0] sm:$0xff]
  %v1356 = vld [vmem:[%s1 + $0x28f8] sm:$0xff]
  %v1357 = vld [vmem:[%s1 + $0x2900] sm:$0xff]
  %v1358 = vld [vmem:[%s1 + $0x2908] sm:$0xff]
  %v1359 = vld [vmem:[%s1 + $0x2910] sm:$0xff]
  %v1360 = vld [vmem:[%s1 + $0x2918] sm:$0xff]
  %v1361 = vld [vmem:[%s1 + $0x2920] sm:$0xff]
  %v1362 = vld [vmem:[%s1 + $0x2928] sm:$0xff]
  %v1363 = vld [vmem:[%s1 + $0x2930] sm:$0xff]
  %v1364 = vld [vmem:[%s1 + $0x2938] sm:$0xff]
  %v1365 = vld [vmem:[%s1 + $0x2940] sm:$0xff]
  %v1366 = vld [vmem:[%s1 + $0x2948] sm:$0xff]
  %v1367 = vld [vmem:[%s1 + $0x2950] sm:$0xff]
  %v1368 = vld [vmem:[%s1 + $0x2958] sm:$0xff]
  %v1369 = vld [vmem:[%s1 + $0x2960] sm:$0xff]
  %v1370 = vld [vmem:[%s1 + $0x2968] sm:$0xff]
  %v1371 = vld [vmem:[%s1 + $0x2970] sm:$0xff]
  %v1372 = vld [vmem:[%s1 + $0x2978] sm:$0xff]
  %v1373 = vld [vmem:[%s1 + $0x2980] sm:$0xff]
  %v1374 = vld [vmem:[%s1 + $0x2988] sm:$0xff]
  %v1375 = vld [vmem:[%s1 + $0x2990] sm:$0xff]
  %v1376 = vld [vmem:[%s1 + $0x2998] sm:$0xff]
  %v1377 = vld [vmem:[%s1 + $0x29a0] sm:$0xff]
  %v1378 = vld [vmem:[%s1 + $0x29a8] sm:$0xff]
  %v1379 = vld [vmem:[%s1 + $0x29b0] sm:$0xff]
  %v1380 = vld [vmem:[%s1 + $0x29b8] sm:$0xff]
  %v1381 = vld [vmem:[%s1 + $0x29c0] sm:$0xff]
  %v1382 = vld [vmem:[%s1 + $0x29c8] sm:$0xff]
  %v1383 = vld [vmem:[%s1 + $0x29d0] sm:$0xff]
  %v1384 = vld [vmem:[%s1 + $0x29d8] sm:$0xff]
  %v1385 = vld [vmem:[%s1 + $0x29e0] sm:$0xff]
  %v1386 = vld [vmem:[%s1 + $0x29e8] sm:$0xff]
  %v1387 = vld [vmem:[%s1 + $0x29f0] sm:$0xff]
  %v1388 = vld [vmem:[%s1 + $0x29f8] sm:$0xff]
  %v1389 = vld [vmem:[%s1 + $0x2a00] sm:$0xff]
  %v1390 = vld [vmem:[%s1 + $0x2a08] sm:$0xff]
  %v1391 = vld [vmem:[%s1 + $0x2a10] sm:$0xff]
  %v1392 = vld [vmem:[%s1 + $0x2a18] sm:$0xff]
  %v1393 = vld [vmem:[%s1 + $0x2a20] sm:$0xff]
  %v1394 = vld [vmem:[%s1 + $0x2a28] sm:$0xff]
  %v1395 = vld [vmem:[%s1 + $0x2a30] sm:$0xff]
  %v1396 = vld [vmem:[%s1 + $0x2a38] sm:$0xff]
  %v1397 = vld [vmem:[%s1 + $0x2a40] sm:$0xff]
  %v1398 = vld [vmem:[%s1 + $0x2a48] sm:$0xff]
  %v1399 = vld [vmem:[%s1 + $0x2a50] sm:$0xff]
  %v1400 = vld [vmem:[%s1 + $0x2a58] sm:$0xff]
  %v1401 = vld [vmem:[%s1 + $0x2a60] sm:$0xff]
  %v1402 = vld [vmem:[%s1 + $0x2a68] sm:$0xff]
  %v1403 = vld [vmem:[%s1 + $0x2a70] sm:$0xff]
  %v1404 = vld [vmem:[%s1 + $0x2a78] sm:$0xff]
  %v1405 = vld [vmem:[%s1 + $0x2a80] sm:$0xff]
  %v1406 = vld [vmem:[%s1 + $0x2a88] sm:$0xff]
  %v1407 = vld [vmem:[%s1 + $0x2a90] sm:$0xff]
  %v1408 = vld [vmem:[%s1 + $0x2a98] sm:$0xff]
  %v1409 = vld [vmem:[%s1 + $0x2aa0] sm:$0xff]
  %v1410 = vld [vmem:[%s1 + $0x2aa8] sm:$0xff]
  %v1411 = vld [vmem:[%s1 + $0x2ab0] sm:$0xff]
  %v1412 = vld [vmem:[%s1 + $0x2ab8] sm:$0xff]
  %v1413 = vld [vmem:[%s1 + $0x2ac0] sm:$0xff]
  %v1414 = vld [vmem:[%s1 + $0x2ac8] sm:$0xff]
  %v1415 = vld [vmem:[%s1 + $0x2ad0] sm:$0xff]
  %v1416 = vld [vmem:[%s1 + $0x2ad8] sm:$0xff]
  %v1417 = vld [vmem:[%s1 + $0x2ae0] sm:$0xff]
  %v1418 = vld [vmem:[%s1 + $0x2ae8] sm:$0xff]
  %v1419 = vld [vmem:[%s1 + $0x2af0] sm:$0xff]
  %v1420 = vld [vmem:[%s1 + $0x2af8] sm:$0xff]
  %v1421 = vld [vmem:[%s1 + $0x2b00] sm:$0xff]
  %v1422 = vld [vmem:[%s1 + $0x2b08] sm:$0xff]
  %v1423 = vld [vmem:[%s1 + $0x2b10] sm:$0xff]
  %v1424 = vld [vmem:[%s1 + $0x2b18] sm:$0xff]
  %v1425 = vld [vmem:[%s1 + $0x2b20] sm:$0xff]
  %v1426 = vld [vmem:[%s1 + $0x2b28] sm:$0xff]
  %v1427 = vld [vmem:[%s1 + $0x2b30] sm:$0xff]
  %v1428 = vld [vmem:[%s1 + $0x2b38] sm:$0xff]
  %v1429 = vld [vmem:[%s1 + $0x2b40] sm:$0xff]
  %v1430 = vld [vmem:[%s1 + $0x2b48] sm:$0xff]
  %v1431 = vld [vmem:[%s1 + $0x2b50] sm:$0xff]
  %v1432 = vld [vmem:[%s1 + $0x2b58] sm:$0xff]
  %v1433 = vld [vmem:[%s1 + $0x2b60] sm:$0xff]
  %v1434 = vld [vmem:[%s1 + $0x2b68] sm:$0xff]
  %v1435 = vld [vmem:[%s1 + $0x2b70] sm:$0xff]
  %v1436 = vld [vmem:[%s1 + $0x2b78] sm:$0xff]
  %v1437 = vld [vmem:[%s1 + $0x2b80] sm:$0xff]
  %v1438 = vld [vmem:[%s1 + $0x2b88] sm:$0xff]
  %v1439 = vld [vmem:[%s1 + $0x2b90] sm:$0xff]
  %v1440 = vld [vmem:[%s1 + $0x2b98] sm:$0xff]
  %v1441 = vld [vmem:[%s1 + $0x2ba0] sm:$0xff]
  %v1442 = vld [vmem:[%s1 + $0x2ba8] sm:$0xff]
  %v1443 = vld [vmem:[%s1 + $0x2bb0] sm:$0xff]
  %v1444 = vld [vmem:[%s1 + $0x2bb8] sm:$0xff]
  %v1445 = vld [vmem:[%s1 + $0x2bc0] sm:$0xff]
  %v1446 = vld [vmem:[%s1 + $0x2bc8] sm:$0xff]
  %v1447 = vld [vmem:[%s1 + $0x2bd0] sm:$0xff]
  %v1448 = vld [vmem:[%s1 + $0x2bd8] sm:$0xff]
  %v1449 = vld [vmem:[%s1 + $0x2be0] sm:$0xff]
  %v1450 = vld [vmem:[%s1 + $0x2be8] sm:$0xff]
  %v1451 = vld [vmem:[%s1 + $0x2bf0] sm:$0xff]
  %v1452 = vld [vmem:[%s1 + $0x2bf8] sm:$0xff]
  %v1453 = vld [vmem:[%s1 + $0x2c00] sm:$0xff]
  %v1454 = vld [vmem:[%s1 + $0x2c08] sm:$0xff]
  %v1455 = vld [vmem:[%s1 + $0x2c10] sm:$0xff]
  %v1456 = vld [vmem:[%s1 + $0x2c18] sm:$0xff]
  %v1457 = vld [vmem:[%s1 + $0x2c20] sm:$0xff]
  %v1458 = vld [vmem:[%s1 + $0x2c28] sm:$0xff]
  %v1459 = vld [vmem:[%s1 + $0x2c30] sm:$0xff]
  %v1460 = vld [vmem:[%s1 + $0x2c38] sm:$0xff]
  %v1461 = vld [vmem:[%s1 + $0x2c40] sm:$0xff]
  %v1462 = vld [vmem:[%s1 + $0x2c48] sm:$0xff]
  %v1463 = vld [vmem:[%s1 + $0x2c50] sm:$0xff]
  %v1464 = vld [vmem:[%s1 + $0x2c58] sm:$0xff]
  %v1465 = vld [vmem:[%s1 + $0x2c60] sm:$0xff]
  %v1466 = vld [vmem:[%s1 + $0x2c68] sm:$0xff]
  %v1467 = vld [vmem:[%s1 + $0x2c70] sm:$0xff]
  %v1468 = vld [vmem:[%s1 + $0x2c78] sm:$0xff]
  %v1469 = vld [vmem:[%s1 + $0x2c80] sm:$0xff]
  %v1470 = vld [vmem:[%s1 + $0x2c88] sm:$0xff]
  %v1471 = vld [vmem:[%s1 + $0x2c90] sm:$0xff]
  %v1472 = vld [vmem:[%s1 + $0x2c98] sm:$0xff]
  %v1473 = vld [vmem:[%s1 + $0x2ca0] sm:$0xff]
  %v1474 = vld [vmem:[%s1 + $0x2ca8] sm:$0xff]
  %v1475 = vld [vmem:[%s1 + $0x2cb0] sm:$0xff]
  %v1476 = vld [vmem:[%s1 + $0x2cb8] sm:$0xff]
  %v1477 = vld [vmem:[%s1 + $0x2cc0] sm:$0xff]
  %v1478 = vld [vmem:[%s1 + $0x2cc8] sm:$0xff]
  %v1479 = vld [vmem:[%s1 + $0x2cd0] sm:$0xff]
  %v1480 = vld [vmem:[%s1 + $0x2cd8] sm:$0xff]
  %v1481 = vld [vmem:[%s1 + $0x2ce0] sm:$0xff]
  %v1482 = vld [vmem:[%s1 + $0x2ce8] sm:$0xff]
  %v1483 = vld [vmem:[%s1 + $0x2cf0] sm:$0xff]
  %v1484 = vld [vmem:[%s1 + $0x2cf8] sm:$0xff]
  %v1485 = vld [vmem:[%s1 + $0x2d00] sm:$0xff]
  %v1486 = vld [vmem:[%s1 + $0x2d08] sm:$0xff]
  %v1487 = vld [vmem:[%s1 + $0x2d10] sm:$0xff]
  %v1488 = vld [vmem:[%s1 + $0x2d18] sm:$0xff]
  %v1489 = vld [vmem:[%s1 + $0x2d20] sm:$0xff]
  %v1490 = vld [vmem:[%s1 + $0x2d28] sm:$0xff]
  %v1491 = vld [vmem:[%s1 + $0x2d30] sm:$0xff]
  %v1492 = vld [vmem:[%s1 + $0x2d38] sm:$0xff]
  %v1493 = vld [vmem:[%s1 + $0x2d40] sm:$0xff]
  %v1494 = vld [vmem:[%s1 + $0x2d48] sm:$0xff]
  %v1495 = vld [vmem:[%s1 + $0x2d50] sm:$0xff]
  %v1496 = vld [vmem:[%s1 + $0x2d58] sm:$0xff]
  %v1497 = vld [vmem:[%s1 + $0x2d60] sm:$0xff]
  %v1498 = vld [vmem:[%s1 + $0x2d68] sm:$0xff]
  %v1499 = vld [vmem:[%s1 + $0x2d70] sm:$0xff]
  %v1500 = vld [vmem:[%s1 + $0x2d78] sm:$0xff]
  %v1501 = vld [vmem:[%s1 + $0x2d80] sm:$0xff]
  %v1502 = vld [vmem:[%s1 + $0x2d88] sm:$0xff]
  %v1503 = vld [vmem:[%s1 + $0x2d90] sm:$0xff]
  %v1504 = vld [vmem:[%s1 + $0x2d98] sm:$0xff]
  %v1505 = vld [vmem:[%s1 + $0x2da0] sm:$0xff]
  %v1506 = vld [vmem:[%s1 + $0x2da8] sm:$0xff]
  %v1507 = vld [vmem:[%s1 + $0x2db0] sm:$0xff]
  %v1508 = vld [vmem:[%s1 + $0x2db8] sm:$0xff]
  %v1509 = vld [vmem:[%s1 + $0x2dc0] sm:$0xff]
  %v1510 = vld [vmem:[%s1 + $0x2dc8] sm:$0xff]
  %v1511 = vld [vmem:[%s1 + $0x2dd0] sm:$0xff]
  %v1512 = vld [vmem:[%s1 + $0x2dd8] sm:$0xff]
  %v1513 = vld [vmem:[%s1 + $0x2de0] sm:$0xff]
  %v1514 = vld [vmem:[%s1 + $0x2de8] sm:$0xff]
  %v1515 = vld [vmem:[%s1 + $0x2df0] sm:$0xff]
  %v1516 = vld [vmem:[%s1 + $0x2df8] sm:$0xff]
  %v1517 = vld [vmem:[%s1 + $0x2e00] sm:$0xff]
  %v1518 = vld [vmem:[%s1 + $0x2e08] sm:$0xff]
  %v1519 = vld [vmem:[%s1 + $0x2e10] sm:$0xff]
  %v1520 = vld [vmem:[%s1 + $0x2e18] sm:$0xff]
  %v1521 = vld [vmem:[%s1 + $0x2e20] sm:$0xff]
  %v1522 = vld [vmem:[%s1 + $0x2e28] sm:$0xff]
  %v1523 = vld [vmem:[%s1 + $0x2e30] sm:$0xff]
  %v1524 = vld [vmem:[%s1 + $0x2e38] sm:$0xff]
  %v1525 = vld [vmem:[%s1 + $0x2e40] sm:$0xff]
  %v1526 = vld [vmem:[%s1 + $0x2e48] sm:$0xff]
  %v1527 = vld [vmem:[%s1 + $0x2e50] sm:$0xff]
  %v1528 = vld [vmem:[%s1 + $0x2e58] sm:$0xff]
  %v1529 = vld [vmem:[%s1 + $0x2e60] sm:$0xff]
  %v1530 = vld [vmem:[%s1 + $0x2e68] sm:$0xff]
  %v1531 = vld [vmem:[%s1 + $0x2e70] sm:$0xff]
  %v1532 = vld [vmem:[%s1 + $0x2e78] sm:$0xff]
  %v1533 = vld [vmem:[%s1 + $0x2e80] sm:$0xff]
  %v1534 = vld [vmem:[%s1 + $0x2e88] sm:$0xff]
  %v1535 = vld [vmem:[%s1 + $0x2e90] sm:$0xff]
  %v1536 = vld [vmem:[%s1 + $0x2e98] sm:$0xff]
  %v1537 = vld [vmem:[%s1 + $0x2ea0] sm:$0xff]
  %v1538 = vld [vmem:[%s1 + $0x2ea8] sm:$0xff]
  %v1539 = vld [vmem:[%s1 + $0x2eb0] sm:$0xff]
  %v1540 = vld [vmem:[%s1 + $0x2eb8] sm:$0xff]
  %v1541 = vld [vmem:[%s1 + $0x2ec0] sm:$0xff]
  %v1542 = vld [vmem:[%s1 + $0x2ec8] sm:$0xff]
  %v1543 = vld [vmem:[%s1 + $0x2ed0] sm:$0xff]
  %v1544 = vld [vmem:[%s1 + $0x2ed8] sm:$0xff]
  %v1545 = vld [vmem:[%s1 + $0x2ee0] sm:$0xff]
  %v1546 = vld [vmem:[%s1 + $0x2ee8] sm:$0xff]
  %v1547 = vld [vmem:[%s1 + $0x2ef0] sm:$0xff]
  %v1548 = vld [vmem:[%s1 + $0x2ef8] sm:$0xff]
  %v1549 = vld [vmem:[%s1 + $0x2f00] sm:$0xff]
  %v1550 = vld [vmem:[%s1 + $0x2f08] sm:$0xff]
  %v1551 = vld [vmem:[%s1 + $0x2f10] sm:$0xff]
  %v1552 = vld [vmem:[%s1 + $0x2f18] sm:$0xff]
  %v1553 = vld [vmem:[%s1 + $0x2f20] sm:$0xff]
  %v1554 = vld [vmem:[%s1 + $0x2f28] sm:$0xff]
  %v1555 = vld [vmem:[%s1 + $0x2f30] sm:$0xff]
  %v1556 = vld [vmem:[%s1 + $0x2f38] sm:$0xff]
  %v1557 = vld [vmem:[%s1 + $0x2f40] sm:$0xff]
  %v1558 = vld [vmem:[%s1 + $0x2f48] sm:$0xff]
  %v1559 = vld [vmem:[%s1 + $0x2f50] sm:$0xff]
  %v1560 = vld [vmem:[%s1 + $0x2f58] sm:$0xff]
  %v1561 = vld [vmem:[%s1 + $0x2f60] sm:$0xff]
  %v1562 = vld [vmem:[%s1 + $0x2f68] sm:$0xff]
  %v1563 = vld [vmem:[%s1 + $0x2f70] sm:$0xff]
  %v1564 = vld [vmem:[%s1 + $0x2f78] sm:$0xff]
  %v1565 = vld [vmem:[%s1 + $0x2f80] sm:$0xff]
  %v1566 = vld [vmem:[%s1 + $0x2f88] sm:$0xff]
  %v1567 = vld [vmem:[%s1 + $0x2f90] sm:$0xff]
  %v1568 = vld [vmem:[%s1 + $0x2f98] sm:$0xff]
  %v1569 = vld [vmem:[%s1 + $0x2fa0] sm:$0xff]
  %v1570 = vld [vmem:[%s1 + $0x2fa8] sm:$0xff]
  %v1571 = vld [vmem:[%s1 + $0x2fb0] sm:$0xff]
  %v1572 = vld [vmem:[%s1 + $0x2fb8] sm:$0xff]
  %v1573 = vld [vmem:[%s1 + $0x2fc0] sm:$0xff]
  %v1574 = vld [vmem:[%s1 + $0x2fc8] sm:$0xff]
  %v1575 = vld [vmem:[%s1 + $0x2fd0] sm:$0xff]
  %v1576 = vld [vmem:[%s1 + $0x2fd8] sm:$0xff]
  %v1577 = vld [vmem:[%s1 + $0x2fe0] sm:$0xff]
  %v1578 = vld [vmem:[%s1 + $0x2fe8] sm:$0xff]
  %v1579 = vld [vmem:[%s1 + $0x2ff0] sm:$0xff]
  %v1580 = vld [vmem:[%s1 + $0x2ff8] sm:$0xff]
  %v1581 = vld [vmem:[%s1 + $0x3000] sm:$0xff]
  %v1582 = vld [vmem:[%s1 + $0x3008] sm:$0xff]
  %v1583 = vld [vmem:[%s1 + $0x3010] sm:$0xff]
  %v1584 = vld [vmem:[%s1 + $0x3018] sm:$0xff]
  %v1585 = vld [vmem:[%s1 + $0x3020] sm:$0xff]
  %v1586 = vld [vmem:[%s1 + $0x3028] sm:$0xff]
  %v1587 = vld [vmem:[%s1 + $0x3030] sm:$0xff]
  %v1588 = vld [vmem:[%s1 + $0x3038] sm:$0xff]
  %v1589 = vld [vmem:[%s1 + $0x3040] sm:$0xff]
  %v1590 = vld [vmem:[%s1 + $0x3048] sm:$0xff]
  %v1591 = vld [vmem:[%s1 + $0x3050] sm:$0xff]
  %v1592 = vld [vmem:[%s1 + $0x3058] sm:$0xff]
  %v1593 = vld [vmem:[%s1 + $0x3060] sm:$0xff]
  %v1594 = vld [vmem:[%s1 + $0x3068] sm:$0xff]
  %v1595 = vld [vmem:[%s1 + $0x3070] sm:$0xff]
  %v1596 = vld [vmem:[%s1 + $0x3078] sm:$0xff]
  %v1597 = vld [vmem:[%s1 + $0x3080] sm:$0xff]
  %v1598 = vld [vmem:[%s1 + $0x3088] sm:$0xff]
  %v1599 = vld [vmem:[%s1 + $0x3090] sm:$0xff]
  %v1600 = vld [vmem:[%s1 + $0x3098] sm:$0xff]
  %v1601 = vld [vmem:[%s1 + $0x30a0] sm:$0xff]
  %v1602 = vld [vmem:[%s1 + $0x30a8] sm:$0xff]
  %v1603 = vld [vmem:[%s1 + $0x30b0] sm:$0xff]
  %v1604 = vld [vmem:[%s1 + $0x30b8] sm:$0xff]
  %v1605 = vld [vmem:[%s1 + $0x30c0] sm:$0xff]
  %v1606 = vld [vmem:[%s1 + $0x30c8] sm:$0xff]
  %v1607 = vld [vmem:[%s1 + $0x30d0] sm:$0xff]
  %v1608 = vld [vmem:[%s1 + $0x30d8] sm:$0xff]
  %v1609 = vld [vmem:[%s1 + $0x30e0] sm:$0xff]
  %v1610 = vld [vmem:[%s1 + $0x30e8] sm:$0xff]
  %v1611 = vld [vmem:[%s1 + $0x30f0] sm:$0xff]
  %v1612 = vld [vmem:[%s1 + $0x30f8] sm:$0xff]
  %v1613 = vld [vmem:[%s1 + $0x3100] sm:$0xff]
  %v1614 = vld [vmem:[%s1 + $0x3108] sm:$0xff]
  %v1615 = vld [vmem:[%s1 + $0x3110] sm:$0xff]
  %v1616 = vld [vmem:[%s1 + $0x3118] sm:$0xff]
  %v1617 = vld [vmem:[%s1 + $0x3120] sm:$0xff]
  %v1618 = vld [vmem:[%s1 + $0x3128] sm:$0xff]
  %v1619 = vld [vmem:[%s1 + $0x3130] sm:$0xff]
  %v1620 = vld [vmem:[%s1 + $0x3138] sm:$0xff]
  %v1621 = vld [vmem:[%s1 + $0x3140] sm:$0xff]
  %v1622 = vld [vmem:[%s1 + $0x3148] sm:$0xff]
  %v1623 = vld [vmem:[%s1 + $0x3150] sm:$0xff]
  %v1624 = vld [vmem:[%s1 + $0x3158] sm:$0xff]
  %v1625 = vld [vmem:[%s1 + $0x3160] sm:$0xff]
  %v1626 = vld [vmem:[%s1 + $0x3168] sm:$0xff]
  %v1627 = vld [vmem:[%s1 + $0x3170] sm:$0xff]
  %v1628 = vld [vmem:[%s1 + $0x3178] sm:$0xff]
  %v1629 = vld [vmem:[%s1 + $0x3180] sm:$0xff]
  %v1630 = vld [vmem:[%s1 + $0x3188] sm:$0xff]
  %v1631 = vld [vmem:[%s1 + $0x3190] sm:$0xff]
  %v1632 = vld [vmem:[%s1 + $0x3198] sm:$0xff]
  %v1633 = vld [vmem:[%s1 + $0x31a0] sm:$0xff]
  %v1634 = vld [vmem:[%s1 + $0x31a8] sm:$0xff]
  %v1635 = vld [vmem:[%s1 + $0x31b0] sm:$0xff]
  %v1636 = vld [vmem:[%s1 + $0x31b8] sm:$0xff]
  %v1637 = vld [vmem:[%s1 + $0x31c0] sm:$0xff]
  %v1638 = vld [vmem:[%s1 + $0x31c8] sm:$0xff]
  %v1639 = vld [vmem:[%s1 + $0x31d0] sm:$0xff]
  %v1640 = vld [vmem:[%s1 + $0x31d8] sm:$0xff]
  %v1641 = vld [vmem:[%s1 + $0x31e0] sm:$0xff]
  %v1642 = vld [vmem:[%s1 + $0x31e8] sm:$0xff]
  %v1643 = vld [vmem:[%s1 + $0x31f0] sm:$0xff]
  %v1644 = vld [vmem:[%s1 + $0x31f8] sm:$0xff]
  %v1645 = vld [vmem:[%s2] sm:$0xf]
  %v1647 = vlaneseq
  %v1648 = vshrl.u32 %v1647, 7
  %v1649 = vsub.s32 0, %v1648
  %v1650 = vrot.slane %v1645, %v1649
  %v1651 = vlaneseq
  %v1652 = vshrl.u32 %v1651, 7
  %v1653 = vsub.s32 1, %v1652
  %v1654 = vrot.slane %v1645, %v1653
  %v1655 = vlaneseq
  %v1656 = vshrl.u32 %v1655, 7
  %v1657 = vsub.s32 2, %v1656
  %v1658 = vrot.slane %v1645, %v1657
  %v1659 = vlaneseq
  %v1660 = vshrl.u32 %v1659, 7
  %v1661 = vsub.s32 3, %v1660
  %v1662 = vrot.slane %v1645, %v1661
  %1667 = vmatprep.subr.mxu0 %v46
  %1668 = vmatpush1.msra.mxu0 %v45
  %1669 = vmatprep.subr.mxu0 %v50
  %1670 = vmatpush1.msra.mxu0 %v49
  %1671 = vmatprep.subr.mxu0 %v54
  %1672 = vmatpush1.msra.mxu0 %v53
  %1673 = vmatprep.subr.mxu0 %v58
  %1674 = vmatpush1.msra.mxu0 %v57
  %1675 = vmatprep.subr.mxu0 %v62
  %1676 = vmatpush1.msra.mxu0 %v61
  %1677 = vmatprep.subr.mxu0 %v66
  %1678 = vmatpush1.msra.mxu0 %v65
  %1679 = vmatprep.subr.mxu0 %v70
  %1680 = vmatpush1.msra.mxu0 %v69
  %1681 = vmatprep.subr.mxu0 %v74
  %1682 = vmatpush1.msra.mxu0 %v73
  %1683 = vmatprep.subr.mxu0 %v78
  %1684 = vmatpush1.msra.mxu0 %v77
  %1685 = vmatprep.subr.mxu0 %v82
  %1686 = vmatpush1.msra.mxu0 %v81
  %1687 = vmatprep.subr.mxu0 %v86
  %1688 = vmatpush1.msra.mxu0 %v85
  %1689 = vmatprep.subr.mxu0 %v90
  %1690 = vmatpush1.msra.mxu0 %v89
  %1691 = vmatprep.subr.mxu0 %v94
  %1692 = vmatpush1.msra.mxu0 %v93
  %1693 = vmatprep.subr.mxu0 %v98
  %1694 = vmatpush1.msra.mxu0 %v97
  %1695 = vmatprep.subr.mxu0 %v102
  %1696 = vmatpush1.msra.mxu0 %v101
  %1697 = vmatprep.subr.mxu0 %v106
  %1698 = vmatpush1.msra.mxu0 %v105
  %1699 = vmatprep.subr.mxu0 %v110
  %1700 = vmatpush1.msra.mxu0 %v109
  %1701 = vmatprep.subr.mxu0 %v114
  %1702 = vmatpush1.msra.mxu0 %v113
  %1703 = vmatprep.subr.mxu0 %v118
  %1704 = vmatpush1.msra.mxu0 %v117
  %1705 = vmatprep.subr.mxu0 %v122
  %1706 = vmatpush1.msra.mxu0 %v121
  %1707 = vmatprep.subr.mxu0 %v126
  %1708 = vmatpush1.msra.mxu0 %v125
  %1709 = vmatprep.subr.mxu0 %v130
  %1710 = vmatpush1.msra.mxu0 %v129
  %1711 = vmatprep.subr.mxu0 %v134
  %1712 = vmatpush1.msra.mxu0 %v133
  %1713 = vmatprep.subr.mxu0 %v138
  %1714 = vmatpush1.msra.mxu0 %v137
  %1715 = vmatprep.subr.mxu0 %v142
  %1716 = vmatpush1.msra.mxu0 %v141
  %1717 = vmatprep.subr.mxu0 %v146
  %1718 = vmatpush1.msra.mxu0 %v145
  %1719 = vmatprep.subr.mxu0 %v150
  %1720 = vmatpush1.msra.mxu0 %v149
  %1721 = vmatprep.subr.mxu0 %v154
  %1722 = vmatpush1.msra.mxu0 %v153
  %1723 = vmatprep.subr.mxu0 %v158
  %1724 = vmatpush1.msra.mxu0 %v157
  %1725 = vmatprep.subr.mxu0 %v162
  %1726 = vmatpush1.msra.mxu0 %v161
  %1727 = vmatprep.subr.mxu0 %v166
  %1728 = vmatpush1.msra.mxu0 %v165
  %1729 = vmatprep.subr.mxu0 %v170
  %1730 = vmatpush1.msra.mxu0 %v169
  %1731 = vmatprep.mubr.f32.mxu0 %v21
  %1732 = vmatmul.mubr.f32.gmra.mrb[0].mxu0 %v20
  %v1733 = vpop.f32.mrb[0].mxu0
  %v1734 = vadd.f32 %v1650, %v1733
  %v1735 = vpop.f32.mrb[0].mxu0
  %v1736 = vadd.f32 %v1654, %v1735
  %1737 = vdwg.mxu0
  %1738 = vmatprep.subr.mxu0 %v174
  %1739 = vmatpush1.msra.mxu0 %v173
  %1740 = vmatprep.subr.mxu0 %v178
  %1741 = vmatpush1.msra.mxu0 %v177
  %1742 = vmatprep.subr.mxu0 %v182
  %1743 = vmatpush1.msra.mxu0 %v181
  %1744 = vmatprep.subr.mxu0 %v186
  %1745 = vmatpush1.msra.mxu0 %v185
  %1746 = vmatprep.subr.mxu0 %v190
  %1747 = vmatpush1.msra.mxu0 %v189
  %1748 = vmatprep.subr.mxu0 %v194
  %1749 = vmatpush1.msra.mxu0 %v193
  %1750 = vmatprep.subr.mxu0 %v198
  %1751 = vmatpush1.msra.mxu0 %v197
  %1752 = vmatprep.subr.mxu0 %v202
  %1753 = vmatpush1.msra.mxu0 %v201
  %1754 = vmatprep.subr.mxu0 %v206
  %1755 = vmatpush1.msra.mxu0 %v205
  %1756 = vmatprep.subr.mxu0 %v210
  %1757 = vmatpush1.msra.mxu0 %v209
  %1758 = vmatprep.subr.mxu0 %v214
  %1759 = vmatpush1.msra.mxu0 %v213
  %1760 = vmatprep.subr.mxu0 %v218
  %1761 = vmatpush1.msra.mxu0 %v217
  %1762 = vmatprep.subr.mxu0 %v222
  %1763 = vmatpush1.msra.mxu0 %v221
  %1764 = vmatprep.subr.mxu0 %v226
  %1765 = vmatpush1.msra.mxu0 %v225
  %1766 = vmatprep.subr.mxu0 %v230
  %1767 = vmatpush1.msra.mxu0 %v229
  %1768 = vmatprep.subr.mxu0 %v234
  %1769 = vmatpush1.msra.mxu0 %v233
  %1770 = vmatprep.subr.mxu0 %v238
  %1771 = vmatpush1.msra.mxu0 %v237
  %1772 = vmatprep.subr.mxu0 %v242
  %1773 = vmatpush1.msra.mxu0 %v241
  %1774 = vmatprep.subr.mxu0 %v246
  %1775 = vmatpush1.msra.mxu0 %v245
  %1776 = vmatprep.subr.mxu0 %v250
  %1777 = vmatpush1.msra.mxu0 %v249
  %1778 = vmatprep.subr.mxu0 %v254
  %1779 = vmatpush1.msra.mxu0 %v253
  %1780 = vmatprep.subr.mxu0 %v258
  %1781 = vmatpush1.msra.mxu0 %v257
  %1782 = vmatprep.subr.mxu0 %v262
  %1783 = vmatpush1.msra.mxu0 %v261
  %1784 = vmatprep.subr.mxu0 %v266
  %1785 = vmatpush1.msra.mxu0 %v265
  %1786 = vmatprep.subr.mxu0 %v270
  %1787 = vmatpush1.msra.mxu0 %v269
  %1788 = vmatprep.subr.mxu0 %v274
  %1789 = vmatpush1.msra.mxu0 %v273
  %1790 = vmatprep.subr.mxu0 %v278
  %1791 = vmatpush1.msra.mxu0 %v277
  %1792 = vmatprep.subr.mxu0 %v282
  %1793 = vmatpush1.msra.mxu0 %v281
  %1794 = vmatprep.subr.mxu0 %v286
  %1795 = vmatpush1.msra.mxu0 %v285
  %1796 = vmatprep.subr.mxu0 %v290
  %1797 = vmatpush1.msra.mxu0 %v289
  %1798 = vmatprep.subr.mxu0 %v294
  %1799 = vmatpush1.msra.mxu0 %v293
  %1800 = vmatprep.subr.mxu0 %v298
  %1801 = vmatpush1.msra.mxu0 %v297
  %1802 = vmatprep.mubr.f32.mxu0 %v23
  %1803 = vmatmul.mubr.f32.gmra.mrb[0].mxu0 %v22
  %v1804 = vpop.f32.mrb[0].mxu0
  %v1805 = vadd.f32 %v1734, %v1804
  %v1806 = vpop.f32.mrb[0].mxu0
  %v1807 = vadd.f32 %v1736, %v1806
  %1808 = vdwg.mxu0
  %1809 = vmatprep.subr.mxu0 %v302
  %1810 = vmatpush1.msra.mxu0 %v301
  %1811 = vmatprep.subr.mxu0 %v306
  %1812 = vmatpush1.msra.mxu0 %v305
  %1813 = vmatprep.subr.mxu0 %v310
  %1814 = vmatpush1.msra.mxu0 %v309
  %1815 = vmatprep.subr.mxu0 %v314
  %1816 = vmatpush1.msra.mxu0 %v313
  %1817 = vmatprep.subr.mxu0 %v318
  %1818 = vmatpush1.msra.mxu0 %v317
  %1819 = vmatprep.subr.mxu0 %v322
  %1820 = vmatpush1.msra.mxu0 %v321
  %1821 = vmatprep.subr.mxu0 %v326
  %1822 = vmatpush1.msra.mxu0 %v325
  %1823 = vmatprep.subr.mxu0 %v330
  %1824 = vmatpush1.msra.mxu0 %v329
  %1825 = vmatprep.subr.mxu0 %v334
  %1826 = vmatpush1.msra.mxu0 %v333
  %1827 = vmatprep.subr.mxu0 %v338
  %1828 = vmatpush1.msra.mxu0 %v337
  %1829 = vmatprep.subr.mxu0 %v342
  %1830 = vmatpush1.msra.mxu0 %v341
  %1831 = vmatprep.subr.mxu0 %v346
  %1832 = vmatpush1.msra.mxu0 %v345
  %1833 = vmatprep.subr.mxu0 %v350
  %1834 = vmatpush1.msra.mxu0 %v349
  %1835 = vmatprep.subr.mxu0 %v354
  %1836 = vmatpush1.msra.mxu0 %v353
  %1837 = vmatprep.subr.mxu0 %v358
  %1838 = vmatpush1.msra.mxu0 %v357
  %1839 = vmatprep.subr.mxu0 %v362
  %1840 = vmatpush1.msra.mxu0 %v361
  %1841 = vmatprep.subr.mxu0 %v366
  %1842 = vmatpush1.msra.mxu0 %v365
  %1843 = vmatprep.subr.mxu0 %v370
  %1844 = vmatpush1.msra.mxu0 %v369
  %1845 = vmatprep.subr.mxu0 %v374
  %1846 = vmatpush1.msra.mxu0 %v373
  %1847 = vmatprep.subr.mxu0 %v378
  %1848 = vmatpush1.msra.mxu0 %v377
  %1849 = vmatprep.subr.mxu0 %v382
  %1850 = vmatpush1.msra.mxu0 %v381
  %1851 = vmatprep.subr.mxu0 %v386
  %1852 = vmatpush1.msra.mxu0 %v385
  %1853 = vmatprep.subr.mxu0 %v390
  %1854 = vmatpush1.msra.mxu0 %v389
  %1855 = vmatprep.subr.mxu0 %v394
  %1856 = vmatpush1.msra.mxu0 %v393
  %1857 = vmatprep.subr.mxu0 %v398
  %1858 = vmatpush1.msra.mxu0 %v397
  %1859 = vmatprep.subr.mxu0 %v402
  %1860 = vmatpush1.msra.mxu0 %v401
  %1861 = vmatprep.subr.mxu0 %v406
  %1862 = vmatpush1.msra.mxu0 %v405
  %1863 = vmatprep.subr.mxu0 %v410
  %1864 = vmatpush1.msra.mxu0 %v409
  %1865 = vmatprep.subr.mxu0 %v414
  %1866 = vmatpush1.msra.mxu0 %v413
  %1867 = vmatprep.subr.mxu0 %v418
  %1868 = vmatpush1.msra.mxu0 %v417
  %1869 = vmatprep.subr.mxu0 %v422
  %1870 = vmatpush1.msra.mxu0 %v421
  %1871 = vmatprep.subr.mxu0 %v426
  %1872 = vmatpush1.msra.mxu0 %v425
  %1873 = vmatprep.mubr.f32.mxu0 %v25
  %1874 = vmatmul.mubr.f32.gmra.mrb[0].mxu0 %v24
  %v1875 = vpop.f32.mrb[0].mxu0
  %v1876 = vadd.f32 %v1805, %v1875
  %v1877 = vpop.f32.mrb[0].mxu0
  %v1878 = vadd.f32 %v1807, %v1877
  %1879 = vdwg.mxu0
  %1880 = vmatprep.subr.mxu0 %v430
  %1881 = vmatpush1.msra.mxu0 %v429
  %1882 = vmatprep.subr.mxu0 %v434
  %1883 = vmatpush1.msra.mxu0 %v433
  %1884 = vmatprep.subr.mxu0 %v438
  %1885 = vmatpush1.msra.mxu0 %v437
  %1886 = vmatprep.subr.mxu0 %v442
  %1887 = vmatpush1.msra.mxu0 %v441
  %1888 = vmatprep.subr.mxu0 %v446
  %1889 = vmatpush1.msra.mxu0 %v445
  %1890 = vmatprep.subr.mxu0 %v450
  %1891 = vmatpush1.msra.mxu0 %v449
  %1892 = vmatprep.subr.mxu0 %v454
  %1893 = vmatpush1.msra.mxu0 %v453
  %1894 = vmatprep.subr.mxu0 %v458
  %1895 = vmatpush1.msra.mxu0 %v457
  %1896 = vmatprep.subr.mxu0 %v462
  %1897 = vmatpush1.msra.mxu0 %v461
  %1898 = vmatprep.subr.mxu0 %v466
  %1899 = vmatpush1.msra.mxu0 %v465
  %1900 = vmatprep.subr.mxu0 %v470
  %1901 = vmatpush1.msra.mxu0 %v469
  %1902 = vmatprep.subr.mxu0 %v474
  %1903 = vmatpush1.msra.mxu0 %v473
  %1904 = vmatprep.subr.mxu0 %v478
  %1905 = vmatpush1.msra.mxu0 %v477
  %1906 = vmatprep.subr.mxu0 %v482
  %1907 = vmatpush1.msra.mxu0 %v481
  %1908 = vmatprep.subr.mxu0 %v486
  %1909 = vmatpush1.msra.mxu0 %v485
  %1910 = vmatprep.subr.mxu0 %v490
  %1911 = vmatpush1.msra.mxu0 %v489
  %1912 = vmatprep.subr.mxu0 %v494
  %1913 = vmatpush1.msra.mxu0 %v493
  %1914 = vmatprep.subr.mxu0 %v498
  %1915 = vmatpush1.msra.mxu0 %v497
  %1916 = vmatprep.subr.mxu0 %v502
  %1917 = vmatpush1.msra.mxu0 %v501
  %1918 = vmatprep.subr.mxu0 %v506
  %1919 = vmatpush1.msra.mxu0 %v505
  %1920 = vmatprep.subr.mxu0 %v510
  %1921 = vmatpush1.msra.mxu0 %v509
  %1922 = vmatprep.subr.mxu0 %v514
  %1923 = vmatpush1.msra.mxu0 %v513
  %1924 = vmatprep.subr.mxu0 %v518
  %1925 = vmatpush1.msra.mxu0 %v517
  %1926 = vmatprep.subr.mxu0 %v522
  %1927 = vmatpush1.msra.mxu0 %v521
  %1928 = vmatprep.subr.mxu0 %v526
  %1929 = vmatpush1.msra.mxu0 %v525
  %1930 = vmatprep.subr.mxu0 %v530
  %1931 = vmatpush1.msra.mxu0 %v529
  %1932 = vmatprep.subr.mxu0 %v534
  %1933 = vmatpush1.msra.mxu0 %v533
  %1934 = vmatprep.subr.mxu0 %v538
  %1935 = vmatpush1.msra.mxu0 %v537
  %1936 = vmatprep.subr.mxu0 %v542
  %1937 = vmatpush1.msra.mxu0 %v541
  %1938 = vmatprep.subr.mxu0 %v546
  %1939 = vmatpush1.msra.mxu0 %v545
  %1940 = vmatprep.subr.mxu0 %v550
  %1941 = vmatpush1.msra.mxu0 %v549
  %1942 = vmatprep.subr.mxu0 %v554
  %1943 = vmatpush1.msra.mxu0 %v553
  %1944 = vmatprep.mubr.f32.mxu0 %v27
  %1945 = vmatmul.mubr.f32.gmra.mrb[0].mxu0 %v26
  %v1946 = vpop.f32.mrb[0].mxu0
  %v1947 = vadd.f32 %v1876, %v1946
  %v1948 = vpop.f32.mrb[0].mxu0
  %v1949 = vadd.f32 %v1878, %v1948
  %1950 = vdwg.mxu0
  %1951 = vmatprep.subr.mxu0 %v558
  %1952 = vmatpush1.msra.mxu0 %v557
  %1953 = vmatprep.subr.mxu0 %v562
  %1954 = vmatpush1.msra.mxu0 %v561
  %1955 = vmatprep.subr.mxu0 %v566
  %1956 = vmatpush1.msra.mxu0 %v565
  %1957 = vmatprep.subr.mxu0 %v570
  %1958 = vmatpush1.msra.mxu0 %v569
  %1959 = vmatprep.subr.mxu0 %v574
  %1960 = vmatpush1.msra.mxu0 %v573
  %1961 = vmatprep.subr.mxu0 %v578
  %1962 = vmatpush1.msra.mxu0 %v577
  %1963 = vmatprep.subr.mxu0 %v582
  %1964 = vmatpush1.msra.mxu0 %v581
  %1965 = vmatprep.subr.mxu0 %v586
  %1966 = vmatpush1.msra.mxu0 %v585
  %1967 = vmatprep.subr.mxu0 %v590
  %1968 = vmatpush1.msra.mxu0 %v589
  %1969 = vmatprep.subr.mxu0 %v594
  %1970 = vmatpush1.msra.mxu0 %v593
  %1971 = vmatprep.subr.mxu0 %v598
  %1972 = vmatpush1.msra.mxu0 %v597
  %1973 = vmatprep.subr.mxu0 %v602
  %1974 = vmatpush1.msra.mxu0 %v601
  %1975 = vmatprep.subr.mxu0 %v606
  %1976 = vmatpush1.msra.mxu0 %v605
  %1977 = vmatprep.subr.mxu0 %v610
  %1978 = vmatpush1.msra.mxu0 %v609
  %1979 = vmatprep.subr.mxu0 %v614
  %1980 = vmatpush1.msra.mxu0 %v613
  %1981 = vmatprep.subr.mxu0 %v618
  %1982 = vmatpush1.msra.mxu0 %v617
  %1983 = vmatprep.subr.mxu0 %v622
  %1984 = vmatpush1.msra.mxu0 %v621
  %1985 = vmatprep.subr.mxu0 %v626
  %1986 = vmatpush1.msra.mxu0 %v625
  %1987 = vmatprep.subr.mxu0 %v630
  %1988 = vmatpush1.msra.mxu0 %v629
  %1989 = vmatprep.subr.mxu0 %v634
  %1990 = vmatpush1.msra.mxu0 %v633
  %1991 = vmatprep.subr.mxu0 %v638
  %1992 = vmatpush1.msra.mxu0 %v637
  %1993 = vmatprep.subr.mxu0 %v642
  %1994 = vmatpush1.msra.mxu0 %v641
  %1995 = vmatprep.subr.mxu0 %v646
  %1996 = vmatpush1.msra.mxu0 %v645
  %1997 = vmatprep.subr.mxu0 %v650
  %1998 = vmatpush1.msra.mxu0 %v649
  %1999 = vmatprep.subr.mxu0 %v654
  %2000 = vmatpush1.msra.mxu0 %v653
  %2001 = vmatprep.subr.mxu0 %v658
  %2002 = vmatpush1.msra.mxu0 %v657
  %2003 = vmatprep.subr.mxu0 %v662
  %2004 = vmatpush1.msra.mxu0 %v661
  %2005 = vmatprep.subr.mxu0 %v666
  %2006 = vmatpush1.msra.mxu0 %v665
  %2007 = vmatprep.subr.mxu0 %v670
  %2008 = vmatpush1.msra.mxu0 %v669
  %2009 = vmatprep.subr.mxu0 %v674
  %2010 = vmatpush1.msra.mxu0 %v673
  %2011 = vmatprep.subr.mxu0 %v678
  %2012 = vmatpush1.msra.mxu0 %v677
  %2013 = vmatprep.subr.mxu0 %v682
  %2014 = vmatpush1.msra.mxu0 %v681
  %2015 = vmatprep.mubr.f32.mxu0 %v29
  %2016 = vmatmul.mubr.f32.gmra.mrb[0].mxu0 %v28
  %v2017 = vpop.f32.mrb[0].mxu0
  %v2018 = vadd.f32 %v1947, %v2017
  %v2019 = vpop.f32.mrb[0].mxu0
  %v2020 = vadd.f32 %v1949, %v2019
  %2021 = vdwg.mxu0
  %2022 = vmatprep.subr.mxu0 %v686
  %2023 = vmatpush1.msra.mxu0 %v685
  %2024 = vmatprep.subr.mxu0 %v690
  %2025 = vmatpush1.msra.mxu0 %v689
  %2026 = vmatprep.subr.mxu0 %v694
  %2027 = vmatpush1.msra.mxu0 %v693
  %2028 = vmatprep.subr.mxu0 %v698
  %2029 = vmatpush1.msra.mxu0 %v697
  %2030 = vmatprep.subr.mxu0 %v702
  %2031 = vmatpush1.msra.mxu0 %v701
  %2032 = vmatprep.subr.mxu0 %v706
  %2033 = vmatpush1.msra.mxu0 %v705
  %2034 = vmatprep.subr.mxu0 %v710
  %2035 = vmatpush1.msra.mxu0 %v709
  %2036 = vmatprep.subr.mxu0 %v714
  %2037 = vmatpush1.msra.mxu0 %v713
  %2038 = vmatprep.subr.mxu0 %v718
  %2039 = vmatpush1.msra.mxu0 %v717
  %2040 = vmatprep.subr.mxu0 %v722
  %2041 = vmatpush1.msra.mxu0 %v721
  %2042 = vmatprep.subr.mxu0 %v726
  %2043 = vmatpush1.msra.mxu0 %v725
  %2044 = vmatprep.subr.mxu0 %v730
  %2045 = vmatpush1.msra.mxu0 %v729
  %2046 = vmatprep.subr.mxu0 %v734
  %2047 = vmatpush1.msra.mxu0 %v733
  %2048 = vmatprep.subr.mxu0 %v738
  %2049 = vmatpush1.msra.mxu0 %v737
  %2050 = vmatprep.subr.mxu0 %v742
  %2051 = vmatpush1.msra.mxu0 %v741
  %2052 = vmatprep.subr.mxu0 %v746
  %2053 = vmatpush1.msra.mxu0 %v745
  %2054 = vmatprep.subr.mxu0 %v750
  %2055 = vmatpush1.msra.mxu0 %v749
  %2056 = vmatprep.subr.mxu0 %v754
  %2057 = vmatpush1.msra.mxu0 %v753
  %2058 = vmatprep.subr.mxu0 %v758
  %2059 = vmatpush1.msra.mxu0 %v757
  %2060 = vmatprep.subr.mxu0 %v762
  %2061 = vmatpush1.msra.mxu0 %v761
  %2062 = vmatprep.subr.mxu0 %v766
  %2063 = vmatpush1.msra.mxu0 %v765
  %2064 = vmatprep.subr.mxu0 %v770
  %2065 = vmatpush1.msra.mxu0 %v769
  %2066 = vmatprep.subr.mxu0 %v774
  %2067 = vmatpush1.msra.mxu0 %v773
  %2068 = vmatprep.subr.mxu0 %v778
  %2069 = vmatpush1.msra.mxu0 %v777
  %2070 = vmatprep.subr.mxu0 %v782
  %2071 = vmatpush1.msra.mxu0 %v781
  %2072 = vmatprep.subr.mxu0 %v786
  %2073 = vmatpush1.msra.mxu0 %v785
  %2074 = vmatprep.subr.mxu0 %v790
  %2075 = vmatpush1.msra.mxu0 %v789
  %2076 = vmatprep.subr.mxu0 %v794
  %2077 = vmatpush1.msra.mxu0 %v793
  %2078 = vmatprep.subr.mxu0 %v798
  %2079 = vmatpush1.msra.mxu0 %v797
  %2080 = vmatprep.subr.mxu0 %v802
  %2081 = vmatpush1.msra.mxu0 %v801
  %2082 = vmatprep.subr.mxu0 %v806
  %2083 = vmatpush1.msra.mxu0 %v805
  %2084 = vmatprep.subr.mxu0 %v810
  %2085 = vmatpush1.msra.mxu0 %v809
  %2086 = vmatprep.mubr.f32.mxu0 %v31
  %2087 = vmatmul.mubr.f32.gmra.mrb[0].mxu0 %v30
  %v2088 = vpop.f32.mrb[0].mxu0
  %v2089 = vadd.f32 %v2018, %v2088
  %v2090 = vpop.f32.mrb[0].mxu0
  %v2091 = vadd.f32 %v2020, %v2090
  %2092 = vdwg.mxu0
  %2093 = vmatprep.subr.mxu0 %v814
  %2094 = vmatpush1.msra.mxu0 %v813
  %2095 = vmatprep.subr.mxu0 %v818
  %2096 = vmatpush1.msra.mxu0 %v817
  %2097 = vmatprep.subr.mxu0 %v822
  %2098 = vmatpush1.msra.mxu0 %v821
  %2099 = vmatprep.subr.mxu0 %v826
  %2100 = vmatpush1.msra.mxu0 %v825
  %2101 = vmatprep.subr.mxu0 %v830
  %2102 = vmatpush1.msra.mxu0 %v829
  %2103 = vmatprep.subr.mxu0 %v834
  %2104 = vmatpush1.msra.mxu0 %v833
  %2105 = vmatprep.subr.mxu0 %v838
  %2106 = vmatpush1.msra.mxu0 %v837
  %2107 = vmatprep.subr.mxu0 %v842
  %2108 = vmatpush1.msra.mxu0 %v841
  %2109 = vmatprep.subr.mxu0 %v846
  %2110 = vmatpush1.msra.mxu0 %v845
  %2111 = vmatprep.subr.mxu0 %v850
  %2112 = vmatpush1.msra.mxu0 %v849
  %2113 = vmatprep.subr.mxu0 %v854
  %2114 = vmatpush1.msra.mxu0 %v853
  %2115 = vmatprep.subr.mxu0 %v858
  %2116 = vmatpush1.msra.mxu0 %v857
  %2117 = vmatprep.subr.mxu0 %v862
  %2118 = vmatpush1.msra.mxu0 %v861
  %2119 = vmatprep.subr.mxu0 %v866
  %2120 = vmatpush1.msra.mxu0 %v865
  %2121 = vmatprep.subr.mxu0 %v870
  %2122 = vmatpush1.msra.mxu0 %v869
  %2123 = vmatprep.subr.mxu0 %v874
  %2124 = vmatpush1.msra.mxu0 %v873
  %2125 = vmatprep.subr.mxu0 %v878
  %2126 = vmatpush1.msra.mxu0 %v877
  %2127 = vmatprep.subr.mxu0 %v882
  %2128 = vmatpush1.msra.mxu0 %v881
  %2129 = vmatprep.subr.mxu0 %v886
  %2130 = vmatpush1.msra.mxu0 %v885
  %2131 = vmatprep.subr.mxu0 %v890
  %2132 = vmatpush1.msra.mxu0 %v889
  %2133 = vmatprep.subr.mxu0 %v894
  %2134 = vmatpush1.msra.mxu0 %v893
  %2135 = vmatprep.subr.mxu0 %v898
  %2136 = vmatpush1.msra.mxu0 %v897
  %2137 = vmatprep.subr.mxu0 %v902
  %2138 = vmatpush1.msra.mxu0 %v901
  %2139 = vmatprep.subr.mxu0 %v906
  %2140 = vmatpush1.msra.mxu0 %v905
  %2141 = vmatprep.subr.mxu0 %v910
  %2142 = vmatpush1.msra.mxu0 %v909
  %2143 = vmatprep.subr.mxu0 %v914
  %2144 = vmatpush1.msra.mxu0 %v913
  %2145 = vmatprep.subr.mxu0 %v918
  %2146 = vmatpush1.msra.mxu0 %v917
  %2147 = vmatprep.subr.mxu0 %v922
  %2148 = vmatpush1.msra.mxu0 %v921
  %2149 = vmatprep.subr.mxu0 %v926
  %2150 = vmatpush1.msra.mxu0 %v925
  %2151 = vmatprep.subr.mxu0 %v930
  %2152 = vmatpush1.msra.mxu0 %v929
  %2153 = vmatprep.subr.mxu0 %v934
  %2154 = vmatpush1.msra.mxu0 %v933
  %2155 = vmatprep.subr.mxu0 %v938
  %2156 = vmatpush1.msra.mxu0 %v937
  %2157 = vmatprep.mubr.f32.mxu0 %v33
  %2158 = vmatmul.mubr.f32.gmra.mrb[0].mxu0 %v32
  %v2159 = vpop.f32.mrb[0].mxu0
  %v2160 = vadd.f32 %v2089, %v2159
  %v2161 = vpop.f32.mrb[0].mxu0
  %v2162 = vadd.f32 %v2091, %v2161
  %2163 = vdwg.mxu0
  %2164 = vmatprep.subr.mxu0 %v942
  %2165 = vmatpush1.msra.mxu0 %v941
  %2166 = vmatprep.subr.mxu0 %v946
  %2167 = vmatpush1.msra.mxu0 %v945
  %2168 = vmatprep.subr.mxu0 %v950
  %2169 = vmatpush1.msra.mxu0 %v949
  %2170 = vmatprep.subr.mxu0 %v954
  %2171 = vmatpush1.msra.mxu0 %v953
  %2172 = vmatprep.subr.mxu0 %v958
  %2173 = vmatpush1.msra.mxu0 %v957
  %2174 = vmatprep.subr.mxu0 %v962
  %2175 = vmatpush1.msra.mxu0 %v961
  %2176 = vmatprep.subr.mxu0 %v966
  %2177 = vmatpush1.msra.mxu0 %v965
  %2178 = vmatprep.subr.mxu0 %v970
  %2179 = vmatpush1.msra.mxu0 %v969
  %2180 = vmatprep.subr.mxu0 %v974
  %2181 = vmatpush1.msra.mxu0 %v973
  %2182 = vmatprep.subr.mxu0 %v978
  %2183 = vmatpush1.msra.mxu0 %v977
  %2184 = vmatprep.subr.mxu0 %v982
  %2185 = vmatpush1.msra.mxu0 %v981
  %2186 = vmatprep.subr.mxu0 %v986
  %2187 = vmatpush1.msra.mxu0 %v985
  %2188 = vmatprep.subr.mxu0 %v990
  %2189 = vmatpush1.msra.mxu0 %v989
  %2190 = vmatprep.subr.mxu0 %v994
  %2191 = vmatpush1.msra.mxu0 %v993
  %2192 = vmatprep.subr.mxu0 %v998
  %2193 = vmatpush1.msra.mxu0 %v997
  %2194 = vmatprep.subr.mxu0 %v1002
  %2195 = vmatpush1.msra.mxu0 %v1001
  %2196 = vmatprep.subr.mxu0 %v1006
  %2197 = vmatpush1.msra.mxu0 %v1005
  %2198 = vmatprep.subr.mxu0 %v1010
  %2199 = vmatpush1.msra.mxu0 %v1009
  %2200 = vmatprep.subr.mxu0 %v1014
  %2201 = vmatpush1.msra.mxu0 %v1013
  %2202 = vmatprep.subr.mxu0 %v1018
  %2203 = vmatpush1.msra.mxu0 %v1017
  %2204 = vmatprep.subr.mxu0 %v1022
  %2205 = vmatpush1.msra.mxu0 %v1021
  %2206 = vmatprep.subr.mxu0 %v1026
  %2207 = vmatpush1.msra.mxu0 %v1025
  %2208 = vmatprep.subr.mxu0 %v1030
  %2209 = vmatpush1.msra.mxu0 %v1029
  %2210 = vmatprep.subr.mxu0 %v1034
  %2211 = vmatpush1.msra.mxu0 %v1033
  %2212 = vmatprep.subr.mxu0 %v1038
  %2213 = vmatpush1.msra.mxu0 %v1037
  %2214 = vmatprep.subr.mxu0 %v1042
  %2215 = vmatpush1.msra.mxu0 %v1041
  %2216 = vmatprep.subr.mxu0 %v1046
  %2217 = vmatpush1.msra.mxu0 %v1045
  %2218 = vmatprep.subr.mxu0 %v1050
  %2219 = vmatpush1.msra.mxu0 %v1049
  %2220 = vmatprep.subr.mxu0 %v1054
  %2221 = vmatpush1.msra.mxu0 %v1053
  %2222 = vmatprep.subr.mxu0 %v1058
  %2223 = vmatpush1.msra.mxu0 %v1057
  %2224 = vmatprep.subr.mxu0 %v1062
  %2225 = vmatpush1.msra.mxu0 %v1061
  %2226 = vmatprep.subr.mxu0 %v1066
  %2227 = vmatpush1.msra.mxu0 %v1065
  %2228 = vmatprep.mubr.f32.mxu0 %v35
  %2229 = vmatmul.mubr.f32.gmra.mrb[0].mxu0 %v34
  %v2230 = vpop.f32.mrb[0].mxu0
  %v2231 = vadd.f32 %v2160, %v2230
  %v2232 = vpop.f32.mrb[0].mxu0
  %v2233 = vadd.f32 %v2162, %v2232
  %2234 = vdwg.mxu0
  %2235 = vmatprep.subr.mxu0 %v1070
  %2236 = vmatpush1.msra.mxu0 %v1069
  %2237 = vmatprep.subr.mxu0 %v1074
  %2238 = vmatpush1.msra.mxu0 %v1073
  %2239 = vmatprep.subr.mxu0 %v1078
  %2240 = vmatpush1.msra.mxu0 %v1077
  %2241 = vmatprep.subr.mxu0 %v1082
  %2242 = vmatpush1.msra.mxu0 %v1081
  %2243 = vmatprep.subr.mxu0 %v1086
  %2244 = vmatpush1.msra.mxu0 %v1085
  %2245 = vmatprep.subr.mxu0 %v1090
  %2246 = vmatpush1.msra.mxu0 %v1089
  %2247 = vmatprep.subr.mxu0 %v1094
  %2248 = vmatpush1.msra.mxu0 %v1093
  %2249 = vmatprep.subr.mxu0 %v1098
  %2250 = vmatpush1.msra.mxu0 %v1097
  %2251 = vmatprep.subr.mxu0 %v1102
  %2252 = vmatpush1.msra.mxu0 %v1101
  %2253 = vmatprep.subr.mxu0 %v1106
  %2254 = vmatpush1.msra.mxu0 %v1105
  %2255 = vmatprep.subr.mxu0 %v1110
  %2256 = vmatpush1.msra.mxu0 %v1109
  %2257 = vmatprep.subr.mxu0 %v1114
  %2258 = vmatpush1.msra.mxu0 %v1113
  %2259 = vmatprep.subr.mxu0 %v1118
  %2260 = vmatpush1.msra.mxu0 %v1117
  %2261 = vmatprep.subr.mxu0 %v1122
  %2262 = vmatpush1.msra.mxu0 %v1121
  %2263 = vmatprep.subr.mxu0 %v1126
  %2264 = vmatpush1.msra.mxu0 %v1125
  %2265 = vmatprep.subr.mxu0 %v1130
  %2266 = vmatpush1.msra.mxu0 %v1129
  %2267 = vmatprep.subr.mxu0 %v1134
  %2268 = vmatpush1.msra.mxu0 %v1133
  %2269 = vmatprep.subr.mxu0 %v1138
  %2270 = vmatpush1.msra.mxu0 %v1137
  %2271 = vmatprep.subr.mxu0 %v1142
  %2272 = vmatpush1.msra.mxu0 %v1141
  %2273 = vmatprep.subr.mxu0 %v1146
  %2274 = vmatpush1.msra.mxu0 %v1145
  %2275 = vmatprep.subr.mxu0 %v1150
  %2276 = vmatpush1.msra.mxu0 %v1149
  %2277 = vmatprep.subr.mxu0 %v1154
  %2278 = vmatpush1.msra.mxu0 %v1153
  %2279 = vmatprep.subr.mxu0 %v1158
  %2280 = vmatpush1.msra.mxu0 %v1157
  %2281 = vmatprep.subr.mxu0 %v1162
  %2282 = vmatpush1.msra.mxu0 %v1161
  %2283 = vmatprep.subr.mxu0 %v1166
  %2284 = vmatpush1.msra.mxu0 %v1165
  %2285 = vmatprep.subr.mxu0 %v1170
  %2286 = vmatpush1.msra.mxu0 %v1169
  %2287 = vmatprep.subr.mxu0 %v1174
  %2288 = vmatpush1.msra.mxu0 %v1173
  %2289 = vmatprep.subr.mxu0 %v1178
  %2290 = vmatpush1.msra.mxu0 %v1177
  %2291 = vmatprep.subr.mxu0 %v1182
  %2292 = vmatpush1.msra.mxu0 %v1181
  %2293 = vmatprep.subr.mxu0 %v1186
  %2294 = vmatpush1.msra.mxu0 %v1185
  %2295 = vmatprep.subr.mxu0 %v1190
  %2296 = vmatpush1.msra.mxu0 %v1189
  %2297 = vmatprep.subr.mxu0 %v1194
  %2298 = vmatpush1.msra.mxu0 %v1193
  %2299 = vmatprep.mubr.f32.mxu0 %v37
  %2300 = vmatmul.mubr.f32.gmra.mrb[0].mxu0 %v36
  %v2301 = vpop.f32.mrb[0].mxu0
  %v2302 = vadd.f32 %v2231, %v2301
  %v2303 = vpop.f32.mrb[0].mxu0
  %v2304 = vadd.f32 %v2233, %v2303
  %2305 = vdwg.mxu0
  %2306 = vmatprep.subr.mxu0 %v1198
  %2307 = vmatpush1.msra.mxu0 %v1197
  %2308 = vmatprep.subr.mxu0 %v1202
  %2309 = vmatpush1.msra.mxu0 %v1201
  %2310 = vmatprep.subr.mxu0 %v1206
  %2311 = vmatpush1.msra.mxu0 %v1205
  %2312 = vmatprep.subr.mxu0 %v1210
  %2313 = vmatpush1.msra.mxu0 %v1209
  %2314 = vmatprep.subr.mxu0 %v1214
  %2315 = vmatpush1.msra.mxu0 %v1213
  %2316 = vmatprep.subr.mxu0 %v1218
  %2317 = vmatpush1.msra.mxu0 %v1217
  %2318 = vmatprep.subr.mxu0 %v1222
  %2319 = vmatpush1.msra.mxu0 %v1221
  %2320 = vmatprep.subr.mxu0 %v1226
  %2321 = vmatpush1.msra.mxu0 %v1225
  %2322 = vmatprep.subr.mxu0 %v1230
  %2323 = vmatpush1.msra.mxu0 %v1229
  %2324 = vmatprep.subr.mxu0 %v1234
  %2325 = vmatpush1.msra.mxu0 %v1233
  %2326 = vmatprep.subr.mxu0 %v1238
  %2327 = vmatpush1.msra.mxu0 %v1237
  %2328 = vmatprep.subr.mxu0 %v1242
  %2329 = vmatpush1.msra.mxu0 %v1241
  %2330 = vmatprep.subr.mxu0 %v1246
  %2331 = vmatpush1.msra.mxu0 %v1245
  %2332 = vmatprep.subr.mxu0 %v1250
  %2333 = vmatpush1.msra.mxu0 %v1249
  %2334 = vmatprep.subr.mxu0 %v1254
  %2335 = vmatpush1.msra.mxu0 %v1253
  %2336 = vmatprep.subr.mxu0 %v1258
  %2337 = vmatpush1.msra.mxu0 %v1257
  %2338 = vmatprep.subr.mxu0 %v1262
  %2339 = vmatpush1.msra.mxu0 %v1261
  %2340 = vmatprep.subr.mxu0 %v1266
  %2341 = vmatpush1.msra.mxu0 %v1265
  %2342 = vmatprep.subr.mxu0 %v1270
  %2343 = vmatpush1.msra.mxu0 %v1269
  %2344 = vmatprep.subr.mxu0 %v1274
  %2345 = vmatpush1.msra.mxu0 %v1273
  %2346 = vmatprep.subr.mxu0 %v1278
  %2347 = vmatpush1.msra.mxu0 %v1277
  %2348 = vmatprep.subr.mxu0 %v1282
  %2349 = vmatpush1.msra.mxu0 %v1281
  %2350 = vmatprep.subr.mxu0 %v1286
  %2351 = vmatpush1.msra.mxu0 %v1285
  %2352 = vmatprep.subr.mxu0 %v1290
  %2353 = vmatpush1.msra.mxu0 %v1289
  %2354 = vmatprep.subr.mxu0 %v1294
  %2355 = vmatpush1.msra.mxu0 %v1293
  %2356 = vmatprep.subr.mxu0 %v1298
  %2357 = vmatpush1.msra.mxu0 %v1297
  %2358 = vmatprep.subr.mxu0 %v1302
  %2359 = vmatpush1.msra.mxu0 %v1301
  %2360 = vmatprep.subr.mxu0 %v1306
  %2361 = vmatpush1.msra.mxu0 %v1305
  %2362 = vmatprep.subr.mxu0 %v1310
  %2363 = vmatpush1.msra.mxu0 %v1309
  %2364 = vmatprep.subr.mxu0 %v1314
  %2365 = vmatpush1.msra.mxu0 %v1313
  %2366 = vmatprep.subr.mxu0 %v1318
  %2367 = vmatpush1.msra.mxu0 %v1317
  %2368 = vmatprep.subr.mxu0 %v1322
  %2369 = vmatpush1.msra.mxu0 %v1321
  %2370 = vmatprep.mubr.f32.mxu0 %v39
  %2371 = vmatmul.mubr.f32.gmra.mrb[0].mxu0 %v38
  %v2372 = vpop.f32.mrb[0].mxu0
  %v2373 = vadd.f32 %v2302, %v2372
  %v2374 = vpop.f32.mrb[0].mxu0
  %v2375 = vadd.f32 %v2304, %v2374
  %2376 = vdwg.mxu0
  %2377 = vmatprep.subr.mxu0 %v1326
  %2378 = vmatpush1.msra.mxu0 %v1325
  %2379 = vmatprep.subr.mxu0 %v1330
  %2380 = vmatpush1.msra.mxu0 %v1329
  %2381 = vmatprep.subr.mxu0 %v1334
  %2382 = vmatpush1.msra.mxu0 %v1333
  %2383 = vmatprep.subr.mxu0 %v1338
  %2384 = vmatpush1.msra.mxu0 %v1337
  %2385 = vmatprep.subr.mxu0 %v1342
  %2386 = vmatpush1.msra.mxu0 %v1341
  %2387 = vmatprep.subr.mxu0 %v1346
  %2388 = vmatpush1.msra.mxu0 %v1345
  %2389 = vmatprep.subr.mxu0 %v1350
  %2390 = vmatpush1.msra.mxu0 %v1349
  %2391 = vmatprep.subr.mxu0 %v1354
  %2392 = vmatpush1.msra.mxu0 %v1353
  %2393 = vmatprep.subr.mxu0 %v1358
  %2394 = vmatpush1.msra.mxu0 %v1357
  %2395 = vmatprep.subr.mxu0 %v1362
  %2396 = vmatpush1.msra.mxu0 %v1361
  %2397 = vmatprep.subr.mxu0 %v1366
  %2398 = vmatpush1.msra.mxu0 %v1365
  %2399 = vmatprep.subr.mxu0 %v1370
  %2400 = vmatpush1.msra.mxu0 %v1369
  %2401 = vmatprep.subr.mxu0 %v1374
  %2402 = vmatpush1.msra.mxu0 %v1373
  %2403 = vmatprep.subr.mxu0 %v1378
  %2404 = vmatpush1.msra.mxu0 %v1377
  %2405 = vmatprep.subr.mxu0 %v1382
  %2406 = vmatpush1.msra.mxu0 %v1381
  %2407 = vmatprep.subr.mxu0 %v1386
  %2408 = vmatpush1.msra.mxu0 %v1385
  %2409 = vmatprep.subr.mxu0 %v1390
  %2410 = vmatpush1.msra.mxu0 %v1389
  %2411 = vmatprep.subr.mxu0 %v1394
  %2412 = vmatpush1.msra.mxu0 %v1393
  %2413 = vmatprep.subr.mxu0 %v1398
  %2414 = vmatpush1.msra.mxu0 %v1397
  %2415 = vmatprep.subr.mxu0 %v1402
  %2416 = vmatpush1.msra.mxu0 %v1401
  %2417 = vmatprep.subr.mxu0 %v1406
  %2418 = vmatpush1.msra.mxu0 %v1405
  %2419 = vmatprep.subr.mxu0 %v1410
  %2420 = vmatpush1.msra.mxu0 %v1409
  %2421 = vmatprep.subr.mxu0 %v1414
  %2422 = vmatpush1.msra.mxu0 %v1413
  %2423 = vmatprep.subr.mxu0 %v1418
  %2424 = vmatpush1.msra.mxu0 %v1417
  %2425 = vmatprep.subr.mxu0 %v1422
  %2426 = vmatpush1.msra.mxu0 %v1421
  %2427 = vmatprep.subr.mxu0 %v1426
  %2428 = vmatpush1.msra.mxu0 %v1425
  %2429 = vmatprep.subr.mxu0 %v1430
  %2430 = vmatpush1.msra.mxu0 %v1429
  %2431 = vmatprep.subr.mxu0 %v1434
  %2432 = vmatpush1.msra.mxu0 %v1433
  %2433 = vmatprep.subr.mxu0 %v1438
  %2434 = vmatpush1.msra.mxu0 %v1437
  %2435 = vmatprep.subr.mxu0 %v1442
  %2436 = vmatpush1.msra.mxu0 %v1441
  %2437 = vmatprep.subr.mxu0 %v1446
  %2438 = vmatpush1.msra.mxu0 %v1445
  %2439 = vmatprep.subr.mxu0 %v1450
  %2440 = vmatpush1.msra.mxu0 %v1449
  %2441 = vmatprep.mubr.f32.mxu0 %v41
  %2442 = vmatmul.mubr.f32.gmra.mrb[0].mxu0 %v40
  %v2443 = vpop.f32.mrb[0].mxu0
  %v2444 = vadd.f32 %v2373, %v2443
  %v2445 = vpop.f32.mrb[0].mxu0
  %v2446 = vadd.f32 %v2375, %v2445
  %2447 = vdwg.mxu0
  %2448 = vmatprep.subr.mxu0 %v1454
  %2449 = vmatpush1.msra.mxu0 %v1453
  %2450 = vmatprep.subr.mxu0 %v1458
  %2451 = vmatpush1.msra.mxu0 %v1457
  %2452 = vmatprep.subr.mxu0 %v1462
  %2453 = vmatpush1.msra.mxu0 %v1461
  %2454 = vmatprep.subr.mxu0 %v1466
  %2455 = vmatpush1.msra.mxu0 %v1465
  %2456 = vmatprep.subr.mxu0 %v1470
  %2457 = vmatpush1.msra.mxu0 %v1469
  %2458 = vmatprep.subr.mxu0 %v1474
  %2459 = vmatpush1.msra.mxu0 %v1473
  %2460 = vmatprep.subr.mxu0 %v1478
  %2461 = vmatpush1.msra.mxu0 %v1477
  %2462 = vmatprep.subr.mxu0 %v1482
  %2463 = vmatpush1.msra.mxu0 %v1481
  %2464 = vmatprep.subr.mxu0 %v1486
  %2465 = vmatpush1.msra.mxu0 %v1485
  %2466 = vmatprep.subr.mxu0 %v1490
  %2467 = vmatpush1.msra.mxu0 %v1489
  %2468 = vmatprep.subr.mxu0 %v1494
  %2469 = vmatpush1.msra.mxu0 %v1493
  %2470 = vmatprep.subr.mxu0 %v1498
  %2471 = vmatpush1.msra.mxu0 %v1497
  %2472 = vmatprep.subr.mxu0 %v1502
  %2473 = vmatpush1.msra.mxu0 %v1501
  %2474 = vmatprep.subr.mxu0 %v1506
  %2475 = vmatpush1.msra.mxu0 %v1505
  %2476 = vmatprep.subr.mxu0 %v1510
  %2477 = vmatpush1.msra.mxu0 %v1509
  %2478 = vmatprep.subr.mxu0 %v1514
  %2479 = vmatpush1.msra.mxu0 %v1513
  %2480 = vmatprep.subr.mxu0 %v1518
  %2481 = vmatpush1.msra.mxu0 %v1517
  %2482 = vmatprep.subr.mxu0 %v1522
  %2483 = vmatpush1.msra.mxu0 %v1521
  %2484 = vmatprep.subr.mxu0 %v1526
  %2485 = vmatpush1.msra.mxu0 %v1525
  %2486 = vmatprep.subr.mxu0 %v1530
  %2487 = vmatpush1.msra.mxu0 %v1529
  %2488 = vmatprep.subr.mxu0 %v1534
  %2489 = vmatpush1.msra.mxu0 %v1533
  %2490 = vmatprep.subr.mxu0 %v1538
  %2491 = vmatpush1.msra.mxu0 %v1537
  %2492 = vmatprep.subr.mxu0 %v1542
  %2493 = vmatpush1.msra.mxu0 %v1541
  %2494 = vmatprep.subr.mxu0 %v1546
  %2495 = vmatpush1.msra.mxu0 %v1545
  %2496 = vmatprep.subr.mxu0 %v1550
  %2497 = vmatpush1.msra.mxu0 %v1549
  %2498 = vmatprep.subr.mxu0 %v1554
  %2499 = vmatpush1.msra.mxu0 %v1553
  %2500 = vmatprep.subr.mxu0 %v1558
  %2501 = vmatpush1.msra.mxu0 %v1557
  %2502 = vmatprep.subr.mxu0 %v1562
  %2503 = vmatpush1.msra.mxu0 %v1561
  %2504 = vmatprep.subr.mxu0 %v1566
  %2505 = vmatpush1.msra.mxu0 %v1565
  %2506 = vmatprep.subr.mxu0 %v1570
  %2507 = vmatpush1.msra.mxu0 %v1569
  %2508 = vmatprep.subr.mxu0 %v1574
  %2509 = vmatpush1.msra.mxu0 %v1573
  %2510 = vmatprep.subr.mxu0 %v1578
  %2511 = vmatpush1.msra.mxu0 %v1577
  %2512 = vmatprep.mubr.f32.mxu0 %v43
  %2513 = vmatmul.mubr.f32.gmra.mrb[0].mxu0 %v42
  %v2514 = vpop.f32.mrb[0].mxu0
  %v2515 = vadd.f32 %v2444, %v2514
  %v2516 = vpop.f32.mrb[0].mxu0
  %v2517 = vadd.f32 %v2446, %v2516
  %2518 = vdwg.mxu0
  %2519 = vmatprep.subr.mxu0 %v1582
  %2520 = vmatpush1.msra.mxu0 %v1581
  %2521 = vmatprep.subr.mxu0 %v1586
  %2522 = vmatpush1.msra.mxu0 %v1585
  %2523 = vmatprep.subr.mxu0 %v1590
  %2524 = vmatpush1.msra.mxu0 %v1589
  %2525 = vmatprep.subr.mxu0 %v1594
  %2526 = vmatpush1.msra.mxu0 %v1593
  %2527 = vmatprep.subr.mxu0 %v1598
  %2528 = vmatpush1.msra.mxu0 %v1597
  %2529 = vmatprep.subr.mxu0 %v1602
  %2530 = vmatpush1.msra.mxu0 %v1601
  %2531 = vmatprep.subr.mxu0 %v1606
  %2532 = vmatpush1.msra.mxu0 %v1605
  %2533 = vmatprep.subr.mxu0 %v1610
  %2534 = vmatpush1.msra.mxu0 %v1609
  %2535 = vmatprep.subr.mxu0 %v1614
  %2536 = vmatpush1.msra.mxu0 %v1613
  %2537 = vmatprep.subr.mxu0 %v1618
  %2538 = vmatpush1.msra.mxu0 %v1617
  %2539 = vmatprep.subr.mxu0 %v1622
  %2540 = vmatpush1.msra.mxu0 %v1621
  %2541 = vmatprep.subr.mxu0 %v1626
  %2542 = vmatpush1.msra.mxu0 %v1625
  %2543 = vmatprep.subr.mxu0 %v1630
  %2544 = vmatpush1.msra.mxu0 %v1629
  %2545 = vmatprep.subr.mxu0 %v1634
  %2546 = vmatpush1.msra.mxu0 %v1633
  %2547 = vmatprep.subr.mxu0 %v1638
  %2548 = vmatpush1.msra.mxu0 %v1637
  %2549 = vmatprep.subr.mxu0 %v1642
  %2550 = vmatpush1.msra.mxu0 %v1641
  %2551 = vmatprep.subr.mxu0 0.0
  %2552 = vmatpush1.msra.mxu0 0.0
  %2553 = vmatprep.subr.mxu0 0.0
  %2554 = vmatpush1.msra.mxu0 0.0
  %2555 = vmatprep.subr.mxu0 0.0
  %2556 = vmatpush1.msra.mxu0 0.0
  %2557 = vmatprep.subr.mxu0 0.0
  %2558 = vmatpush1.msra.mxu0 0.0
  %2559 = vmatprep.subr.mxu0 0.0
  %2560 = vmatpush1.msra.mxu0 0.0
  %2561 = vmatprep.subr.mxu0 0.0
  %2562 = vmatpush1.msra.mxu0 0.0
  %2563 = vmatprep.subr.mxu0 0.0
  %2564 = vmatpush1.msra.mxu0 0.0
  %2565 = vmatprep.subr.mxu0 0.0
  %2566 = vmatpush1.msra.mxu0 0.0
  %2567 = vmatprep.subr.mxu0 0.0
  %2568 = vmatpush1.msra.mxu0 0.0
  %2569 = vmatprep.subr.mxu0 0.0
  %2570 = vmatpush1.msra.mxu0 0.0
  %2571 = vmatprep.subr.mxu0 0.0
  %2572 = vmatpush1.msra.mxu0 0.0
  %2573 = vmatprep.subr.mxu0 0.0
  %2574 = vmatpush1.msra.mxu0 0.0
  %2575 = vmatprep.subr.mxu0 0.0
  %2576 = vmatpush1.msra.mxu0 0.0
  %2577 = vmatprep.subr.mxu0 0.0
  %2578 = vmatpush1.msra.mxu0 0.0
  %2579 = vmatprep.subr.mxu0 0.0
  %2580 = vmatpush1.msra.mxu0 0.0
  %2581 = vmatprep.subr.mxu0 0.0
  %2582 = vmatpush1.msra.mxu0 0.0
  %2583 = vmatprep.mubr.f32.mxu0 0.0
  %2584 = vmatmul.mubr.f32.gmra.mrb[0].mxu0 %v44
  %v2585 = vpop.f32.mrb[0].mxu0
  %v2586 = vadd.f32 %v2515, %v2585
  %v2587 = vpop.f32.mrb[0].mxu0
  %v2588 = vadd.f32 %v2517, %v2587
  %2589 = vdwg.mxu0
  %2590 = vmatprep.subr.mxu0 %v48
  %2591 = vmatpush1.msra.mxu0 %v47
  %2592 = vmatprep.subr.mxu0 %v52
  %2593 = vmatpush1.msra.mxu0 %v51
  %2594 = vmatprep.subr.mxu0 %v56
  %2595 = vmatpush1.msra.mxu0 %v55
  %2596 = vmatprep.subr.mxu0 %v60
  %2597 = vmatpush1.msra.mxu0 %v59
  %2598 = vmatprep.subr.mxu0 %v64
  %2599 = vmatpush1.msra.mxu0 %v63
  %2600 = vmatprep.subr.mxu0 %v68
  %2601 = vmatpush1.msra.mxu0 %v67
  %2602 = vmatprep.subr.mxu0 %v72
  %2603 = vmatpush1.msra.mxu0 %v71
  %2604 = vmatprep.subr.mxu0 %v76
  %2605 = vmatpush1.msra.mxu0 %v75
  %2606 = vmatprep.subr.mxu0 %v80
  %2607 = vmatpush1.msra.mxu0 %v79
  %2608 = vmatprep.subr.mxu0 %v84
  %2609 = vmatpush1.msra.mxu0 %v83
  %2610 = vmatprep.subr.mxu0 %v88
  %2611 = vmatpush1.msra.mxu0 %v87
  %2612 = vmatprep.subr.mxu0 %v92
  %2613 = vmatpush1.msra.mxu0 %v91
  %2614 = vmatprep.subr.mxu0 %v96
  %2615 = vmatpush1.msra.mxu0 %v95
  %2616 = vmatprep.subr.mxu0 %v100
  %2617 = vmatpush1.msra.mxu0 %v99
  %2618 = vmatprep.subr.mxu0 %v104
  %2619 = vmatpush1.msra.mxu0 %v103
  %2620 = vmatprep.subr.mxu0 %v108
  %2621 = vmatpush1.msra.mxu0 %v107
  %2622 = vmatprep.subr.mxu0 %v112
  %2623 = vmatpush1.msra.mxu0 %v111
  %2624 = vmatprep.subr.mxu0 %v116
  %2625 = vmatpush1.msra.mxu0 %v115
  %2626 = vmatprep.subr.mxu0 %v120
  %2627 = vmatpush1.msra.mxu0 %v119
  %2628 = vmatprep.subr.mxu0 %v124
  %2629 = vmatpush1.msra.mxu0 %v123
  %2630 = vmatprep.subr.mxu0 %v128
  %2631 = vmatpush1.msra.mxu0 %v127
  %2632 = vmatprep.subr.mxu0 %v132
  %2633 = vmatpush1.msra.mxu0 %v131
  %2634 = vmatprep.subr.mxu0 %v136
  %2635 = vmatpush1.msra.mxu0 %v135
  %2636 = vmatprep.subr.mxu0 %v140
  %2637 = vmatpush1.msra.mxu0 %v139
  %2638 = vmatprep.subr.mxu0 %v144
  %2639 = vmatpush1.msra.mxu0 %v143
  %2640 = vmatprep.subr.mxu0 %v148
  %2641 = vmatpush1.msra.mxu0 %v147
  %2642 = vmatprep.subr.mxu0 %v152
  %2643 = vmatpush1.msra.mxu0 %v151
  %2644 = vmatprep.subr.mxu0 %v156
  %2645 = vmatpush1.msra.mxu0 %v155
  %2646 = vmatprep.subr.mxu0 %v160
  %2647 = vmatpush1.msra.mxu0 %v159
  %2648 = vmatprep.subr.mxu0 %v164
  %2649 = vmatpush1.msra.mxu0 %v163
  %2650 = vmatprep.subr.mxu0 %v168
  %2651 = vmatpush1.msra.mxu0 %v167
  %2652 = vmatprep.subr.mxu0 %v172
  %2653 = vmatpush1.msra.mxu0 %v171
  %2654 = vmatprep.mubr.f32.mxu0 %v21
  %2655 = vmatmul.mubr.f32.gmra.mrb[0].mxu0 %v20
  %v2656 = vpop.f32.mrb[0].mxu0
  %v2657 = vadd.f32 %v1658, %v2656
  %v2658 = vpop.f32.mrb[0].mxu0
  %v2659 = vadd.f32 %v1662, %v2658
  %2660 = vdwg.mxu0
  %2661 = vmatprep.subr.mxu0 %v176
  %2662 = vmatpush1.msra.mxu0 %v175
  %2663 = vmatprep.subr.mxu0 %v180
  %2664 = vmatpush1.msra.mxu0 %v179
  %2665 = vmatprep.subr.mxu0 %v184
  %2666 = vmatpush1.msra.mxu0 %v183
  %2667 = vmatprep.subr.mxu0 %v188
  %2668 = vmatpush1.msra.mxu0 %v187
  %2669 = vmatprep.subr.mxu0 %v192
  %2670 = vmatpush1.msra.mxu0 %v191
  %2671 = vmatprep.subr.mxu0 %v196
  %2672 = vmatpush1.msra.mxu0 %v195
  %2673 = vmatprep.subr.mxu0 %v200
  %2674 = vmatpush1.msra.mxu0 %v199
  %2675 = vmatprep.subr.mxu0 %v204
  %2676 = vmatpush1.msra.mxu0 %v203
  %2677 = vmatprep.subr.mxu0 %v208
  %2678 = vmatpush1.msra.mxu0 %v207
  %2679 = vmatprep.subr.mxu0 %v212
  %2680 = vmatpush1.msra.mxu0 %v211
  %2681 = vmatprep.subr.mxu0 %v216
  %2682 = vmatpush1.msra.mxu0 %v215
  %2683 = vmatprep.subr.mxu0 %v220
  %2684 = vmatpush1.msra.mxu0 %v219
  %2685 = vmatprep.subr.mxu0 %v224
  %2686 = vmatpush1.msra.mxu0 %v223
  %2687 = vmatprep.subr.mxu0 %v228
  %2688 = vmatpush1.msra.mxu0 %v227
  %2689 = vmatprep.subr.mxu0 %v232
  %2690 = vmatpush1.msra.mxu0 %v231
  %2691 = vmatprep.subr.mxu0 %v236
  %2692 = vmatpush1.msra.mxu0 %v235
  %2693 = vmatprep.subr.mxu0 %v240
  %2694 = vmatpush1.msra.mxu0 %v239
  %2695 = vmatprep.subr.mxu0 %v244
  %2696 = vmatpush1.msra.mxu0 %v243
  %2697 = vmatprep.subr.mxu0 %v248
  %2698 = vmatpush1.msra.mxu0 %v247
  %2699 = vmatprep.subr.mxu0 %v252
  %2700 = vmatpush1.msra.mxu0 %v251
  %2701 = vmatprep.subr.mxu0 %v256
  %2702 = vmatpush1.msra.mxu0 %v255
  %2703 = vmatprep.subr.mxu0 %v260
  %2704 = vmatpush1.msra.mxu0 %v259
  %2705 = vmatprep.subr.mxu0 %v264
  %2706 = vmatpush1.msra.mxu0 %v263
  %2707 = vmatprep.subr.mxu0 %v268
  %2708 = vmatpush1.msra.mxu0 %v267
  %2709 = vmatprep.subr.mxu0 %v272
  %2710 = vmatpush1.msra.mxu0 %v271
  %2711 = vmatprep.subr.mxu0 %v276
  %2712 = vmatpush1.msra.mxu0 %v275
  %2713 = vmatprep.subr.mxu0 %v280
  %2714 = vmatpush1.msra.mxu0 %v279
  %2715 = vmatprep.subr.mxu0 %v284
  %2716 = vmatpush1.msra.mxu0 %v283
  %2717 = vmatprep.subr.mxu0 %v288
  %2718 = vmatpush1.msra.mxu0 %v287
  %2719 = vmatprep.subr.mxu0 %v292
  %2720 = vmatpush1.msra.mxu0 %v291
  %2721 = vmatprep.subr.mxu0 %v296
  %2722 = vmatpush1.msra.mxu0 %v295
  %2723 = vmatprep.subr.mxu0 %v300
  %2724 = vmatpush1.msra.mxu0 %v299
  %2725 = vmatprep.mubr.f32.mxu0 %v23
  %2726 = vmatmul.mubr.f32.gmra.mrb[0].mxu0 %v22
  %v2727 = vpop.f32.mrb[0].mxu0
  %v2728 = vadd.f32 %v2657, %v2727
  %v2729 = vpop.f32.mrb[0].mxu0
  %v2730 = vadd.f32 %v2659, %v2729
  %2731 = vdwg.mxu0
  %2732 = vmatprep.subr.mxu0 %v304
  %2733 = vmatpush1.msra.mxu0 %v303
  %2734 = vmatprep.subr.mxu0 %v308
  %2735 = vmatpush1.msra.mxu0 %v307
  %2736 = vmatprep.subr.mxu0 %v312
  %2737 = vmatpush1.msra.mxu0 %v311
  %2738 = vmatprep.subr.mxu0 %v316
  %2739 = vmatpush1.msra.mxu0 %v315
  %2740 = vmatprep.subr.mxu0 %v320
  %2741 = vmatpush1.msra.mxu0 %v319
  %2742 = vmatprep.subr.mxu0 %v324
  %2743 = vmatpush1.msra.mxu0 %v323
  %2744 = vmatprep.subr.mxu0 %v328
  %2745 = vmatpush1.msra.mxu0 %v327
  %2746 = vmatprep.subr.mxu0 %v332
  %2747 = vmatpush1.msra.mxu0 %v331
  %2748 = vmatprep.subr.mxu0 %v336
  %2749 = vmatpush1.msra.mxu0 %v335
  %2750 = vmatprep.subr.mxu0 %v340
  %2751 = vmatpush1.msra.mxu0 %v339
  %2752 = vmatprep.subr.mxu0 %v344
  %2753 = vmatpush1.msra.mxu0 %v343
  %2754 = vmatprep.subr.mxu0 %v348
  %2755 = vmatpush1.msra.mxu0 %v347
  %2756 = vmatprep.subr.mxu0 %v352
  %2757 = vmatpush1.msra.mxu0 %v351
  %2758 = vmatprep.subr.mxu0 %v356
  %2759 = vmatpush1.msra.mxu0 %v355
  %2760 = vmatprep.subr.mxu0 %v360
  %2761 = vmatpush1.msra.mxu0 %v359
  %2762 = vmatprep.subr.mxu0 %v364
  %2763 = vmatpush1.msra.mxu0 %v363
  %2764 = vmatprep.subr.mxu0 %v368
  %2765 = vmatpush1.msra.mxu0 %v367
  %2766 = vmatprep.subr.mxu0 %v372
  %2767 = vmatpush1.msra.mxu0 %v371
  %2768 = vmatprep.subr.mxu0 %v376
  %2769 = vmatpush1.msra.mxu0 %v375
  %2770 = vmatprep.subr.mxu0 %v380
  %2771 = vmatpush1.msra.mxu0 %v379
  %2772 = vmatprep.subr.mxu0 %v384
  %2773 = vmatpush1.msra.mxu0 %v383
  %2774 = vmatprep.subr.mxu0 %v388
  %2775 = vmatpush1.msra.mxu0 %v387
  %2776 = vmatprep.subr.mxu0 %v392
  %2777 = vmatpush1.msra.mxu0 %v391
  %2778 = vmatprep.subr.mxu0 %v396
  %2779 = vmatpush1.msra.mxu0 %v395
  %2780 = vmatprep.subr.mxu0 %v400
  %2781 = vmatpush1.msra.mxu0 %v399
  %2782 = vmatprep.subr.mxu0 %v404
  %2783 = vmatpush1.msra.mxu0 %v403
  %2784 = vmatprep.subr.mxu0 %v408
  %2785 = vmatpush1.msra.mxu0 %v407
  %2786 = vmatprep.subr.mxu0 %v412
  %2787 = vmatpush1.msra.mxu0 %v411
  %2788 = vmatprep.subr.mxu0 %v416
  %2789 = vmatpush1.msra.mxu0 %v415
  %2790 = vmatprep.subr.mxu0 %v420
  %2791 = vmatpush1.msra.mxu0 %v419
  %2792 = vmatprep.subr.mxu0 %v424
  %2793 = vmatpush1.msra.mxu0 %v423
  %2794 = vmatprep.subr.mxu0 %v428
  %2795 = vmatpush1.msra.mxu0 %v427
  %2796 = vmatprep.mubr.f32.mxu0 %v25
  %2797 = vmatmul.mubr.f32.gmra.mrb[0].mxu0 %v24
  %v2798 = vpop.f32.mrb[0].mxu0
  %v2799 = vadd.f32 %v2728, %v2798
  %v2800 = vpop.f32.mrb[0].mxu0
  %v2801 = vadd.f32 %v2730, %v2800
  %2802 = vdwg.mxu0
  %2803 = vmatprep.subr.mxu0 %v432
  %2804 = vmatpush1.msra.mxu0 %v431
  %2805 = vmatprep.subr.mxu0 %v436
  %2806 = vmatpush1.msra.mxu0 %v435
  %2807 = vmatprep.subr.mxu0 %v440
  %2808 = vmatpush1.msra.mxu0 %v439
  %2809 = vmatprep.subr.mxu0 %v444
  %2810 = vmatpush1.msra.mxu0 %v443
  %2811 = vmatprep.subr.mxu0 %v448
  %2812 = vmatpush1.msra.mxu0 %v447
  %2813 = vmatprep.subr.mxu0 %v452
  %2814 = vmatpush1.msra.mxu0 %v451
  %2815 = vmatprep.subr.mxu0 %v456
  %2816 = vmatpush1.msra.mxu0 %v455
  %2817 = vmatprep.subr.mxu0 %v460
  %2818 = vmatpush1.msra.mxu0 %v459
  %2819 = vmatprep.subr.mxu0 %v464
  %2820 = vmatpush1.msra.mxu0 %v463
  %2821 = vmatprep.subr.mxu0 %v468
  %2822 = vmatpush1.msra.mxu0 %v467
  %2823 = vmatprep.subr.mxu0 %v472
  %2824 = vmatpush1.msra.mxu0 %v471
  %2825 = vmatprep.subr.mxu0 %v476
  %2826 = vmatpush1.msra.mxu0 %v475
  %2827 = vmatprep.subr.mxu0 %v480
  %2828 = vmatpush1.msra.mxu0 %v479
  %2829 = vmatprep.subr.mxu0 %v484
  %2830 = vmatpush1.msra.mxu0 %v483
  %2831 = vmatprep.subr.mxu0 %v488
  %2832 = vmatpush1.msra.mxu0 %v487
  %2833 = vmatprep.subr.mxu0 %v492
  %2834 = vmatpush1.msra.mxu0 %v491
  %2835 = vmatprep.subr.mxu0 %v496
  %2836 = vmatpush1.msra.mxu0 %v495
  %2837 = vmatprep.subr.mxu0 %v500
  %2838 = vmatpush1.msra.mxu0 %v499
  %2839 = vmatprep.subr.mxu0 %v504
  %2840 = vmatpush1.msra.mxu0 %v503
  %2841 = vmatprep.subr.mxu0 %v508
  %2842 = vmatpush1.msra.mxu0 %v507
  %2843 = vmatprep.subr.mxu0 %v512
  %2844 = vmatpush1.msra.mxu0 %v511
  %2845 = vmatprep.subr.mxu0 %v516
  %2846 = vmatpush1.msra.mxu0 %v515
  %2847 = vmatprep.subr.mxu0 %v520
  %2848 = vmatpush1.msra.mxu0 %v519
  %2849 = vmatprep.subr.mxu0 %v524
  %2850 = vmatpush1.msra.mxu0 %v523
  %2851 = vmatprep.subr.mxu0 %v528
  %2852 = vmatpush1.msra.mxu0 %v527
  %2853 = vmatprep.subr.mxu0 %v532
  %2854 = vmatpush1.msra.mxu0 %v531
  %2855 = vmatprep.subr.mxu0 %v536
  %2856 = vmatpush1.msra.mxu0 %v535
  %2857 = vmatprep.subr.mxu0 %v540
  %2858 = vmatpush1.msra.mxu0 %v539
  %2859 = vmatprep.subr.mxu0 %v544
  %2860 = vmatpush1.msra.mxu0 %v543
  %2861 = vmatprep.subr.mxu0 %v548
  %2862 = vmatpush1.msra.mxu0 %v547
  %2863 = vmatprep.subr.mxu0 %v552
  %2864 = vmatpush1.msra.mxu0 %v551
  %2865 = vmatprep.subr.mxu0 %v556
  %2866 = vmatpush1.msra.mxu0 %v555
  %2867 = vmatprep.mubr.f32.mxu0 %v27
  %2868 = vmatmul.mubr.f32.gmra.mrb[0].mxu0 %v26
  %v2869 = vpop.f32.mrb[0].mxu0
  %v2870 = vadd.f32 %v2799, %v2869
  %v2871 = vpop.f32.mrb[0].mxu0
  %v2872 = vadd.f32 %v2801, %v2871
  %2873 = vdwg.mxu0
  %2874 = vmatprep.subr.mxu0 %v560
  %2875 = vmatpush1.msra.mxu0 %v559
  %2876 = vmatprep.subr.mxu0 %v564
  %2877 = vmatpush1.msra.mxu0 %v563
  %2878 = vmatprep.subr.mxu0 %v568
  %2879 = vmatpush1.msra.mxu0 %v567
  %2880 = vmatprep.subr.mxu0 %v572
  %2881 = vmatpush1.msra.mxu0 %v571
  %2882 = vmatprep.subr.mxu0 %v576
  %2883 = vmatpush1.msra.mxu0 %v575
  %2884 = vmatprep.subr.mxu0 %v580
  %2885 = vmatpush1.msra.mxu0 %v579
  %2886 = vmatprep.subr.mxu0 %v584
  %2887 = vmatpush1.msra.mxu0 %v583
  %2888 = vmatprep.subr.mxu0 %v588
  %2889 = vmatpush1.msra.mxu0 %v587
  %2890 = vmatprep.subr.mxu0 %v592
  %2891 = vmatpush1.msra.mxu0 %v591
  %2892 = vmatprep.subr.mxu0 %v596
  %2893 = vmatpush1.msra.mxu0 %v595
  %2894 = vmatprep.subr.mxu0 %v600
  %2895 = vmatpush1.msra.mxu0 %v599
  %2896 = vmatprep.subr.mxu0 %v604
  %2897 = vmatpush1.msra.mxu0 %v603
  %2898 = vmatprep.subr.mxu0 %v608
  %2899 = vmatpush1.msra.mxu0 %v607
  %2900 = vmatprep.subr.mxu0 %v612
  %2901 = vmatpush1.msra.mxu0 %v611
  %2902 = vmatprep.subr.mxu0 %v616
  %2903 = vmatpush1.msra.mxu0 %v615
  %2904 = vmatprep.subr.mxu0 %v620
  %2905 = vmatpush1.msra.mxu0 %v619
  %2906 = vmatprep.subr.mxu0 %v624
  %2907 = vmatpush1.msra.mxu0 %v623
  %2908 = vmatprep.subr.mxu0 %v628
  %2909 = vmatpush1.msra.mxu0 %v627
  %2910 = vmatprep.subr.mxu0 %v632
  %2911 = vmatpush1.msra.mxu0 %v631
  %2912 = vmatprep.subr.mxu0 %v636
  %2913 = vmatpush1.msra.mxu0 %v635
  %2914 = vmatprep.subr.mxu0 %v640
  %2915 = vmatpush1.msra.mxu0 %v639
  %2916 = vmatprep.subr.mxu0 %v644
  %2917 = vmatpush1.msra.mxu0 %v643
  %2918 = vmatprep.subr.mxu0 %v648
  %2919 = vmatpush1.msra.mxu0 %v647
  %2920 = vmatprep.subr.mxu0 %v652
  %2921 = vmatpush1.msra.mxu0 %v651
  %2922 = vmatprep.subr.mxu0 %v656
  %2923 = vmatpush1.msra.mxu0 %v655
  %2924 = vmatprep.subr.mxu0 %v660
  %2925 = vmatpush1.msra.mxu0 %v659
  %2926 = vmatprep.subr.mxu0 %v664
  %2927 = vmatpush1.msra.mxu0 %v663
  %2928 = vmatprep.subr.mxu0 %v668
  %2929 = vmatpush1.msra.mxu0 %v667
  %2930 = vmatprep.subr.mxu0 %v672
  %2931 = vmatpush1.msra.mxu0 %v671
  %2932 = vmatprep.subr.mxu0 %v676
  %2933 = vmatpush1.msra.mxu0 %v675
  %2934 = vmatprep.subr.mxu0 %v680
  %2935 = vmatpush1.msra.mxu0 %v679
  %2936 = vmatprep.subr.mxu0 %v684
  %2937 = vmatpush1.msra.mxu0 %v683
  %2938 = vmatprep.mubr.f32.mxu0 %v29
  %2939 = vmatmul.mubr.f32.gmra.mrb[0].mxu0 %v28
  %v2940 = vpop.f32.mrb[0].mxu0
  %v2941 = vadd.f32 %v2870, %v2940
  %v2942 = vpop.f32.mrb[0].mxu0
  %v2943 = vadd.f32 %v2872, %v2942
  %2944 = vdwg.mxu0
  %2945 = vmatprep.subr.mxu0 %v688
  %2946 = vmatpush1.msra.mxu0 %v687
  %2947 = vmatprep.subr.mxu0 %v692
  %2948 = vmatpush1.msra.mxu0 %v691
  %2949 = vmatprep.subr.mxu0 %v696
  %2950 = vmatpush1.msra.mxu0 %v695
  %2951 = vmatprep.subr.mxu0 %v700
  %2952 = vmatpush1.msra.mxu0 %v699
  %2953 = vmatprep.subr.mxu0 %v704
  %2954 = vmatpush1.msra.mxu0 %v703
  %2955 = vmatprep.subr.mxu0 %v708
  %2956 = vmatpush1.msra.mxu0 %v707
  %2957 = vmatprep.subr.mxu0 %v712
  %2958 = vmatpush1.msra.mxu0 %v711
  %2959 = vmatprep.subr.mxu0 %v716
  %2960 = vmatpush1.msra.mxu0 %v715
  %2961 = vmatprep.subr.mxu0 %v720
  %2962 = vmatpush1.msra.mxu0 %v719
  %2963 = vmatprep.subr.mxu0 %v724
  %2964 = vmatpush1.msra.mxu0 %v723
  %2965 = vmatprep.subr.mxu0 %v728
  %2966 = vmatpush1.msra.mxu0 %v727
  %2967 = vmatprep.subr.mxu0 %v732
  %2968 = vmatpush1.msra.mxu0 %v731
  %2969 = vmatprep.subr.mxu0 %v736
  %2970 = vmatpush1.msra.mxu0 %v735
  %2971 = vmatprep.subr.mxu0 %v740
  %2972 = vmatpush1.msra.mxu0 %v739
  %2973 = vmatprep.subr.mxu0 %v744
  %2974 = vmatpush1.msra.mxu0 %v743
  %2975 = vmatprep.subr.mxu0 %v748
  %2976 = vmatpush1.msra.mxu0 %v747
  %2977 = vmatprep.subr.mxu0 %v752
  %2978 = vmatpush1.msra.mxu0 %v751
  %2979 = vmatprep.subr.mxu0 %v756
  %2980 = vmatpush1.msra.mxu0 %v755
  %2981 = vmatprep.subr.mxu0 %v760
  %2982 = vmatpush1.msra.mxu0 %v759
  %2983 = vmatprep.subr.mxu0 %v764
  %2984 = vmatpush1.msra.mxu0 %v763
  %2985 = vmatprep.subr.mxu0 %v768
  %2986 = vmatpush1.msra.mxu0 %v767
  %2987 = vmatprep.subr.mxu0 %v772
  %2988 = vmatpush1.msra.mxu0 %v771
  %2989 = vmatprep.subr.mxu0 %v776
  %2990 = vmatpush1.msra.mxu0 %v775
  %2991 = vmatprep.subr.mxu0 %v780
  %2992 = vmatpush1.msra.mxu0 %v779
  %2993 = vmatprep.subr.mxu0 %v784
  %2994 = vmatpush1.msra.mxu0 %v783
  %2995 = vmatprep.subr.mxu0 %v788
  %2996 = vmatpush1.msra.mxu0 %v787
  %2997 = vmatprep.subr.mxu0 %v792
  %2998 = vmatpush1.msra.mxu0 %v791
  %2999 = vmatprep.subr.mxu0 %v796
  %3000 = vmatpush1.msra.mxu0 %v795
  %3001 = vmatprep.subr.mxu0 %v800
  %3002 = vmatpush1.msra.mxu0 %v799
  %3003 = vmatprep.subr.mxu0 %v804
  %3004 = vmatpush1.msra.mxu0 %v803
  %3005 = vmatprep.subr.mxu0 %v808
  %3006 = vmatpush1.msra.mxu0 %v807
  %3007 = vmatprep.subr.mxu0 %v812
  %3008 = vmatpush1.msra.mxu0 %v811
  %3009 = vmatprep.mubr.f32.mxu0 %v31
  %3010 = vmatmul.mubr.f32.gmra.mrb[0].mxu0 %v30
  %v3011 = vpop.f32.mrb[0].mxu0
  %v3012 = vadd.f32 %v2941, %v3011
  %v3013 = vpop.f32.mrb[0].mxu0
  %v3014 = vadd.f32 %v2943, %v3013
  %3015 = vdwg.mxu0
  %3016 = vmatprep.subr.mxu0 %v816
  %3017 = vmatpush1.msra.mxu0 %v815
  %3018 = vmatprep.subr.mxu0 %v820
  %3019 = vmatpush1.msra.mxu0 %v819
  %3020 = vmatprep.subr.mxu0 %v824
  %3021 = vmatpush1.msra.mxu0 %v823
  %3022 = vmatprep.subr.mxu0 %v828
  %3023 = vmatpush1.msra.mxu0 %v827
  %3024 = vmatprep.subr.mxu0 %v832
  %3025 = vmatpush1.msra.mxu0 %v831
  %3026 = vmatprep.subr.mxu0 %v836
  %3027 = vmatpush1.msra.mxu0 %v835
  %3028 = vmatprep.subr.mxu0 %v840
  %3029 = vmatpush1.msra.mxu0 %v839
  %3030 = vmatprep.subr.mxu0 %v844
  %3031 = vmatpush1.msra.mxu0 %v843
  %3032 = vmatprep.subr.mxu0 %v848
  %3033 = vmatpush1.msra.mxu0 %v847
  %3034 = vmatprep.subr.mxu0 %v852
  %3035 = vmatpush1.msra.mxu0 %v851
  %3036 = vmatprep.subr.mxu0 %v856
  %3037 = vmatpush1.msra.mxu0 %v855
  %3038 = vmatprep.subr.mxu0 %v860
  %3039 = vmatpush1.msra.mxu0 %v859
  %3040 = vmatprep.subr.mxu0 %v864
  %3041 = vmatpush1.msra.mxu0 %v863
  %3042 = vmatprep.subr.mxu0 %v868
  %3043 = vmatpush1.msra.mxu0 %v867
  %3044 = vmatprep.subr.mxu0 %v872
  %3045 = vmatpush1.msra.mxu0 %v871
  %3046 = vmatprep.subr.mxu0 %v876
  %3047 = vmatpush1.msra.mxu0 %v875
  %3048 = vmatprep.subr.mxu0 %v880
  %3049 = vmatpush1.msra.mxu0 %v879
  %3050 = vmatprep.subr.mxu0 %v884
  %3051 = vmatpush1.msra.mxu0 %v883
  %3052 = vmatprep.subr.mxu0 %v888
  %3053 = vmatpush1.msra.mxu0 %v887
  %3054 = vmatprep.subr.mxu0 %v892
  %3055 = vmatpush1.msra.mxu0 %v891
  %3056 = vmatprep.subr.mxu0 %v896
  %3057 = vmatpush1.msra.mxu0 %v895
  %3058 = vmatprep.subr.mxu0 %v900
  %3059 = vmatpush1.msra.mxu0 %v899
  %3060 = vmatprep.subr.mxu0 %v904
  %3061 = vmatpush1.msra.mxu0 %v903
  %3062 = vmatprep.subr.mxu0 %v908
  %3063 = vmatpush1.msra.mxu0 %v907
  %3064 = vmatprep.subr.mxu0 %v912
  %3065 = vmatpush1.msra.mxu0 %v911
  %3066 = vmatprep.subr.mxu0 %v916
  %3067 = vmatpush1.msra.mxu0 %v915
  %3068 = vmatprep.subr.mxu0 %v920
  %3069 = vmatpush1.msra.mxu0 %v919
  %3070 = vmatprep.subr.mxu0 %v924
  %3071 = vmatpush1.msra.mxu0 %v923
  %3072 = vmatprep.subr.mxu0 %v928
  %3073 = vmatpush1.msra.mxu0 %v927
  %3074 = vmatprep.subr.mxu0 %v932
  %3075 = vmatpush1.msra.mxu0 %v931
  %3076 = vmatprep.subr.mxu0 %v936
  %3077 = vmatpush1.msra.mxu0 %v935
  %3078 = vmatprep.subr.mxu0 %v940
  %3079 = vmatpush1.msra.mxu0 %v939
  %3080 = vmatprep.mubr.f32.mxu0 %v33
  %3081 = vmatmul.mubr.f32.gmra.mrb[0].mxu0 %v32
  %v3082 = vpop.f32.mrb[0].mxu0
  %v3083 = vadd.f32 %v3012, %v3082
  %v3084 = vpop.f32.mrb[0].mxu0
  %v3085 = vadd.f32 %v3014, %v3084
  %3086 = vdwg.mxu0
  %3087 = vmatprep.subr.mxu0 %v944
  %3088 = vmatpush1.msra.mxu0 %v943
  %3089 = vmatprep.subr.mxu0 %v948
  %3090 = vmatpush1.msra.mxu0 %v947
  %3091 = vmatprep.subr.mxu0 %v952
  %3092 = vmatpush1.msra.mxu0 %v951
  %3093 = vmatprep.subr.mxu0 %v956
  %3094 = vmatpush1.msra.mxu0 %v955
  %3095 = vmatprep.subr.mxu0 %v960
  %3096 = vmatpush1.msra.mxu0 %v959
  %3097 = vmatprep.subr.mxu0 %v964
  %3098 = vmatpush1.msra.mxu0 %v963
  %3099 = vmatprep.subr.mxu0 %v968
  %3100 = vmatpush1.msra.mxu0 %v967
  %3101 = vmatprep.subr.mxu0 %v972
  %3102 = vmatpush1.msra.mxu0 %v971
  %3103 = vmatprep.subr.mxu0 %v976
  %3104 = vmatpush1.msra.mxu0 %v975
  %3105 = vmatprep.subr.mxu0 %v980
  %3106 = vmatpush1.msra.mxu0 %v979
  %3107 = vmatprep.subr.mxu0 %v984
  %3108 = vmatpush1.msra.mxu0 %v983
  %3109 = vmatprep.subr.mxu0 %v988
  %3110 = vmatpush1.msra.mxu0 %v987
  %3111 = vmatprep.subr.mxu0 %v992
  %3112 = vmatpush1.msra.mxu0 %v991
  %3113 = vmatprep.subr.mxu0 %v996
  %3114 = vmatpush1.msra.mxu0 %v995
  %3115 = vmatprep.subr.mxu0 %v1000
  %3116 = vmatpush1.msra.mxu0 %v999
  %3117 = vmatprep.subr.mxu0 %v1004
  %3118 = vmatpush1.msra.mxu0 %v1003
  %3119 = vmatprep.subr.mxu0 %v1008
  %3120 = vmatpush1.msra.mxu0 %v1007
  %3121 = vmatprep.subr.mxu0 %v1012
  %3122 = vmatpush1.msra.mxu0 %v1011
  %3123 = vmatprep.subr.mxu0 %v1016
  %3124 = vmatpush1.msra.mxu0 %v1015
  %3125 = vmatprep.subr.mxu0 %v1020
  %3126 = vmatpush1.msra.mxu0 %v1019
  %3127 = vmatprep.subr.mxu0 %v1024
  %3128 = vmatpush1.msra.mxu0 %v1023
  %3129 = vmatprep.subr.mxu0 %v1028
  %3130 = vmatpush1.msra.mxu0 %v1027
  %3131 = vmatprep.subr.mxu0 %v1032
  %3132 = vmatpush1.msra.mxu0 %v1031
  %3133 = vmatprep.subr.mxu0 %v1036
  %3134 = vmatpush1.msra.mxu0 %v1035
  %3135 = vmatprep.subr.mxu0 %v1040
  %3136 = vmatpush1.msra.mxu0 %v1039
  %3137 = vmatprep.subr.mxu0 %v1044
  %3138 = vmatpush1.msra.mxu0 %v1043
  %3139 = vmatprep.subr.mxu0 %v1048
  %3140 = vmatpush1.msra.mxu0 %v1047
  %3141 = vmatprep.subr.mxu0 %v1052
  %3142 = vmatpush1.msra.mxu0 %v1051
  %3143 = vmatprep.subr.mxu0 %v1056
  %3144 = vmatpush1.msra.mxu0 %v1055
  %3145 = vmatprep.subr.mxu0 %v1060
  %3146 = vmatpush1.msra.mxu0 %v1059
  %3147 = vmatprep.subr.mxu0 %v1064
  %3148 = vmatpush1.msra.mxu0 %v1063
  %3149 = vmatprep.subr.mxu0 %v1068
  %3150 = vmatpush1.msra.mxu0 %v1067
  %3151 = vmatprep.mubr.f32.mxu0 %v35
  %3152 = vmatmul.mubr.f32.gmra.mrb[0].mxu0 %v34
  %v3153 = vpop.f32.mrb[0].mxu0
  %v3154 = vadd.f32 %v3083, %v3153
  %v3155 = vpop.f32.mrb[0].mxu0
  %v3156 = vadd.f32 %v3085, %v3155
  %3157 = vdwg.mxu0
  %3158 = vmatprep.subr.mxu0 %v1072
  %3159 = vmatpush1.msra.mxu0 %v1071
  %3160 = vmatprep.subr.mxu0 %v1076
  %3161 = vmatpush1.msra.mxu0 %v1075
  %3162 = vmatprep.subr.mxu0 %v1080
  %3163 = vmatpush1.msra.mxu0 %v1079
  %3164 = vmatprep.subr.mxu0 %v1084
  %3165 = vmatpush1.msra.mxu0 %v1083
  %3166 = vmatprep.subr.mxu0 %v1088
  %3167 = vmatpush1.msra.mxu0 %v1087
  %3168 = vmatprep.subr.mxu0 %v1092
  %3169 = vmatpush1.msra.mxu0 %v1091
  %3170 = vmatprep.subr.mxu0 %v1096
  %3171 = vmatpush1.msra.mxu0 %v1095
  %3172 = vmatprep.subr.mxu0 %v1100
  %3173 = vmatpush1.msra.mxu0 %v1099
  %3174 = vmatprep.subr.mxu0 %v1104
  %3175 = vmatpush1.msra.mxu0 %v1103
  %3176 = vmatprep.subr.mxu0 %v1108
  %3177 = vmatpush1.msra.mxu0 %v1107
  %3178 = vmatprep.subr.mxu0 %v1112
  %3179 = vmatpush1.msra.mxu0 %v1111
  %3180 = vmatprep.subr.mxu0 %v1116
  %3181 = vmatpush1.msra.mxu0 %v1115
  %3182 = vmatprep.subr.mxu0 %v1120
  %3183 = vmatpush1.msra.mxu0 %v1119
  %3184 = vmatprep.subr.mxu0 %v1124
  %3185 = vmatpush1.msra.mxu0 %v1123
  %3186 = vmatprep.subr.mxu0 %v1128
  %3187 = vmatpush1.msra.mxu0 %v1127
  %3188 = vmatprep.subr.mxu0 %v1132
  %3189 = vmatpush1.msra.mxu0 %v1131
  %3190 = vmatprep.subr.mxu0 %v1136
  %3191 = vmatpush1.msra.mxu0 %v1135
  %3192 = vmatprep.subr.mxu0 %v1140
  %3193 = vmatpush1.msra.mxu0 %v1139
  %3194 = vmatprep.subr.mxu0 %v1144
  %3195 = vmatpush1.msra.mxu0 %v1143
  %3196 = vmatprep.subr.mxu0 %v1148
  %3197 = vmatpush1.msra.mxu0 %v1147
  %3198 = vmatprep.subr.mxu0 %v1152
  %3199 = vmatpush1.msra.mxu0 %v1151
  %3200 = vmatprep.subr.mxu0 %v1156
  %3201 = vmatpush1.msra.mxu0 %v1155
  %3202 = vmatprep.subr.mxu0 %v1160
  %3203 = vmatpush1.msra.mxu0 %v1159
  %3204 = vmatprep.subr.mxu0 %v1164
  %3205 = vmatpush1.msra.mxu0 %v1163
  %3206 = vmatprep.subr.mxu0 %v1168
  %3207 = vmatpush1.msra.mxu0 %v1167
  %3208 = vmatprep.subr.mxu0 %v1172
  %3209 = vmatpush1.msra.mxu0 %v1171
  %3210 = vmatprep.subr.mxu0 %v1176
  %3211 = vmatpush1.msra.mxu0 %v1175
  %3212 = vmatprep.subr.mxu0 %v1180
  %3213 = vmatpush1.msra.mxu0 %v1179
  %3214 = vmatprep.subr.mxu0 %v1184
  %3215 = vmatpush1.msra.mxu0 %v1183
  %3216 = vmatprep.subr.mxu0 %v1188
  %3217 = vmatpush1.msra.mxu0 %v1187
  %3218 = vmatprep.subr.mxu0 %v1192
  %3219 = vmatpush1.msra.mxu0 %v1191
  %3220 = vmatprep.subr.mxu0 %v1196
  %3221 = vmatpush1.msra.mxu0 %v1195
  %3222 = vmatprep.mubr.f32.mxu0 %v37
  %3223 = vmatmul.mubr.f32.gmra.mrb[0].mxu0 %v36
  %v3224 = vpop.f32.mrb[0].mxu0
  %v3225 = vadd.f32 %v3154, %v3224
  %v3226 = vpop.f32.mrb[0].mxu0
  %v3227 = vadd.f32 %v3156, %v3226
  %3228 = vdwg.mxu0
  %3229 = vmatprep.subr.mxu0 %v1200
  %3230 = vmatpush1.msra.mxu0 %v1199
  %3231 = vmatprep.subr.mxu0 %v1204
  %3232 = vmatpush1.msra.mxu0 %v1203
  %3233 = vmatprep.subr.mxu0 %v1208
  %3234 = vmatpush1.msra.mxu0 %v1207
  %3235 = vmatprep.subr.mxu0 %v1212
  %3236 = vmatpush1.msra.mxu0 %v1211
  %3237 = vmatprep.subr.mxu0 %v1216
  %3238 = vmatpush1.msra.mxu0 %v1215
  %3239 = vmatprep.subr.mxu0 %v1220
  %3240 = vmatpush1.msra.mxu0 %v1219
  %3241 = vmatprep.subr.mxu0 %v1224
  %3242 = vmatpush1.msra.mxu0 %v1223
  %3243 = vmatprep.subr.mxu0 %v1228
  %3244 = vmatpush1.msra.mxu0 %v1227
  %3245 = vmatprep.subr.mxu0 %v1232
  %3246 = vmatpush1.msra.mxu0 %v1231
  %3247 = vmatprep.subr.mxu0 %v1236
  %3248 = vmatpush1.msra.mxu0 %v1235
  %3249 = vmatprep.subr.mxu0 %v1240
  %3250 = vmatpush1.msra.mxu0 %v1239
  %3251 = vmatprep.subr.mxu0 %v1244
  %3252 = vmatpush1.msra.mxu0 %v1243
  %3253 = vmatprep.subr.mxu0 %v1248
  %3254 = vmatpush1.msra.mxu0 %v1247
  %3255 = vmatprep.subr.mxu0 %v1252
  %3256 = vmatpush1.msra.mxu0 %v1251
  %3257 = vmatprep.subr.mxu0 %v1256
  %3258 = vmatpush1.msra.mxu0 %v1255
  %3259 = vmatprep.subr.mxu0 %v1260
  %3260 = vmatpush1.msra.mxu0 %v1259
  %3261 = vmatprep.subr.mxu0 %v1264
  %3262 = vmatpush1.msra.mxu0 %v1263
  %3263 = vmatprep.subr.mxu0 %v1268
  %3264 = vmatpush1.msra.mxu0 %v1267
  %3265 = vmatprep.subr.mxu0 %v1272
  %3266 = vmatpush1.msra.mxu0 %v1271
  %3267 = vmatprep.subr.mxu0 %v1276
  %3268 = vmatpush1.msra.mxu0 %v1275
  %3269 = vmatprep.subr.mxu0 %v1280
  %3270 = vmatpush1.msra.mxu0 %v1279
  %3271 = vmatprep.subr.mxu0 %v1284
  %3272 = vmatpush1.msra.mxu0 %v1283
  %3273 = vmatprep.subr.mxu0 %v1288
  %3274 = vmatpush1.msra.mxu0 %v1287
  %3275 = vmatprep.subr.mxu0 %v1292
  %3276 = vmatpush1.msra.mxu0 %v1291
  %3277 = vmatprep.subr.mxu0 %v1296
  %3278 = vmatpush1.msra.mxu0 %v1295
  %3279 = vmatprep.subr.mxu0 %v1300
  %3280 = vmatpush1.msra.mxu0 %v1299
  %3281 = vmatprep.subr.mxu0 %v1304
  %3282 = vmatpush1.msra.mxu0 %v1303
  %3283 = vmatprep.subr.mxu0 %v1308
  %3284 = vmatpush1.msra.mxu0 %v1307
  %3285 = vmatprep.subr.mxu0 %v1312
  %3286 = vmatpush1.msra.mxu0 %v1311
  %3287 = vmatprep.subr.mxu0 %v1316
  %3288 = vmatpush1.msra.mxu0 %v1315
  %3289 = vmatprep.subr.mxu0 %v1320
  %3290 = vmatpush1.msra.mxu0 %v1319
  %3291 = vmatprep.subr.mxu0 %v1324
  %3292 = vmatpush1.msra.mxu0 %v1323
  %3293 = vmatprep.mubr.f32.mxu0 %v39
  %3294 = vmatmul.mubr.f32.gmra.mrb[0].mxu0 %v38
  %v3295 = vpop.f32.mrb[0].mxu0
  %v3296 = vadd.f32 %v3225, %v3295
  %v3297 = vpop.f32.mrb[0].mxu0
  %v3298 = vadd.f32 %v3227, %v3297
  %3299 = vdwg.mxu0
  %3300 = vmatprep.subr.mxu0 %v1328
  %3301 = vmatpush1.msra.mxu0 %v1327
  %3302 = vmatprep.subr.mxu0 %v1332
  %3303 = vmatpush1.msra.mxu0 %v1331
  %3304 = vmatprep.subr.mxu0 %v1336
  %3305 = vmatpush1.msra.mxu0 %v1335
  %3306 = vmatprep.subr.mxu0 %v1340
  %3307 = vmatpush1.msra.mxu0 %v1339
  %3308 = vmatprep.subr.mxu0 %v1344
  %3309 = vmatpush1.msra.mxu0 %v1343
  %3310 = vmatprep.subr.mxu0 %v1348
  %3311 = vmatpush1.msra.mxu0 %v1347
  %3312 = vmatprep.subr.mxu0 %v1352
  %3313 = vmatpush1.msra.mxu0 %v1351
  %3314 = vmatprep.subr.mxu0 %v1356
  %3315 = vmatpush1.msra.mxu0 %v1355
  %3316 = vmatprep.subr.mxu0 %v1360
  %3317 = vmatpush1.msra.mxu0 %v1359
  %3318 = vmatprep.subr.mxu0 %v1364
  %3319 = vmatpush1.msra.mxu0 %v1363
  %3320 = vmatprep.subr.mxu0 %v1368
  %3321 = vmatpush1.msra.mxu0 %v1367
  %3322 = vmatprep.subr.mxu0 %v1372
  %3323 = vmatpush1.msra.mxu0 %v1371
  %3324 = vmatprep.subr.mxu0 %v1376
  %3325 = vmatpush1.msra.mxu0 %v1375
  %3326 = vmatprep.subr.mxu0 %v1380
  %3327 = vmatpush1.msra.mxu0 %v1379
  %3328 = vmatprep.subr.mxu0 %v1384
  %3329 = vmatpush1.msra.mxu0 %v1383
  %3330 = vmatprep.subr.mxu0 %v1388
  %3331 = vmatpush1.msra.mxu0 %v1387
  %3332 = vmatprep.subr.mxu0 %v1392
  %3333 = vmatpush1.msra.mxu0 %v1391
  %3334 = vmatprep.subr.mxu0 %v1396
  %3335 = vmatpush1.msra.mxu0 %v1395
  %3336 = vmatprep.subr.mxu0 %v1400
  %3337 = vmatpush1.msra.mxu0 %v1399
  %3338 = vmatprep.subr.mxu0 %v1404
  %3339 = vmatpush1.msra.mxu0 %v1403
  %3340 = vmatprep.subr.mxu0 %v1408
  %3341 = vmatpush1.msra.mxu0 %v1407
  %3342 = vmatprep.subr.mxu0 %v1412
  %3343 = vmatpush1.msra.mxu0 %v1411
  %3344 = vmatprep.subr.mxu0 %v1416
  %3345 = vmatpush1.msra.mxu0 %v1415
  %3346 = vmatprep.subr.mxu0 %v1420
  %3347 = vmatpush1.msra.mxu0 %v1419
  %3348 = vmatprep.subr.mxu0 %v1424
  %3349 = vmatpush1.msra.mxu0 %v1423
  %3350 = vmatprep.subr.mxu0 %v1428
  %3351 = vmatpush1.msra.mxu0 %v1427
  %3352 = vmatprep.subr.mxu0 %v1432
  %3353 = vmatpush1.msra.mxu0 %v1431
  %3354 = vmatprep.subr.mxu0 %v1436
  %3355 = vmatpush1.msra.mxu0 %v1435
  %3356 = vmatprep.subr.mxu0 %v1440
  %3357 = vmatpush1.msra.mxu0 %v1439
  %3358 = vmatprep.subr.mxu0 %v1444
  %3359 = vmatpush1.msra.mxu0 %v1443
  %3360 = vmatprep.subr.mxu0 %v1448
  %3361 = vmatpush1.msra.mxu0 %v1447
  %3362 = vmatprep.subr.mxu0 %v1452
  %3363 = vmatpush1.msra.mxu0 %v1451
  %3364 = vmatprep.mubr.f32.mxu0 %v41
  %3365 = vmatmul.mubr.f32.gmra.mrb[0].mxu0 %v40
  %v3366 = vpop.f32.mrb[0].mxu0
  %v3367 = vadd.f32 %v3296, %v3366
  %v3368 = vpop.f32.mrb[0].mxu0
  %v3369 = vadd.f32 %v3298, %v3368
  %3370 = vdwg.mxu0
  %3371 = vmatprep.subr.mxu0 %v1456
  %3372 = vmatpush1.msra.mxu0 %v1455
  %3373 = vmatprep.subr.mxu0 %v1460
  %3374 = vmatpush1.msra.mxu0 %v1459
  %3375 = vmatprep.subr.mxu0 %v1464
  %3376 = vmatpush1.msra.mxu0 %v1463
  %3377 = vmatprep.subr.mxu0 %v1468
  %3378 = vmatpush1.msra.mxu0 %v1467
  %3379 = vmatprep.subr.mxu0 %v1472
  %3380 = vmatpush1.msra.mxu0 %v1471
  %3381 = vmatprep.subr.mxu0 %v1476
  %3382 = vmatpush1.msra.mxu0 %v1475
  %3383 = vmatprep.subr.mxu0 %v1480
  %3384 = vmatpush1.msra.mxu0 %v1479
  %3385 = vmatprep.subr.mxu0 %v1484
  %3386 = vmatpush1.msra.mxu0 %v1483
  %3387 = vmatprep.subr.mxu0 %v1488
  %3388 = vmatpush1.msra.mxu0 %v1487
  %3389 = vmatprep.subr.mxu0 %v1492
  %3390 = vmatpush1.msra.mxu0 %v1491
  %3391 = vmatprep.subr.mxu0 %v1496
  %3392 = vmatpush1.msra.mxu0 %v1495
  %3393 = vmatprep.subr.mxu0 %v1500
  %3394 = vmatpush1.msra.mxu0 %v1499
  %3395 = vmatprep.subr.mxu0 %v1504
  %3396 = vmatpush1.msra.mxu0 %v1503
  %3397 = vmatprep.subr.mxu0 %v1508
  %3398 = vmatpush1.msra.mxu0 %v1507
  %3399 = vmatprep.subr.mxu0 %v1512
  %3400 = vmatpush1.msra.mxu0 %v1511
  %3401 = vmatprep.subr.mxu0 %v1516
  %3402 = vmatpush1.msra.mxu0 %v1515
  %3403 = vmatprep.subr.mxu0 %v1520
  %3404 = vmatpush1.msra.mxu0 %v1519
  %3405 = vmatprep.subr.mxu0 %v1524
  %3406 = vmatpush1.msra.mxu0 %v1523
  %3407 = vmatprep.subr.mxu0 %v1528
  %3408 = vmatpush1.msra.mxu0 %v1527
  %3409 = vmatprep.subr.mxu0 %v1532
  %3410 = vmatpush1.msra.mxu0 %v1531
  %3411 = vmatprep.subr.mxu0 %v1536
  %3412 = vmatpush1.msra.mxu0 %v1535
  %3413 = vmatprep.subr.mxu0 %v1540
  %3414 = vmatpush1.msra.mxu0 %v1539
  %3415 = vmatprep.subr.mxu0 %v1544
  %3416 = vmatpush1.msra.mxu0 %v1543
  %3417 = vmatprep.subr.mxu0 %v1548
  %3418 = vmatpush1.msra.mxu0 %v1547
  %3419 = vmatprep.subr.mxu0 %v1552
  %3420 = vmatpush1.msra.mxu0 %v1551
  %3421 = vmatprep.subr.mxu0 %v1556
  %3422 = vmatpush1.msra.mxu0 %v1555
  %3423 = vmatprep.subr.mxu0 %v1560
  %3424 = vmatpush1.msra.mxu0 %v1559
  %3425 = vmatprep.subr.mxu0 %v1564
  %3426 = vmatpush1.msra.mxu0 %v1563
  %3427 = vmatprep.subr.mxu0 %v1568
  %3428 = vmatpush1.msra.mxu0 %v1567
  %3429 = vmatprep.subr.mxu0 %v1572
  %3430 = vmatpush1.msra.mxu0 %v1571
  %3431 = vmatprep.subr.mxu0 %v1576
  %3432 = vmatpush1.msra.mxu0 %v1575
  %3433 = vmatprep.subr.mxu0 %v1580
  %3434 = vmatpush1.msra.mxu0 %v1579
  %3435 = vmatprep.mubr.f32.mxu0 %v43
  %3436 = vmatmul.mubr.f32.gmra.mrb[0].mxu0 %v42
  %v3437 = vpop.f32.mrb[0].mxu0
  %v3438 = vadd.f32 %v3367, %v3437
  %v3439 = vpop.f32.mrb[0].mxu0
  %v3440 = vadd.f32 %v3369, %v3439
  %3441 = vdwg.mxu0
  %3442 = vmatprep.subr.mxu0 %v1584
  %3443 = vmatpush1.msra.mxu0 %v1583
  %3444 = vmatprep.subr.mxu0 %v1588
  %3445 = vmatpush1.msra.mxu0 %v1587
  %3446 = vmatprep.subr.mxu0 %v1592
  %3447 = vmatpush1.msra.mxu0 %v1591
  %3448 = vmatprep.subr.mxu0 %v1596
  %3449 = vmatpush1.msra.mxu0 %v1595
  %3450 = vmatprep.subr.mxu0 %v1600
  %3451 = vmatpush1.msra.mxu0 %v1599
  %3452 = vmatprep.subr.mxu0 %v1604
  %3453 = vmatpush1.msra.mxu0 %v1603
  %3454 = vmatprep.subr.mxu0 %v1608
  %3455 = vmatpush1.msra.mxu0 %v1607
  %3456 = vmatprep.subr.mxu0 %v1612
  %3457 = vmatpush1.msra.mxu0 %v1611
  %3458 = vmatprep.subr.mxu0 %v1616
  %3459 = vmatpush1.msra.mxu0 %v1615
  %3460 = vmatprep.subr.mxu0 %v1620
  %3461 = vmatpush1.msra.mxu0 %v1619
  %3462 = vmatprep.subr.mxu0 %v1624
  %3463 = vmatpush1.msra.mxu0 %v1623
  %3464 = vmatprep.subr.mxu0 %v1628
  %3465 = vmatpush1.msra.mxu0 %v1627
  %3466 = vmatprep.subr.mxu0 %v1632
  %3467 = vmatpush1.msra.mxu0 %v1631
  %3468 = vmatprep.subr.mxu0 %v1636
  %3469 = vmatpush1.msra.mxu0 %v1635
  %3470 = vmatprep.subr.mxu0 %v1640
  %3471 = vmatpush1.msra.mxu0 %v1639
  %3472 = vmatprep.subr.mxu0 %v1644
  %3473 = vmatpush1.msra.mxu0 %v1643
  %3474 = vmatprep.subr.mxu0 0.0
  %3475 = vmatpush1.msra.mxu0 0.0
  %3476 = vmatprep.subr.mxu0 0.0
  %3477 = vmatpush1.msra.mxu0 0.0
  %3478 = vmatprep.subr.mxu0 0.0
  %3479 = vmatpush1.msra.mxu0 0.0
  %3480 = vmatprep.subr.mxu0 0.0
  %3481 = vmatpush1.msra.mxu0 0.0
  %3482 = vmatprep.subr.mxu0 0.0
  %3483 = vmatpush1.msra.mxu0 0.0
  %3484 = vmatprep.subr.mxu0 0.0
  %3485 = vmatpush1.msra.mxu0 0.0
  %3486 = vmatprep.subr.mxu0 0.0
  %3487 = vmatpush1.msra.mxu0 0.0
  %3488 = vmatprep.subr.mxu0 0.0
  %3489 = vmatpush1.msra.mxu0 0.0
  %3490 = vmatprep.subr.mxu0 0.0
  %3491 = vmatpush1.msra.mxu0 0.0
  %3492 = vmatprep.subr.mxu0 0.0
  %3493 = vmatpush1.msra.mxu0 0.0
  %3494 = vmatprep.subr.mxu0 0.0
  %3495 = vmatpush1.msra.mxu0 0.0
  %3496 = vmatprep.subr.mxu0 0.0
  %3497 = vmatpush1.msra.mxu0 0.0
  %3498 = vmatprep.subr.mxu0 0.0
  %3499 = vmatpush1.msra.mxu0 0.0
  %3500 = vmatprep.subr.mxu0 0.0
  %3501 = vmatpush1.msra.mxu0 0.0
  %3502 = vmatprep.subr.mxu0 0.0
  %3503 = vmatpush1.msra.mxu0 0.0
  %3504 = vmatprep.subr.mxu0 0.0
  %3505 = vmatpush1.msra.mxu0 0.0
  %3506 = vmatprep.mubr.f32.mxu0 0.0
  %3507 = vmatmul.mubr.f32.gmra.mrb[0].mxu0 %v44
  %v3508 = vpop.f32.mrb[0].mxu0
  %v3509 = vadd.f32 %v3438, %v3508
  %v3510 = vpop.f32.mrb[0].mxu0
  %v3511 = vadd.f32 %v3440, %v3510
  %3512 = vdwg.mxu0
  %v3513 = vmax.f32 %v2586, 0.0
  %v3514 = vmax.f32 %v2588, 0.0
  %v3515 = vmax.f32 %v3509, 0.0
  %v3516 = vmax.f32 %v3511, 0.0
  %v3517 = vld [vmem:[%s3] sm:$0xff]
  %v3518 = vld [vmem:[%s3 + $0x8] sm:$0xff]
  %v3519 = vld [vmem:[%s3 + $0x10] sm:$0xff]
  %v3520 = vld [vmem:[%s3 + $0x18] sm:$0xff]
  %v3521 = vld [vmem:[%s3 + $0x20] sm:$0xff]
  %v3522 = vld [vmem:[%s3 + $0x28] sm:$0xff]
  %v3523 = vld [vmem:[%s3 + $0x30] sm:$0xff]
  %v3524 = vld [vmem:[%s3 + $0x38] sm:$0xff]
  %v3525 = vld [vmem:[%s3 + $0x40] sm:$0xff]
  %v3526 = vld [vmem:[%s3 + $0x48] sm:$0xff]
  %v3527 = vld [vmem:[%s3 + $0x50] sm:$0xff]
  %v3528 = vld [vmem:[%s3 + $0x58] sm:$0xff]
  %v3529 = vld [vmem:[%s3 + $0x60] sm:$0xff]
  %v3530 = vld [vmem:[%s3 + $0x68] sm:$0xff]
  %v3531 = vld [vmem:[%s3 + $0x70] sm:$0xff]
  %v3532 = vld [vmem:[%s3 + $0x78] sm:$0xff]
  %v3533 = vld [vmem:[%s3 + $0x80] sm:$0xff]
  %v3534 = vld [vmem:[%s3 + $0x88] sm:$0xff]
  %v3535 = vld [vmem:[%s3 + $0x90] sm:$0xff]
  %v3536 = vld [vmem:[%s3 + $0x98] sm:$0xff]
  %v3537 = vld [vmem:[%s3 + $0xa0] sm:$0xff]
  %v3538 = vld [vmem:[%s3 + $0xa8] sm:$0xff]
  %v3539 = vld [vmem:[%s3 + $0xb0] sm:$0xff]
  %v3540 = vld [vmem:[%s3 + $0xb8] sm:$0xff]
  %v3541 = vld [vmem:[%s3 + $0xc0] sm:$0xff]
  %v3542 = vld [vmem:[%s3 + $0xc8] sm:$0xff]
  %v3543 = vld [vmem:[%s3 + $0xd0] sm:$0xff]
  %v3544 = vld [vmem:[%s3 + $0xd8] sm:$0xff]
  %v3545 = vld [vmem:[%s3 + $0xe0] sm:$0xff]
  %v3546 = vld [vmem:[%s3 + $0xe8] sm:$0xff]
  %v3547 = vld [vmem:[%s3 + $0xf0] sm:$0xff]
  %v3548 = vld [vmem:[%s3 + $0xf8] sm:$0xff]
  %v3549 = vld [vmem:[%s3 + $0x100] sm:$0xff]
  %v3550 = vld [vmem:[%s3 + $0x108] sm:$0xff]
  %v3551 = vld [vmem:[%s3 + $0x110] sm:$0xff]
  %v3552 = vld [vmem:[%s3 + $0x118] sm:$0xff]
  %v3553 = vld [vmem:[%s3 + $0x120] sm:$0xff]
  %v3554 = vld [vmem:[%s3 + $0x128] sm:$0xff]
  %v3555 = vld [vmem:[%s3 + $0x130] sm:$0xff]
  %v3556 = vld [vmem:[%s3 + $0x138] sm:$0xff]
  %v3557 = vld [vmem:[%s3 + $0x140] sm:$0xff]
  %v3558 = vld [vmem:[%s3 + $0x148] sm:$0xff]
  %v3559 = vld [vmem:[%s3 + $0x150] sm:$0xff]
  %v3560 = vld [vmem:[%s3 + $0x158] sm:$0xff]
  %v3561 = vld [vmem:[%s3 + $0x160] sm:$0xff]
  %v3562 = vld [vmem:[%s3 + $0x168] sm:$0xff]
  %v3563 = vld [vmem:[%s3 + $0x170] sm:$0xff]
  %v3564 = vld [vmem:[%s3 + $0x178] sm:$0xff]
  %v3565 = vld [vmem:[%s3 + $0x180] sm:$0xff]
  %v3566 = vld [vmem:[%s3 + $0x188] sm:$0xff]
  %v3567 = vld [vmem:[%s3 + $0x190] sm:$0xff]
  %v3568 = vld [vmem:[%s3 + $0x198] sm:$0xff]
  %v3569 = vld [vmem:[%s3 + $0x1a0] sm:$0xff]
  %v3570 = vld [vmem:[%s3 + $0x1a8] sm:$0xff]
  %v3571 = vld [vmem:[%s3 + $0x1b0] sm:$0xff]
  %v3572 = vld [vmem:[%s3 + $0x1b8] sm:$0xff]
  %v3573 = vld [vmem:[%s3 + $0x1c0] sm:$0xff]
  %v3574 = vld [vmem:[%s3 + $0x1c8] sm:$0xff]
  %v3575 = vld [vmem:[%s3 + $0x1d0] sm:$0xff]
  %v3576 = vld [vmem:[%s3 + $0x1d8] sm:$0xff]
  %v3577 = vld [vmem:[%s3 + $0x1e0] sm:$0xff]
  %v3578 = vld [vmem:[%s3 + $0x1e8] sm:$0xff]
  %v3579 = vld [vmem:[%s3 + $0x1f0] sm:$0xff]
  %v3580 = vld [vmem:[%s3 + $0x1f8] sm:$0xff]
  %v3581 = vld [vmem:[%s4] sm:$0x1]
  %v3583 = vlaneseq
  %v3584 = vshrl.u32 %v3583, 7
  %v3585 = vsub.s32 0, %v3584
  %v3586 = vrot.slane %v3581, %v3585
  %3588 = vmatprep.subr.mxu0 0.0
  %3589 = vmatpush1.msra.mxu0 %v3517
  %3590 = vmatprep.subr.mxu0 0.0
  %3591 = vmatpush1.msra.mxu0 %v3518
  %3592 = vmatprep.subr.mxu0 0.0
  %3593 = vmatpush1.msra.mxu0 %v3519
  %3594 = vmatprep.subr.mxu0 0.0
  %3595 = vmatpush1.msra.mxu0 %v3520
  %3596 = vmatprep.subr.mxu0 0.0
  %3597 = vmatpush1.msra.mxu0 %v3521
  %3598 = vmatprep.subr.mxu0 0.0
  %3599 = vmatpush1.msra.mxu0 %v3522
  %3600 = vmatprep.subr.mxu0 0.0
  %3601 = vmatpush1.msra.mxu0 %v3523
  %3602 = vmatprep.subr.mxu0 0.0
  %3603 = vmatpush1.msra.mxu0 %v3524
  %3604 = vmatprep.subr.mxu0 0.0
  %3605 = vmatpush1.msra.mxu0 %v3525
  %3606 = vmatprep.subr.mxu0 0.0
  %3607 = vmatpush1.msra.mxu0 %v3526
  %3608 = vmatprep.subr.mxu0 0.0
  %3609 = vmatpush1.msra.mxu0 %v3527
  %3610 = vmatprep.subr.mxu0 0.0
  %3611 = vmatpush1.msra.mxu0 %v3528
  %3612 = vmatprep.subr.mxu0 0.0
  %3613 = vmatpush1.msra.mxu0 %v3529
  %3614 = vmatprep.subr.mxu0 0.0
  %3615 = vmatpush1.msra.mxu0 %v3530
  %3616 = vmatprep.subr.mxu0 0.0
  %3617 = vmatpush1.msra.mxu0 %v3531
  %3618 = vmatprep.subr.mxu0 0.0
  %3619 = vmatpush1.msra.mxu0 %v3532
  %3620 = vmatprep.subr.mxu0 0.0
  %3621 = vmatpush1.msra.mxu0 %v3533
  %3622 = vmatprep.subr.mxu0 0.0
  %3623 = vmatpush1.msra.mxu0 %v3534
  %3624 = vmatprep.subr.mxu0 0.0
  %3625 = vmatpush1.msra.mxu0 %v3535
  %3626 = vmatprep.subr.mxu0 0.0
  %3627 = vmatpush1.msra.mxu0 %v3536
  %3628 = vmatprep.subr.mxu0 0.0
  %3629 = vmatpush1.msra.mxu0 %v3537
  %3630 = vmatprep.subr.mxu0 0.0
  %3631 = vmatpush1.msra.mxu0 %v3538
  %3632 = vmatprep.subr.mxu0 0.0
  %3633 = vmatpush1.msra.mxu0 %v3539
  %3634 = vmatprep.subr.mxu0 0.0
  %3635 = vmatpush1.msra.mxu0 %v3540
  %3636 = vmatprep.subr.mxu0 0.0
  %3637 = vmatpush1.msra.mxu0 %v3541
  %3638 = vmatprep.subr.mxu0 0.0
  %3639 = vmatpush1.msra.mxu0 %v3542
  %3640 = vmatprep.subr.mxu0 0.0
  %3641 = vmatpush1.msra.mxu0 %v3543
  %3642 = vmatprep.subr.mxu0 0.0
  %3643 = vmatpush1.msra.mxu0 %v3544
  %3644 = vmatprep.subr.mxu0 0.0
  %3645 = vmatpush1.msra.mxu0 %v3545
  %3646 = vmatprep.subr.mxu0 0.0
  %3647 = vmatpush1.msra.mxu0 %v3546
  %3648 = vmatprep.subr.mxu0 0.0
  %3649 = vmatpush1.msra.mxu0 %v3547
  %3650 = vmatprep.subr.mxu0 0.0
  %3651 = vmatpush1.msra.mxu0 %v3548
  %3652 = vmatprep.mubr.f32.mxu0 %v3514
  %3653 = vmatmul.mubr.f32.gmra.mrb[0].mxu0 %v3513
  %v3654 = vpop.f32.mrb[0].mxu0
  %v3655 = vadd.f32 %v3586, %v3654
  %v3656 = vpop.f32.mrb[0].mxu0
  %3657 = vdwg.mxu0
  %3658 = vmatprep.subr.mxu0 0.0
  %3659 = vmatpush1.msra.mxu0 %v3549
  %3660 = vmatprep.subr.mxu0 0.0
  %3661 = vmatpush1.msra.mxu0 %v3550
  %3662 = vmatprep.subr.mxu0 0.0
  %3663 = vmatpush1.msra.mxu0 %v3551
  %3664 = vmatprep.subr.mxu0 0.0
  %3665 = vmatpush1.msra.mxu0 %v3552
  %3666 = vmatprep.subr.mxu0 0.0
  %3667 = vmatpush1.msra.mxu0 %v3553
  %3668 = vmatprep.subr.mxu0 0.0
  %3669 = vmatpush1.msra.mxu0 %v3554
  %3670 = vmatprep.subr.mxu0 0.0
  %3671 = vmatpush1.msra.mxu0 %v3555
  %3672 = vmatprep.subr.mxu0 0.0
  %3673 = vmatpush1.msra.mxu0 %v3556
  %3674 = vmatprep.subr.mxu0 0.0
  %3675 = vmatpush1.msra.mxu0 %v3557
  %3676 = vmatprep.subr.mxu0 0.0
  %3677 = vmatpush1.msra.mxu0 %v3558
  %3678 = vmatprep.subr.mxu0 0.0
  %3679 = vmatpush1.msra.mxu0 %v3559
  %3680 = vmatprep.subr.mxu0 0.0
  %3681 = vmatpush1.msra.mxu0 %v3560
  %3682 = vmatprep.subr.mxu0 0.0
  %3683 = vmatpush1.msra.mxu0 %v3561
  %3684 = vmatprep.subr.mxu0 0.0
  %3685 = vmatpush1.msra.mxu0 %v3562
  %3686 = vmatprep.subr.mxu0 0.0
  %3687 = vmatpush1.msra.mxu0 %v3563
  %3688 = vmatprep.subr.mxu0 0.0
  %3689 = vmatpush1.msra.mxu0 %v3564
  %3690 = vmatprep.subr.mxu0 0.0
  %3691 = vmatpush1.msra.mxu0 %v3565
  %3692 = vmatprep.subr.mxu0 0.0
  %3693 = vmatpush1.msra.mxu0 %v3566
  %3694 = vmatprep.subr.mxu0 0.0
  %3695 = vmatpush1.msra.mxu0 %v3567
  %3696 = vmatprep.subr.mxu0 0.0
  %3697 = vmatpush1.msra.mxu0 %v3568
  %3698 = vmatprep.subr.mxu0 0.0
  %3699 = vmatpush1.msra.mxu0 %v3569
  %3700 = vmatprep.subr.mxu0 0.0
  %3701 = vmatpush1.msra.mxu0 %v3570
  %3702 = vmatprep.subr.mxu0 0.0
  %3703 = vmatpush1.msra.mxu0 %v3571
  %3704 = vmatprep.subr.mxu0 0.0
  %3705 = vmatpush1.msra.mxu0 %v3572
  %3706 = vmatprep.subr.mxu0 0.0
  %3707 = vmatpush1.msra.mxu0 %v3573
  %3708 = vmatprep.subr.mxu0 0.0
  %3709 = vmatpush1.msra.mxu0 %v3574
  %3710 = vmatprep.subr.mxu0 0.0
  %3711 = vmatpush1.msra.mxu0 %v3575
  %3712 = vmatprep.subr.mxu0 0.0
  %3713 = vmatpush1.msra.mxu0 %v3576
  %3714 = vmatprep.subr.mxu0 0.0
  %3715 = vmatpush1.msra.mxu0 %v3577
  %3716 = vmatprep.subr.mxu0 0.0
  %3717 = vmatpush1.msra.mxu0 %v3578
  %3718 = vmatprep.subr.mxu0 0.0
  %3719 = vmatpush1.msra.mxu0 %v3579
  %3720 = vmatprep.subr.mxu0 0.0
  %3721 = vmatpush1.msra.mxu0 %v3580
  %3722 = vmatprep.mubr.f32.mxu0 %v3516
  %3723 = vmatmul.mubr.f32.gmra.mrb[0].mxu0 %v3515
  %v3724 = vpop.f32.mrb[0].mxu0
  %v3725 = vadd.f32 %v3655, %v3724
  %v3726 = vpop.f32.mrb[0].mxu0
  %3727 = vdwg.mxu0
  %3728 = vst [vmem:[%s5] sm:$0xff] %v3725
  // Predicated region
  $region22: #{dqn_forward.7} parent=0 // pred_check
    _
  $region23: #{dqn_forward.7} parent=0 // pred_check_branch
    %3730 = sbr.rel (0) target = $region25
  $region24: #{dqn_forward.7} parent=0 // pred_region
    _
  $region25: #{dqn_forward.7} parent=0 // pred_fallthru
    _
  // Predicated region
  $region26: #{dqn_forward.7} parent=0 // pred_check
    _
  $region27: #{dqn_forward.7} parent=0 // pred_check_branch
    %3732 = sbr.rel (0) target = $region29
  $region28: #{dqn_forward.7} parent=0 // pred_region
    _
  $region29: #{dqn_forward.7} parent=0 // pred_fallthru
    _

</llo_original>
